<compile_context>
chip_gen: v7x
topology: tpu7x:2x2x1
jax: 0.10.0
libtpu: 0.0.40
codegen_flags: <defaults>
</compile_context>

<pallas_src>
import math
from functools import partial

import jax
import jax.numpy as jnp
from jax import lax
from jax.experimental import pallas as pl
from jax.experimental.pallas import tpu as pltpu

BF16 = jnp.bfloat16
NEG_INF = -1e9


# ----------------------------- in-kernel helpers -----------------------------

def _mxu(a, b):
    """Matmul with bf16 operands, f32 accumulation."""
    return jnp.dot(a.astype(BF16), b.astype(BF16),
                   preferred_element_type=jnp.float32)


def _mxu_nt(a, b):
    """a @ b.T with bf16 operands, f32 accumulation (no explicit transpose)."""
    return lax.dot_general(a.astype(BF16), b.astype(BF16),
                           (((1,), (1,)), ((), ())),
                           preferred_element_type=jnp.float32)


def _softmax_rows(s):
    s = s - jnp.max(s, axis=-1, keepdims=True)
    p = jnp.exp(s)
    return p * pl.reciprocal(jnp.sum(p, axis=-1, keepdims=True), approx=True)


def _layer_norm(x, g, b, eps=1e-5):
    mu = jnp.mean(x, axis=-1, keepdims=True)
    xc = x - mu
    var = jnp.mean(xc * xc, axis=-1, keepdims=True)
    return xc * lax.rsqrt(var + eps) * g + b


# ----------------------------- Pallas kernels -----------------------------

def _frontend_kernel(lag_ref, wc_ref, bc_ref, bases_ref, bd_ref, lw_ref,
                     rb_ref, pe_ref, o_ref, *, num_bases):
    """Causal conv (+tanh) -> basis RelGraphConv -> +positional encoding."""
    # causal Conv1d as lag matmul + tanh
    feat = jnp.tanh(_mxu(lag_ref[...], wc_ref[...]) + bc_ref[...])      # (NT, C)
    # RelGraphConv: self-loop + bias ...
    acc = _mxu(feat, lw_ref[...]) + rb_ref[...]                         # (NT, C)
    # ... plus per-basis aggregation  sum_b BD_b @ (feat @ V_b)
    for b in range(num_bases):
        acc = acc + _mxu(bd_ref[b], _mxu(feat, bases_ref[b]))
    o_ref[...] = acc + pe_ref[...]


def _encoder_kernel(x_ref, bias_ref, ipw_ref, ipb_ref, opw_ref, opb_ref,
                    w1_ref, b1_ref, w2_ref, b2_ref,
                    ln1g_ref, ln1b_ref, ln2g_ref, ln2b_ref, o_ref,
                    *, n_head, seq_len):
    """Post-norm TransformerEncoderLayer + temporal mean for one node block."""
    xf = x_ref[...]                                   # (BR, C) rows = (node, time)
    br, d = xf.shape
    dh = d // n_head
    scale = 1.0 / math.sqrt(dh)
    bias = bias_ref[...]                              # (BR, BR) block-diag mask

    qkv = _mxu(xf, ipw_ref[...]) + ipb_ref[...]       # (BR, 3C)
    heads = []
    for h in range(n_head):
        qh = qkv[:, h * dh:(h + 1) * dh]
        kh = qkv[:, d + h * dh:d + (h + 1) * dh]
        vh = qkv[:, 2 * d + h * dh:2 * d + (h + 1) * dh]
        s = _mxu_nt(qh, kh) * scale + bias            # cross-node entries -> -1e9
        p = _softmax_rows(s)
        heads.append(_mxu(p, vh))                     # (BR, dh)
    attn = jnp.concatenate(heads, axis=-1)            # (BR, C)
    sa = _mxu(attn, opw_ref[...]) + opb_ref[...]

    x1 = _layer_norm(xf + sa, ln1g_ref[...], ln1b_ref[...])             # norm1
    hid = jnp.maximum(_mxu(x1, w1_ref[...]) + b1_ref[...], 0.0)         # FFN relu
    ff = _mxu(hid, w2_ref[...]) + b2_ref[...]
    x2 = _layer_norm(x1 + ff, ln2g_ref[...], ln2b_ref[...])             # norm2

    n_blk = br // seq_len                             # temporal mean per node
    o_ref[...] = jnp.mean(x2.reshape(n_blk, seq_len, d), axis=1)


def _tail_kernel(x1_ref, xu_ref, ubases_ref, uadj_ref, ulw_ref, ub_ref,
                 wq_ref, wk_ref, wv_ref, ow_ref, ob_ref, o_ref,
                 *, num_bases, num_nodes, dim_k):
    """Urban RelGraphConv -> concat -> SelfAttention -> output Linear."""
    xu = xu_ref[...]                                  # (Nu, Cu)
    agg = _mxu(xu, ulw_ref[...]) + ub_ref[...]
    for b in range(num_bases):
        agg = agg + _mxu(uadj_ref[b], _mxu(xu, ubases_ref[b]))
    cat = jnp.concatenate([x1_ref[...], agg[:num_nodes]], axis=-1)      # (N, C+Cu)
    q = _mxu(cat, wq_ref[...])
    k = _mxu(cat, wk_ref[...])
    v = _mxu(cat, wv_ref[...])
    p = _softmax_rows(_mxu_nt(q, k) * (1.0 / math.sqrt(dim_k)))
    att = _mxu(p, v)
    o_ref[...] = _mxu(att, ow_ref[...]) + ob_ref[...]                   # (N, out)


# ----------------------------- pallas_call wrappers -----------------------------

def _bcast_spec(shape):
    """Full-array block whose index does not depend on the grid step."""
    zeros = (0,) * len(shape)
    return pl.BlockSpec(tuple(shape), lambda i, _z=zeros: _z)


def frontend_call(lag, wc, bc, bases, bd, loop_w, rg_bias, pe, *, num_bases):
    nt, c = pe.shape
    args = (lag, wc, bc, bases, bd, loop_w, rg_bias, pe)
    return pl.pallas_call(
        partial(_frontend_kernel, num_bases=num_bases),
        out_shape=jax.ShapeDtypeStruct((nt, c), jnp.float32),
        grid=(1,),
        in_specs=[_bcast_spec(a.shape) for a in args],
        out_specs=_bcast_spec((nt, c)),
        compiler_params=pltpu.CompilerParams(dimension_semantics=("arbitrary",)),
    )(*[a.astype(jnp.float32) for a in args])


def encoder_call(x, attn_bias, ipw, ipb, opw, opb, w1, b1, w2, b2,
                 ln1g, ln1b, ln2g, ln2b, *, n_head, seq_len, n_nodes, nsplit):
    nt, d = x.shape
    br = nt // nsplit                 # rows per grid step (contiguous node block)
    nblk = n_nodes // nsplit
    args = (x, attn_bias, ipw, ipb, opw, opb, w1, b1, w2, b2,
            ln1g, ln1b, ln2g, ln2b)
    in_specs = [pl.BlockSpec((br, d), lambda i: (i, 0))]
    in_specs += [_bcast_spec(a.shape) for a in args[1:]]
    return pl.pallas_call(
        partial(_encoder_kernel, n_head=n_head, seq_len=seq_len),
        out_shape=jax.ShapeDtypeStruct((n_nodes, d), jnp.float32),
        grid=(nsplit,),
        in_specs=in_specs,
        out_specs=pl.BlockSpec((nblk, d), lambda i: (i, 0)),
        compiler_params=pltpu.CompilerParams(dimension_semantics=("parallel",)),
    )(*[a.astype(jnp.float32) for a in args])


def tail_call(x1, xu, ubases, uadj, uloop, ubias, wq, wk, wv, ow, ob,
              *, num_bases, num_nodes, dim_k):
    out_dim = ow.shape[1]
    args = (x1, xu, ubases, uadj, uloop, ubias, wq, wk, wv, ow, ob)
    return pl.pallas_call(
        partial(_tail_kernel, num_bases=num_bases, num_nodes=num_nodes,
                dim_k=dim_k),
        out_shape=jax.ShapeDtypeStruct((num_nodes, out_dim), jnp.float32),
        grid=(1,),
        in_specs=[_bcast_spec(a.shape) for a in args],
        out_specs=_bcast_spec((num_nodes, out_dim)),
        compiler_params=pltpu.CompilerParams(dimension_semantics=("arbitrary",)),
    )(*[a.astype(jnp.float32) for a in args])


# ----------------------------- XLA glue (structure only) -----------------------------

def _adjacency(src, dst, etype, coeff, num_nodes):
    """A_b[n, m] = sum_{e: dst=n, src=m} coeff[etype_e, b]  -> (nb, N, N)."""
    ce = coeff[etype]                                            # (E, nb)
    oh_src = jax.nn.one_hot(src, num_nodes, dtype=jnp.float32)   # (E, N)
    oh_dst = jax.nn.one_hot(dst, num_nodes, dtype=jnp.float32)   # (E, N)
    return jnp.einsum('en,eb,em->bnm', oh_dst, ce, oh_src)


def positional_encoding(max_len, d_model):
    pos = jnp.arange(max_len, dtype=jnp.float32)[:, None]
    div = jnp.exp(jnp.arange(0, d_model, 2, dtype=jnp.float32)
                  * (-math.log(10000.0) / d_model))
    pe = jnp.zeros((max_len, d_model), jnp.float32)
    pe = pe.at[:, 0::2].set(jnp.sin(pos * div))
    pe = pe.at[:, 1::2].set(jnp.cos(pos * div))
    return pe


# ----------------------------- forward pass -----------------------------

def mrkgcn_forward(params, x, src_base, dst_base, etype_base,
                   x_urban, src_urban, dst_urban, etype_urban, *, n_head=8):
    batch, num_nodes, seq_len = x.shape        # torch concat requires batch == 1
    bn = batch * num_nodes
    t = seq_len
    nt = bn * t
    c = params["conv_w"].shape[0]
    k = params["conv_w"].shape[-1]
    nb = params["b_bases"].shape[0]

    # --- lag matrix in (node, time) row order; pad tiny contraction dim 3 -> 8
    xr = x.reshape(bn, t)
    pad_x = jnp.pad(xr, ((0, 0), (k - 1, 0)))
    lag = jnp.stack([pad_x[:, j:j + t] for j in range(k)], axis=-1)   # (BN, T, K)
    kpad = 8
    lag2d = jnp.pad(lag.reshape(nt, k), ((0, 0), (0, kpad - k)))
    wc = jnp.pad(params["conv_w"][:, 0, :].T, ((0, kpad - k), (0, 0)))  # (8, C)

    # --- base-graph basis adjacency, block-diagonal over time (node-major rows)
    adj = _adjacency(src_base, dst_base, etype_base, params["b_coeff"], bn)
    bd = jnp.einsum('bnm,tu->bntmu', adj,
                    jnp.eye(t, dtype=jnp.float32)).reshape(nb, nt, nt)

    pe_slab = jnp.tile(positional_encoding(100, c)[:t], (bn, 1))        # (NT, C)

    # --- K1: conv + tanh + base RGCN + PE  -> (NT, C), rows ordered (node, time)
    x1 = frontend_call(lag2d, wc, params["conv_b"].reshape(1, c),
                       params["b_bases"], bd, params["b_loop"],
                       params["b_bias"].reshape(1, c), pe_slab, num_bases=nb)

    # --- K2: transformer encoder layer + temporal mean, split over node halves
    nsplit = 2 if bn % 2 == 0 else 1
    br = (bn // nsplit) * t
    ridx = jnp.arange(br) // t                       # node id of each row in block
    attn_bias = jnp.where(ridx[:, None] == ridx[None, :], 0.0,
                          NEG_INF).astype(jnp.float32)
    enc = params["enc"]
    x1 = encoder_call(
        x1, attn_bias,
        enc["in_proj_w"].T, enc["in_proj_b"].reshape(1, -1),
        enc["out_proj_w"].T, enc["out_proj_b"].reshape(1, -1),
        enc["ffn_w1"].T, enc["ffn_b1"].reshape(1, -1),
        enc["ffn_w2"].T, enc["ffn_b2"].reshape(1, -1),
        enc["ln1_g"].reshape(1, -1), enc["ln1_b"].reshape(1, -1),
        enc["ln2_g"].reshape(1, -1), enc["ln2_b"].reshape(1, -1),
        n_head=n_head, seq_len=t, n_nodes=bn, nsplit=nsplit)            # (BN, C)

    # --- K3: urban RGCN + concat + SelfAttention + output Linear
    nu = x_urban.shape[0]
    uadj = _adjacency(src_urban, dst_urban, etype_urban, params["u_coeff"], nu)
    out = tail_call(x1, x_urban, params["u_bases"], uadj, params["u_loop"],
                    params["u_bias"].reshape(1, -1),
                    params["att_wq"].T, params["att_wk"].T, params["att_wv"].T,
                    params["out_w"].T, params["out_b"].reshape(1, -1),
                    num_bases=nb, num_nodes=bn,
                    dim_k=params["att_wq"].shape[0])
    return out                                                           # (N, out)


# ----------------------------- parameter init -----------------------------

def init_params(key, *, base_emb=64, urban_emb=32, num_rel=34, num_bases=4,
                dim_k=32, dim_v=16, out_dim=1, kernel_size=3, dim_ff=2048):
    keys = iter(jax.random.split(key, 40))

    def w(shape, scale=0.05):
        return (scale * jax.random.normal(next(keys), shape)).astype(jnp.float32)

    return {
        "conv_w": w((base_emb, 1, kernel_size)),
        "conv_b": w((base_emb,)),
        "b_bases": w((num_bases, base_emb, base_emb)),
        "b_coeff": w((num_rel, num_bases), scale=0.5),
        "b_loop": w((base_emb, base_emb)),
        "b_bias": w((base_emb,)),
        "u_bases": w((num_bases, urban_emb, urban_emb)),
        "u_coeff": w((num_rel, num_bases), scale=0.5),
        "u_loop": w((urban_emb, urban_emb)),
        "u_bias": w((urban_emb,)),
        "enc": {
            "in_proj_w": w((3 * base_emb, base_emb)),
            "in_proj_b": jnp.zeros((3 * base_emb,), jnp.float32),
            "out_proj_w": w((base_emb, base_emb)),
            "out_proj_b": jnp.zeros((base_emb,), jnp.float32),
            "ln1_g": jnp.ones((base_emb,), jnp.float32),
            "ln1_b": jnp.zeros((base_emb,), jnp.float32),
            "ln2_g": jnp.ones((base_emb,), jnp.float32),
            "ln2_b": jnp.zeros((base_emb,), jnp.float32),
            "ffn_w1": w((dim_ff, base_emb)),
            "ffn_b1": jnp.zeros((dim_ff,), jnp.float32),
            "ffn_w2": w((base_emb, dim_ff)),
            "ffn_b2": jnp.zeros((base_emb,), jnp.float32),
        },
        "att_wq": w((dim_k, base_emb + urban_emb)),
        "att_wk": w((dim_k, base_emb + urban_emb)),
        "att_wv": w((dim_v, base_emb + urban_emb)),
        "out_w": w((out_dim, dim_v)),
        "out_b": jnp.zeros((out_dim,), jnp.float32),
    }


# ----------------------------- main -----------------------------

if __name__ == "__main__":
    key = jax.random.PRNGKey(0)
    kp, kx, ku, k1, k2, k3, k4, k5, k6 = jax.random.split(key, 9)

    num_nodes, seq_len = 16, 12
    num_urban, num_rel = 24, 34
    E_base, E_urban = 48, 64

    params = init_params(kp)
    x = jax.random.normal(kx, (1, num_nodes, seq_len), jnp.float32)
    x_urban = jax.random.normal(ku, (num_urban, 32), jnp.float32)
    src_base = jax.random.randint(k1, (E_base,), 0, num_nodes, jnp.int32)
    dst_base = jax.random.randint(k2, (E_base,), 0, num_nodes, jnp.int32)
    etype_base = jax.random.randint(k3, (E_base,), 0, num_rel, jnp.int32)
    src_urban = jax.random.randint(k4, (E_urban,), 0, num_urban, jnp.int32)
    dst_urban = jax.random.randint(k5, (E_urban,), 0, num_urban, jnp.int32)
    etype_urban = jax.random.randint(k6, (E_urban,), 0, num_rel, jnp.int32)

    fwd = jax.jit(partial(mrkgcn_forward, n_head=8))
    out = fwd(params, x, src_base, dst_base, etype_base,
              x_urban, src_urban, dst_urban, etype_urban)
    out = jax.block_until_ready(out)

    assert out.shape == (num_nodes, 1), out.shape
    assert bool(jnp.all(jnp.isfinite(out)))
    print("KERNEL_OK")
</pallas_src>

<mosaic_0001>
module attributes {stable_mosaic.version = 11 : i64} {
  func.func @_frontend_kernel(%arg0: i32, %arg1: memref<192x8xf32, #tpu.memory_space<vmem>>, %arg2: memref<8x64xf32, #tpu.memory_space<vmem>>, %arg3: memref<1x64xf32, #tpu.memory_space<vmem>>, %arg4: memref<4x64x64xf32, #tpu.memory_space<vmem>>, %arg5: memref<4x192x192xf32, #tpu.memory_space<vmem>>, %arg6: memref<64x64xf32, #tpu.memory_space<vmem>>, %arg7: memref<1x64xf32, #tpu.memory_space<vmem>>, %arg8: memref<192x64xf32, #tpu.memory_space<vmem>>, %arg9: memref<192x64xf32, #tpu.memory_space<vmem>>) attributes {dimension_semantics = [#tpu.dimension_semantics<arbitrary>], iteration_bounds = array<i64: 1>, scalar_prefetch = 0 : i64, scratch_operands = 0 : i64, tpu.core_type = #tpu.core_type<tc>, window_params = [{pipeline_mode = #tpu.pipeline_mode<synchronous>, transform_indices = @transform_0, window_bounds = array<i64: 192, 8>}, {pipeline_mode = #tpu.pipeline_mode<synchronous>, transform_indices = @transform_1, window_bounds = array<i64: 8, 64>}, {pipeline_mode = #tpu.pipeline_mode<synchronous>, transform_indices = @transform_2, window_bounds = array<i64: 1, 64>}, {pipeline_mode = #tpu.pipeline_mode<synchronous>, transform_indices = @transform_3, window_bounds = array<i64: 4, 64, 64>}, {pipeline_mode = #tpu.pipeline_mode<synchronous>, transform_indices = @transform_4, window_bounds = array<i64: 4, 192, 192>}, {pipeline_mode = #tpu.pipeline_mode<synchronous>, transform_indices = @transform_5, window_bounds = array<i64: 64, 64>}, {pipeline_mode = #tpu.pipeline_mode<synchronous>, transform_indices = @transform_6, window_bounds = array<i64: 1, 64>}, {pipeline_mode = #tpu.pipeline_mode<synchronous>, transform_indices = @transform_7, window_bounds = array<i64: 192, 64>}, {pipeline_mode = #tpu.pipeline_mode<synchronous>, transform_indices = @transform_8, window_bounds = array<i64: 192, 64>}]} {
    %c0 = arith.constant 0 : index
    %c0_0 = arith.constant 0 : index
    %0 = vector.load %arg1[%c0, %c0_0] : memref<192x8xf32, #tpu.memory_space<vmem>>, vector<192x8xf32>
    %c0_1 = arith.constant 0 : index
    %c0_2 = arith.constant 0 : index
    %1 = vector.load %arg2[%c0_1, %c0_2] : memref<8x64xf32, #tpu.memory_space<vmem>>, vector<8x64xf32>
    %2 = arith.truncf %0 : vector<192x8xf32> to vector<192x8xbf16>
    %3 = arith.truncf %1 : vector<8x64xf32> to vector<8x64xbf16>
    %cst = arith.constant dense<0.000000e+00> : vector<192x64xf32>
    %4 = tpu.matmul %2, %3, %cst {dimension_numbers = #tpu.dot_dimension_numbers<[1], [0], [0], [1], [0, 0, 1, 1], [], []>} : vector<192x8xbf16>, vector<8x64xbf16>, vector<192x64xf32> -> vector<192x64xf32>
    %c0_3 = arith.constant 0 : index
    %c0_4 = arith.constant 0 : index
    %5 = vector.load %arg3[%c0_3, %c0_4] : memref<1x64xf32, #tpu.memory_space<vmem>>, vector<1x64xf32>
    %6 = vector.broadcast %5 : vector<1x64xf32> to vector<192x64xf32>
    %7 = arith.addf %4, %6 : vector<192x64xf32>
    %8 = math.tanh %7 : vector<192x64xf32>
    %c0_5 = arith.constant 0 : index
    %c0_6 = arith.constant 0 : index
    %9 = vector.load %arg6[%c0_5, %c0_6] : memref<64x64xf32, #tpu.memory_space<vmem>>, vector<64x64xf32>
    %10 = arith.truncf %8 : vector<192x64xf32> to vector<192x64xbf16>
    %11 = arith.truncf %9 : vector<64x64xf32> to vector<64x64xbf16>
    %cst_7 = arith.constant dense<0.000000e+00> : vector<192x64xf32>
    %12 = tpu.matmul %10, %11, %cst_7 {dimension_numbers = #tpu.dot_dimension_numbers<[1], [0], [0], [1], [0, 0, 1, 1], [], []>} : vector<192x64xbf16>, vector<64x64xbf16>, vector<192x64xf32> -> vector<192x64xf32>
    %c0_8 = arith.constant 0 : index
    %c0_9 = arith.constant 0 : index
    %13 = vector.load %arg7[%c0_8, %c0_9] : memref<1x64xf32, #tpu.memory_space<vmem>>, vector<1x64xf32>
    %14 = vector.broadcast %13 : vector<1x64xf32> to vector<192x64xf32>
    %15 = arith.addf %12, %14 : vector<192x64xf32>
    %c0_10 = arith.constant 0 : index
    %c0_11 = arith.constant 0 : index
    %c0_12 = arith.constant 0 : index
    %16 = vector.load %arg5[%c0_10, %c0_11, %c0_12] : memref<4x192x192xf32, #tpu.memory_space<vmem>>, vector<1x192x192xf32>
    %17 = vector.shape_cast %16 : vector<1x192x192xf32> to vector<192x192xf32>
    %c0_13 = arith.constant 0 : index
    %c0_14 = arith.constant 0 : index
    %c0_15 = arith.constant 0 : index
    %18 = vector.load %arg4[%c0_13, %c0_14, %c0_15] : memref<4x64x64xf32, #tpu.memory_space<vmem>>, vector<1x64x64xf32>
    %19 = vector.shape_cast %18 : vector<1x64x64xf32> to vector<64x64xf32>
    %20 = arith.truncf %8 : vector<192x64xf32> to vector<192x64xbf16>
    %21 = arith.truncf %19 : vector<64x64xf32> to vector<64x64xbf16>
    %cst_16 = arith.constant dense<0.000000e+00> : vector<192x64xf32>
    %22 = tpu.matmul %20, %21, %cst_16 {dimension_numbers = #tpu.dot_dimension_numbers<[1], [0], [0], [1], [0, 0, 1, 1], [], []>} : vector<192x64xbf16>, vector<64x64xbf16>, vector<192x64xf32> -> vector<192x64xf32>
    %23 = arith.truncf %17 : vector<192x192xf32> to vector<192x192xbf16>
    %24 = arith.truncf %22 : vector<192x64xf32> to vector<192x64xbf16>
    %cst_17 = arith.constant dense<0.000000e+00> : vector<192x64xf32>
    %25 = tpu.matmul %23, %24, %cst_17 {dimension_numbers = #tpu.dot_dimension_numbers<[1], [0], [0], [1], [0, 0, 1, 1], [], []>} : vector<192x192xbf16>, vector<192x64xbf16>, vector<192x64xf32> -> vector<192x64xf32>
    %26 = arith.addf %15, %25 : vector<192x64xf32>
    %c1 = arith.constant 1 : index
    %c0_18 = arith.constant 0 : index
    %c0_19 = arith.constant 0 : index
    %27 = vector.load %arg5[%c1, %c0_18, %c0_19] : memref<4x192x192xf32, #tpu.memory_space<vmem>>, vector<1x192x192xf32>
    %28 = vector.shape_cast %27 : vector<1x192x192xf32> to vector<192x192xf32>
    %c1_20 = arith.constant 1 : index
    %c0_21 = arith.constant 0 : index
    %c0_22 = arith.constant 0 : index
    %29 = vector.load %arg4[%c1_20, %c0_21, %c0_22] : memref<4x64x64xf32, #tpu.memory_space<vmem>>, vector<1x64x64xf32>
    %30 = vector.shape_cast %29 : vector<1x64x64xf32> to vector<64x64xf32>
    %31 = arith.truncf %8 : vector<192x64xf32> to vector<192x64xbf16>
    %32 = arith.truncf %30 : vector<64x64xf32> to vector<64x64xbf16>
    %cst_23 = arith.constant dense<0.000000e+00> : vector<192x64xf32>
    %33 = tpu.matmul %31, %32, %cst_23 {dimension_numbers = #tpu.dot_dimension_numbers<[1], [0], [0], [1], [0, 0, 1, 1], [], []>} : vector<192x64xbf16>, vector<64x64xbf16>, vector<192x64xf32> -> vector<192x64xf32>
    %34 = arith.truncf %28 : vector<192x192xf32> to vector<192x192xbf16>
    %35 = arith.truncf %33 : vector<192x64xf32> to vector<192x64xbf16>
    %cst_24 = arith.constant dense<0.000000e+00> : vector<192x64xf32>
    %36 = tpu.matmul %34, %35, %cst_24 {dimension_numbers = #tpu.dot_dimension_numbers<[1], [0], [0], [1], [0, 0, 1, 1], [], []>} : vector<192x192xbf16>, vector<192x64xbf16>, vector<192x64xf32> -> vector<192x64xf32>
    %37 = arith.addf %26, %36 : vector<192x64xf32>
    %c2 = arith.constant 2 : index
    %c0_25 = arith.constant 0 : index
    %c0_26 = arith.constant 0 : index
    %38 = vector.load %arg5[%c2, %c0_25, %c0_26] : memref<4x192x192xf32, #tpu.memory_space<vmem>>, vector<1x192x192xf32>
    %39 = vector.shape_cast %38 : vector<1x192x192xf32> to vector<192x192xf32>
    %c2_27 = arith.constant 2 : index
    %c0_28 = arith.constant 0 : index
    %c0_29 = arith.constant 0 : index
    %40 = vector.load %arg4[%c2_27, %c0_28, %c0_29] : memref<4x64x64xf32, #tpu.memory_space<vmem>>, vector<1x64x64xf32>
    %41 = vector.shape_cast %40 : vector<1x64x64xf32> to vector<64x64xf32>
    %42 = arith.truncf %8 : vector<192x64xf32> to vector<192x64xbf16>
    %43 = arith.truncf %41 : vector<64x64xf32> to vector<64x64xbf16>
    %cst_30 = arith.constant dense<0.000000e+00> : vector<192x64xf32>
    %44 = tpu.matmul %42, %43, %cst_30 {dimension_numbers = #tpu.dot_dimension_numbers<[1], [0], [0], [1], [0, 0, 1, 1], [], []>} : vector<192x64xbf16>, vector<64x64xbf16>, vector<192x64xf32> -> vector<192x64xf32>
    %45 = arith.truncf %39 : vector<192x192xf32> to vector<192x192xbf16>
    %46 = arith.truncf %44 : vector<192x64xf32> to vector<192x64xbf16>
    %cst_31 = arith.constant dense<0.000000e+00> : vector<192x64xf32>
    %47 = tpu.matmul %45, %46, %cst_31 {dimension_numbers = #tpu.dot_dimension_numbers<[1], [0], [0], [1], [0, 0, 1, 1], [], []>} : vector<192x192xbf16>, vector<192x64xbf16>, vector<192x64xf32> -> vector<192x64xf32>
    %48 = arith.addf %37, %47 : vector<192x64xf32>
    %c3 = arith.constant 3 : index
    %c0_32 = arith.constant 0 : index
    %c0_33 = arith.constant 0 : index
    %49 = vector.load %arg5[%c3, %c0_32, %c0_33] : memref<4x192x192xf32, #tpu.memory_space<vmem>>, vector<1x192x192xf32>
    %50 = vector.shape_cast %49 : vector<1x192x192xf32> to vector<192x192xf32>
    %c3_34 = arith.constant 3 : index
    %c0_35 = arith.constant 0 : index
    %c0_36 = arith.constant 0 : index
    %51 = vector.load %arg4[%c3_34, %c0_35, %c0_36] : memref<4x64x64xf32, #tpu.memory_space<vmem>>, vector<1x64x64xf32>
    %52 = vector.shape_cast %51 : vector<1x64x64xf32> to vector<64x64xf32>
    %53 = arith.truncf %8 : vector<192x64xf32> to vector<192x64xbf16>
    %54 = arith.truncf %52 : vector<64x64xf32> to vector<64x64xbf16>
    %cst_37 = arith.constant dense<0.000000e+00> : vector<192x64xf32>
    %55 = tpu.matmul %53, %54, %cst_37 {dimension_numbers = #tpu.dot_dimension_numbers<[1], [0], [0], [1], [0, 0, 1, 1], [], []>} : vector<192x64xbf16>, vector<64x64xbf16>, vector<192x64xf32> -> vector<192x64xf32>
    %56 = arith.truncf %50 : vector<192x192xf32> to vector<192x192xbf16>
    %57 = arith.truncf %55 : vector<192x64xf32> to vector<192x64xbf16>
    %cst_38 = arith.constant dense<0.000000e+00> : vector<192x64xf32>
    %58 = tpu.matmul %56, %57, %cst_38 {dimension_numbers = #tpu.dot_dimension_numbers<[1], [0], [0], [1], [0, 0, 1, 1], [], []>} : vector<192x192xbf16>, vector<192x64xbf16>, vector<192x64xf32> -> vector<192x64xf32>
    %59 = arith.addf %48, %58 : vector<192x64xf32>
    %c0_39 = arith.constant 0 : index
    %c0_40 = arith.constant 0 : index
    %60 = vector.load %arg8[%c0_39, %c0_40] : memref<192x64xf32, #tpu.memory_space<vmem>>, vector<192x64xf32>
    %61 = arith.addf %59, %60 : vector<192x64xf32>
    %c0_41 = arith.constant 0 : index
    %c0_42 = arith.constant 0 : index
    %62 = vector.load %arg9[%c0_41, %c0_42] : memref<192x64xf32, #tpu.memory_space<vmem>>, vector<192x64xf32>
    tpu.vector_store %arg9[%c0_41, %c0_42], %61 {strides = array<i32>} : memref<192x64xf32, #tpu.memory_space<vmem>>, vector<192x64xf32>,
    return
  }
  func.func @transform_0(%arg0: i32) -> (i32, i32) {
    %c0_i32 = arith.constant 0 : i32
    %c0_i32_0 = arith.constant 0 : i32
    %c0_i32_1 = arith.constant 0 : i32
    return %c0_i32, %c0_i32_0 : i32, i32
  }
  func.func @transform_1(%arg0: i32) -> (i32, i32) {
    %c0_i32 = arith.constant 0 : i32
    %c0_i32_0 = arith.constant 0 : i32
    %c0_i32_1 = arith.constant 0 : i32
    return %c0_i32, %c0_i32_0 : i32, i32
  }
  func.func @transform_2(%arg0: i32) -> (i32, i32) {
    %c0_i32 = arith.constant 0 : i32
    %c0_i32_0 = arith.constant 0 : i32
    %c0_i32_1 = arith.constant 0 : i32
    return %c0_i32, %c0_i32_0 : i32, i32
  }
  func.func @transform_3(%arg0: i32) -> (i32, i32, i32) {
    %c0_i32 = arith.constant 0 : i32
    %c0_i32_0 = arith.constant 0 : i32
    %c0_i32_1 = arith.constant 0 : i32
    %c0_i32_2 = arith.constant 0 : i32
    return %c0_i32, %c0_i32_0, %c0_i32_1 : i32, i32, i32
  }
  func.func @transform_4(%arg0: i32) -> (i32, i32, i32) {
    %c0_i32 = arith.constant 0 : i32
    %c0_i32_0 = arith.constant 0 : i32
    %c0_i32_1 = arith.constant 0 : i32
    %c0_i32_2 = arith.constant 0 : i32
    return %c0_i32, %c0_i32_0, %c0_i32_1 : i32, i32, i32
  }
  func.func @transform_5(%arg0: i32) -> (i32, i32) {
    %c0_i32 = arith.constant 0 : i32
    %c0_i32_0 = arith.constant 0 : i32
    %c0_i32_1 = arith.constant 0 : i32
    return %c0_i32, %c0_i32_0 : i32, i32
  }
  func.func @transform_6(%arg0: i32) -> (i32, i32) {
    %c0_i32 = arith.constant 0 : i32
    %c0_i32_0 = arith.constant 0 : i32
    %c0_i32_1 = arith.constant 0 : i32
    return %c0_i32, %c0_i32_0 : i32, i32
  }
  func.func @transform_7(%arg0: i32) -> (i32, i32) {
    %c0_i32 = arith.constant 0 : i32
    %c0_i32_0 = arith.constant 0 : i32
    %c0_i32_1 = arith.constant 0 : i32
    return %c0_i32, %c0_i32_0 : i32, i32
  }
  func.func @transform_8(%arg0: i32) -> (i32, i32) {
    %c0_i32 = arith.constant 0 : i32
    %c0_i32_0 = arith.constant 0 : i32
    %c0_i32_1 = arith.constant 0 : i32
    return %c0_i32, %c0_i32_0 : i32, i32
  }
}

module attributes {stable_mosaic.version = 11 : i64} {
  func.func @_encoder_kernel(%arg0: i32, %arg1: memref<96x64xf32, #tpu.memory_space<vmem>>, %arg2: memref<96x96xf32, #tpu.memory_space<vmem>>, %arg3: memref<64x192xf32, #tpu.memory_space<vmem>>, %arg4: memref<1x192xf32, #tpu.memory_space<vmem>>, %arg5: memref<64x64xf32, #tpu.memory_space<vmem>>, %arg6: memref<1x64xf32, #tpu.memory_space<vmem>>, %arg7: memref<64x2048xf32, #tpu.memory_space<vmem>>, %arg8: memref<1x2048xf32, #tpu.memory_space<vmem>>, %arg9: memref<2048x64xf32, #tpu.memory_space<vmem>>, %arg10: memref<1x64xf32, #tpu.memory_space<vmem>>, %arg11: memref<1x64xf32, #tpu.memory_space<vmem>>, %arg12: memref<1x64xf32, #tpu.memory_space<vmem>>, %arg13: memref<1x64xf32, #tpu.memory_space<vmem>>, %arg14: memref<1x64xf32, #tpu.memory_space<vmem>>, %arg15: memref<8x64xf32, #tpu.memory_space<vmem>>) attributes {dimension_semantics = [#tpu.dimension_semantics<parallel>], iteration_bounds = array<i64: 2>, scalar_prefetch = 0 : i64, scratch_operands = 0 : i64, tpu.core_type = #tpu.core_type<tc>, window_params = [{transform_indices = @transform_0, window_bounds = array<i64: 96, 64>}, {pipeline_mode = #tpu.pipeline_mode<synchronous>, transform_indices = @transform_1, window_bounds = array<i64: 96, 96>}, {pipeline_mode = #tpu.pipeline_mode<synchronous>, transform_indices = @transform_2, window_bounds = array<i64: 64, 192>}, {pipeline_mode = #tpu.pipeline_mode<synchronous>, transform_indices = @transform_3, window_bounds = array<i64: 1, 192>}, {pipeline_mode = #tpu.pipeline_mode<synchronous>, transform_indices = @transform_4, window_bounds = array<i64: 64, 64>}, {pipeline_mode = #tpu.pipeline_mode<synchronous>, transform_indices = @transform_5, window_bounds = array<i64: 1, 64>}, {pipeline_mode = #tpu.pipeline_mode<synchronous>, transform_indices = @transform_6, window_bounds = array<i64: 64, 2048>}, {pipeline_mode = #tpu.pipeline_mode<synchronous>, transform_indices = @transform_7, window_bounds = array<i64: 1, 2048>}, {pipeline_mode = #tpu.pipeline_mode<synchronous>, transform_indices = @transform_8, window_bounds = array<i64: 2048, 64>}, {pipeline_mode = #tpu.pipeline_mode<synchronous>, transform_indices = @transform_9, window_bounds = array<i64: 1, 64>}, {pipeline_mode = #tpu.pipeline_mode<synchronous>, transform_indices = @transform_10, window_bounds = array<i64: 1, 64>}, {pipeline_mode = #tpu.pipeline_mode<synchronous>, transform_indices = @transform_11, window_bounds = array<i64: 1, 64>}, {pipeline_mode = #tpu.pipeline_mode<synchronous>, transform_indices = @transform_12, window_bounds = array<i64: 1, 64>}, {pipeline_mode = #tpu.pipeline_mode<synchronous>, transform_indices = @transform_13, window_bounds = array<i64: 1, 64>}, {transform_indices = @transform_14, window_bounds = array<i64: 8, 64>}]} {
    %c0 = arith.constant 0 : index
    %c0_0 = arith.constant 0 : index
    %0 = vector.load %arg1[%c0, %c0_0] : memref<96x64xf32, #tpu.memory_space<vmem>>, vector<96x64xf32>
    %c0_1 = arith.constant 0 : index
    %c0_2 = arith.constant 0 : index
    %1 = vector.load %arg2[%c0_1, %c0_2] : memref<96x96xf32, #tpu.memory_space<vmem>>, vector<96x96xf32>
    %c0_3 = arith.constant 0 : index
    %c0_4 = arith.constant 0 : index
    %2 = vector.load %arg3[%c0_3, %c0_4] : memref<64x192xf32, #tpu.memory_space<vmem>>, vector<64x192xf32>
    %3 = arith.truncf %0 : vector<96x64xf32> to vector<96x64xbf16>
    %4 = arith.truncf %2 : vector<64x192xf32> to vector<64x192xbf16>
    %cst = arith.constant dense<0.000000e+00> : vector<96x192xf32>
    %5 = tpu.matmul %3, %4, %cst {dimension_numbers = #tpu.dot_dimension_numbers<[1], [0], [0], [1], [0, 0, 1, 1], [], []>} : vector<96x64xbf16>, vector<64x192xbf16>, vector<96x192xf32> -> vector<96x192xf32>
    %c0_5 = arith.constant 0 : index
    %c0_6 = arith.constant 0 : index
    %6 = vector.load %arg4[%c0_5, %c0_6] : memref<1x192xf32, #tpu.memory_space<vmem>>, vector<1x192xf32>
    %7 = vector.broadcast %6 : vector<1x192xf32> to vector<96x192xf32>
    %8 = arith.addf %5, %7 : vector<96x192xf32>
    %9 = vector.extract_strided_slice %8 {offsets = [0, 0], sizes = [96, 8], strides = [1, 1]} : vector<96x192xf32> to vector<96x8xf32>
    %10 = vector.extract_strided_slice %8 {offsets = [0, 64], sizes = [96, 8], strides = [1, 1]} : vector<96x192xf32> to vector<96x8xf32>
    %11 = vector.extract_strided_slice %8 {offsets = [0, 128], sizes = [96, 8], strides = [1, 1]} : vector<96x192xf32> to vector<96x8xf32>
    %12 = arith.truncf %9 : vector<96x8xf32> to vector<96x8xbf16>
    %13 = arith.truncf %10 : vector<96x8xf32> to vector<96x8xbf16>
    %cst_7 = arith.constant dense<0.000000e+00> : vector<96x96xf32>
    %14 = tpu.matmul %12, %13, %cst_7 {dimension_numbers = #tpu.dot_dimension_numbers<[1], [1], [0], [0], [0, 0, 1, 0], [], []>} : vector<96x8xbf16>, vector<96x8xbf16>, vector<96x96xf32> -> vector<96x96xf32>
    %cst_8 = arith.constant 0.353553385 : f32
    %15 = vector.broadcast %cst_8 : f32 to vector<96x96xf32>
    %16 = arith.mulf %14, %15 : vector<96x96xf32>
    %17 = arith.addf %16, %1 : vector<96x96xf32>
    %cst_9 = arith.constant dense<0xFF800000> : vector<96xf32>
    %18 = vector.multi_reduction <maximumf>, %17, %cst_9 [1] : vector<96x96xf32> to vector<96xf32>
    %19 = vector.shape_cast %18 : vector<96xf32> to vector<96x1xf32>
    %20 = vector.broadcast %19 : vector<96x1xf32> to vector<96x96xf32>
    %21 = arith.subf %17, %20 : vector<96x96xf32>
    %22 = math.exp %21 : vector<96x96xf32>
    %cst_10 = arith.constant dense<0.000000e+00> : vector<96xf32>
    %23 = vector.multi_reduction <add>, %22, %cst_10 [1] : vector<96x96xf32> to vector<96xf32>
    %24 = vector.shape_cast %23 : vector<96xf32> to vector<96x1xf32>
    %25 = tpu.reciprocal %24 {approx = true} : vector<96x1xf32> -> vector<96x1xf32>
    %26 = vector.broadcast %25 : vector<96x1xf32> to vector<96x96xf32>
    %27 = arith.mulf %22, %26 : vector<96x96xf32>
    %28 = arith.truncf %27 : vector<96x96xf32> to vector<96x96xbf16>
    %29 = arith.truncf %11 : vector<96x8xf32> to vector<96x8xbf16>
    %cst_11 = arith.constant dense<0.000000e+00> : vector<96x8xf32>
    %30 = tpu.matmul %28, %29, %cst_11 {dimension_numbers = #tpu.dot_dimension_numbers<[1], [0], [0], [1], [0, 0, 1, 1], [], []>} : vector<96x96xbf16>, vector<96x8xbf16>, vector<96x8xf32> -> vector<96x8xf32>
    %31 = vector.extract_strided_slice %8 {offsets = [0, 8], sizes = [96, 8], strides = [1, 1]} : vector<96x192xf32> to vector<96x8xf32>
    %32 = vector.extract_strided_slice %8 {offsets = [0, 72], sizes = [96, 8], strides = [1, 1]} : vector<96x192xf32> to vector<96x8xf32>
    %33 = vector.extract_strided_slice %8 {offsets = [0, 136], sizes = [96, 8], strides = [1, 1]} : vector<96x192xf32> to vector<96x8xf32>
    %34 = arith.truncf %31 : vector<96x8xf32> to vector<96x8xbf16>
    %35 = arith.truncf %32 : vector<96x8xf32> to vector<96x8xbf16>
    %cst_12 = arith.constant dense<0.000000e+00> : vector<96x96xf32>
    %36 = tpu.matmul %34, %35, %cst_12 {dimension_numbers = #tpu.dot_dimension_numbers<[1], [1], [0], [0], [0, 0, 1, 0], [], []>} : vector<96x8xbf16>, vector<96x8xbf16>, vector<96x96xf32> -> vector<96x96xf32>
    %cst_13 = arith.constant 0.353553385 : f32
    %37 = vector.broadcast %cst_13 : f32 to vector<96x96xf32>
    %38 = arith.mulf %36, %37 : vector<96x96xf32>
    %39 = arith.addf %38, %1 : vector<96x96xf32>
    %cst_14 = arith.constant dense<0xFF800000> : vector<96xf32>
    %40 = vector.multi_reduction <maximumf>, %39, %cst_14 [1] : vector<96x96xf32> to vector<96xf32>
    %41 = vector.shape_cast %40 : vector<96xf32> to vector<96x1xf32>
    %42 = vector.broadcast %41 : vector<96x1xf32> to vector<96x96xf32>
    %43 = arith.subf %39, %42 : vector<96x96xf32>
    %44 = math.exp %43 : vector<96x96xf32>
    %cst_15 = arith.constant dense<0.000000e+00> : vector<96xf32>
    %45 = vector.multi_reduction <add>, %44, %cst_15 [1] : vector<96x96xf32> to vector<96xf32>
    %46 = vector.shape_cast %45 : vector<96xf32> to vector<96x1xf32>
    %47 = tpu.reciprocal %46 {approx = true} : vector<96x1xf32> -> vector<96x1xf32>
    %48 = vector.broadcast %47 : vector<96x1xf32> to vector<96x96xf32>
    %49 = arith.mulf %44, %48 : vector<96x96xf32>
    %50 = arith.truncf %49 : vector<96x96xf32> to vector<96x96xbf16>
    %51 = arith.truncf %33 : vector<96x8xf32> to vector<96x8xbf16>
    %cst_16 = arith.constant dense<0.000000e+00> : vector<96x8xf32>
    %52 = tpu.matmul %50, %51, %cst_16 {dimension_numbers = #tpu.dot_dimension_numbers<[1], [0], [0], [1], [0, 0, 1, 1], [], []>} : vector<96x96xbf16>, vector<96x8xbf16>, vector<96x8xf32> -> vector<96x8xf32>
    %53 = vector.extract_strided_slice %8 {offsets = [0, 16], sizes = [96, 8], strides = [1, 1]} : vector<96x192xf32> to vector<96x8xf32>
    %54 = vector.extract_strided_slice %8 {offsets = [0, 80], sizes = [96, 8], strides = [1, 1]} : vector<96x192xf32> to vector<96x8xf32>
    %55 = vector.extract_strided_slice %8 {offsets = [0, 144], sizes = [96, 8], strides = [1, 1]} : vector<96x192xf32> to vector<96x8xf32>
    %56 = arith.truncf %53 : vector<96x8xf32> to vector<96x8xbf16>
    %57 = arith.truncf %54 : vector<96x8xf32> to vector<96x8xbf16>
    %cst_17 = arith.constant dense<0.000000e+00> : vector<96x96xf32>
    %58 = tpu.matmul %56, %57, %cst_17 {dimension_numbers = #tpu.dot_dimension_numbers<[1], [1], [0], [0], [0, 0, 1, 0], [], []>} : vector<96x8xbf16>, vector<96x8xbf16>, vector<96x96xf32> -> vector<96x96xf32>
    %cst_18 = arith.constant 0.353553385 : f32
    %59 = vector.broadcast %cst_18 : f32 to vector<96x96xf32>
    %60 = arith.mulf %58, %59 : vector<96x96xf32>
    %61 = arith.addf %60, %1 : vector<96x96xf32>
    %cst_19 = arith.constant dense<0xFF800000> : vector<96xf32>
    %62 = vector.multi_reduction <maximumf>, %61, %cst_19 [1] : vector<96x96xf32> to vector<96xf32>
    %63 = vector.shape_cast %62 : vector<96xf32> to vector<96x1xf32>
    %64 = vector.broadcast %63 : vector<96x1xf32> to vector<96x96xf32>
    %65 = arith.subf %61, %64 : vector<96x96xf32>
    %66 = math.exp %65 : vector<96x96xf32>
    %cst_20 = arith.constant dense<0.000000e+00> : vector<96xf32>
    %67 = vector.multi_reduction <add>, %66, %cst_20 [1] : vector<96x96xf32> to vector<96xf32>
    %68 = vector.shape_cast %67 : vector<96xf32> to vector<96x1xf32>
    %69 = tpu.reciprocal %68 {approx = true} : vector<96x1xf32> -> vector<96x1xf32>
    %70 = vector.broadcast %69 : vector<96x1xf32> to vector<96x96xf32>
    %71 = arith.mulf %66, %70 : vector<96x96xf32>
    %72 = arith.truncf %71 : vector<96x96xf32> to vector<96x96xbf16>
    %73 = arith.truncf %55 : vector<96x8xf32> to vector<96x8xbf16>
    %cst_21 = arith.constant dense<0.000000e+00> : vector<96x8xf32>
    %74 = tpu.matmul %72, %73, %cst_21 {dimension_numbers = #tpu.dot_dimension_numbers<[1], [0], [0], [1], [0, 0, 1, 1], [], []>} : vector<96x96xbf16>, vector<96x8xbf16>, vector<96x8xf32> -> vector<96x8xf32>
    %75 = vector.extract_strided_slice %8 {offsets = [0, 24], sizes = [96, 8], strides = [1, 1]} : vector<96x192xf32> to vector<96x8xf32>
    %76 = vector.extract_strided_slice %8 {offsets = [0, 88], sizes = [96, 8], strides = [1, 1]} : vector<96x192xf32> to vector<96x8xf32>
    %77 = vector.extract_strided_slice %8 {offsets = [0, 152], sizes = [96, 8], strides = [1, 1]} : vector<96x192xf32> to vector<96x8xf32>
    %78 = arith.truncf %75 : vector<96x8xf32> to vector<96x8xbf16>
    %79 = arith.truncf %76 : vector<96x8xf32> to vector<96x8xbf16>
    %cst_22 = arith.constant dense<0.000000e+00> : vector<96x96xf32>
    %80 = tpu.matmul %78, %79, %cst_22 {dimension_numbers = #tpu.dot_dimension_numbers<[1], [1], [0], [0], [0, 0, 1, 0], [], []>} : vector<96x8xbf16>, vector<96x8xbf16>, vector<96x96xf32> -> vector<96x96xf32>
    %cst_23 = arith.constant 0.353553385 : f32
    %81 = vector.broadcast %cst_23 : f32 to vector<96x96xf32>
    %82 = arith.mulf %80, %81 : vector<96x96xf32>
    %83 = arith.addf %82, %1 : vector<96x96xf32>
    %cst_24 = arith.constant dense<0xFF800000> : vector<96xf32>
    %84 = vector.multi_reduction <maximumf>, %83, %cst_24 [1] : vector<96x96xf32> to vector<96xf32>
    %85 = vector.shape_cast %84 : vector<96xf32> to vector<96x1xf32>
    %86 = vector.broadcast %85 : vector<96x1xf32> to vector<96x96xf32>
    %87 = arith.subf %83, %86 : vector<96x96xf32>
    %88 = math.exp %87 : vector<96x96xf32>
    %cst_25 = arith.constant dense<0.000000e+00> : vector<96xf32>
    %89 = vector.multi_reduction <add>, %88, %cst_25 [1] : vector<96x96xf32> to vector<96xf32>
    %90 = vector.shape_cast %89 : vector<96xf32> to vector<96x1xf32>
    %91 = tpu.reciprocal %90 {approx = true} : vector<96x1xf32> -> vector<96x1xf32>
    %92 = vector.broadcast %91 : vector<96x1xf32> to vector<96x96xf32>
    %93 = arith.mulf %88, %92 : vector<96x96xf32>
    %94 = arith.truncf %93 : vector<96x96xf32> to vector<96x96xbf16>
    %95 = arith.truncf %77 : vector<96x8xf32> to vector<96x8xbf16>
    %cst_26 = arith.constant dense<0.000000e+00> : vector<96x8xf32>
    %96 = tpu.matmul %94, %95, %cst_26 {dimension_numbers = #tpu.dot_dimension_numbers<[1], [0], [0], [1], [0, 0, 1, 1], [], []>} : vector<96x96xbf16>, vector<96x8xbf16>, vector<96x8xf32> -> vector<96x8xf32>
    %97 = vector.extract_strided_slice %8 {offsets = [0, 32], sizes = [96, 8], strides = [1, 1]} : vector<96x192xf32> to vector<96x8xf32>
    %98 = vector.extract_strided_slice %8 {offsets = [0, 96], sizes = [96, 8], strides = [1, 1]} : vector<96x192xf32> to vector<96x8xf32>
    %99 = vector.extract_strided_slice %8 {offsets = [0, 160], sizes = [96, 8], strides = [1, 1]} : vector<96x192xf32> to vector<96x8xf32>
    %100 = arith.truncf %97 : vector<96x8xf32> to vector<96x8xbf16>
    %101 = arith.truncf %98 : vector<96x8xf32> to vector<96x8xbf16>
    %cst_27 = arith.constant dense<0.000000e+00> : vector<96x96xf32>
    %102 = tpu.matmul %100, %101, %cst_27 {dimension_numbers = #tpu.dot_dimension_numbers<[1], [1], [0], [0], [0, 0, 1, 0], [], []>} : vector<96x8xbf16>, vector<96x8xbf16>, vector<96x96xf32> -> vector<96x96xf32>
    %cst_28 = arith.constant 0.353553385 : f32
    %103 = vector.broadcast %cst_28 : f32 to vector<96x96xf32>
    %104 = arith.mulf %102, %103 : vector<96x96xf32>
    %105 = arith.addf %104, %1 : vector<96x96xf32>
    %cst_29 = arith.constant dense<0xFF800000> : vector<96xf32>
    %106 = vector.multi_reduction <maximumf>, %105, %cst_29 [1] : vector<96x96xf32> to vector<96xf32>
    %107 = vector.shape_cast %106 : vector<96xf32> to vector<96x1xf32>
    %108 = vector.broadcast %107 : vector<96x1xf32> to vector<96x96xf32>
    %109 = arith.subf %105, %108 : vector<96x96xf32>
    %110 = math.exp %109 : vector<96x96xf32>
    %cst_30 = arith.constant dense<0.000000e+00> : vector<96xf32>
    %111 = vector.multi_reduction <add>, %110, %cst_30 [1] : vector<96x96xf32> to vector<96xf32>
    %112 = vector.shape_cast %111 : vector<96xf32> to vector<96x1xf32>
    %113 = tpu.reciprocal %112 {approx = true} : vector<96x1xf32> -> vector<96x1xf32>
    %114 = vector.broadcast %113 : vector<96x1xf32> to vector<96x96xf32>
    %115 = arith.mulf %110, %114 : vector<96x96xf32>
    %116 = arith.truncf %115 : vector<96x96xf32> to vector<96x96xbf16>
    %117 = arith.truncf %99 : vector<96x8xf32> to vector<96x8xbf16>
    %cst_31 = arith.constant dense<0.000000e+00> : vector<96x8xf32>
    %118 = tpu.matmul %116, %117, %cst_31 {dimension_numbers = #tpu.dot_dimension_numbers<[1], [0], [0], [1], [0, 0, 1, 1], [], []>} : vector<96x96xbf16>, vector<96x8xbf16>, vector<96x8xf32> -> vector<96x8xf32>
    %119 = vector.extract_strided_slice %8 {offsets = [0, 40], sizes = [96, 8], strides = [1, 1]} : vector<96x192xf32> to vector<96x8xf32>
    %120 = vector.extract_strided_slice %8 {offsets = [0, 104], sizes = [96, 8], strides = [1, 1]} : vector<96x192xf32> to vector<96x8xf32>
    %121 = vector.extract_strided_slice %8 {offsets = [0, 168], sizes = [96, 8], strides = [1, 1]} : vector<96x192xf32> to vector<96x8xf32>
    %122 = arith.truncf %119 : vector<96x8xf32> to vector<96x8xbf16>
    %123 = arith.truncf %120 : vector<96x8xf32> to vector<96x8xbf16>
    %cst_32 = arith.constant dense<0.000000e+00> : vector<96x96xf32>
    %124 = tpu.matmul %122, %123, %cst_32 {dimension_numbers = #tpu.dot_dimension_numbers<[1], [1], [0], [0], [0, 0, 1, 0], [], []>} : vector<96x8xbf16>, vector<96x8xbf16>, vector<96x96xf32> -> vector<96x96xf32>
    %cst_33 = arith.constant 0.353553385 : f32
    %125 = vector.broadcast %cst_33 : f32 to vector<96x96xf32>
    %126 = arith.mulf %124, %125 : vector<96x96xf32>
    %127 = arith.addf %126, %1 : vector<96x96xf32>
    %cst_34 = arith.constant dense<0xFF800000> : vector<96xf32>
    %128 = vector.multi_reduction <maximumf>, %127, %cst_34 [1] : vector<96x96xf32> to vector<96xf32>
    %129 = vector.shape_cast %128 : vector<96xf32> to vector<96x1xf32>
    %130 = vector.broadcast %129 : vector<96x1xf32> to vector<96x96xf32>
    %131 = arith.subf %127, %130 : vector<96x96xf32>
    %132 = math.exp %131 : vector<96x96xf32>
    %cst_35 = arith.constant dense<0.000000e+00> : vector<96xf32>
    %133 = vector.multi_reduction <add>, %132, %cst_35 [1] : vector<96x96xf32> to vector<96xf32>
    %134 = vector.shape_cast %133 : vector<96xf32> to vector<96x1xf32>
    %135 = tpu.reciprocal %134 {approx = true} : vector<96x1xf32> -> vector<96x1xf32>
    %136 = vector.broadcast %135 : vector<96x1xf32> to vector<96x96xf32>
    %137 = arith.mulf %132, %136 : vector<96x96xf32>
    %138 = arith.truncf %137 : vector<96x96xf32> to vector<96x96xbf16>
    %139 = arith.truncf %121 : vector<96x8xf32> to vector<96x8xbf16>
    %cst_36 = arith.constant dense<0.000000e+00> : vector<96x8xf32>
    %140 = tpu.matmul %138, %139, %cst_36 {dimension_numbers = #tpu.dot_dimension_numbers<[1], [0], [0], [1], [0, 0, 1, 1], [], []>} : vector<96x96xbf16>, vector<96x8xbf16>, vector<96x8xf32> -> vector<96x8xf32>
    %141 = vector.extract_strided_slice %8 {offsets = [0, 48], sizes = [96, 8], strides = [1, 1]} : vector<96x192xf32> to vector<96x8xf32>
    %142 = vector.extract_strided_slice %8 {offsets = [0, 112], sizes = [96, 8], strides = [1, 1]} : vector<96x192xf32> to vector<96x8xf32>
    %143 = vector.extract_strided_slice %8 {offsets = [0, 176], sizes = [96, 8], strides = [1, 1]} : vector<96x192xf32> to vector<96x8xf32>
    %144 = arith.truncf %141 : vector<96x8xf32> to vector<96x8xbf16>
    %145 = arith.truncf %142 : vector<96x8xf32> to vector<96x8xbf16>
    %cst_37 = arith.constant dense<0.000000e+00> : vector<96x96xf32>
    %146 = tpu.matmul %144, %145, %cst_37 {dimension_numbers = #tpu.dot_dimension_numbers<[1], [1], [0], [0], [0, 0, 1, 0], [], []>} : vector<96x8xbf16>, vector<96x8xbf16>, vector<96x96xf32> -> vector<96x96xf32>
    %cst_38 = arith.constant 0.353553385 : f32
    %147 = vector.broadcast %cst_38 : f32 to vector<96x96xf32>
    %148 = arith.mulf %146, %147 : vector<96x96xf32>
    %149 = arith.addf %148, %1 : vector<96x96xf32>
    %cst_39 = arith.constant dense<0xFF800000> : vector<96xf32>
    %150 = vector.multi_reduction <maximumf>, %149, %cst_39 [1] : vector<96x96xf32> to vector<96xf32>
    %151 = vector.shape_cast %150 : vector<96xf32> to vector<96x1xf32>
    %152 = vector.broadcast %151 : vector<96x1xf32> to vector<96x96xf32>
    %153 = arith.subf %149, %152 : vector<96x96xf32>
    %154 = math.exp %153 : vector<96x96xf32>
    %cst_40 = arith.constant dense<0.000000e+00> : vector<96xf32>
    %155 = vector.multi_reduction <add>, %154, %cst_40 [1] : vector<96x96xf32> to vector<96xf32>
    %156 = vector.shape_cast %155 : vector<96xf32> to vector<96x1xf32>
    %157 = tpu.reciprocal %156 {approx = true} : vector<96x1xf32> -> vector<96x1xf32>
    %158 = vector.broadcast %157 : vector<96x1xf32> to vector<96x96xf32>
    %159 = arith.mulf %154, %158 : vector<96x96xf32>
    %160 = arith.truncf %159 : vector<96x96xf32> to vector<96x96xbf16>
    %161 = arith.truncf %143 : vector<96x8xf32> to vector<96x8xbf16>
    %cst_41 = arith.constant dense<0.000000e+00> : vector<96x8xf32>
    %162 = tpu.matmul %160, %161, %cst_41 {dimension_numbers = #tpu.dot_dimension_numbers<[1], [0], [0], [1], [0, 0, 1, 1], [], []>} : vector<96x96xbf16>, vector<96x8xbf16>, vector<96x8xf32> -> vector<96x8xf32>
    %163 = vector.extract_strided_slice %8 {offsets = [0, 56], sizes = [96, 8], strides = [1, 1]} : vector<96x192xf32> to vector<96x8xf32>
    %164 = vector.extract_strided_slice %8 {offsets = [0, 120], sizes = [96, 8], strides = [1, 1]} : vector<96x192xf32> to vector<96x8xf32>
    %165 = vector.extract_strided_slice %8 {offsets = [0, 184], sizes = [96, 8], strides = [1, 1]} : vector<96x192xf32> to vector<96x8xf32>
    %166 = arith.truncf %163 : vector<96x8xf32> to vector<96x8xbf16>
    %167 = arith.truncf %164 : vector<96x8xf32> to vector<96x8xbf16>
    %cst_42 = arith.constant dense<0.000000e+00> : vector<96x96xf32>
    %168 = tpu.matmul %166, %167, %cst_42 {dimension_numbers = #tpu.dot_dimension_numbers<[1], [1], [0], [0], [0, 0, 1, 0], [], []>} : vector<96x8xbf16>, vector<96x8xbf16>, vector<96x96xf32> -> vector<96x96xf32>
    %cst_43 = arith.constant 0.353553385 : f32
    %169 = vector.broadcast %cst_43 : f32 to vector<96x96xf32>
    %170 = arith.mulf %168, %169 : vector<96x96xf32>
    %171 = arith.addf %170, %1 : vector<96x96xf32>
    %cst_44 = arith.constant dense<0xFF800000> : vector<96xf32>
    %172 = vector.multi_reduction <maximumf>, %171, %cst_44 [1] : vector<96x96xf32> to vector<96xf32>
    %173 = vector.shape_cast %172 : vector<96xf32> to vector<96x1xf32>
    %174 = vector.broadcast %173 : vector<96x1xf32> to vector<96x96xf32>
    %175 = arith.subf %171, %174 : vector<96x96xf32>
    %176 = math.exp %175 : vector<96x96xf32>
    %cst_45 = arith.constant dense<0.000000e+00> : vector<96xf32>
    %177 = vector.multi_reduction <add>, %176, %cst_45 [1] : vector<96x96xf32> to vector<96xf32>
    %178 = vector.shape_cast %177 : vector<96xf32> to vector<96x1xf32>
    %179 = tpu.reciprocal %178 {approx = true} : vector<96x1xf32> -> vector<96x1xf32>
    %180 = vector.broadcast %179 : vector<96x1xf32> to vector<96x96xf32>
    %181 = arith.mulf %176, %180 : vector<96x96xf32>
    %182 = arith.truncf %181 : vector<96x96xf32> to vector<96x96xbf16>
    %183 = arith.truncf %165 : vector<96x8xf32> to vector<96x8xbf16>
    %cst_46 = arith.constant dense<0.000000e+00> : vector<96x8xf32>
    %184 = tpu.matmul %182, %183, %cst_46 {dimension_numbers = #tpu.dot_dimension_numbers<[1], [0], [0], [1], [0, 0, 1, 1], [], []>} : vector<96x96xbf16>, vector<96x8xbf16>, vector<96x8xf32> -> vector<96x8xf32>
    %185 = tpu.concatenate %30, %52, %74, %96, %118, %140, %162, %184 in 1 : vector<96x8xf32>, vector<96x8xf32>, vector<96x8xf32>, vector<96x8xf32>, vector<96x8xf32>, vector<96x8xf32>, vector<96x8xf32>, vector<96x8xf32> -> vector<96x64xf32>
    %c0_47 = arith.constant 0 : index
    %c0_48 = arith.constant 0 : index
    %186 = vector.load %arg5[%c0_47, %c0_48] : memref<64x64xf32, #tpu.memory_space<vmem>>, vector<64x64xf32>
    %187 = arith.truncf %185 : vector<96x64xf32> to vector<96x64xbf16>
    %188 = arith.truncf %186 : vector<64x64xf32> to vector<64x64xbf16>
    %cst_49 = arith.constant dense<0.000000e+00> : vector<96x64xf32>
    %189 = tpu.matmul %187, %188, %cst_49 {dimension_numbers = #tpu.dot_dimension_numbers<[1], [0], [0], [1], [0, 0, 1, 1], [], []>} : vector<96x64xbf16>, vector<64x64xbf16>, vector<96x64xf32> -> vector<96x64xf32>
    %c0_50 = arith.constant 0 : index
    %c0_51 = arith.constant 0 : index
    %190 = vector.load %arg6[%c0_50, %c0_51] : memref<1x64xf32, #tpu.memory_space<vmem>>, vector<1x64xf32>
    %191 = vector.broadcast %190 : vector<1x64xf32> to vector<96x64xf32>
    %192 = arith.addf %189, %191 : vector<96x64xf32>
    %193 = arith.addf %0, %192 : vector<96x64xf32>
    %c0_52 = arith.constant 0 : index
    %c0_53 = arith.constant 0 : index
    %194 = vector.load %arg11[%c0_52, %c0_53] : memref<1x64xf32, #tpu.memory_space<vmem>>, vector<1x64xf32>
    %c0_54 = arith.constant 0 : index
    %c0_55 = arith.constant 0 : index
    %195 = vector.load %arg12[%c0_54, %c0_55] : memref<1x64xf32, #tpu.memory_space<vmem>>, vector<1x64xf32>
    %cst_56 = arith.constant dense<0.000000e+00> : vector<96xf32>
    %196 = vector.multi_reduction <add>, %193, %cst_56 [1] : vector<96x64xf32> to vector<96xf32>
    %197 = vector.shape_cast %196 : vector<96xf32> to vector<96x1xf32>
    %cst_57 = arith.constant 6.400000e+01 : f32
    %198 = vector.broadcast %cst_57 : f32 to vector<96x1xf32>
    %199 = arith.divf %197, %198 : vector<96x1xf32>
    %200 = vector.broadcast %199 : vector<96x1xf32> to vector<96x64xf32>
    %201 = arith.subf %193, %200 : vector<96x64xf32>
    %202 = arith.mulf %201, %201 : vector<96x64xf32>
    %cst_58 = arith.constant dense<0.000000e+00> : vector<96xf32>
    %203 = vector.multi_reduction <add>, %202, %cst_58 [1] : vector<96x64xf32> to vector<96xf32>
    %204 = vector.shape_cast %203 : vector<96xf32> to vector<96x1xf32>
    %cst_59 = arith.constant 6.400000e+01 : f32
    %205 = vector.broadcast %cst_59 : f32 to vector<96x1xf32>
    %206 = arith.divf %204, %205 : vector<96x1xf32>
    %cst_60 = arith.constant 9.99999974E-6 : f32
    %207 = vector.broadcast %cst_60 : f32 to vector<96x1xf32>
    %208 = arith.addf %206, %207 : vector<96x1xf32>
    %209 = math.rsqrt %208 : vector<96x1xf32>
    %210 = vector.broadcast %209 : vector<96x1xf32> to vector<96x64xf32>
    %211 = arith.mulf %201, %210 : vector<96x64xf32>
    %212 = vector.broadcast %194 : vector<1x64xf32> to vector<96x64xf32>
    %213 = arith.mulf %211, %212 : vector<96x64xf32>
    %214 = vector.broadcast %195 : vector<1x64xf32> to vector<96x64xf32>
    %215 = arith.addf %213, %214 : vector<96x64xf32>
    %c0_61 = arith.constant 0 : index
    %c0_62 = arith.constant 0 : index
    %216 = vector.load %arg7[%c0_61, %c0_62] : memref<64x2048xf32, #tpu.memory_space<vmem>>, vector<64x2048xf32>
    %217 = arith.truncf %215 : vector<96x64xf32> to vector<96x64xbf16>
    %218 = arith.truncf %216 : vector<64x2048xf32> to vector<64x2048xbf16>
    %cst_63 = arith.constant dense<0.000000e+00> : vector<96x2048xf32>
    %219 = tpu.matmul %217, %218, %cst_63 {dimension_numbers = #tpu.dot_dimension_numbers<[1], [0], [0], [1], [0, 0, 1, 1], [], []>} : vector<96x64xbf16>, vector<64x2048xbf16>, vector<96x2048xf32> -> vector<96x2048xf32>
    %c0_64 = arith.constant 0 : index
    %c0_65 = arith.constant 0 : index
    %220 = vector.load %arg8[%c0_64, %c0_65] : memref<1x2048xf32, #tpu.memory_space<vmem>>, vector<1x2048xf32>
    %221 = vector.broadcast %220 : vector<1x2048xf32> to vector<96x2048xf32>
    %222 = arith.addf %219, %221 : vector<96x2048xf32>
    %cst_66 = arith.constant 0.000000e+00 : f32
    %223 = vector.broadcast %cst_66 : f32 to vector<96x2048xf32>
    %224 = arith.maximumf %222, %223 : vector<96x2048xf32>
    %c0_67 = arith.constant 0 : index
    %c0_68 = arith.constant 0 : index
    %225 = vector.load %arg9[%c0_67, %c0_68] : memref<2048x64xf32, #tpu.memory_space<vmem>>, vector<2048x64xf32>
    %226 = arith.truncf %224 : vector<96x2048xf32> to vector<96x2048xbf16>
    %227 = arith.truncf %225 : vector<2048x64xf32> to vector<2048x64xbf16>
    %cst_69 = arith.constant dense<0.000000e+00> : vector<96x64xf32>
    %228 = tpu.matmul %226, %227, %cst_69 {dimension_numbers = #tpu.dot_dimension_numbers<[1], [0], [0], [1], [0, 0, 1, 1], [], []>} : vector<96x2048xbf16>, vector<2048x64xbf16>, vector<96x64xf32> -> vector<96x64xf32>
    %c0_70 = arith.constant 0 : index
    %c0_71 = arith.constant 0 : index
    %229 = vector.load %arg10[%c0_70, %c0_71] : memref<1x64xf32, #tpu.memory_space<vmem>>, vector<1x64xf32>
    %230 = vector.broadcast %229 : vector<1x64xf32> to vector<96x64xf32>
    %231 = arith.addf %228, %230 : vector<96x64xf32>
    %232 = arith.addf %215, %231 : vector<96x64xf32>
    %c0_72 = arith.constant 0 : index
    %c0_73 = arith.constant 0 : index
    %233 = vector.load %arg13[%c0_72, %c0_73] : memref<1x64xf32, #tpu.memory_space<vmem>>, vector<1x64xf32>
    %c0_74 = arith.constant 0 : index
    %c0_75 = arith.constant 0 : index
    %234 = vector.load %arg14[%c0_74, %c0_75] : memref<1x64xf32, #tpu.memory_space<vmem>>, vector<1x64xf32>
    %cst_76 = arith.constant dense<0.000000e+00> : vector<96xf32>
    %235 = vector.multi_reduction <add>, %232, %cst_76 [1] : vector<96x64xf32> to vector<96xf32>
    %236 = vector.shape_cast %235 : vector<96xf32> to vector<96x1xf32>
    %cst_77 = arith.constant 6.400000e+01 : f32
    %237 = vector.broadcast %cst_77 : f32 to vector<96x1xf32>
    %238 = arith.divf %236, %237 : vector<96x1xf32>
    %239 = vector.broadcast %238 : vector<96x1xf32> to vector<96x64xf32>
    %240 = arith.subf %232, %239 : vector<96x64xf32>
    %241 = arith.mulf %240, %240 : vector<96x64xf32>
    %cst_78 = arith.constant dense<0.000000e+00> : vector<96xf32>
    %242 = vector.multi_reduction <add>, %241, %cst_78 [1] : vector<96x64xf32> to vector<96xf32>
    %243 = vector.shape_cast %242 : vector<96xf32> to vector<96x1xf32>
    %cst_79 = arith.constant 6.400000e+01 : f32
    %244 = vector.broadcast %cst_79 : f32 to vector<96x1xf32>
    %245 = arith.divf %243, %244 : vector<96x1xf32>
    %cst_80 = arith.constant 9.99999974E-6 : f32
    %246 = vector.broadcast %cst_80 : f32 to vector<96x1xf32>
    %247 = arith.addf %245, %246 : vector<96x1xf32>
    %248 = math.rsqrt %247 : vector<96x1xf32>
    %249 = vector.broadcast %248 : vector<96x1xf32> to vector<96x64xf32>
    %250 = arith.mulf %240, %249 : vector<96x64xf32>
    %251 = vector.broadcast %233 : vector<1x64xf32> to vector<96x64xf32>
    %252 = arith.mulf %250, %251 : vector<96x64xf32>
    %253 = vector.broadcast %234 : vector<1x64xf32> to vector<96x64xf32>
    %254 = arith.addf %252, %253 : vector<96x64xf32>
    %255 = vector.shape_cast %254 : vector<96x64xf32> to vector<8x12x64xf32>
    %cst_81 = arith.constant dense<0.000000e+00> : vector<8x64xf32>
    %256 = vector.multi_reduction <add>, %255, %cst_81 [1] : vector<8x12x64xf32> to vector<8x64xf32>
    %cst_82 = arith.constant 1.200000e+01 : f32
    %257 = vector.broadcast %cst_82 : f32 to vector<8x64xf32>
    %258 = arith.divf %256, %257 : vector<8x64xf32>
    %c0_83 = arith.constant 0 : index
    %c0_84 = arith.constant 0 : index
    %259 = vector.load %arg15[%c0_83, %c0_84] : memref<8x64xf32, #tpu.memory_space<vmem>>, vector<8x64xf32>
    tpu.vector_store %arg15[%c0_83, %c0_84], %258 {strides = array<i32>} : memref<8x64xf32, #tpu.memory_space<vmem>>, vector<8x64xf32>,
    return
  }
  func.func @transform_0(%arg0: i32) -> (i32, i32) {
    %c0_i32 = arith.constant 0 : i32
    %c0_i32_0 = arith.constant 0 : i32
    return %arg0, %c0_i32 : i32, i32
  }
  func.func @transform_1(%arg0: i32) -> (i32, i32) {
    %c0_i32 = arith.constant 0 : i32
    %c0_i32_0 = arith.constant 0 : i32
    %c0_i32_1 = arith.constant 0 : i32
    return %c0_i32, %c0_i32_0 : i32, i32
  }
  func.func @transform_2(%arg0: i32) -> (i32, i32) {
    %c0_i32 = arith.constant 0 : i32
    %c0_i32_0 = arith.constant 0 : i32
    %c0_i32_1 = arith.constant 0 : i32
    return %c0_i32, %c0_i32_0 : i32, i32
  }
  func.func @transform_3(%arg0: i32) -> (i32, i32) {
    %c0_i32 = arith.constant 0 : i32
    %c0_i32_0 = arith.constant 0 : i32
    %c0_i32_1 = arith.constant 0 : i32
    return %c0_i32, %c0_i32_0 : i32, i32
  }
  func.func @transform_4(%arg0: i32) -> (i32, i32) {
    %c0_i32 = arith.constant 0 : i32
    %c0_i32_0 = arith.constant 0 : i32
    %c0_i32_1 = arith.constant 0 : i32
    return %c0_i32, %c0_i32_0 : i32, i32
  }
  func.func @transform_5(%arg0: i32) -> (i32, i32) {
    %c0_i32 = arith.constant 0 : i32
    %c0_i32_0 = arith.constant 0 : i32
    %c0_i32_1 = arith.constant 0 : i32
    return %c0_i32, %c0_i32_0 : i32, i32
  }
  func.func @transform_6(%arg0: i32) -> (i32, i32) {
    %c0_i32 = arith.constant 0 : i32
    %c0_i32_0 = arith.constant 0 : i32
    %c0_i32_1 = arith.constant 0 : i32
    return %c0_i32, %c0_i32_0 : i32, i32
  }
  func.func @transform_7(%arg0: i32) -> (i32, i32) {
    %c0_i32 = arith.constant 0 : i32
    %c0_i32_0 = arith.constant 0 : i32
    %c0_i32_1 = arith.constant 0 : i32
    return %c0_i32, %c0_i32_0 : i32, i32
  }
  func.func @transform_8(%arg0: i32) -> (i32, i32) {
    %c0_i32 = arith.constant 0 : i32
    %c0_i32_0 = arith.constant 0 : i32
    %c0_i32_1 = arith.constant 0 : i32
    return %c0_i32, %c0_i32_0 : i32, i32
  }
  func.func @transform_9(%arg0: i32) -> (i32, i32) {
    %c0_i32 = arith.constant 0 : i32
    %c0_i32_0 = arith.constant 0 : i32
    %c0_i32_1 = arith.constant 0 : i32
    return %c0_i32, %c0_i32_0 : i32, i32
  }
  func.func @transform_10(%arg0: i32) -> (i32, i32) {
    %c0_i32 = arith.constant 0 : i32
    %c0_i32_0 = arith.constant 0 : i32
    %c0_i32_1 = arith.constant 0 : i32
    return %c0_i32, %c0_i32_0 : i32, i32
  }
  func.func @transform_11(%arg0: i32) -> (i32, i32) {
    %c0_i32 = arith.constant 0 : i32
    %c0_i32_0 = arith.constant 0 : i32
    %c0_i32_1 = arith.constant 0 : i32
    return %c0_i32, %c0_i32_0 : i32, i32
  }
  func.func @transform_12(%arg0: i32) -> (i32, i32) {
    %c0_i32 = arith.constant 0 : i32
    %c0_i32_0 = arith.constant 0 : i32
    %c0_i32_1 = arith.constant 0 : i32
    return %c0_i32, %c0_i32_0 : i32, i32
  }
  func.func @transform_13(%arg0: i32) -> (i32, i32) {
    %c0_i32 = arith.constant 0 : i32
    %c0_i32_0 = arith.constant 0 : i32
    %c0_i32_1 = arith.constant 0 : i32
    return %c0_i32, %c0_i32_0 : i32, i32
  }
  func.func @transform_14(%arg0: i32) -> (i32, i32) {
    %c0_i32 = arith.constant 0 : i32
    %c0_i32_0 = arith.constant 0 : i32
    return %arg0, %c0_i32 : i32, i32
  }
}

module attributes {stable_mosaic.version = 11 : i64} {
  func.func @_tail_kernel(%arg0: i32, %arg1: memref<16x64xf32, #tpu.memory_space<vmem>>, %arg2: memref<24x32xf32, #tpu.memory_space<vmem>>, %arg3: memref<4x32x32xf32, #tpu.memory_space<vmem>>, %arg4: memref<4x24x24xf32, #tpu.memory_space<vmem>>, %arg5: memref<32x32xf32, #tpu.memory_space<vmem>>, %arg6: memref<1x32xf32, #tpu.memory_space<vmem>>, %arg7: memref<96x32xf32, #tpu.memory_space<vmem>>, %arg8: memref<96x32xf32, #tpu.memory_space<vmem>>, %arg9: memref<96x16xf32, #tpu.memory_space<vmem>>, %arg10: memref<16x1xf32, #tpu.memory_space<vmem>>, %arg11: memref<1x1xf32, #tpu.memory_space<vmem>>, %arg12: memref<16x1xf32, #tpu.memory_space<vmem>>) attributes {dimension_semantics = [#tpu.dimension_semantics<arbitrary>], iteration_bounds = array<i64: 1>, scalar_prefetch = 0 : i64, scratch_operands = 0 : i64, tpu.core_type = #tpu.core_type<tc>, window_params = [{pipeline_mode = #tpu.pipeline_mode<synchronous>, transform_indices = @transform_0, window_bounds = array<i64: 16, 64>}, {pipeline_mode = #tpu.pipeline_mode<synchronous>, transform_indices = @transform_1, window_bounds = array<i64: 24, 32>}, {pipeline_mode = #tpu.pipeline_mode<synchronous>, transform_indices = @transform_2, window_bounds = array<i64: 4, 32, 32>}, {pipeline_mode = #tpu.pipeline_mode<synchronous>, transform_indices = @transform_3, window_bounds = array<i64: 4, 24, 24>}, {pipeline_mode = #tpu.pipeline_mode<synchronous>, transform_indices = @transform_4, window_bounds = array<i64: 32, 32>}, {pipeline_mode = #tpu.pipeline_mode<synchronous>, transform_indices = @transform_5, window_bounds = array<i64: 1, 32>}, {pipeline_mode = #tpu.pipeline_mode<synchronous>, transform_indices = @transform_6, window_bounds = array<i64: 96, 32>}, {pipeline_mode = #tpu.pipeline_mode<synchronous>, transform_indices = @transform_7, window_bounds = array<i64: 96, 32>}, {pipeline_mode = #tpu.pipeline_mode<synchronous>, transform_indices = @transform_8, window_bounds = array<i64: 96, 16>}, {pipeline_mode = #tpu.pipeline_mode<synchronous>, transform_indices = @transform_9, window_bounds = array<i64: 16, 1>}, {pipeline_mode = #tpu.pipeline_mode<synchronous>, transform_indices = @transform_10, window_bounds = array<i64: 1, 1>}, {pipeline_mode = #tpu.pipeline_mode<synchronous>, transform_indices = @transform_11, window_bounds = array<i64: 16, 1>}]} {
    %c0 = arith.constant 0 : index
    %c0_0 = arith.constant 0 : index
    %0 = vector.load %arg2[%c0, %c0_0] : memref<24x32xf32, #tpu.memory_space<vmem>>, vector<24x32xf32>
    %c0_1 = arith.constant 0 : index
    %c0_2 = arith.constant 0 : index
    %1 = vector.load %arg5[%c0_1, %c0_2] : memref<32x32xf32, #tpu.memory_space<vmem>>, vector<32x32xf32>
    %2 = arith.truncf %0 : vector<24x32xf32> to vector<24x32xbf16>
    %3 = arith.truncf %1 : vector<32x32xf32> to vector<32x32xbf16>
    %cst = arith.constant dense<0.000000e+00> : vector<24x32xf32>
    %4 = tpu.matmul %2, %3, %cst {dimension_numbers = #tpu.dot_dimension_numbers<[1], [0], [0], [1], [0, 0, 1, 1], [], []>} : vector<24x32xbf16>, vector<32x32xbf16>, vector<24x32xf32> -> vector<24x32xf32>
    %c0_3 = arith.constant 0 : index
    %c0_4 = arith.constant 0 : index
    %5 = vector.load %arg6[%c0_3, %c0_4] : memref<1x32xf32, #tpu.memory_space<vmem>>, vector<1x32xf32>
    %6 = vector.broadcast %5 : vector<1x32xf32> to vector<24x32xf32>
    %7 = arith.addf %4, %6 : vector<24x32xf32>
    %c0_5 = arith.constant 0 : index
    %c0_6 = arith.constant 0 : index
    %c0_7 = arith.constant 0 : index
    %8 = vector.load %arg4[%c0_5, %c0_6, %c0_7] : memref<4x24x24xf32, #tpu.memory_space<vmem>>, vector<1x24x24xf32>
    %9 = vector.shape_cast %8 : vector<1x24x24xf32> to vector<24x24xf32>
    %c0_8 = arith.constant 0 : index
    %c0_9 = arith.constant 0 : index
    %c0_10 = arith.constant 0 : index
    %10 = vector.load %arg3[%c0_8, %c0_9, %c0_10] : memref<4x32x32xf32, #tpu.memory_space<vmem>>, vector<1x32x32xf32>
    %11 = vector.shape_cast %10 : vector<1x32x32xf32> to vector<32x32xf32>
    %12 = arith.truncf %0 : vector<24x32xf32> to vector<24x32xbf16>
    %13 = arith.truncf %11 : vector<32x32xf32> to vector<32x32xbf16>
    %cst_11 = arith.constant dense<0.000000e+00> : vector<24x32xf32>
    %14 = tpu.matmul %12, %13, %cst_11 {dimension_numbers = #tpu.dot_dimension_numbers<[1], [0], [0], [1], [0, 0, 1, 1], [], []>} : vector<24x32xbf16>, vector<32x32xbf16>, vector<24x32xf32> -> vector<24x32xf32>
    %15 = arith.truncf %9 : vector<24x24xf32> to vector<24x24xbf16>
    %16 = arith.truncf %14 : vector<24x32xf32> to vector<24x32xbf16>
    %cst_12 = arith.constant dense<0.000000e+00> : vector<24x32xf32>
    %17 = tpu.matmul %15, %16, %cst_12 {dimension_numbers = #tpu.dot_dimension_numbers<[1], [0], [0], [1], [0, 0, 1, 1], [], []>} : vector<24x24xbf16>, vector<24x32xbf16>, vector<24x32xf32> -> vector<24x32xf32>
    %18 = arith.addf %7, %17 : vector<24x32xf32>
    %c1 = arith.constant 1 : index
    %c0_13 = arith.constant 0 : index
    %c0_14 = arith.constant 0 : index
    %19 = vector.load %arg4[%c1, %c0_13, %c0_14] : memref<4x24x24xf32, #tpu.memory_space<vmem>>, vector<1x24x24xf32>
    %20 = vector.shape_cast %19 : vector<1x24x24xf32> to vector<24x24xf32>
    %c1_15 = arith.constant 1 : index
    %c0_16 = arith.constant 0 : index
    %c0_17 = arith.constant 0 : index
    %21 = vector.load %arg3[%c1_15, %c0_16, %c0_17] : memref<4x32x32xf32, #tpu.memory_space<vmem>>, vector<1x32x32xf32>
    %22 = vector.shape_cast %21 : vector<1x32x32xf32> to vector<32x32xf32>
    %23 = arith.truncf %0 : vector<24x32xf32> to vector<24x32xbf16>
    %24 = arith.truncf %22 : vector<32x32xf32> to vector<32x32xbf16>
    %cst_18 = arith.constant dense<0.000000e+00> : vector<24x32xf32>
    %25 = tpu.matmul %23, %24, %cst_18 {dimension_numbers = #tpu.dot_dimension_numbers<[1], [0], [0], [1], [0, 0, 1, 1], [], []>} : vector<24x32xbf16>, vector<32x32xbf16>, vector<24x32xf32> -> vector<24x32xf32>
    %26 = arith.truncf %20 : vector<24x24xf32> to vector<24x24xbf16>
    %27 = arith.truncf %25 : vector<24x32xf32> to vector<24x32xbf16>
    %cst_19 = arith.constant dense<0.000000e+00> : vector<24x32xf32>
    %28 = tpu.matmul %26, %27, %cst_19 {dimension_numbers = #tpu.dot_dimension_numbers<[1], [0], [0], [1], [0, 0, 1, 1], [], []>} : vector<24x24xbf16>, vector<24x32xbf16>, vector<24x32xf32> -> vector<24x32xf32>
    %29 = arith.addf %18, %28 : vector<24x32xf32>
    %c2 = arith.constant 2 : index
    %c0_20 = arith.constant 0 : index
    %c0_21 = arith.constant 0 : index
    %30 = vector.load %arg4[%c2, %c0_20, %c0_21] : memref<4x24x24xf32, #tpu.memory_space<vmem>>, vector<1x24x24xf32>
    %31 = vector.shape_cast %30 : vector<1x24x24xf32> to vector<24x24xf32>
    %c2_22 = arith.constant 2 : index
    %c0_23 = arith.constant 0 : index
    %c0_24 = arith.constant 0 : index
    %32 = vector.load %arg3[%c2_22, %c0_23, %c0_24] : memref<4x32x32xf32, #tpu.memory_space<vmem>>, vector<1x32x32xf32>
    %33 = vector.shape_cast %32 : vector<1x32x32xf32> to vector<32x32xf32>
    %34 = arith.truncf %0 : vector<24x32xf32> to vector<24x32xbf16>
    %35 = arith.truncf %33 : vector<32x32xf32> to vector<32x32xbf16>
    %cst_25 = arith.constant dense<0.000000e+00> : vector<24x32xf32>
    %36 = tpu.matmul %34, %35, %cst_25 {dimension_numbers = #tpu.dot_dimension_numbers<[1], [0], [0], [1], [0, 0, 1, 1], [], []>} : vector<24x32xbf16>, vector<32x32xbf16>, vector<24x32xf32> -> vector<24x32xf32>
    %37 = arith.truncf %31 : vector<24x24xf32> to vector<24x24xbf16>
    %38 = arith.truncf %36 : vector<24x32xf32> to vector<24x32xbf16>
    %cst_26 = arith.constant dense<0.000000e+00> : vector<24x32xf32>
    %39 = tpu.matmul %37, %38, %cst_26 {dimension_numbers = #tpu.dot_dimension_numbers<[1], [0], [0], [1], [0, 0, 1, 1], [], []>} : vector<24x24xbf16>, vector<24x32xbf16>, vector<24x32xf32> -> vector<24x32xf32>
    %40 = arith.addf %29, %39 : vector<24x32xf32>
    %c3 = arith.constant 3 : index
    %c0_27 = arith.constant 0 : index
    %c0_28 = arith.constant 0 : index
    %41 = vector.load %arg4[%c3, %c0_27, %c0_28] : memref<4x24x24xf32, #tpu.memory_space<vmem>>, vector<1x24x24xf32>
    %42 = vector.shape_cast %41 : vector<1x24x24xf32> to vector<24x24xf32>
    %c3_29 = arith.constant 3 : index
    %c0_30 = arith.constant 0 : index
    %c0_31 = arith.constant 0 : index
    %43 = vector.load %arg3[%c3_29, %c0_30, %c0_31] : memref<4x32x32xf32, #tpu.memory_space<vmem>>, vector<1x32x32xf32>
    %44 = vector.shape_cast %43 : vector<1x32x32xf32> to vector<32x32xf32>
    %45 = arith.truncf %0 : vector<24x32xf32> to vector<24x32xbf16>
    %46 = arith.truncf %44 : vector<32x32xf32> to vector<32x32xbf16>
    %cst_32 = arith.constant dense<0.000000e+00> : vector<24x32xf32>
    %47 = tpu.matmul %45, %46, %cst_32 {dimension_numbers = #tpu.dot_dimension_numbers<[1], [0], [0], [1], [0, 0, 1, 1], [], []>} : vector<24x32xbf16>, vector<32x32xbf16>, vector<24x32xf32> -> vector<24x32xf32>
    %48 = arith.truncf %42 : vector<24x24xf32> to vector<24x24xbf16>
    %49 = arith.truncf %47 : vector<24x32xf32> to vector<24x32xbf16>
    %cst_33 = arith.constant dense<0.000000e+00> : vector<24x32xf32>
    %50 = tpu.matmul %48, %49, %cst_33 {dimension_numbers = #tpu.dot_dimension_numbers<[1], [0], [0], [1], [0, 0, 1, 1], [], []>} : vector<24x24xbf16>, vector<24x32xbf16>, vector<24x32xf32> -> vector<24x32xf32>
    %51 = arith.addf %40, %50 : vector<24x32xf32>
    %c0_34 = arith.constant 0 : index
    %c0_35 = arith.constant 0 : index
    %52 = vector.load %arg1[%c0_34, %c0_35] : memref<16x64xf32, #tpu.memory_space<vmem>>, vector<16x64xf32>
    %53 = vector.extract_strided_slice %51 {offsets = [0, 0], sizes = [16, 32], strides = [1, 1]} : vector<24x32xf32> to vector<16x32xf32>
    %54 = tpu.concatenate %52, %53 in 1 : vector<16x64xf32>, vector<16x32xf32> -> vector<16x96xf32>
    %c0_36 = arith.constant 0 : index
    %c0_37 = arith.constant 0 : index
    %55 = vector.load %arg7[%c0_36, %c0_37] : memref<96x32xf32, #tpu.memory_space<vmem>>, vector<96x32xf32>
    %56 = arith.truncf %54 : vector<16x96xf32> to vector<16x96xbf16>
    %57 = arith.truncf %55 : vector<96x32xf32> to vector<96x32xbf16>
    %cst_38 = arith.constant dense<0.000000e+00> : vector<16x32xf32>
    %58 = tpu.matmul %56, %57, %cst_38 {dimension_numbers = #tpu.dot_dimension_numbers<[1], [0], [0], [1], [0, 0, 1, 1], [], []>} : vector<16x96xbf16>, vector<96x32xbf16>, vector<16x32xf32> -> vector<16x32xf32>
    %c0_39 = arith.constant 0 : index
    %c0_40 = arith.constant 0 : index
    %59 = vector.load %arg8[%c0_39, %c0_40] : memref<96x32xf32, #tpu.memory_space<vmem>>, vector<96x32xf32>
    %60 = arith.truncf %54 : vector<16x96xf32> to vector<16x96xbf16>
    %61 = arith.truncf %59 : vector<96x32xf32> to vector<96x32xbf16>
    %cst_41 = arith.constant dense<0.000000e+00> : vector<16x32xf32>
    %62 = tpu.matmul %60, %61, %cst_41 {dimension_numbers = #tpu.dot_dimension_numbers<[1], [0], [0], [1], [0, 0, 1, 1], [], []>} : vector<16x96xbf16>, vector<96x32xbf16>, vector<16x32xf32> -> vector<16x32xf32>
    %c0_42 = arith.constant 0 : index
    %c0_43 = arith.constant 0 : index
    %63 = vector.load %arg9[%c0_42, %c0_43] : memref<96x16xf32, #tpu.memory_space<vmem>>, vector<96x16xf32>
    %64 = arith.truncf %54 : vector<16x96xf32> to vector<16x96xbf16>
    %65 = arith.truncf %63 : vector<96x16xf32> to vector<96x16xbf16>
    %cst_44 = arith.constant dense<0.000000e+00> : vector<16x16xf32>
    %66 = tpu.matmul %64, %65, %cst_44 {dimension_numbers = #tpu.dot_dimension_numbers<[1], [0], [0], [1], [0, 0, 1, 1], [], []>} : vector<16x96xbf16>, vector<96x16xbf16>, vector<16x16xf32> -> vector<16x16xf32>
    %67 = arith.truncf %58 : vector<16x32xf32> to vector<16x32xbf16>
    %68 = arith.truncf %62 : vector<16x32xf32> to vector<16x32xbf16>
    %cst_45 = arith.constant dense<0.000000e+00> : vector<16x16xf32>
    %69 = tpu.matmul %67, %68, %cst_45 {dimension_numbers = #tpu.dot_dimension_numbers<[1], [1], [0], [0], [0, 0, 1, 0], [], []>} : vector<16x32xbf16>, vector<16x32xbf16>, vector<16x16xf32> -> vector<16x16xf32>
    %cst_46 = arith.constant 0.176776692 : f32
    %70 = vector.broadcast %cst_46 : f32 to vector<16x16xf32>
    %71 = arith.mulf %69, %70 : vector<16x16xf32>
    %cst_47 = arith.constant dense<0xFF800000> : vector<16xf32>
    %72 = vector.multi_reduction <maximumf>, %71, %cst_47 [1] : vector<16x16xf32> to vector<16xf32>
    %73 = vector.shape_cast %72 : vector<16xf32> to vector<16x1xf32>
    %74 = vector.broadcast %73 : vector<16x1xf32> to vector<16x16xf32>
    %75 = arith.subf %71, %74 : vector<16x16xf32>
    %76 = math.exp %75 : vector<16x16xf32>
    %cst_48 = arith.constant dense<0.000000e+00> : vector<16xf32>
    %77 = vector.multi_reduction <add>, %76, %cst_48 [1] : vector<16x16xf32> to vector<16xf32>
    %78 = vector.shape_cast %77 : vector<16xf32> to vector<16x1xf32>
    %79 = tpu.reciprocal %78 {approx = true} : vector<16x1xf32> -> vector<16x1xf32>
    %80 = vector.broadcast %79 : vector<16x1xf32> to vector<16x16xf32>
    %81 = arith.mulf %76, %80 : vector<16x16xf32>
    %82 = arith.truncf %81 : vector<16x16xf32> to vector<16x16xbf16>
    %83 = arith.truncf %66 : vector<16x16xf32> to vector<16x16xbf16>
    %cst_49 = arith.constant dense<0.000000e+00> : vector<16x16xf32>
    %84 = tpu.matmul %82, %83, %cst_49 {dimension_numbers = #tpu.dot_dimension_numbers<[1], [0], [0], [1], [0, 0, 1, 1], [], []>} : vector<16x16xbf16>, vector<16x16xbf16>, vector<16x16xf32> -> vector<16x16xf32>
    %c0_50 = arith.constant 0 : index
    %c0_51 = arith.constant 0 : index
    %85 = vector.load %arg10[%c0_50, %c0_51] : memref<16x1xf32, #tpu.memory_space<vmem>>, vector<16x1xf32>
    %86 = arith.truncf %84 : vector<16x16xf32> to vector<16x16xbf16>
    %87 = arith.truncf %85 : vector<16x1xf32> to vector<16x1xbf16>
    %cst_52 = arith.constant dense<0.000000e+00> : vector<16x1xf32>
    %88 = tpu.matmul %86, %87, %cst_52 {dimension_numbers = #tpu.dot_dimension_numbers<[1], [0], [0], [1], [0, 0, 1, 1], [], []>} : vector<16x16xbf16>, vector<16x1xbf16>, vector<16x1xf32> -> vector<16x1xf32>
    %c0_53 = arith.constant 0 : index
    %c0_54 = arith.constant 0 : index
    %89 = vector.load %arg11[%c0_53, %c0_54] : memref<1x1xf32, #tpu.memory_space<vmem>>, vector<1x1xf32>
    %90 = vector.broadcast %89 : vector<1x1xf32> to vector<16x1xf32>
    %91 = arith.addf %88, %90 : vector<16x1xf32>
    %c0_55 = arith.constant 0 : index
    %c0_56 = arith.constant 0 : index
    %92 = vector.load %arg12[%c0_55, %c0_56] : memref<16x1xf32, #tpu.memory_space<vmem>>, vector<16x1xf32>
    tpu.vector_store %arg12[%c0_55, %c0_56], %91 {strides = array<i32>} : memref<16x1xf32, #tpu.memory_space<vmem>>, vector<16x1xf32>,
    return
  }
  func.func @transform_0(%arg0: i32) -> (i32, i32) {
    %c0_i32 = arith.constant 0 : i32
    %c0_i32_0 = arith.constant 0 : i32
    %c0_i32_1 = arith.constant 0 : i32
    return %c0_i32, %c0_i32_0 : i32, i32
  }
  func.func @transform_1(%arg0: i32) -> (i32, i32) {
    %c0_i32 = arith.constant 0 : i32
    %c0_i32_0 = arith.constant 0 : i32
    %c0_i32_1 = arith.constant 0 : i32
    return %c0_i32, %c0_i32_0 : i32, i32
  }
  func.func @transform_2(%arg0: i32) -> (i32, i32, i32) {
    %c0_i32 = arith.constant 0 : i32
    %c0_i32_0 = arith.constant 0 : i32
    %c0_i32_1 = arith.constant 0 : i32
    %c0_i32_2 = arith.constant 0 : i32
    return %c0_i32, %c0_i32_0, %c0_i32_1 : i32, i32, i32
  }
  func.func @transform_3(%arg0: i32) -> (i32, i32, i32) {
    %c0_i32 = arith.constant 0 : i32
    %c0_i32_0 = arith.constant 0 : i32
    %c0_i32_1 = arith.constant 0 : i32
    %c0_i32_2 = arith.constant 0 : i32
    return %c0_i32, %c0_i32_0, %c0_i32_1 : i32, i32, i32
  }
  func.func @transform_4(%arg0: i32) -> (i32, i32) {
    %c0_i32 = arith.constant 0 : i32
    %c0_i32_0 = arith.constant 0 : i32
    %c0_i32_1 = arith.constant 0 : i32
    return %c0_i32, %c0_i32_0 : i32, i32
  }
  func.func @transform_5(%arg0: i32) -> (i32, i32) {
    %c0_i32 = arith.constant 0 : i32
    %c0_i32_0 = arith.constant 0 : i32
    %c0_i32_1 = arith.constant 0 : i32
    return %c0_i32, %c0_i32_0 : i32, i32
  }
  func.func @transform_6(%arg0: i32) -> (i32, i32) {
    %c0_i32 = arith.constant 0 : i32
    %c0_i32_0 = arith.constant 0 : i32
    %c0_i32_1 = arith.constant 0 : i32
    return %c0_i32, %c0_i32_0 : i32, i32
  }
  func.func @transform_7(%arg0: i32) -> (i32, i32) {
    %c0_i32 = arith.constant 0 : i32
    %c0_i32_0 = arith.constant 0 : i32
    %c0_i32_1 = arith.constant 0 : i32
    return %c0_i32, %c0_i32_0 : i32, i32
  }
  func.func @transform_8(%arg0: i32) -> (i32, i32) {
    %c0_i32 = arith.constant 0 : i32
    %c0_i32_0 = arith.constant 0 : i32
    %c0_i32_1 = arith.constant 0 : i32
    return %c0_i32, %c0_i32_0 : i32, i32
  }
  func.func @transform_9(%arg0: i32) -> (i32, i32) {
    %c0_i32 = arith.constant 0 : i32
    %c0_i32_0 = arith.constant 0 : i32
    %c0_i32_1 = arith.constant 0 : i32
    return %c0_i32, %c0_i32_0 : i32, i32
  }
  func.func @transform_10(%arg0: i32) -> (i32, i32) {
    %c0_i32 = arith.constant 0 : i32
    %c0_i32_0 = arith.constant 0 : i32
    %c0_i32_1 = arith.constant 0 : i32
    return %c0_i32, %c0_i32_0 : i32, i32
  }
  func.func @transform_11(%arg0: i32) -> (i32, i32) {
    %c0_i32 = arith.constant 0 : i32
    %c0_i32_0 = arith.constant 0 : i32
    %c0_i32_1 = arith.constant 0 : i32
    return %c0_i32, %c0_i32_0 : i32, i32
  }
}

</mosaic_0001>

<llo_original>
// kernel: tile.9
$region0: #{tile.9}
  %s0 = inlined_call_operand.vmem [shape: f32[16,12,64], index: 0, kind: input, shape index: {}]
  %s1 = inlined_call_operand.vmem [shape: f32[192,64], index: 1, kind: output, shape index: {}]
  %v2 = vld [vmem:[%s0] sm:$0xff]
  %vm3 = vcmask 523264
  %4 = vst.msk [vmem:[%s1] sm:$0xff] %vm3, %v2
  %s5 = scalar_lea.vmem %s0, 8
  %v6 = vld [vmem:[%s5] sm:$0xf]
  %vm7 = vcmask 523264
  %s8 = scalar_lea.vmem %s1, 8
  %9 = vst.msk [vmem:[%s8] sm:$0xf] %vm7, %v6
  %s10 = scalar_lea.vmem %s0, 16
  %v11 = vld [vmem:[%s10] sm:$0xff]
  %vm12 = vcmask 523264
  %s13 = scalar_lea.vmem %s1, 12
  %14 = vst.msk [vmem:[%s13] sm:$0xff] %vm12, %v11
  %s15 = scalar_lea.vmem %s0, 24
  %v16 = vld [vmem:[%s15] sm:$0xf]
  %vm17 = vcmask 523264
  %s18 = scalar_lea.vmem %s1, 20
  %19 = vst.msk [vmem:[%s18] sm:$0xf] %vm17, %v16
  %s20 = scalar_lea.vmem %s0, 32
  %v21 = vld [vmem:[%s20] sm:$0xff]
  %vm22 = vcmask 523264
  %s23 = scalar_lea.vmem %s1, 24
  %24 = vst.msk [vmem:[%s23] sm:$0xff] %vm22, %v21
  %s25 = scalar_lea.vmem %s0, 40
  %v26 = vld [vmem:[%s25] sm:$0xf]
  %vm27 = vcmask 523264
  %s28 = scalar_lea.vmem %s1, 32
  %29 = vst.msk [vmem:[%s28] sm:$0xf] %vm27, %v26
  %s30 = scalar_lea.vmem %s0, 48
  %v31 = vld [vmem:[%s30] sm:$0xff]
  %vm32 = vcmask 523264
  %s33 = scalar_lea.vmem %s1, 36
  %34 = vst.msk [vmem:[%s33] sm:$0xff] %vm32, %v31
  %s35 = scalar_lea.vmem %s0, 56
  %v36 = vld [vmem:[%s35] sm:$0xf]
  %vm37 = vcmask 523264
  %s38 = scalar_lea.vmem %s1, 44
  %39 = vst.msk [vmem:[%s38] sm:$0xf] %vm37, %v36
  %s40 = scalar_lea.vmem %s0, 64
  %v41 = vld [vmem:[%s40] sm:$0xff]
  %vm42 = vcmask 523264
  %s43 = scalar_lea.vmem %s1, 48
  %44 = vst.msk [vmem:[%s43] sm:$0xff] %vm42, %v41
  %s45 = scalar_lea.vmem %s0, 72
  %v46 = vld [vmem:[%s45] sm:$0xf]
  %vm47 = vcmask 523264
  %s48 = scalar_lea.vmem %s1, 56
  %49 = vst.msk [vmem:[%s48] sm:$0xf] %vm47, %v46
  %s50 = scalar_lea.vmem %s0, 80
  %v51 = vld [vmem:[%s50] sm:$0xff]
  %vm52 = vcmask 523264
  %s53 = scalar_lea.vmem %s1, 60
  %54 = vst.msk [vmem:[%s53] sm:$0xff] %vm52, %v51
  %s55 = scalar_lea.vmem %s0, 88
  %v56 = vld [vmem:[%s55] sm:$0xf]
  %vm57 = vcmask 523264
  %s58 = scalar_lea.vmem %s1, 68
  %59 = vst.msk [vmem:[%s58] sm:$0xf] %vm57, %v56
  %s60 = scalar_lea.vmem %s0, 96
  %v61 = vld [vmem:[%s60] sm:$0xff]
  %vm62 = vcmask 523264
  %s63 = scalar_lea.vmem %s1, 72
  %64 = vst.msk [vmem:[%s63] sm:$0xff] %vm62, %v61
  %s65 = scalar_lea.vmem %s0, 104
  %v66 = vld [vmem:[%s65] sm:$0xf]
  %vm67 = vcmask 523264
  %s68 = scalar_lea.vmem %s1, 80
  %69 = vst.msk [vmem:[%s68] sm:$0xf] %vm67, %v66
  %s70 = scalar_lea.vmem %s0, 112
  %v71 = vld [vmem:[%s70] sm:$0xff]
  %vm72 = vcmask 523264
  %s73 = scalar_lea.vmem %s1, 84
  %74 = vst.msk [vmem:[%s73] sm:$0xff] %vm72, %v71
  %s75 = scalar_lea.vmem %s0, 120
  %v76 = vld [vmem:[%s75] sm:$0xf]
  %vm77 = vcmask 523264
  %s78 = scalar_lea.vmem %s1, 92
  %79 = vst.msk [vmem:[%s78] sm:$0xf] %vm77, %v76
  %s80 = scalar_lea.vmem %s0, 128
  %v81 = vld [vmem:[%s80] sm:$0xff]
  %vm82 = vcmask 523264
  %s83 = scalar_lea.vmem %s1, 96
  %84 = vst.msk [vmem:[%s83] sm:$0xff] %vm82, %v81
  %s85 = scalar_lea.vmem %s0, 136
  %v86 = vld [vmem:[%s85] sm:$0xf]
  %vm87 = vcmask 523264
  %s88 = scalar_lea.vmem %s1, 104
  %89 = vst.msk [vmem:[%s88] sm:$0xf] %vm87, %v86
  %s90 = scalar_lea.vmem %s0, 144
  %v91 = vld [vmem:[%s90] sm:$0xff]
  %vm92 = vcmask 523264
  %s93 = scalar_lea.vmem %s1, 108
  %94 = vst.msk [vmem:[%s93] sm:$0xff] %vm92, %v91
  %s95 = scalar_lea.vmem %s0, 152
  %v96 = vld [vmem:[%s95] sm:$0xf]
  %vm97 = vcmask 523264
  %s98 = scalar_lea.vmem %s1, 116
  %99 = vst.msk [vmem:[%s98] sm:$0xf] %vm97, %v96
  %s100 = scalar_lea.vmem %s0, 160
  %v101 = vld [vmem:[%s100] sm:$0xff]
  %vm102 = vcmask 523264
  %s103 = scalar_lea.vmem %s1, 120
  %104 = vst.msk [vmem:[%s103] sm:$0xff] %vm102, %v101
  %s105 = scalar_lea.vmem %s0, 168
  %v106 = vld [vmem:[%s105] sm:$0xf]
  %vm107 = vcmask 523264
  %s108 = scalar_lea.vmem %s1, 128
  %109 = vst.msk [vmem:[%s108] sm:$0xf] %vm107, %v106
  %s110 = scalar_lea.vmem %s0, 176
  %v111 = vld [vmem:[%s110] sm:$0xff]
  %vm112 = vcmask 523264
  %s113 = scalar_lea.vmem %s1, 132
  %114 = vst.msk [vmem:[%s113] sm:$0xff] %vm112, %v111
  %s115 = scalar_lea.vmem %s0, 184
  %v116 = vld [vmem:[%s115] sm:$0xf]
  %vm117 = vcmask 523264
  %s118 = scalar_lea.vmem %s1, 140
  %119 = vst.msk [vmem:[%s118] sm:$0xf] %vm117, %v116
  %s120 = scalar_lea.vmem %s0, 192
  %v121 = vld [vmem:[%s120] sm:$0xff]
  %vm122 = vcmask 523264
  %s123 = scalar_lea.vmem %s1, 144
  %124 = vst.msk [vmem:[%s123] sm:$0xff] %vm122, %v121
  %s125 = scalar_lea.vmem %s0, 200
  %v126 = vld [vmem:[%s125] sm:$0xf]
  %vm127 = vcmask 523264
  %s128 = scalar_lea.vmem %s1, 152
  %129 = vst.msk [vmem:[%s128] sm:$0xf] %vm127, %v126
  %s130 = scalar_lea.vmem %s0, 208
  %v131 = vld [vmem:[%s130] sm:$0xff]
  %vm132 = vcmask 523264
  %s133 = scalar_lea.vmem %s1, 156
  %134 = vst.msk [vmem:[%s133] sm:$0xff] %vm132, %v131
  %s135 = scalar_lea.vmem %s0, 216
  %v136 = vld [vmem:[%s135] sm:$0xf]
  %vm137 = vcmask 523264
  %s138 = scalar_lea.vmem %s1, 164
  %139 = vst.msk [vmem:[%s138] sm:$0xf] %vm137, %v136
  %s140 = scalar_lea.vmem %s0, 224
  %v141 = vld [vmem:[%s140] sm:$0xff]
  %vm142 = vcmask 523264
  %s143 = scalar_lea.vmem %s1, 168
  %144 = vst.msk [vmem:[%s143] sm:$0xff] %vm142, %v141
  %s145 = scalar_lea.vmem %s0, 232
  %v146 = vld [vmem:[%s145] sm:$0xf]
  %vm147 = vcmask 523264
  %s148 = scalar_lea.vmem %s1, 176
  %149 = vst.msk [vmem:[%s148] sm:$0xf] %vm147, %v146
  %s150 = scalar_lea.vmem %s0, 240
  %v151 = vld [vmem:[%s150] sm:$0xff]
  %vm152 = vcmask 523264
  %s153 = scalar_lea.vmem %s1, 180
  %154 = vst.msk [vmem:[%s153] sm:$0xff] %vm152, %v151
  %s155 = scalar_lea.vmem %s0, 248
  %v156 = vld [vmem:[%s155] sm:$0xf]
  %vm157 = vcmask 523264
  %s158 = scalar_lea.vmem %s1, 188
  %159 = vst.msk [vmem:[%s158] sm:$0xf] %vm157, %v156

// kernel: mrkgcn_forward.3
$region0: #{mrkgcn_forward.3}
  #allocation0 [shape = 'u32[]', space=smem, size = 0x4, offset = 0x4, fixed_abs, tag = 'smem constant byte address 0x4 - core index']
  #allocation1 [shape = 'u32[144,128]{1,0:T(1,128)}', space=vmem, size = 0x12000, scoped, tag = 'internal scratch']
  %s0 = inlined_call_operand.vmem [shape: f32[192,8], index: 0, kind: input, shape index: {}]
  %s1 = inlined_call_operand.vmem [shape: f32[8,64], index: 1, kind: input, shape index: {}]
  %s2 = inlined_call_operand.vmem [shape: f32[1,64], index: 2, kind: input, shape index: {}]
  %s3 = inlined_call_operand.vmem [shape: f32[4,64,64], index: 3, kind: input, shape index: {}]
  %s4 = inlined_call_operand.vmem [shape: f32[4,192,192], index: 4, kind: input, shape index: {}]
  %s5 = inlined_call_operand.vmem [shape: f32[64,64], index: 5, kind: input, shape index: {}]
  %s6 = inlined_call_operand.vmem [shape: f32[1,64], index: 6, kind: input, shape index: {}]
  %s7 = inlined_call_operand.vmem [shape: f32[192,64], index: 7, kind: input, shape index: {}]
  %s8 = inlined_call_operand.vmem [shape: f32[192,64], index: 8, kind: output, shape index: {}]
  %s9 = sld [smem:[#allocation0]]
  $region42: #{mrkgcn_forward.3} parent=0
    _
  %s11 = ssub.s32 1, %s9
  %s12 = scalar_select 0, %s11, %s9
  // Predicated region
  $region2: #{mrkgcn_forward.3} parent=0 // pred_check
    _
  $region3: #{mrkgcn_forward.3} parent=0 // pred_check_branch
    %14 = sbr.rel (0) target = $region5
  $region4: #{mrkgcn_forward.3} parent=0 // pred_region
    _
  $region5: #{mrkgcn_forward.3} parent=0 // pred_fallthru
    _
  // Predicated region
  $region6: #{mrkgcn_forward.3} parent=0 // pred_check
    _
  $region7: #{mrkgcn_forward.3} parent=0 // pred_check_branch
    %16 = sbr.rel (0) target = $region9
  $region8: #{mrkgcn_forward.3} parent=0 // pred_region
    _
  $region9: #{mrkgcn_forward.3} parent=0 // pred_fallthru
    _
  // Predicated region
  $region10: #{mrkgcn_forward.3} parent=0 // pred_check
    _
  $region11: #{mrkgcn_forward.3} parent=0 // pred_check_branch
    %18 = sbr.rel (0) target = $region13
  $region12: #{mrkgcn_forward.3} parent=0 // pred_region
    _
  $region13: #{mrkgcn_forward.3} parent=0 // pred_fallthru
    _
  // Predicated region
  $region14: #{mrkgcn_forward.3} parent=0 // pred_check
    _
  $region15: #{mrkgcn_forward.3} parent=0 // pred_check_branch
    %20 = sbr.rel (0) target = $region17
  $region16: #{mrkgcn_forward.3} parent=0 // pred_region
    _
  $region17: #{mrkgcn_forward.3} parent=0 // pred_fallthru
    _
  // Predicated region
  $region18: #{mrkgcn_forward.3} parent=0 // pred_check
    _
  $region19: #{mrkgcn_forward.3} parent=0 // pred_check_branch
    %22 = sbr.rel (0) target = $region21
  $region20: #{mrkgcn_forward.3} parent=0 // pred_region
    _
  $region21: #{mrkgcn_forward.3} parent=0 // pred_fallthru
    _
  // Predicated region
  $region22: #{mrkgcn_forward.3} parent=0 // pred_check
    _
  $region23: #{mrkgcn_forward.3} parent=0 // pred_check_branch
    %24 = sbr.rel (0) target = $region25
  $region24: #{mrkgcn_forward.3} parent=0 // pred_region
    _
  $region25: #{mrkgcn_forward.3} parent=0 // pred_fallthru
    _
  // Predicated region
  $region26: #{mrkgcn_forward.3} parent=0 // pred_check
    _
  $region27: #{mrkgcn_forward.3} parent=0 // pred_check_branch
    %26 = sbr.rel (0) target = $region29
  $region28: #{mrkgcn_forward.3} parent=0 // pred_region
    _
  $region29: #{mrkgcn_forward.3} parent=0 // pred_fallthru
    _
  // Predicated region
  $region30: #{mrkgcn_forward.3} parent=0 // pred_check
    _
  $region31: #{mrkgcn_forward.3} parent=0 // pred_check_branch
    %28 = sbr.rel (0) target = $region33
  $region32: #{mrkgcn_forward.3} parent=0 // pred_region
    _
  $region33: #{mrkgcn_forward.3} parent=0 // pred_fallthru
    _
  %v30 = vld [vmem:[%s0] sm:$0xff]
  %v31 = vld [vmem:[%s0 + $0x8] sm:$0xff]
  %v32 = vld [vmem:[%s0 + $0x10] sm:$0xff]
  %v33 = vld [vmem:[%s0 + $0x18] sm:$0xff]
  %v34 = vld [vmem:[%s0 + $0x20] sm:$0xff]
  %v35 = vld [vmem:[%s0 + $0x28] sm:$0xff]
  %v36 = vld [vmem:[%s0 + $0x30] sm:$0xff]
  %v37 = vld [vmem:[%s0 + $0x38] sm:$0xff]
  %v38 = vld [vmem:[%s0 + $0x40] sm:$0xff]
  %v39 = vld [vmem:[%s0 + $0x48] sm:$0xff]
  %v40 = vld [vmem:[%s0 + $0x50] sm:$0xff]
  %v41 = vld [vmem:[%s0 + $0x58] sm:$0xff]
  %v42 = vld [vmem:[%s0 + $0x60] sm:$0xff]
  %v43 = vld [vmem:[%s0 + $0x68] sm:$0xff]
  %v44 = vld [vmem:[%s0 + $0x70] sm:$0xff]
  %v45 = vld [vmem:[%s0 + $0x78] sm:$0xff]
  %v46 = vld [vmem:[%s0 + $0x80] sm:$0xff]
  %v47 = vld [vmem:[%s0 + $0x88] sm:$0xff]
  %v48 = vld [vmem:[%s0 + $0x90] sm:$0xff]
  %v49 = vld [vmem:[%s0 + $0x98] sm:$0xff]
  %v50 = vld [vmem:[%s0 + $0xa0] sm:$0xff]
  %v51 = vld [vmem:[%s0 + $0xa8] sm:$0xff]
  %v52 = vld [vmem:[%s0 + $0xb0] sm:$0xff]
  %v53 = vld [vmem:[%s0 + $0xb8] sm:$0xff]
  %v54 = vld [vmem:[%s1] sm:$0xff]
  %v55 = vpack.c.bf16 %v31, %v30
  %v56 = vpack.c.bf16 %v33, %v32
  %v57 = vpack.c.bf16 %v35, %v34
  %v58 = vpack.c.bf16 %v37, %v36
  %v59 = vpack.c.bf16 %v39, %v38
  %v60 = vpack.c.bf16 %v41, %v40
  %v61 = vpack.c.bf16 %v43, %v42
  %v62 = vpack.c.bf16 %v45, %v44
  %v63 = vpack.c.bf16 %v47, %v46
  %v64 = vpack.c.bf16 %v49, %v48
  %v65 = vpack.c.bf16 %v51, %v50
  %v66 = vpack.c.bf16 %v53, %v52
  %v67 = vpack.c.bf16 %v54, %v54
  %v68 = vld [vmem:[%s2] sm:$0x1]
  %v70 = vlaneseq
  %v71 = vshrl.u32 %v70, 7
  %v72 = vsub.s32 0, %v71
  %v73 = vrot.slane %v68, %v72
  %vm75 = vcmask 64512
  %v77 = vsel %vm75, %v55, 0
  %v80 = vsel %vm75, %v56, 0
  %v83 = vsel %vm75, %v57, 0
  %v86 = vsel %vm75, %v58, 0
  %v89 = vsel %vm75, %v59, 0
  %v92 = vsel %vm75, %v60, 0
  %v95 = vsel %vm75, %v61, 0
  %v98 = vsel %vm75, %v62, 0
  %v101 = vsel %vm75, %v63, 0
  %v104 = vsel %vm75, %v64, 0
  %v107 = vsel %vm75, %v65, 0
  %v110 = vsel %vm75, %v66, 0
  %vm112 = vcmask 1043456
  %v114 = vsel %vm112, %v67, 0
  %116 = vmatprep.subr.bf16.mxu0 0
  %117 = vmatpush1.bf16.msra.mxu0 %v114
  %118 = vmatprep.subr.bf16.mxu0 0
  %119 = vmatpush1.bf16.msra.mxu0 0
  %120 = vmatprep.subr.bf16.mxu0 0
  %121 = vmatpush1.bf16.msra.mxu0 0
  %122 = vmatprep.subr.bf16.mxu0 0
  %123 = vmatpush1.bf16.msra.mxu0 0
  %124 = vmatprep.subr.bf16.mxu0 0
  %125 = vmatpush1.bf16.msra.mxu0 0
  %126 = vmatprep.subr.bf16.mxu0 0
  %127 = vmatpush1.bf16.msra.mxu0 0
  %128 = vmatprep.subr.bf16.mxu0 0
  %129 = vmatpush1.bf16.msra.mxu0 0
  %130 = vmatprep.subr.bf16.mxu0 0
  %131 = vmatpush1.bf16.msra.mxu0 0
  %132 = vmatprep.subr.bf16.mxu0 0
  %133 = vmatpush1.bf16.msra.mxu0 0
  %134 = vmatprep.subr.bf16.mxu0 0
  %135 = vmatpush1.bf16.msra.mxu0 0
  %136 = vmatprep.subr.bf16.mxu0 0
  %137 = vmatpush1.bf16.msra.mxu0 0
  %138 = vmatprep.subr.bf16.mxu0 0
  %139 = vmatpush1.bf16.msra.mxu0 0
  %140 = vmatprep.subr.bf16.mxu0 0
  %141 = vmatpush1.bf16.msra.mxu0 0
  %142 = vmatprep.subr.bf16.mxu0 0
  %143 = vmatpush1.bf16.msra.mxu0 0
  %144 = vmatprep.subr.bf16.mxu0 0
  %145 = vmatpush1.bf16.msra.mxu0 0
  %146 = vmatprep.subr.bf16.mxu0 0
  %147 = vmatpush1.bf16.msra.mxu0 0
  %148 = vmatprep.mubr.bf16.mxu0 0
  %149 = vmatmul.mubr.bf16.gmra.mrb[0].mxu0 %v77
  %v150 = vpop.f32.mrb[0].mxu0
  %v151 = vadd.f32 %v73, %v150
  %v152 = vpop.f32.mrb[0].mxu0
  %v153 = vpop.f32.mrb[0].mxu0
  %v154 = vadd.f32 %v73, %v153
  %v155 = vpop.f32.mrb[0].mxu0
  %156 = vmatprep.mubr.bf16.mxu0 0
  %157 = vmatmul.mubr.bf16.gmra.mrb[0].mxu0 %v80
  %v158 = vpop.f32.mrb[0].mxu0
  %v159 = vadd.f32 %v73, %v158
  %v160 = vpop.f32.mrb[0].mxu0
  %v161 = vpop.f32.mrb[0].mxu0
  %v162 = vadd.f32 %v73, %v161
  %v163 = vpop.f32.mrb[0].mxu0
  %164 = vmatprep.mubr.bf16.mxu0 0
  %165 = vmatmul.mubr.bf16.gmra.mrb[0].mxu0 %v83
  %v166 = vpop.f32.mrb[0].mxu0
  %v167 = vadd.f32 %v73, %v166
  %v168 = vpop.f32.mrb[0].mxu0
  %v169 = vpop.f32.mrb[0].mxu0
  %v170 = vadd.f32 %v73, %v169
  %v171 = vpop.f32.mrb[0].mxu0
  %172 = vmatprep.mubr.bf16.mxu0 0
  %173 = vmatmul.mubr.bf16.gmra.mrb[0].mxu0 %v86
  %v174 = vpop.f32.mrb[0].mxu0
  %v175 = vadd.f32 %v73, %v174
  %v176 = vpop.f32.mrb[0].mxu0
  %v177 = vpop.f32.mrb[0].mxu0
  %v178 = vadd.f32 %v73, %v177
  %v179 = vpop.f32.mrb[0].mxu0
  %180 = vmatprep.mubr.bf16.mxu0 0
  %181 = vmatmul.mubr.bf16.gmra.mrb[0].mxu0 %v89
  %v182 = vpop.f32.mrb[0].mxu0
  %v183 = vadd.f32 %v73, %v182
  %v184 = vpop.f32.mrb[0].mxu0
  %v185 = vpop.f32.mrb[0].mxu0
  %v186 = vadd.f32 %v73, %v185
  %v187 = vpop.f32.mrb[0].mxu0
  %188 = vmatprep.mubr.bf16.mxu0 0
  %189 = vmatmul.mubr.bf16.gmra.mrb[0].mxu0 %v92
  %v190 = vpop.f32.mrb[0].mxu0
  %v191 = vadd.f32 %v73, %v190
  %v192 = vpop.f32.mrb[0].mxu0
  %v193 = vpop.f32.mrb[0].mxu0
  %v194 = vadd.f32 %v73, %v193
  %v195 = vpop.f32.mrb[0].mxu0
  %196 = vmatprep.mubr.bf16.mxu0 0
  %197 = vmatmul.mubr.bf16.gmra.mrb[0].mxu0 %v95
  %v198 = vpop.f32.mrb[0].mxu0
  %v199 = vadd.f32 %v73, %v198
  %v200 = vpop.f32.mrb[0].mxu0
  %v201 = vpop.f32.mrb[0].mxu0
  %v202 = vadd.f32 %v73, %v201
  %v203 = vpop.f32.mrb[0].mxu0
  %204 = vmatprep.mubr.bf16.mxu0 0
  %205 = vmatmul.mubr.bf16.gmra.mrb[0].mxu0 %v98
  %v206 = vpop.f32.mrb[0].mxu0
  %v207 = vadd.f32 %v73, %v206
  %v208 = vpop.f32.mrb[0].mxu0
  %v209 = vpop.f32.mrb[0].mxu0
  %v210 = vadd.f32 %v73, %v209
  %v211 = vpop.f32.mrb[0].mxu0
  %212 = vmatprep.mubr.bf16.mxu0 0
  %213 = vmatmul.mubr.bf16.gmra.mrb[0].mxu0 %v101
  %v214 = vpop.f32.mrb[0].mxu0
  %v215 = vadd.f32 %v73, %v214
  %v216 = vpop.f32.mrb[0].mxu0
  %v217 = vpop.f32.mrb[0].mxu0
  %v218 = vadd.f32 %v73, %v217
  %v219 = vpop.f32.mrb[0].mxu0
  %220 = vmatprep.mubr.bf16.mxu0 0
  %221 = vmatmul.mubr.bf16.gmra.mrb[0].mxu0 %v104
  %v222 = vpop.f32.mrb[0].mxu0
  %v223 = vadd.f32 %v73, %v222
  %v224 = vpop.f32.mrb[0].mxu0
  %v225 = vpop.f32.mrb[0].mxu0
  %v226 = vadd.f32 %v73, %v225
  %v227 = vpop.f32.mrb[0].mxu0
  %228 = vmatprep.mubr.bf16.mxu0 0
  %229 = vmatmul.mubr.bf16.gmra.mrb[0].mxu0 %v107
  %v230 = vpop.f32.mrb[0].mxu0
  %v231 = vadd.f32 %v73, %v230
  %v232 = vpop.f32.mrb[0].mxu0
  %v233 = vpop.f32.mrb[0].mxu0
  %v234 = vadd.f32 %v73, %v233
  %v235 = vpop.f32.mrb[0].mxu0
  %236 = vmatprep.mubr.bf16.mxu0 0
  %237 = vmatmul.mubr.bf16.gmra.mrb[0].mxu0 %v110
  %v238 = vpop.f32.mrb[0].mxu0
  %v239 = vadd.f32 %v73, %v238
  %v240 = vpop.f32.mrb[0].mxu0
  %v241 = vpop.f32.mrb[0].mxu0
  %v242 = vadd.f32 %v73, %v241
  %v243 = vpop.f32.mrb[0].mxu0
  %244 = vdwg.mxu0
  %v245 = vtanh.pop %v151
  %v246 = vtanh.pop %v154
  %v247 = vtanh.pop %v159
  %v248 = vtanh.pop %v162
  %v249 = vtanh.pop %v167
  %v250 = vtanh.pop %v170
  %v251 = vtanh.pop %v175
  %v252 = vtanh.pop %v178
  %v253 = vtanh.pop %v183
  %v254 = vtanh.pop %v186
  %v255 = vtanh.pop %v191
  %v256 = vtanh.pop %v194
  %v257 = vtanh.pop %v199
  %v258 = vtanh.pop %v202
  %v259 = vtanh.pop %v207
  %v260 = vtanh.pop %v210
  %v261 = vtanh.pop %v215
  %v262 = vtanh.pop %v218
  %v263 = vtanh.pop %v223
  %v264 = vtanh.pop %v226
  %v265 = vtanh.pop %v231
  %v266 = vtanh.pop %v234
  %v267 = vtanh.pop %v239
  %v268 = vtanh.pop %v242
  %v269 = vld [vmem:[%s5] sm:$0xff]
  %v270 = vld [vmem:[%s5 + $0x8] sm:$0xff]
  %v271 = vld [vmem:[%s5 + $0x10] sm:$0xff]
  %v272 = vld [vmem:[%s5 + $0x18] sm:$0xff]
  %v273 = vld [vmem:[%s5 + $0x20] sm:$0xff]
  %v274 = vld [vmem:[%s5 + $0x28] sm:$0xff]
  %v275 = vld [vmem:[%s5 + $0x30] sm:$0xff]
  %v276 = vld [vmem:[%s5 + $0x38] sm:$0xff]
  %v277 = vpack.c.bf16 %v246, %v245
  %v278 = vpack.c.bf16 %v248, %v247
  %v279 = vpack.c.bf16 %v250, %v249
  %v280 = vpack.c.bf16 %v252, %v251
  %v281 = vpack.c.bf16 %v254, %v253
  %v282 = vpack.c.bf16 %v256, %v255
  %v283 = vpack.c.bf16 %v258, %v257
  %v284 = vpack.c.bf16 %v260, %v259
  %v285 = vpack.c.bf16 %v262, %v261
  %v286 = vpack.c.bf16 %v264, %v263
  %v287 = vpack.c.bf16 %v266, %v265
  %v288 = vpack.c.bf16 %v268, %v267
  %v289 = vpack.c.bf16 %v270, %v269
  %v290 = vpack.c.bf16 %v272, %v271
  %v291 = vpack.c.bf16 %v274, %v273
  %v292 = vpack.c.bf16 %v276, %v275
  %v293 = vld [vmem:[%s6] sm:$0x1]
  %v295 = vlaneseq
  %v296 = vshrl.u32 %v295, 7
  %v297 = vsub.s32 0, %v296
  %v298 = vrot.slane %v293, %v297
  %vm300 = vcmask 523264
  %v302 = vsel %vm300, %v277, 0
  %v305 = vsel %vm300, %v278, 0
  %v308 = vsel %vm300, %v279, 0
  %v311 = vsel %vm300, %v280, 0
  %v314 = vsel %vm300, %v281, 0
  %v317 = vsel %vm300, %v282, 0
  %v320 = vsel %vm300, %v283, 0
  %v323 = vsel %vm300, %v284, 0
  %v326 = vsel %vm300, %v285, 0
  %v329 = vsel %vm300, %v286, 0
  %v332 = vsel %vm300, %v287, 0
  %v335 = vsel %vm300, %v288, 0
  %337 = vmatprep.subr.bf16.mxu0 0
  %338 = vmatpush1.bf16.msra.mxu0 %v289
  %339 = vmatprep.subr.bf16.mxu0 0
  %340 = vmatpush1.bf16.msra.mxu0 %v290
  %341 = vmatprep.subr.bf16.mxu0 0
  %342 = vmatpush1.bf16.msra.mxu0 %v291
  %343 = vmatprep.subr.bf16.mxu0 0
  %344 = vmatpush1.bf16.msra.mxu0 %v292
  %345 = vmatprep.subr.bf16.mxu0 0
  %346 = vmatpush1.bf16.msra.mxu0 0
  %347 = vmatprep.subr.bf16.mxu0 0
  %348 = vmatpush1.bf16.msra.mxu0 0
  %349 = vmatprep.subr.bf16.mxu0 0
  %350 = vmatpush1.bf16.msra.mxu0 0
  %351 = vmatprep.subr.bf16.mxu0 0
  %352 = vmatpush1.bf16.msra.mxu0 0
  %353 = vmatprep.subr.bf16.mxu0 0
  %354 = vmatpush1.bf16.msra.mxu0 0
  %355 = vmatprep.subr.bf16.mxu0 0
  %356 = vmatpush1.bf16.msra.mxu0 0
  %357 = vmatprep.subr.bf16.mxu0 0
  %358 = vmatpush1.bf16.msra.mxu0 0
  %359 = vmatprep.subr.bf16.mxu0 0
  %360 = vmatpush1.bf16.msra.mxu0 0
  %361 = vmatprep.subr.bf16.mxu0 0
  %362 = vmatpush1.bf16.msra.mxu0 0
  %363 = vmatprep.subr.bf16.mxu0 0
  %364 = vmatpush1.bf16.msra.mxu0 0
  %365 = vmatprep.subr.bf16.mxu0 0
  %366 = vmatpush1.bf16.msra.mxu0 0
  %367 = vmatprep.subr.bf16.mxu0 0
  %368 = vmatpush1.bf16.msra.mxu0 0
  %369 = vmatprep.mubr.bf16.mxu0 0
  %370 = vmatmul.mubr.bf16.gmra.mrb[0].mxu0 %v302
  %v371 = vpop.f32.mrb[0].mxu0
  %v372 = vadd.f32 %v298, %v371
  %v373 = vpop.f32.mrb[0].mxu0
  %v374 = vpop.f32.mrb[0].mxu0
  %v375 = vadd.f32 %v298, %v374
  %v376 = vpop.f32.mrb[0].mxu0
  %377 = vmatprep.mubr.bf16.mxu0 0
  %378 = vmatmul.mubr.bf16.gmra.mrb[0].mxu0 %v305
  %v379 = vpop.f32.mrb[0].mxu0
  %v380 = vadd.f32 %v298, %v379
  %v381 = vpop.f32.mrb[0].mxu0
  %v382 = vpop.f32.mrb[0].mxu0
  %v383 = vadd.f32 %v298, %v382
  %v384 = vpop.f32.mrb[0].mxu0
  %385 = vmatprep.mubr.bf16.mxu0 0
  %386 = vmatmul.mubr.bf16.gmra.mrb[0].mxu0 %v308
  %v387 = vpop.f32.mrb[0].mxu0
  %v388 = vadd.f32 %v298, %v387
  %v389 = vpop.f32.mrb[0].mxu0
  %v390 = vpop.f32.mrb[0].mxu0
  %v391 = vadd.f32 %v298, %v390
  %v392 = vpop.f32.mrb[0].mxu0
  %393 = vmatprep.mubr.bf16.mxu0 0
  %394 = vmatmul.mubr.bf16.gmra.mrb[0].mxu0 %v311
  %v395 = vpop.f32.mrb[0].mxu0
  %v396 = vadd.f32 %v298, %v395
  %v397 = vpop.f32.mrb[0].mxu0
  %v398 = vpop.f32.mrb[0].mxu0
  %v399 = vadd.f32 %v298, %v398
  %v400 = vpop.f32.mrb[0].mxu0
  %401 = vmatprep.mubr.bf16.mxu0 0
  %402 = vmatmul.mubr.bf16.gmra.mrb[0].mxu0 %v314
  %v403 = vpop.f32.mrb[0].mxu0
  %v404 = vadd.f32 %v298, %v403
  %v405 = vpop.f32.mrb[0].mxu0
  %v406 = vpop.f32.mrb[0].mxu0
  %v407 = vadd.f32 %v298, %v406
  %v408 = vpop.f32.mrb[0].mxu0
  %409 = vmatprep.mubr.bf16.mxu0 0
  %410 = vmatmul.mubr.bf16.gmra.mrb[0].mxu0 %v317
  %v411 = vpop.f32.mrb[0].mxu0
  %v412 = vadd.f32 %v298, %v411
  %v413 = vpop.f32.mrb[0].mxu0
  %v414 = vpop.f32.mrb[0].mxu0
  %v415 = vadd.f32 %v298, %v414
  %v416 = vpop.f32.mrb[0].mxu0
  %417 = vmatprep.mubr.bf16.mxu0 0
  %418 = vmatmul.mubr.bf16.gmra.mrb[0].mxu0 %v320
  %v419 = vpop.f32.mrb[0].mxu0
  %v420 = vadd.f32 %v298, %v419
  %v421 = vpop.f32.mrb[0].mxu0
  %v422 = vpop.f32.mrb[0].mxu0
  %v423 = vadd.f32 %v298, %v422
  %v424 = vpop.f32.mrb[0].mxu0
  %425 = vmatprep.mubr.bf16.mxu0 0
  %426 = vmatmul.mubr.bf16.gmra.mrb[0].mxu0 %v323
  %v427 = vpop.f32.mrb[0].mxu0
  %v428 = vadd.f32 %v298, %v427
  %v429 = vpop.f32.mrb[0].mxu0
  %v430 = vpop.f32.mrb[0].mxu0
  %v431 = vadd.f32 %v298, %v430
  %v432 = vpop.f32.mrb[0].mxu0
  %433 = vmatprep.mubr.bf16.mxu0 0
  %434 = vmatmul.mubr.bf16.gmra.mrb[0].mxu0 %v326
  %v435 = vpop.f32.mrb[0].mxu0
  %v436 = vadd.f32 %v298, %v435
  %v437 = vpop.f32.mrb[0].mxu0
  %v438 = vpop.f32.mrb[0].mxu0
  %v439 = vadd.f32 %v298, %v438
  %v440 = vpop.f32.mrb[0].mxu0
  %441 = vmatprep.mubr.bf16.mxu0 0
  %442 = vmatmul.mubr.bf16.gmra.mrb[0].mxu0 %v329
  %v443 = vpop.f32.mrb[0].mxu0
  %v444 = vadd.f32 %v298, %v443
  %v445 = vpop.f32.mrb[0].mxu0
  %v446 = vpop.f32.mrb[0].mxu0
  %v447 = vadd.f32 %v298, %v446
  %v448 = vpop.f32.mrb[0].mxu0
  %449 = vmatprep.mubr.bf16.mxu0 0
  %450 = vmatmul.mubr.bf16.gmra.mrb[0].mxu0 %v332
  %v451 = vpop.f32.mrb[0].mxu0
  %v452 = vadd.f32 %v298, %v451
  %v453 = vpop.f32.mrb[0].mxu0
  %v454 = vpop.f32.mrb[0].mxu0
  %v455 = vadd.f32 %v298, %v454
  %v456 = vpop.f32.mrb[0].mxu0
  %457 = vmatprep.mubr.bf16.mxu0 0
  %458 = vmatmul.mubr.bf16.gmra.mrb[0].mxu0 %v335
  %v459 = vpop.f32.mrb[0].mxu0
  %v460 = vadd.f32 %v298, %v459
  %v461 = vpop.f32.mrb[0].mxu0
  %v462 = vpop.f32.mrb[0].mxu0
  %v463 = vadd.f32 %v298, %v462
  %v464 = vpop.f32.mrb[0].mxu0
  %465 = vdwg.mxu0
  %v466 = vld [vmem:[%s4] sm:$0xff]
  %v467 = vld [vmem:[%s4 + $0x8] sm:$0xff]
  %v468 = vld [vmem:[%s4 + $0x10] sm:$0xff]
  %v469 = vld [vmem:[%s4 + $0x18] sm:$0xff]
  %v470 = vld [vmem:[%s4 + $0x20] sm:$0xff]
  %v471 = vld [vmem:[%s4 + $0x28] sm:$0xff]
  %v472 = vld [vmem:[%s4 + $0x30] sm:$0xff]
  %v473 = vld [vmem:[%s4 + $0x38] sm:$0xff]
  %v474 = vld [vmem:[%s4 + $0x40] sm:$0xff]
  %v475 = vld [vmem:[%s4 + $0x48] sm:$0xff]
  %v476 = vld [vmem:[%s4 + $0x50] sm:$0xff]
  %v477 = vld [vmem:[%s4 + $0x58] sm:$0xff]
  %v478 = vld [vmem:[%s4 + $0x60] sm:$0xff]
  %v479 = vld [vmem:[%s4 + $0x68] sm:$0xff]
  %v480 = vld [vmem:[%s4 + $0x70] sm:$0xff]
  %v481 = vld [vmem:[%s4 + $0x78] sm:$0xff]
  %v482 = vld [vmem:[%s4 + $0x80] sm:$0xff]
  %v483 = vld [vmem:[%s4 + $0x88] sm:$0xff]
  %v484 = vld [vmem:[%s4 + $0x90] sm:$0xff]
  %v485 = vld [vmem:[%s4 + $0x98] sm:$0xff]
  %v486 = vld [vmem:[%s4 + $0xa0] sm:$0xff]
  %v487 = vld [vmem:[%s4 + $0xa8] sm:$0xff]
  %v488 = vld [vmem:[%s4 + $0xb0] sm:$0xff]
  %v489 = vld [vmem:[%s4 + $0xb8] sm:$0xff]
  %v490 = vld [vmem:[%s4 + $0xc0] sm:$0xff]
  %v491 = vld [vmem:[%s4 + $0xc8] sm:$0xff]
  %v492 = vld [vmem:[%s4 + $0xd0] sm:$0xff]
  %v493 = vld [vmem:[%s4 + $0xd8] sm:$0xff]
  %v494 = vld [vmem:[%s4 + $0xe0] sm:$0xff]
  %v495 = vld [vmem:[%s4 + $0xe8] sm:$0xff]
  %v496 = vld [vmem:[%s4 + $0xf0] sm:$0xff]
  %v497 = vld [vmem:[%s4 + $0xf8] sm:$0xff]
  %v498 = vld [vmem:[%s4 + $0x100] sm:$0xff]
  %v499 = vld [vmem:[%s4 + $0x108] sm:$0xff]
  %v500 = vld [vmem:[%s4 + $0x110] sm:$0xff]
  %v501 = vld [vmem:[%s4 + $0x118] sm:$0xff]
  %v502 = vld [vmem:[%s4 + $0x120] sm:$0xff]
  %v503 = vld [vmem:[%s4 + $0x128] sm:$0xff]
  %v504 = vld [vmem:[%s4 + $0x130] sm:$0xff]
  %v505 = vld [vmem:[%s4 + $0x138] sm:$0xff]
  %v506 = vld [vmem:[%s4 + $0x140] sm:$0xff]
  %v507 = vld [vmem:[%s4 + $0x148] sm:$0xff]
  %v508 = vld [vmem:[%s4 + $0x150] sm:$0xff]
  %v509 = vld [vmem:[%s4 + $0x158] sm:$0xff]
  %v510 = vld [vmem:[%s4 + $0x160] sm:$0xff]
  %v511 = vld [vmem:[%s4 + $0x168] sm:$0xff]
  %v512 = vld [vmem:[%s4 + $0x170] sm:$0xff]
  %v513 = vld [vmem:[%s4 + $0x178] sm:$0xff]
  %v514 = vld [vmem:[%s3] sm:$0xff]
  %v515 = vld [vmem:[%s3 + $0x8] sm:$0xff]
  %v516 = vld [vmem:[%s3 + $0x10] sm:$0xff]
  %v517 = vld [vmem:[%s3 + $0x18] sm:$0xff]
  %v518 = vld [vmem:[%s3 + $0x20] sm:$0xff]
  %v519 = vld [vmem:[%s3 + $0x28] sm:$0xff]
  %v520 = vld [vmem:[%s3 + $0x30] sm:$0xff]
  %v521 = vld [vmem:[%s3 + $0x38] sm:$0xff]
  %v522 = vpack.c.bf16 %v515, %v514
  %v523 = vpack.c.bf16 %v517, %v516
  %v524 = vpack.c.bf16 %v519, %v518
  %v525 = vpack.c.bf16 %v521, %v520
  %526 = vmatprep.subr.bf16.mxu0 0
  %527 = vmatpush1.bf16.msra.mxu0 %v522
  %528 = vmatprep.subr.bf16.mxu0 0
  %529 = vmatpush1.bf16.msra.mxu0 %v523
  %530 = vmatprep.subr.bf16.mxu0 0
  %531 = vmatpush1.bf16.msra.mxu0 %v524
  %532 = vmatprep.subr.bf16.mxu0 0
  %533 = vmatpush1.bf16.msra.mxu0 %v525
  %534 = vmatprep.subr.bf16.mxu0 0
  %535 = vmatpush1.bf16.msra.mxu0 0
  %536 = vmatprep.subr.bf16.mxu0 0
  %537 = vmatpush1.bf16.msra.mxu0 0
  %538 = vmatprep.subr.bf16.mxu0 0
  %539 = vmatpush1.bf16.msra.mxu0 0
  %540 = vmatprep.subr.bf16.mxu0 0
  %541 = vmatpush1.bf16.msra.mxu0 0
  %542 = vmatprep.subr.bf16.mxu0 0
  %543 = vmatpush1.bf16.msra.mxu0 0
  %544 = vmatprep.subr.bf16.mxu0 0
  %545 = vmatpush1.bf16.msra.mxu0 0
  %546 = vmatprep.subr.bf16.mxu0 0
  %547 = vmatpush1.bf16.msra.mxu0 0
  %548 = vmatprep.subr.bf16.mxu0 0
  %549 = vmatpush1.bf16.msra.mxu0 0
  %550 = vmatprep.subr.bf16.mxu0 0
  %551 = vmatpush1.bf16.msra.mxu0 0
  %552 = vmatprep.subr.bf16.mxu0 0
  %553 = vmatpush1.bf16.msra.mxu0 0
  %554 = vmatprep.subr.bf16.mxu0 0
  %555 = vmatpush1.bf16.msra.mxu0 0
  %556 = vmatprep.subr.bf16.mxu0 0
  %557 = vmatpush1.bf16.msra.mxu0 0
  %558 = vmatprep.mubr.bf16.mxu0 0
  %559 = vmatmul.mubr.bf16.gmra.mrb[0].mxu0 %v302
  %v560 = vpop.f32.mrb[0].mxu0
  %v561 = vadd.f32 0.0, %v560
  %v562 = vpop.f32.mrb[0].mxu0
  %v563 = vpop.f32.mrb[0].mxu0
  %v564 = vadd.f32 0.0, %v563
  %v565 = vpop.f32.mrb[0].mxu0
  %566 = vmatprep.mubr.bf16.mxu0 0
  %567 = vmatmul.mubr.bf16.gmra.mrb[0].mxu0 %v305
  %v568 = vpop.f32.mrb[0].mxu0
  %v569 = vadd.f32 0.0, %v568
  %v570 = vpop.f32.mrb[0].mxu0
  %v571 = vpop.f32.mrb[0].mxu0
  %v572 = vadd.f32 0.0, %v571
  %v573 = vpop.f32.mrb[0].mxu0
  %574 = vmatprep.mubr.bf16.mxu0 0
  %575 = vmatmul.mubr.bf16.gmra.mrb[0].mxu0 %v308
  %v576 = vpop.f32.mrb[0].mxu0
  %v577 = vadd.f32 0.0, %v576
  %v578 = vpop.f32.mrb[0].mxu0
  %v579 = vpop.f32.mrb[0].mxu0
  %v580 = vadd.f32 0.0, %v579
  %v581 = vpop.f32.mrb[0].mxu0
  %582 = vmatprep.mubr.bf16.mxu0 0
  %583 = vmatmul.mubr.bf16.gmra.mrb[0].mxu0 %v311
  %v584 = vpop.f32.mrb[0].mxu0
  %v585 = vadd.f32 0.0, %v584
  %v586 = vpop.f32.mrb[0].mxu0
  %v587 = vpop.f32.mrb[0].mxu0
  %v588 = vadd.f32 0.0, %v587
  %v589 = vpop.f32.mrb[0].mxu0
  %590 = vmatprep.mubr.bf16.mxu0 0
  %591 = vmatmul.mubr.bf16.gmra.mrb[0].mxu0 %v314
  %v592 = vpop.f32.mrb[0].mxu0
  %v593 = vadd.f32 0.0, %v592
  %v594 = vpop.f32.mrb[0].mxu0
  %v595 = vpop.f32.mrb[0].mxu0
  %v596 = vadd.f32 0.0, %v595
  %v597 = vpop.f32.mrb[0].mxu0
  %598 = vmatprep.mubr.bf16.mxu0 0
  %599 = vmatmul.mubr.bf16.gmra.mrb[0].mxu0 %v317
  %v600 = vpop.f32.mrb[0].mxu0
  %v601 = vadd.f32 0.0, %v600
  %v602 = vpop.f32.mrb[0].mxu0
  %v603 = vpop.f32.mrb[0].mxu0
  %v604 = vadd.f32 0.0, %v603
  %v605 = vpop.f32.mrb[0].mxu0
  %606 = vmatprep.mubr.bf16.mxu0 0
  %607 = vmatmul.mubr.bf16.gmra.mrb[0].mxu0 %v320
  %v608 = vpop.f32.mrb[0].mxu0
  %v609 = vadd.f32 0.0, %v608
  %v610 = vpop.f32.mrb[0].mxu0
  %v611 = vpop.f32.mrb[0].mxu0
  %v612 = vadd.f32 0.0, %v611
  %v613 = vpop.f32.mrb[0].mxu0
  %614 = vmatprep.mubr.bf16.mxu0 0
  %615 = vmatmul.mubr.bf16.gmra.mrb[0].mxu0 %v323
  %v616 = vpop.f32.mrb[0].mxu0
  %v617 = vadd.f32 0.0, %v616
  %v618 = vpop.f32.mrb[0].mxu0
  %v619 = vpop.f32.mrb[0].mxu0
  %v620 = vadd.f32 0.0, %v619
  %v621 = vpop.f32.mrb[0].mxu0
  %622 = vmatprep.mubr.bf16.mxu0 0
  %623 = vmatmul.mubr.bf16.gmra.mrb[0].mxu0 %v326
  %v624 = vpop.f32.mrb[0].mxu0
  %v625 = vadd.f32 0.0, %v624
  %v626 = vpop.f32.mrb[0].mxu0
  %v627 = vpop.f32.mrb[0].mxu0
  %v628 = vadd.f32 0.0, %v627
  %v629 = vpop.f32.mrb[0].mxu0
  %630 = vmatprep.mubr.bf16.mxu0 0
  %631 = vmatmul.mubr.bf16.gmra.mrb[0].mxu0 %v329
  %v632 = vpop.f32.mrb[0].mxu0
  %v633 = vadd.f32 0.0, %v632
  %v634 = vpop.f32.mrb[0].mxu0
  %v635 = vpop.f32.mrb[0].mxu0
  %v636 = vadd.f32 0.0, %v635
  %v637 = vpop.f32.mrb[0].mxu0
  %638 = vmatprep.mubr.bf16.mxu0 0
  %639 = vmatmul.mubr.bf16.gmra.mrb[0].mxu0 %v332
  %v640 = vpop.f32.mrb[0].mxu0
  %v641 = vadd.f32 0.0, %v640
  %v642 = vpop.f32.mrb[0].mxu0
  %v643 = vpop.f32.mrb[0].mxu0
  %v644 = vadd.f32 0.0, %v643
  %v645 = vpop.f32.mrb[0].mxu0
  %646 = vmatprep.mubr.bf16.mxu0 0
  %647 = vmatmul.mubr.bf16.gmra.mrb[0].mxu0 %v335
  %v648 = vpop.f32.mrb[0].mxu0
  %v649 = vadd.f32 0.0, %v648
  %v650 = vpop.f32.mrb[0].mxu0
  %v651 = vpop.f32.mrb[0].mxu0
  %v652 = vadd.f32 0.0, %v651
  %v653 = vpop.f32.mrb[0].mxu0
  %654 = vdwg.mxu0
  %v655 = vpack.c.bf16 %v468, %v466
  %v656 = vpack.c.bf16 %v469, %v467
  %v657 = vpack.c.bf16 %v472, %v470
  %v658 = vpack.c.bf16 %v473, %v471
  %v659 = vpack.c.bf16 %v476, %v474
  %v660 = vpack.c.bf16 %v477, %v475
  %v661 = vpack.c.bf16 %v480, %v478
  %v662 = vpack.c.bf16 %v481, %v479
  %v663 = vpack.c.bf16 %v484, %v482
  %v664 = vpack.c.bf16 %v485, %v483
  %v665 = vpack.c.bf16 %v488, %v486
  %v666 = vpack.c.bf16 %v489, %v487
  %v667 = vpack.c.bf16 %v492, %v490
  %v668 = vpack.c.bf16 %v493, %v491
  %v669 = vpack.c.bf16 %v496, %v494
  %v670 = vpack.c.bf16 %v497, %v495
  %v671 = vpack.c.bf16 %v500, %v498
  %v672 = vpack.c.bf16 %v501, %v499
  %v673 = vpack.c.bf16 %v504, %v502
  %v674 = vpack.c.bf16 %v505, %v503
  %v675 = vpack.c.bf16 %v508, %v506
  %v676 = vpack.c.bf16 %v509, %v507
  %v677 = vpack.c.bf16 %v512, %v510
  %v678 = vpack.c.bf16 %v513, %v511
  %v679 = vpack.c.bf16 %v564, %v561
  %v680 = vpack.c.bf16 %v572, %v569
  %v681 = vpack.c.bf16 %v580, %v577
  %v682 = vpack.c.bf16 %v588, %v585
  %v683 = vpack.c.bf16 %v596, %v593
  %v684 = vpack.c.bf16 %v604, %v601
  %v685 = vpack.c.bf16 %v612, %v609
  %v686 = vpack.c.bf16 %v620, %v617
  %v687 = vpack.c.bf16 %v628, %v625
  %v688 = vpack.c.bf16 %v636, %v633
  %v689 = vpack.c.bf16 %v644, %v641
  %v690 = vpack.c.bf16 %v652, %v649
  %v692 = vsel %vm300, %v656, 0
  %v695 = vsel %vm300, %v658, 0
  %v698 = vsel %vm300, %v660, 0
  %v701 = vsel %vm300, %v662, 0
  %v704 = vsel %vm300, %v664, 0
  %v707 = vsel %vm300, %v666, 0
  %v710 = vsel %vm300, %v668, 0
  %v713 = vsel %vm300, %v670, 0
  %v716 = vsel %vm300, %v672, 0
  %v719 = vsel %vm300, %v674, 0
  %v722 = vsel %vm300, %v676, 0
  %v725 = vsel %vm300, %v678, 0
  %727 = vmatprep.subr.bf16.mxu0 0
  %728 = vmatpush1.bf16.msra.mxu0 %v679
  %729 = vmatprep.subr.bf16.mxu0 0
  %730 = vmatpush1.bf16.msra.mxu0 %v680
  %731 = vmatprep.subr.bf16.mxu0 0
  %732 = vmatpush1.bf16.msra.mxu0 %v681
  %733 = vmatprep.subr.bf16.mxu0 0
  %734 = vmatpush1.bf16.msra.mxu0 %v682
  %735 = vmatprep.subr.bf16.mxu0 0
  %736 = vmatpush1.bf16.msra.mxu0 %v683
  %737 = vmatprep.subr.bf16.mxu0 0
  %738 = vmatpush1.bf16.msra.mxu0 %v684
  %739 = vmatprep.subr.bf16.mxu0 0
  %740 = vmatpush1.bf16.msra.mxu0 %v685
  %741 = vmatprep.subr.bf16.mxu0 0
  %742 = vmatpush1.bf16.msra.mxu0 %v686
  %743 = vmatprep.subr.bf16.mxu0 0
  %744 = vmatpush1.bf16.msra.mxu0 %v687
  %745 = vmatprep.subr.bf16.mxu0 0
  %746 = vmatpush1.bf16.msra.mxu0 %v688
  %747 = vmatprep.subr.bf16.mxu0 0
  %748 = vmatpush1.bf16.msra.mxu0 %v689
  %749 = vmatprep.subr.bf16.mxu0 0
  %750 = vmatpush1.bf16.msra.mxu0 %v690
  %751 = vmatprep.subr.bf16.mxu0 0
  %752 = vmatpush1.bf16.msra.mxu0 0
  %753 = vmatprep.subr.bf16.mxu0 0
  %754 = vmatpush1.bf16.msra.mxu0 0
  %755 = vmatprep.subr.bf16.mxu0 0
  %756 = vmatpush1.bf16.msra.mxu0 0
  %757 = vmatprep.subr.bf16.mxu0 0
  %758 = vmatpush1.bf16.msra.mxu0 0
  %759 = vmatprep.mubr.bf16.mxu0 %v692
  %760 = vmatmul.mubr.bf16.gmra.mrb[0].mxu0 %v655
  %v761 = vpop.f32.mrb[0].mxu0
  %v762 = vadd.f32 0.0, %v761
  %v763 = vpop.f32.mrb[0].mxu0
  %v764 = vpop.f32.mrb[0].mxu0
  %v765 = vadd.f32 0.0, %v764
  %v766 = vpop.f32.mrb[0].mxu0
  %767 = vmatprep.mubr.bf16.mxu0 %v695
  %768 = vmatmul.mubr.bf16.gmra.mrb[0].mxu0 %v657
  %v769 = vpop.f32.mrb[0].mxu0
  %v770 = vadd.f32 0.0, %v769
  %v771 = vpop.f32.mrb[0].mxu0
  %v772 = vpop.f32.mrb[0].mxu0
  %v773 = vadd.f32 0.0, %v772
  %v774 = vpop.f32.mrb[0].mxu0
  %775 = vmatprep.mubr.bf16.mxu0 %v698
  %776 = vmatmul.mubr.bf16.gmra.mrb[0].mxu0 %v659
  %v777 = vpop.f32.mrb[0].mxu0
  %v778 = vadd.f32 0.0, %v777
  %v779 = vpop.f32.mrb[0].mxu0
  %v780 = vpop.f32.mrb[0].mxu0
  %v781 = vadd.f32 0.0, %v780
  %v782 = vpop.f32.mrb[0].mxu0
  %783 = vmatprep.mubr.bf16.mxu0 %v701
  %784 = vmatmul.mubr.bf16.gmra.mrb[0].mxu0 %v661
  %v785 = vpop.f32.mrb[0].mxu0
  %v786 = vadd.f32 0.0, %v785
  %v787 = vpop.f32.mrb[0].mxu0
  %v788 = vpop.f32.mrb[0].mxu0
  %v789 = vadd.f32 0.0, %v788
  %v790 = vpop.f32.mrb[0].mxu0
  %791 = vmatprep.mubr.bf16.mxu0 %v704
  %792 = vmatmul.mubr.bf16.gmra.mrb[0].mxu0 %v663
  %v793 = vpop.f32.mrb[0].mxu0
  %v794 = vadd.f32 0.0, %v793
  %v795 = vpop.f32.mrb[0].mxu0
  %v796 = vpop.f32.mrb[0].mxu0
  %v797 = vadd.f32 0.0, %v796
  %v798 = vpop.f32.mrb[0].mxu0
  %799 = vmatprep.mubr.bf16.mxu0 %v707
  %800 = vmatmul.mubr.bf16.gmra.mrb[0].mxu0 %v665
  %v801 = vpop.f32.mrb[0].mxu0
  %v802 = vadd.f32 0.0, %v801
  %v803 = vpop.f32.mrb[0].mxu0
  %v804 = vpop.f32.mrb[0].mxu0
  %v805 = vadd.f32 0.0, %v804
  %v806 = vpop.f32.mrb[0].mxu0
  %807 = vmatprep.mubr.bf16.mxu0 %v710
  %808 = vmatmul.mubr.bf16.gmra.mrb[0].mxu0 %v667
  %v809 = vpop.f32.mrb[0].mxu0
  %v810 = vadd.f32 0.0, %v809
  %v811 = vpop.f32.mrb[0].mxu0
  %v812 = vpop.f32.mrb[0].mxu0
  %v813 = vadd.f32 0.0, %v812
  %v814 = vpop.f32.mrb[0].mxu0
  %815 = vmatprep.mubr.bf16.mxu0 %v713
  %816 = vmatmul.mubr.bf16.gmra.mrb[0].mxu0 %v669
  %v817 = vpop.f32.mrb[0].mxu0
  %v818 = vadd.f32 0.0, %v817
  %v819 = vpop.f32.mrb[0].mxu0
  %v820 = vpop.f32.mrb[0].mxu0
  %v821 = vadd.f32 0.0, %v820
  %v822 = vpop.f32.mrb[0].mxu0
  %823 = vmatprep.mubr.bf16.mxu0 %v716
  %824 = vmatmul.mubr.bf16.gmra.mrb[0].mxu0 %v671
  %v825 = vpop.f32.mrb[0].mxu0
  %v826 = vadd.f32 0.0, %v825
  %v827 = vpop.f32.mrb[0].mxu0
  %v828 = vpop.f32.mrb[0].mxu0
  %v829 = vadd.f32 0.0, %v828
  %v830 = vpop.f32.mrb[0].mxu0
  %831 = vmatprep.mubr.bf16.mxu0 %v719
  %832 = vmatmul.mubr.bf16.gmra.mrb[0].mxu0 %v673
  %v833 = vpop.f32.mrb[0].mxu0
  %v834 = vadd.f32 0.0, %v833
  %v835 = vpop.f32.mrb[0].mxu0
  %v836 = vpop.f32.mrb[0].mxu0
  %v837 = vadd.f32 0.0, %v836
  %v838 = vpop.f32.mrb[0].mxu0
  %839 = vmatprep.mubr.bf16.mxu0 %v722
  %840 = vmatmul.mubr.bf16.gmra.mrb[0].mxu0 %v675
  %v841 = vpop.f32.mrb[0].mxu0
  %v842 = vadd.f32 0.0, %v841
  %v843 = vpop.f32.mrb[0].mxu0
  %v844 = vpop.f32.mrb[0].mxu0
  %v845 = vadd.f32 0.0, %v844
  %v846 = vpop.f32.mrb[0].mxu0
  %847 = vmatprep.mubr.bf16.mxu0 %v725
  %848 = vmatmul.mubr.bf16.gmra.mrb[0].mxu0 %v677
  %v849 = vpop.f32.mrb[0].mxu0
  %v850 = vadd.f32 0.0, %v849
  %v851 = vpop.f32.mrb[0].mxu0
  %v852 = vpop.f32.mrb[0].mxu0
  %v853 = vadd.f32 0.0, %v852
  %v854 = vpop.f32.mrb[0].mxu0
  %855 = vdwg.mxu0
  %v856 = vadd.f32 %v372, %v762
  %v857 = vadd.f32 %v375, %v765
  %v858 = vadd.f32 %v380, %v770
  %v859 = vadd.f32 %v383, %v773
  %v860 = vadd.f32 %v388, %v778
  %v861 = vadd.f32 %v391, %v781
  %v862 = vadd.f32 %v396, %v786
  %v863 = vadd.f32 %v399, %v789
  %v864 = vadd.f32 %v404, %v794
  %v865 = vadd.f32 %v407, %v797
  %v866 = vadd.f32 %v412, %v802
  %v867 = vadd.f32 %v415, %v805
  %v868 = vadd.f32 %v420, %v810
  %v869 = vadd.f32 %v423, %v813
  %v870 = vadd.f32 %v428, %v818
  %v871 = vadd.f32 %v431, %v821
  %v872 = vadd.f32 %v436, %v826
  %v873 = vadd.f32 %v439, %v829
  %v874 = vadd.f32 %v444, %v834
  %v875 = vadd.f32 %v447, %v837
  %v876 = vadd.f32 %v452, %v842
  %v877 = vadd.f32 %v455, %v845
  %v878 = vadd.f32 %v460, %v850
  %v879 = vadd.f32 %v463, %v853
  %s880 = scalar_lea.vmem %s4, 384
  %v881 = vld [vmem:[%s880] sm:$0xff]
  %v882 = vld [vmem:[%s880 + $0x8] sm:$0xff]
  %v883 = vld [vmem:[%s880 + $0x10] sm:$0xff]
  %v884 = vld [vmem:[%s880 + $0x18] sm:$0xff]
  %v885 = vld [vmem:[%s880 + $0x20] sm:$0xff]
  %v886 = vld [vmem:[%s880 + $0x28] sm:$0xff]
  %v887 = vld [vmem:[%s880 + $0x30] sm:$0xff]
  %v888 = vld [vmem:[%s880 + $0x38] sm:$0xff]
  %v889 = vld [vmem:[%s880 + $0x40] sm:$0xff]
  %v890 = vld [vmem:[%s880 + $0x48] sm:$0xff]
  %v891 = vld [vmem:[%s880 + $0x50] sm:$0xff]
  %v892 = vld [vmem:[%s880 + $0x58] sm:$0xff]
  %v893 = vld [vmem:[%s880 + $0x60] sm:$0xff]
  %v894 = vld [vmem:[%s880 + $0x68] sm:$0xff]
  %v895 = vld [vmem:[%s880 + $0x70] sm:$0xff]
  %v896 = vld [vmem:[%s880 + $0x78] sm:$0xff]
  %v897 = vld [vmem:[%s880 + $0x80] sm:$0xff]
  %v898 = vld [vmem:[%s880 + $0x88] sm:$0xff]
  %v899 = vld [vmem:[%s880 + $0x90] sm:$0xff]
  %v900 = vld [vmem:[%s880 + $0x98] sm:$0xff]
  %v901 = vld [vmem:[%s880 + $0xa0] sm:$0xff]
  %v902 = vld [vmem:[%s880 + $0xa8] sm:$0xff]
  %v903 = vld [vmem:[%s880 + $0xb0] sm:$0xff]
  %v904 = vld [vmem:[%s880 + $0xb8] sm:$0xff]
  %v905 = vld [vmem:[%s880 + $0xc0] sm:$0xff]
  %v906 = vld [vmem:[%s880 + $0xc8] sm:$0xff]
  %v907 = vld [vmem:[%s880 + $0xd0] sm:$0xff]
  %v908 = vld [vmem:[%s880 + $0xd8] sm:$0xff]
  %v909 = vld [vmem:[%s880 + $0xe0] sm:$0xff]
  %v910 = vld [vmem:[%s880 + $0xe8] sm:$0xff]
  %v911 = vld [vmem:[%s880 + $0xf0] sm:$0xff]
  %v912 = vld [vmem:[%s880 + $0xf8] sm:$0xff]
  %v913 = vld [vmem:[%s880 + $0x100] sm:$0xff]
  %v914 = vld [vmem:[%s880 + $0x108] sm:$0xff]
  %v915 = vld [vmem:[%s880 + $0x110] sm:$0xff]
  %v916 = vld [vmem:[%s880 + $0x118] sm:$0xff]
  %v917 = vld [vmem:[%s880 + $0x120] sm:$0xff]
  %v918 = vld [vmem:[%s880 + $0x128] sm:$0xff]
  %v919 = vld [vmem:[%s880 + $0x130] sm:$0xff]
  %v920 = vld [vmem:[%s880 + $0x138] sm:$0xff]
  %v921 = vld [vmem:[%s880 + $0x140] sm:$0xff]
  %v922 = vld [vmem:[%s880 + $0x148] sm:$0xff]
  %v923 = vld [vmem:[%s880 + $0x150] sm:$0xff]
  %v924 = vld [vmem:[%s880 + $0x158] sm:$0xff]
  %v925 = vld [vmem:[%s880 + $0x160] sm:$0xff]
  %v926 = vld [vmem:[%s880 + $0x168] sm:$0xff]
  %v927 = vld [vmem:[%s880 + $0x170] sm:$0xff]
  %v928 = vld [vmem:[%s880 + $0x178] sm:$0xff]
  %s929 = scalar_lea.vmem %s3, 64
  %v930 = vld [vmem:[%s929] sm:$0xff]
  %v931 = vld [vmem:[%s929 + $0x8] sm:$0xff]
  %v932 = vld [vmem:[%s929 + $0x10] sm:$0xff]
  %v933 = vld [vmem:[%s929 + $0x18] sm:$0xff]
  %v934 = vld [vmem:[%s929 + $0x20] sm:$0xff]
  %v935 = vld [vmem:[%s929 + $0x28] sm:$0xff]
  %v936 = vld [vmem:[%s929 + $0x30] sm:$0xff]
  %v937 = vld [vmem:[%s929 + $0x38] sm:$0xff]
  %v938 = vpack.c.bf16 %v931, %v930
  %v939 = vpack.c.bf16 %v933, %v932
  %v940 = vpack.c.bf16 %v935, %v934
  %v941 = vpack.c.bf16 %v937, %v936
  %942 = vmatprep.subr.bf16.mxu0 0
  %943 = vmatpush1.bf16.msra.mxu0 %v938
  %944 = vmatprep.subr.bf16.mxu0 0
  %945 = vmatpush1.bf16.msra.mxu0 %v939
  %946 = vmatprep.subr.bf16.mxu0 0
  %947 = vmatpush1.bf16.msra.mxu0 %v940
  %948 = vmatprep.subr.bf16.mxu0 0
  %949 = vmatpush1.bf16.msra.mxu0 %v941
  %950 = vmatprep.subr.bf16.mxu0 0
  %951 = vmatpush1.bf16.msra.mxu0 0
  %952 = vmatprep.subr.bf16.mxu0 0
  %953 = vmatpush1.bf16.msra.mxu0 0
  %954 = vmatprep.subr.bf16.mxu0 0
  %955 = vmatpush1.bf16.msra.mxu0 0
  %956 = vmatprep.subr.bf16.mxu0 0
  %957 = vmatpush1.bf16.msra.mxu0 0
  %958 = vmatprep.subr.bf16.mxu0 0
  %959 = vmatpush1.bf16.msra.mxu0 0
  %960 = vmatprep.subr.bf16.mxu0 0
  %961 = vmatpush1.bf16.msra.mxu0 0
  %962 = vmatprep.subr.bf16.mxu0 0
  %963 = vmatpush1.bf16.msra.mxu0 0
  %964 = vmatprep.subr.bf16.mxu0 0
  %965 = vmatpush1.bf16.msra.mxu0 0
  %966 = vmatprep.subr.bf16.mxu0 0
  %967 = vmatpush1.bf16.msra.mxu0 0
  %968 = vmatprep.subr.bf16.mxu0 0
  %969 = vmatpush1.bf16.msra.mxu0 0
  %970 = vmatprep.subr.bf16.mxu0 0
  %971 = vmatpush1.bf16.msra.mxu0 0
  %972 = vmatprep.subr.bf16.mxu0 0
  %973 = vmatpush1.bf16.msra.mxu0 0
  %974 = vmatprep.mubr.bf16.mxu0 0
  %975 = vmatmul.mubr.bf16.gmra.mrb[0].mxu0 %v302
  %v976 = vpop.f32.mrb[0].mxu0
  %v977 = vadd.f32 0.0, %v976
  %v978 = vpop.f32.mrb[0].mxu0
  %v979 = vpop.f32.mrb[0].mxu0
  %v980 = vadd.f32 0.0, %v979
  %v981 = vpop.f32.mrb[0].mxu0
  %982 = vmatprep.mubr.bf16.mxu0 0
  %983 = vmatmul.mubr.bf16.gmra.mrb[0].mxu0 %v305
  %v984 = vpop.f32.mrb[0].mxu0
  %v985 = vadd.f32 0.0, %v984
  %v986 = vpop.f32.mrb[0].mxu0
  %v987 = vpop.f32.mrb[0].mxu0
  %v988 = vadd.f32 0.0, %v987
  %v989 = vpop.f32.mrb[0].mxu0
  %990 = vmatprep.mubr.bf16.mxu0 0
  %991 = vmatmul.mubr.bf16.gmra.mrb[0].mxu0 %v308
  %v992 = vpop.f32.mrb[0].mxu0
  %v993 = vadd.f32 0.0, %v992
  %v994 = vpop.f32.mrb[0].mxu0
  %v995 = vpop.f32.mrb[0].mxu0
  %v996 = vadd.f32 0.0, %v995
  %v997 = vpop.f32.mrb[0].mxu0
  %998 = vmatprep.mubr.bf16.mxu0 0
  %999 = vmatmul.mubr.bf16.gmra.mrb[0].mxu0 %v311
  %v1000 = vpop.f32.mrb[0].mxu0
  %v1001 = vadd.f32 0.0, %v1000
  %v1002 = vpop.f32.mrb[0].mxu0
  %v1003 = vpop.f32.mrb[0].mxu0
  %v1004 = vadd.f32 0.0, %v1003
  %v1005 = vpop.f32.mrb[0].mxu0
  %1006 = vmatprep.mubr.bf16.mxu0 0
  %1007 = vmatmul.mubr.bf16.gmra.mrb[0].mxu0 %v314
  %v1008 = vpop.f32.mrb[0].mxu0
  %v1009 = vadd.f32 0.0, %v1008
  %v1010 = vpop.f32.mrb[0].mxu0
  %v1011 = vpop.f32.mrb[0].mxu0
  %v1012 = vadd.f32 0.0, %v1011
  %v1013 = vpop.f32.mrb[0].mxu0
  %1014 = vmatprep.mubr.bf16.mxu0 0
  %1015 = vmatmul.mubr.bf16.gmra.mrb[0].mxu0 %v317
  %v1016 = vpop.f32.mrb[0].mxu0
  %v1017 = vadd.f32 0.0, %v1016
  %v1018 = vpop.f32.mrb[0].mxu0
  %v1019 = vpop.f32.mrb[0].mxu0
  %v1020 = vadd.f32 0.0, %v1019
  %v1021 = vpop.f32.mrb[0].mxu0
  %1022 = vmatprep.mubr.bf16.mxu0 0
  %1023 = vmatmul.mubr.bf16.gmra.mrb[0].mxu0 %v320
  %v1024 = vpop.f32.mrb[0].mxu0
  %v1025 = vadd.f32 0.0, %v1024
  %v1026 = vpop.f32.mrb[0].mxu0
  %v1027 = vpop.f32.mrb[0].mxu0
  %v1028 = vadd.f32 0.0, %v1027
  %v1029 = vpop.f32.mrb[0].mxu0
  %1030 = vmatprep.mubr.bf16.mxu0 0
  %1031 = vmatmul.mubr.bf16.gmra.mrb[0].mxu0 %v323
  %v1032 = vpop.f32.mrb[0].mxu0
  %v1033 = vadd.f32 0.0, %v1032
  %v1034 = vpop.f32.mrb[0].mxu0
  %v1035 = vpop.f32.mrb[0].mxu0
  %v1036 = vadd.f32 0.0, %v1035
  %v1037 = vpop.f32.mrb[0].mxu0
  %1038 = vmatprep.mubr.bf16.mxu0 0
  %1039 = vmatmul.mubr.bf16.gmra.mrb[0].mxu0 %v326
  %v1040 = vpop.f32.mrb[0].mxu0
  %v1041 = vadd.f32 0.0, %v1040
  %v1042 = vpop.f32.mrb[0].mxu0
  %v1043 = vpop.f32.mrb[0].mxu0
  %v1044 = vadd.f32 0.0, %v1043
  %v1045 = vpop.f32.mrb[0].mxu0
  %1046 = vmatprep.mubr.bf16.mxu0 0
  %1047 = vmatmul.mubr.bf16.gmra.mrb[0].mxu0 %v329
  %v1048 = vpop.f32.mrb[0].mxu0
  %v1049 = vadd.f32 0.0, %v1048
  %v1050 = vpop.f32.mrb[0].mxu0
  %v1051 = vpop.f32.mrb[0].mxu0
  %v1052 = vadd.f32 0.0, %v1051
  %v1053 = vpop.f32.mrb[0].mxu0
  %1054 = vmatprep.mubr.bf16.mxu0 0
  %1055 = vmatmul.mubr.bf16.gmra.mrb[0].mxu0 %v332
  %v1056 = vpop.f32.mrb[0].mxu0
  %v1057 = vadd.f32 0.0, %v1056
  %v1058 = vpop.f32.mrb[0].mxu0
  %v1059 = vpop.f32.mrb[0].mxu0
  %v1060 = vadd.f32 0.0, %v1059
  %v1061 = vpop.f32.mrb[0].mxu0
  %1062 = vmatprep.mubr.bf16.mxu0 0
  %1063 = vmatmul.mubr.bf16.gmra.mrb[0].mxu0 %v335
  %v1064 = vpop.f32.mrb[0].mxu0
  %v1065 = vadd.f32 0.0, %v1064
  %v1066 = vpop.f32.mrb[0].mxu0
  %v1067 = vpop.f32.mrb[0].mxu0
  %v1068 = vadd.f32 0.0, %v1067
  %v1069 = vpop.f32.mrb[0].mxu0
  %1070 = vdwg.mxu0
  %v1071 = vpack.c.bf16 %v883, %v881
  %v1072 = vpack.c.bf16 %v884, %v882
  %v1073 = vpack.c.bf16 %v887, %v885
  %v1074 = vpack.c.bf16 %v888, %v886
  %v1075 = vpack.c.bf16 %v891, %v889
  %v1076 = vpack.c.bf16 %v892, %v890
  %v1077 = vpack.c.bf16 %v895, %v893
  %v1078 = vpack.c.bf16 %v896, %v894
  %v1079 = vpack.c.bf16 %v899, %v897
  %v1080 = vpack.c.bf16 %v900, %v898
  %v1081 = vpack.c.bf16 %v903, %v901
  %v1082 = vpack.c.bf16 %v904, %v902
  %v1083 = vpack.c.bf16 %v907, %v905
  %v1084 = vpack.c.bf16 %v908, %v906
  %v1085 = vpack.c.bf16 %v911, %v909
  %v1086 = vpack.c.bf16 %v912, %v910
  %v1087 = vpack.c.bf16 %v915, %v913
  %v1088 = vpack.c.bf16 %v916, %v914
  %v1089 = vpack.c.bf16 %v919, %v917
  %v1090 = vpack.c.bf16 %v920, %v918
  %v1091 = vpack.c.bf16 %v923, %v921
  %v1092 = vpack.c.bf16 %v924, %v922
  %v1093 = vpack.c.bf16 %v927, %v925
  %v1094 = vpack.c.bf16 %v928, %v926
  %v1095 = vpack.c.bf16 %v980, %v977
  %v1096 = vpack.c.bf16 %v988, %v985
  %v1097 = vpack.c.bf16 %v996, %v993
  %v1098 = vpack.c.bf16 %v1004, %v1001
  %v1099 = vpack.c.bf16 %v1012, %v1009
  %v1100 = vpack.c.bf16 %v1020, %v1017
  %v1101 = vpack.c.bf16 %v1028, %v1025
  %v1102 = vpack.c.bf16 %v1036, %v1033
  %v1103 = vpack.c.bf16 %v1044, %v1041
  %v1104 = vpack.c.bf16 %v1052, %v1049
  %v1105 = vpack.c.bf16 %v1060, %v1057
  %v1106 = vpack.c.bf16 %v1068, %v1065
  %v1108 = vsel %vm300, %v1072, 0
  %v1111 = vsel %vm300, %v1074, 0
  %v1114 = vsel %vm300, %v1076, 0
  %v1117 = vsel %vm300, %v1078, 0
  %v1120 = vsel %vm300, %v1080, 0
  %v1123 = vsel %vm300, %v1082, 0
  %v1126 = vsel %vm300, %v1084, 0
  %v1129 = vsel %vm300, %v1086, 0
  %v1132 = vsel %vm300, %v1088, 0
  %v1135 = vsel %vm300, %v1090, 0
  %v1138 = vsel %vm300, %v1092, 0
  %v1141 = vsel %vm300, %v1094, 0
  %1143 = vmatprep.subr.bf16.mxu0 0
  %1144 = vmatpush1.bf16.msra.mxu0 %v1095
  %1145 = vmatprep.subr.bf16.mxu0 0
  %1146 = vmatpush1.bf16.msra.mxu0 %v1096
  %1147 = vmatprep.subr.bf16.mxu0 0
  %1148 = vmatpush1.bf16.msra.mxu0 %v1097
  %1149 = vmatprep.subr.bf16.mxu0 0
  %1150 = vmatpush1.bf16.msra.mxu0 %v1098
  %1151 = vmatprep.subr.bf16.mxu0 0
  %1152 = vmatpush1.bf16.msra.mxu0 %v1099
  %1153 = vmatprep.subr.bf16.mxu0 0
  %1154 = vmatpush1.bf16.msra.mxu0 %v1100
  %1155 = vmatprep.subr.bf16.mxu0 0
  %1156 = vmatpush1.bf16.msra.mxu0 %v1101
  %1157 = vmatprep.subr.bf16.mxu0 0
  %1158 = vmatpush1.bf16.msra.mxu0 %v1102
  %1159 = vmatprep.subr.bf16.mxu0 0
  %1160 = vmatpush1.bf16.msra.mxu0 %v1103
  %1161 = vmatprep.subr.bf16.mxu0 0
  %1162 = vmatpush1.bf16.msra.mxu0 %v1104
  %1163 = vmatprep.subr.bf16.mxu0 0
  %1164 = vmatpush1.bf16.msra.mxu0 %v1105
  %1165 = vmatprep.subr.bf16.mxu0 0
  %1166 = vmatpush1.bf16.msra.mxu0 %v1106
  %1167 = vmatprep.subr.bf16.mxu0 0
  %1168 = vmatpush1.bf16.msra.mxu0 0
  %1169 = vmatprep.subr.bf16.mxu0 0
  %1170 = vmatpush1.bf16.msra.mxu0 0
  %1171 = vmatprep.subr.bf16.mxu0 0
  %1172 = vmatpush1.bf16.msra.mxu0 0
  %1173 = vmatprep.subr.bf16.mxu0 0
  %1174 = vmatpush1.bf16.msra.mxu0 0
  %1175 = vmatprep.mubr.bf16.mxu0 %v1108
  %1176 = vmatmul.mubr.bf16.gmra.mrb[0].mxu0 %v1071
  %v1177 = vpop.f32.mrb[0].mxu0
  %v1178 = vadd.f32 0.0, %v1177
  %v1179 = vpop.f32.mrb[0].mxu0
  %v1180 = vpop.f32.mrb[0].mxu0
  %v1181 = vadd.f32 0.0, %v1180
  %v1182 = vpop.f32.mrb[0].mxu0
  %1183 = vmatprep.mubr.bf16.mxu0 %v1111
  %1184 = vmatmul.mubr.bf16.gmra.mrb[0].mxu0 %v1073
  %v1185 = vpop.f32.mrb[0].mxu0
  %v1186 = vadd.f32 0.0, %v1185
  %v1187 = vpop.f32.mrb[0].mxu0
  %v1188 = vpop.f32.mrb[0].mxu0
  %v1189 = vadd.f32 0.0, %v1188
  %v1190 = vpop.f32.mrb[0].mxu0
  %1191 = vmatprep.mubr.bf16.mxu0 %v1114
  %1192 = vmatmul.mubr.bf16.gmra.mrb[0].mxu0 %v1075
  %v1193 = vpop.f32.mrb[0].mxu0
  %v1194 = vadd.f32 0.0, %v1193
  %v1195 = vpop.f32.mrb[0].mxu0
  %v1196 = vpop.f32.mrb[0].mxu0
  %v1197 = vadd.f32 0.0, %v1196
  %v1198 = vpop.f32.mrb[0].mxu0
  %1199 = vmatprep.mubr.bf16.mxu0 %v1117
  %1200 = vmatmul.mubr.bf16.gmra.mrb[0].mxu0 %v1077
  %v1201 = vpop.f32.mrb[0].mxu0
  %v1202 = vadd.f32 0.0, %v1201
  %v1203 = vpop.f32.mrb[0].mxu0
  %v1204 = vpop.f32.mrb[0].mxu0
  %v1205 = vadd.f32 0.0, %v1204
  %v1206 = vpop.f32.mrb[0].mxu0
  %1207 = vmatprep.mubr.bf16.mxu0 %v1120
  %1208 = vmatmul.mubr.bf16.gmra.mrb[0].mxu0 %v1079
  %v1209 = vpop.f32.mrb[0].mxu0
  %v1210 = vadd.f32 0.0, %v1209
  %v1211 = vpop.f32.mrb[0].mxu0
  %v1212 = vpop.f32.mrb[0].mxu0
  %v1213 = vadd.f32 0.0, %v1212
  %v1214 = vpop.f32.mrb[0].mxu0
  %1215 = vmatprep.mubr.bf16.mxu0 %v1123
  %1216 = vmatmul.mubr.bf16.gmra.mrb[0].mxu0 %v1081
  %v1217 = vpop.f32.mrb[0].mxu0
  %v1218 = vadd.f32 0.0, %v1217
  %v1219 = vpop.f32.mrb[0].mxu0
  %v1220 = vpop.f32.mrb[0].mxu0
  %v1221 = vadd.f32 0.0, %v1220
  %v1222 = vpop.f32.mrb[0].mxu0
  %1223 = vmatprep.mubr.bf16.mxu0 %v1126
  %1224 = vmatmul.mubr.bf16.gmra.mrb[0].mxu0 %v1083
  %v1225 = vpop.f32.mrb[0].mxu0
  %v1226 = vadd.f32 0.0, %v1225
  %v1227 = vpop.f32.mrb[0].mxu0
  %v1228 = vpop.f32.mrb[0].mxu0
  %v1229 = vadd.f32 0.0, %v1228
  %v1230 = vpop.f32.mrb[0].mxu0
  %1231 = vmatprep.mubr.bf16.mxu0 %v1129
  %1232 = vmatmul.mubr.bf16.gmra.mrb[0].mxu0 %v1085
  %v1233 = vpop.f32.mrb[0].mxu0
  %v1234 = vadd.f32 0.0, %v1233
  %v1235 = vpop.f32.mrb[0].mxu0
  %v1236 = vpop.f32.mrb[0].mxu0
  %v1237 = vadd.f32 0.0, %v1236
  %v1238 = vpop.f32.mrb[0].mxu0
  %1239 = vmatprep.mubr.bf16.mxu0 %v1132
  %1240 = vmatmul.mubr.bf16.gmra.mrb[0].mxu0 %v1087
  %v1241 = vpop.f32.mrb[0].mxu0
  %v1242 = vadd.f32 0.0, %v1241
  %v1243 = vpop.f32.mrb[0].mxu0
  %v1244 = vpop.f32.mrb[0].mxu0
  %v1245 = vadd.f32 0.0, %v1244
  %v1246 = vpop.f32.mrb[0].mxu0
  %1247 = vmatprep.mubr.bf16.mxu0 %v1135
  %1248 = vmatmul.mubr.bf16.gmra.mrb[0].mxu0 %v1089
  %v1249 = vpop.f32.mrb[0].mxu0
  %v1250 = vadd.f32 0.0, %v1249
  %v1251 = vpop.f32.mrb[0].mxu0
  %v1252 = vpop.f32.mrb[0].mxu0
  %v1253 = vadd.f32 0.0, %v1252
  %v1254 = vpop.f32.mrb[0].mxu0
  %1255 = vmatprep.mubr.bf16.mxu0 %v1138
  %1256 = vmatmul.mubr.bf16.gmra.mrb[0].mxu0 %v1091
  %v1257 = vpop.f32.mrb[0].mxu0
  %v1258 = vadd.f32 0.0, %v1257
  %v1259 = vpop.f32.mrb[0].mxu0
  %v1260 = vpop.f32.mrb[0].mxu0
  %v1261 = vadd.f32 0.0, %v1260
  %v1262 = vpop.f32.mrb[0].mxu0
  %1263 = vmatprep.mubr.bf16.mxu0 %v1141
  %1264 = vmatmul.mubr.bf16.gmra.mrb[0].mxu0 %v1093
  %v1265 = vpop.f32.mrb[0].mxu0
  %v1266 = vadd.f32 0.0, %v1265
  %v1267 = vpop.f32.mrb[0].mxu0
  %v1268 = vpop.f32.mrb[0].mxu0
  %v1269 = vadd.f32 0.0, %v1268
  %v1270 = vpop.f32.mrb[0].mxu0
  %1271 = vdwg.mxu0
  %v1272 = vadd.f32 %v856, %v1178
  %v1273 = vadd.f32 %v857, %v1181
  %v1274 = vadd.f32 %v858, %v1186
  %v1275 = vadd.f32 %v859, %v1189
  %v1276 = vadd.f32 %v860, %v1194
  %v1277 = vadd.f32 %v861, %v1197
  %v1278 = vadd.f32 %v862, %v1202
  %v1279 = vadd.f32 %v863, %v1205
  %v1280 = vadd.f32 %v864, %v1210
  %v1281 = vadd.f32 %v865, %v1213
  %v1282 = vadd.f32 %v866, %v1218
  %v1283 = vadd.f32 %v867, %v1221
  %v1284 = vadd.f32 %v868, %v1226
  %v1285 = vadd.f32 %v869, %v1229
  %v1286 = vadd.f32 %v870, %v1234
  %v1287 = vadd.f32 %v871, %v1237
  %v1288 = vadd.f32 %v872, %v1242
  %v1289 = vadd.f32 %v873, %v1245
  %v1290 = vadd.f32 %v874, %v1250
  %v1291 = vadd.f32 %v875, %v1253
  %v1292 = vadd.f32 %v876, %v1258
  %v1293 = vadd.f32 %v877, %v1261
  %v1294 = vadd.f32 %v878, %v1266
  %v1295 = vadd.f32 %v879, %v1269
  %s1296 = scalar_lea.vmem %s4, 768
  %v1297 = vld [vmem:[%s1296] sm:$0xff]
  %v1298 = vld [vmem:[%s1296 + $0x8] sm:$0xff]
  %v1299 = vld [vmem:[%s1296 + $0x10] sm:$0xff]
  %v1300 = vld [vmem:[%s1296 + $0x18] sm:$0xff]
  %v1301 = vld [vmem:[%s1296 + $0x20] sm:$0xff]
  %v1302 = vld [vmem:[%s1296 + $0x28] sm:$0xff]
  %v1303 = vld [vmem:[%s1296 + $0x30] sm:$0xff]
  %v1304 = vld [vmem:[%s1296 + $0x38] sm:$0xff]
  %v1305 = vld [vmem:[%s1296 + $0x40] sm:$0xff]
  %v1306 = vld [vmem:[%s1296 + $0x48] sm:$0xff]
  %v1307 = vld [vmem:[%s1296 + $0x50] sm:$0xff]
  %v1308 = vld [vmem:[%s1296 + $0x58] sm:$0xff]
  %v1309 = vld [vmem:[%s1296 + $0x60] sm:$0xff]
  %v1310 = vld [vmem:[%s1296 + $0x68] sm:$0xff]
  %v1311 = vld [vmem:[%s1296 + $0x70] sm:$0xff]
  %v1312 = vld [vmem:[%s1296 + $0x78] sm:$0xff]
  %v1313 = vld [vmem:[%s1296 + $0x80] sm:$0xff]
  %v1314 = vld [vmem:[%s1296 + $0x88] sm:$0xff]
  %v1315 = vld [vmem:[%s1296 + $0x90] sm:$0xff]
  %v1316 = vld [vmem:[%s1296 + $0x98] sm:$0xff]
  %v1317 = vld [vmem:[%s1296 + $0xa0] sm:$0xff]
  %v1318 = vld [vmem:[%s1296 + $0xa8] sm:$0xff]
  %v1319 = vld [vmem:[%s1296 + $0xb0] sm:$0xff]
  %v1320 = vld [vmem:[%s1296 + $0xb8] sm:$0xff]
  %v1321 = vld [vmem:[%s1296 + $0xc0] sm:$0xff]
  %v1322 = vld [vmem:[%s1296 + $0xc8] sm:$0xff]
  %v1323 = vld [vmem:[%s1296 + $0xd0] sm:$0xff]
  %v1324 = vld [vmem:[%s1296 + $0xd8] sm:$0xff]
  %v1325 = vld [vmem:[%s1296 + $0xe0] sm:$0xff]
  %v1326 = vld [vmem:[%s1296 + $0xe8] sm:$0xff]
  %v1327 = vld [vmem:[%s1296 + $0xf0] sm:$0xff]
  %v1328 = vld [vmem:[%s1296 + $0xf8] sm:$0xff]
  %v1329 = vld [vmem:[%s1296 + $0x100] sm:$0xff]
  %v1330 = vld [vmem:[%s1296 + $0x108] sm:$0xff]
  %v1331 = vld [vmem:[%s1296 + $0x110] sm:$0xff]
  %v1332 = vld [vmem:[%s1296 + $0x118] sm:$0xff]
  %v1333 = vld [vmem:[%s1296 + $0x120] sm:$0xff]
  %v1334 = vld [vmem:[%s1296 + $0x128] sm:$0xff]
  %v1335 = vld [vmem:[%s1296 + $0x130] sm:$0xff]
  %v1336 = vld [vmem:[%s1296 + $0x138] sm:$0xff]
  %v1337 = vld [vmem:[%s1296 + $0x140] sm:$0xff]
  %v1338 = vld [vmem:[%s1296 + $0x148] sm:$0xff]
  %v1339 = vld [vmem:[%s1296 + $0x150] sm:$0xff]
  %v1340 = vld [vmem:[%s1296 + $0x158] sm:$0xff]
  %v1341 = vld [vmem:[%s1296 + $0x160] sm:$0xff]
  %v1342 = vld [vmem:[%s1296 + $0x168] sm:$0xff]
  %v1343 = vld [vmem:[%s1296 + $0x170] sm:$0xff]
  %v1344 = vld [vmem:[%s1296 + $0x178] sm:$0xff]
  %s1345 = scalar_lea.vmem %s3, 128
  %v1346 = vld [vmem:[%s1345] sm:$0xff]
  %v1347 = vld [vmem:[%s1345 + $0x8] sm:$0xff]
  %v1348 = vld [vmem:[%s1345 + $0x10] sm:$0xff]
  %v1349 = vld [vmem:[%s1345 + $0x18] sm:$0xff]
  %v1350 = vld [vmem:[%s1345 + $0x20] sm:$0xff]
  %v1351 = vld [vmem:[%s1345 + $0x28] sm:$0xff]
  %v1352 = vld [vmem:[%s1345 + $0x30] sm:$0xff]
  %v1353 = vld [vmem:[%s1345 + $0x38] sm:$0xff]
  %v1354 = vpack.c.bf16 %v1347, %v1346
  %v1355 = vpack.c.bf16 %v1349, %v1348
  %v1356 = vpack.c.bf16 %v1351, %v1350
  %v1357 = vpack.c.bf16 %v1353, %v1352
  %1358 = vmatprep.subr.bf16.mxu0 0
  %1359 = vmatpush1.bf16.msra.mxu0 %v1354
  %1360 = vmatprep.subr.bf16.mxu0 0
  %1361 = vmatpush1.bf16.msra.mxu0 %v1355
  %1362 = vmatprep.subr.bf16.mxu0 0
  %1363 = vmatpush1.bf16.msra.mxu0 %v1356
  %1364 = vmatprep.subr.bf16.mxu0 0
  %1365 = vmatpush1.bf16.msra.mxu0 %v1357
  %1366 = vmatprep.subr.bf16.mxu0 0
  %1367 = vmatpush1.bf16.msra.mxu0 0
  %1368 = vmatprep.subr.bf16.mxu0 0
  %1369 = vmatpush1.bf16.msra.mxu0 0
  %1370 = vmatprep.subr.bf16.mxu0 0
  %1371 = vmatpush1.bf16.msra.mxu0 0
  %1372 = vmatprep.subr.bf16.mxu0 0
  %1373 = vmatpush1.bf16.msra.mxu0 0
  %1374 = vmatprep.subr.bf16.mxu0 0
  %1375 = vmatpush1.bf16.msra.mxu0 0
  %1376 = vmatprep.subr.bf16.mxu0 0
  %1377 = vmatpush1.bf16.msra.mxu0 0
  %1378 = vmatprep.subr.bf16.mxu0 0
  %1379 = vmatpush1.bf16.msra.mxu0 0
  %1380 = vmatprep.subr.bf16.mxu0 0
  %1381 = vmatpush1.bf16.msra.mxu0 0
  %1382 = vmatprep.subr.bf16.mxu0 0
  %1383 = vmatpush1.bf16.msra.mxu0 0
  %1384 = vmatprep.subr.bf16.mxu0 0
  %1385 = vmatpush1.bf16.msra.mxu0 0
  %1386 = vmatprep.subr.bf16.mxu0 0
  %1387 = vmatpush1.bf16.msra.mxu0 0
  %1388 = vmatprep.subr.bf16.mxu0 0
  %1389 = vmatpush1.bf16.msra.mxu0 0
  %1390 = vmatprep.mubr.bf16.mxu0 0
  %1391 = vmatmul.mubr.bf16.gmra.mrb[0].mxu0 %v302
  %v1392 = vpop.f32.mrb[0].mxu0
  %v1393 = vadd.f32 0.0, %v1392
  %v1394 = vpop.f32.mrb[0].mxu0
  %v1395 = vpop.f32.mrb[0].mxu0
  %v1396 = vadd.f32 0.0, %v1395
  %v1397 = vpop.f32.mrb[0].mxu0
  %1398 = vmatprep.mubr.bf16.mxu0 0
  %1399 = vmatmul.mubr.bf16.gmra.mrb[0].mxu0 %v305
  %v1400 = vpop.f32.mrb[0].mxu0
  %v1401 = vadd.f32 0.0, %v1400
  %v1402 = vpop.f32.mrb[0].mxu0
  %v1403 = vpop.f32.mrb[0].mxu0
  %v1404 = vadd.f32 0.0, %v1403
  %v1405 = vpop.f32.mrb[0].mxu0
  %1406 = vmatprep.mubr.bf16.mxu0 0
  %1407 = vmatmul.mubr.bf16.gmra.mrb[0].mxu0 %v308
  %v1408 = vpop.f32.mrb[0].mxu0
  %v1409 = vadd.f32 0.0, %v1408
  %v1410 = vpop.f32.mrb[0].mxu0
  %v1411 = vpop.f32.mrb[0].mxu0
  %v1412 = vadd.f32 0.0, %v1411
  %v1413 = vpop.f32.mrb[0].mxu0
  %1414 = vmatprep.mubr.bf16.mxu0 0
  %1415 = vmatmul.mubr.bf16.gmra.mrb[0].mxu0 %v311
  %v1416 = vpop.f32.mrb[0].mxu0
  %v1417 = vadd.f32 0.0, %v1416
  %v1418 = vpop.f32.mrb[0].mxu0
  %v1419 = vpop.f32.mrb[0].mxu0
  %v1420 = vadd.f32 0.0, %v1419
  %v1421 = vpop.f32.mrb[0].mxu0
  %1422 = vmatprep.mubr.bf16.mxu0 0
  %1423 = vmatmul.mubr.bf16.gmra.mrb[0].mxu0 %v314
  %v1424 = vpop.f32.mrb[0].mxu0
  %v1425 = vadd.f32 0.0, %v1424
  %v1426 = vpop.f32.mrb[0].mxu0
  %v1427 = vpop.f32.mrb[0].mxu0
  %v1428 = vadd.f32 0.0, %v1427
  %v1429 = vpop.f32.mrb[0].mxu0
  %1430 = vmatprep.mubr.bf16.mxu0 0
  %1431 = vmatmul.mubr.bf16.gmra.mrb[0].mxu0 %v317
  %v1432 = vpop.f32.mrb[0].mxu0
  %v1433 = vadd.f32 0.0, %v1432
  %v1434 = vpop.f32.mrb[0].mxu0
  %v1435 = vpop.f32.mrb[0].mxu0
  %v1436 = vadd.f32 0.0, %v1435
  %v1437 = vpop.f32.mrb[0].mxu0
  %1438 = vmatprep.mubr.bf16.mxu0 0
  %1439 = vmatmul.mubr.bf16.gmra.mrb[0].mxu0 %v320
  %v1440 = vpop.f32.mrb[0].mxu0
  %v1441 = vadd.f32 0.0, %v1440
  %v1442 = vpop.f32.mrb[0].mxu0
  %v1443 = vpop.f32.mrb[0].mxu0
  %v1444 = vadd.f32 0.0, %v1443
  %v1445 = vpop.f32.mrb[0].mxu0
  %1446 = vmatprep.mubr.bf16.mxu0 0
  %1447 = vmatmul.mubr.bf16.gmra.mrb[0].mxu0 %v323
  %v1448 = vpop.f32.mrb[0].mxu0
  %v1449 = vadd.f32 0.0, %v1448
  %v1450 = vpop.f32.mrb[0].mxu0
  %v1451 = vpop.f32.mrb[0].mxu0
  %v1452 = vadd.f32 0.0, %v1451
  %v1453 = vpop.f32.mrb[0].mxu0
  %1454 = vmatprep.mubr.bf16.mxu0 0
  %1455 = vmatmul.mubr.bf16.gmra.mrb[0].mxu0 %v326
  %v1456 = vpop.f32.mrb[0].mxu0
  %v1457 = vadd.f32 0.0, %v1456
  %v1458 = vpop.f32.mrb[0].mxu0
  %v1459 = vpop.f32.mrb[0].mxu0
  %v1460 = vadd.f32 0.0, %v1459
  %v1461 = vpop.f32.mrb[0].mxu0
  %1462 = vmatprep.mubr.bf16.mxu0 0
  %1463 = vmatmul.mubr.bf16.gmra.mrb[0].mxu0 %v329
  %v1464 = vpop.f32.mrb[0].mxu0
  %v1465 = vadd.f32 0.0, %v1464
  %v1466 = vpop.f32.mrb[0].mxu0
  %v1467 = vpop.f32.mrb[0].mxu0
  %v1468 = vadd.f32 0.0, %v1467
  %v1469 = vpop.f32.mrb[0].mxu0
  %1470 = vmatprep.mubr.bf16.mxu0 0
  %1471 = vmatmul.mubr.bf16.gmra.mrb[0].mxu0 %v332
  %v1472 = vpop.f32.mrb[0].mxu0
  %v1473 = vadd.f32 0.0, %v1472
  %v1474 = vpop.f32.mrb[0].mxu0
  %v1475 = vpop.f32.mrb[0].mxu0
  %v1476 = vadd.f32 0.0, %v1475
  %v1477 = vpop.f32.mrb[0].mxu0
  %1478 = vmatprep.mubr.bf16.mxu0 0
  %1479 = vmatmul.mubr.bf16.gmra.mrb[0].mxu0 %v335
  %v1480 = vpop.f32.mrb[0].mxu0
  %v1481 = vadd.f32 0.0, %v1480
  %v1482 = vpop.f32.mrb[0].mxu0
  %v1483 = vpop.f32.mrb[0].mxu0
  %v1484 = vadd.f32 0.0, %v1483
  %v1485 = vpop.f32.mrb[0].mxu0
  %1486 = vdwg.mxu0
  %v1487 = vpack.c.bf16 %v1299, %v1297
  %v1488 = vpack.c.bf16 %v1300, %v1298
  %v1489 = vpack.c.bf16 %v1303, %v1301
  %v1490 = vpack.c.bf16 %v1304, %v1302
  %v1491 = vpack.c.bf16 %v1307, %v1305
  %v1492 = vpack.c.bf16 %v1308, %v1306
  %v1493 = vpack.c.bf16 %v1311, %v1309
  %v1494 = vpack.c.bf16 %v1312, %v1310
  %v1495 = vpack.c.bf16 %v1315, %v1313
  %v1496 = vpack.c.bf16 %v1316, %v1314
  %v1497 = vpack.c.bf16 %v1319, %v1317
  %v1498 = vpack.c.bf16 %v1320, %v1318
  %v1499 = vpack.c.bf16 %v1323, %v1321
  %v1500 = vpack.c.bf16 %v1324, %v1322
  %v1501 = vpack.c.bf16 %v1327, %v1325
  %v1502 = vpack.c.bf16 %v1328, %v1326
  %v1503 = vpack.c.bf16 %v1331, %v1329
  %v1504 = vpack.c.bf16 %v1332, %v1330
  %v1505 = vpack.c.bf16 %v1335, %v1333
  %v1506 = vpack.c.bf16 %v1336, %v1334
  %v1507 = vpack.c.bf16 %v1339, %v1337
  %v1508 = vpack.c.bf16 %v1340, %v1338
  %v1509 = vpack.c.bf16 %v1343, %v1341
  %v1510 = vpack.c.bf16 %v1344, %v1342
  %v1511 = vpack.c.bf16 %v1396, %v1393
  %v1512 = vpack.c.bf16 %v1404, %v1401
  %v1513 = vpack.c.bf16 %v1412, %v1409
  %v1514 = vpack.c.bf16 %v1420, %v1417
  %v1515 = vpack.c.bf16 %v1428, %v1425
  %v1516 = vpack.c.bf16 %v1436, %v1433
  %v1517 = vpack.c.bf16 %v1444, %v1441
  %v1518 = vpack.c.bf16 %v1452, %v1449
  %v1519 = vpack.c.bf16 %v1460, %v1457
  %v1520 = vpack.c.bf16 %v1468, %v1465
  %v1521 = vpack.c.bf16 %v1476, %v1473
  %v1522 = vpack.c.bf16 %v1484, %v1481
  %v1524 = vsel %vm300, %v1488, 0
  %v1527 = vsel %vm300, %v1490, 0
  %v1530 = vsel %vm300, %v1492, 0
  %v1533 = vsel %vm300, %v1494, 0
  %v1536 = vsel %vm300, %v1496, 0
  %v1539 = vsel %vm300, %v1498, 0
  %v1542 = vsel %vm300, %v1500, 0
  %v1545 = vsel %vm300, %v1502, 0
  %v1548 = vsel %vm300, %v1504, 0
  %v1551 = vsel %vm300, %v1506, 0
  %v1554 = vsel %vm300, %v1508, 0
  %v1557 = vsel %vm300, %v1510, 0
  %1559 = vmatprep.subr.bf16.mxu0 0
  %1560 = vmatpush1.bf16.msra.mxu0 %v1511
  %1561 = vmatprep.subr.bf16.mxu0 0
  %1562 = vmatpush1.bf16.msra.mxu0 %v1512
  %1563 = vmatprep.subr.bf16.mxu0 0
  %1564 = vmatpush1.bf16.msra.mxu0 %v1513
  %1565 = vmatprep.subr.bf16.mxu0 0
  %1566 = vmatpush1.bf16.msra.mxu0 %v1514
  %1567 = vmatprep.subr.bf16.mxu0 0
  %1568 = vmatpush1.bf16.msra.mxu0 %v1515
  %1569 = vmatprep.subr.bf16.mxu0 0
  %1570 = vmatpush1.bf16.msra.mxu0 %v1516
  %1571 = vmatprep.subr.bf16.mxu0 0
  %1572 = vmatpush1.bf16.msra.mxu0 %v1517
  %1573 = vmatprep.subr.bf16.mxu0 0
  %1574 = vmatpush1.bf16.msra.mxu0 %v1518
  %1575 = vmatprep.subr.bf16.mxu0 0
  %1576 = vmatpush1.bf16.msra.mxu0 %v1519
  %1577 = vmatprep.subr.bf16.mxu0 0
  %1578 = vmatpush1.bf16.msra.mxu0 %v1520
  %1579 = vmatprep.subr.bf16.mxu0 0
  %1580 = vmatpush1.bf16.msra.mxu0 %v1521
  %1581 = vmatprep.subr.bf16.mxu0 0
  %1582 = vmatpush1.bf16.msra.mxu0 %v1522
  %1583 = vmatprep.subr.bf16.mxu0 0
  %1584 = vmatpush1.bf16.msra.mxu0 0
  %1585 = vmatprep.subr.bf16.mxu0 0
  %1586 = vmatpush1.bf16.msra.mxu0 0
  %1587 = vmatprep.subr.bf16.mxu0 0
  %1588 = vmatpush1.bf16.msra.mxu0 0
  %1589 = vmatprep.subr.bf16.mxu0 0
  %1590 = vmatpush1.bf16.msra.mxu0 0
  %1591 = vmatprep.mubr.bf16.mxu0 %v1524
  %1592 = vmatmul.mubr.bf16.gmra.mrb[0].mxu0 %v1487
  %v1593 = vpop.f32.mrb[0].mxu0
  %v1594 = vadd.f32 0.0, %v1593
  %v1595 = vpop.f32.mrb[0].mxu0
  %v1596 = vpop.f32.mrb[0].mxu0
  %v1597 = vadd.f32 0.0, %v1596
  %v1598 = vpop.f32.mrb[0].mxu0
  %1599 = vmatprep.mubr.bf16.mxu0 %v1527
  %1600 = vmatmul.mubr.bf16.gmra.mrb[0].mxu0 %v1489
  %v1601 = vpop.f32.mrb[0].mxu0
  %v1602 = vadd.f32 0.0, %v1601
  %v1603 = vpop.f32.mrb[0].mxu0
  %v1604 = vpop.f32.mrb[0].mxu0
  %v1605 = vadd.f32 0.0, %v1604
  %v1606 = vpop.f32.mrb[0].mxu0
  %1607 = vmatprep.mubr.bf16.mxu0 %v1530
  %1608 = vmatmul.mubr.bf16.gmra.mrb[0].mxu0 %v1491
  %v1609 = vpop.f32.mrb[0].mxu0
  %v1610 = vadd.f32 0.0, %v1609
  %v1611 = vpop.f32.mrb[0].mxu0
  %v1612 = vpop.f32.mrb[0].mxu0
  %v1613 = vadd.f32 0.0, %v1612
  %v1614 = vpop.f32.mrb[0].mxu0
  %1615 = vmatprep.mubr.bf16.mxu0 %v1533
  %1616 = vmatmul.mubr.bf16.gmra.mrb[0].mxu0 %v1493
  %v1617 = vpop.f32.mrb[0].mxu0
  %v1618 = vadd.f32 0.0, %v1617
  %v1619 = vpop.f32.mrb[0].mxu0
  %v1620 = vpop.f32.mrb[0].mxu0
  %v1621 = vadd.f32 0.0, %v1620
  %v1622 = vpop.f32.mrb[0].mxu0
  %1623 = vmatprep.mubr.bf16.mxu0 %v1536
  %1624 = vmatmul.mubr.bf16.gmra.mrb[0].mxu0 %v1495
  %v1625 = vpop.f32.mrb[0].mxu0
  %v1626 = vadd.f32 0.0, %v1625
  %v1627 = vpop.f32.mrb[0].mxu0
  %v1628 = vpop.f32.mrb[0].mxu0
  %v1629 = vadd.f32 0.0, %v1628
  %v1630 = vpop.f32.mrb[0].mxu0
  %1631 = vmatprep.mubr.bf16.mxu0 %v1539
  %1632 = vmatmul.mubr.bf16.gmra.mrb[0].mxu0 %v1497
  %v1633 = vpop.f32.mrb[0].mxu0
  %v1634 = vadd.f32 0.0, %v1633
  %v1635 = vpop.f32.mrb[0].mxu0
  %v1636 = vpop.f32.mrb[0].mxu0
  %v1637 = vadd.f32 0.0, %v1636
  %v1638 = vpop.f32.mrb[0].mxu0
  %1639 = vmatprep.mubr.bf16.mxu0 %v1542
  %1640 = vmatmul.mubr.bf16.gmra.mrb[0].mxu0 %v1499
  %v1641 = vpop.f32.mrb[0].mxu0
  %v1642 = vadd.f32 0.0, %v1641
  %v1643 = vpop.f32.mrb[0].mxu0
  %v1644 = vpop.f32.mrb[0].mxu0
  %v1645 = vadd.f32 0.0, %v1644
  %v1646 = vpop.f32.mrb[0].mxu0
  %1647 = vmatprep.mubr.bf16.mxu0 %v1545
  %1648 = vmatmul.mubr.bf16.gmra.mrb[0].mxu0 %v1501
  %v1649 = vpop.f32.mrb[0].mxu0
  %v1650 = vadd.f32 0.0, %v1649
  %v1651 = vpop.f32.mrb[0].mxu0
  %v1652 = vpop.f32.mrb[0].mxu0
  %v1653 = vadd.f32 0.0, %v1652
  %v1654 = vpop.f32.mrb[0].mxu0
  %1655 = vmatprep.mubr.bf16.mxu0 %v1548
  %1656 = vmatmul.mubr.bf16.gmra.mrb[0].mxu0 %v1503
  %v1657 = vpop.f32.mrb[0].mxu0
  %v1658 = vadd.f32 0.0, %v1657
  %v1659 = vpop.f32.mrb[0].mxu0
  %v1660 = vpop.f32.mrb[0].mxu0
  %v1661 = vadd.f32 0.0, %v1660
  %v1662 = vpop.f32.mrb[0].mxu0
  %1663 = vmatprep.mubr.bf16.mxu0 %v1551
  %1664 = vmatmul.mubr.bf16.gmra.mrb[0].mxu0 %v1505
  %v1665 = vpop.f32.mrb[0].mxu0
  %v1666 = vadd.f32 0.0, %v1665
  %v1667 = vpop.f32.mrb[0].mxu0
  %v1668 = vpop.f32.mrb[0].mxu0
  %v1669 = vadd.f32 0.0, %v1668
  %v1670 = vpop.f32.mrb[0].mxu0
  %1671 = vmatprep.mubr.bf16.mxu0 %v1554
  %1672 = vmatmul.mubr.bf16.gmra.mrb[0].mxu0 %v1507
  %v1673 = vpop.f32.mrb[0].mxu0
  %v1674 = vadd.f32 0.0, %v1673
  %v1675 = vpop.f32.mrb[0].mxu0
  %v1676 = vpop.f32.mrb[0].mxu0
  %v1677 = vadd.f32 0.0, %v1676
  %v1678 = vpop.f32.mrb[0].mxu0
  %1679 = vmatprep.mubr.bf16.mxu0 %v1557
  %1680 = vmatmul.mubr.bf16.gmra.mrb[0].mxu0 %v1509
  %v1681 = vpop.f32.mrb[0].mxu0
  %v1682 = vadd.f32 0.0, %v1681
  %v1683 = vpop.f32.mrb[0].mxu0
  %v1684 = vpop.f32.mrb[0].mxu0
  %v1685 = vadd.f32 0.0, %v1684
  %v1686 = vpop.f32.mrb[0].mxu0
  %1687 = vdwg.mxu0
  %v1688 = vadd.f32 %v1272, %v1594
  %v1689 = vadd.f32 %v1273, %v1597
  %v1690 = vadd.f32 %v1274, %v1602
  %v1691 = vadd.f32 %v1275, %v1605
  %v1692 = vadd.f32 %v1276, %v1610
  %v1693 = vadd.f32 %v1277, %v1613
  %v1694 = vadd.f32 %v1278, %v1618
  %v1695 = vadd.f32 %v1279, %v1621
  %v1696 = vadd.f32 %v1280, %v1626
  %v1697 = vadd.f32 %v1281, %v1629
  %v1698 = vadd.f32 %v1282, %v1634
  %v1699 = vadd.f32 %v1283, %v1637
  %v1700 = vadd.f32 %v1284, %v1642
  %v1701 = vadd.f32 %v1285, %v1645
  %v1702 = vadd.f32 %v1286, %v1650
  %v1703 = vadd.f32 %v1287, %v1653
  %v1704 = vadd.f32 %v1288, %v1658
  %v1705 = vadd.f32 %v1289, %v1661
  %v1706 = vadd.f32 %v1290, %v1666
  %v1707 = vadd.f32 %v1291, %v1669
  %v1708 = vadd.f32 %v1292, %v1674
  %v1709 = vadd.f32 %v1293, %v1677
  %v1710 = vadd.f32 %v1294, %v1682
  %v1711 = vadd.f32 %v1295, %v1685
  %s1712 = scalar_lea.vmem %s4, 1152
  %v1713 = vld [vmem:[%s1712] sm:$0xff]
  %v1714 = vld [vmem:[%s1712 + $0x8] sm:$0xff]
  %v1715 = vld [vmem:[%s1712 + $0x10] sm:$0xff]
  %v1716 = vld [vmem:[%s1712 + $0x18] sm:$0xff]
  %v1717 = vld [vmem:[%s1712 + $0x20] sm:$0xff]
  %v1718 = vld [vmem:[%s1712 + $0x28] sm:$0xff]
  %v1719 = vld [vmem:[%s1712 + $0x30] sm:$0xff]
  %v1720 = vld [vmem:[%s1712 + $0x38] sm:$0xff]
  %v1721 = vld [vmem:[%s1712 + $0x40] sm:$0xff]
  %v1722 = vld [vmem:[%s1712 + $0x48] sm:$0xff]
  %v1723 = vld [vmem:[%s1712 + $0x50] sm:$0xff]
  %v1724 = vld [vmem:[%s1712 + $0x58] sm:$0xff]
  %v1725 = vld [vmem:[%s1712 + $0x60] sm:$0xff]
  %v1726 = vld [vmem:[%s1712 + $0x68] sm:$0xff]
  %v1727 = vld [vmem:[%s1712 + $0x70] sm:$0xff]
  %v1728 = vld [vmem:[%s1712 + $0x78] sm:$0xff]
  %v1729 = vld [vmem:[%s1712 + $0x80] sm:$0xff]
  %v1730 = vld [vmem:[%s1712 + $0x88] sm:$0xff]
  %v1731 = vld [vmem:[%s1712 + $0x90] sm:$0xff]
  %v1732 = vld [vmem:[%s1712 + $0x98] sm:$0xff]
  %v1733 = vld [vmem:[%s1712 + $0xa0] sm:$0xff]
  %v1734 = vld [vmem:[%s1712 + $0xa8] sm:$0xff]
  %v1735 = vld [vmem:[%s1712 + $0xb0] sm:$0xff]
  %v1736 = vld [vmem:[%s1712 + $0xb8] sm:$0xff]
  %v1737 = vld [vmem:[%s1712 + $0xc0] sm:$0xff]
  %v1738 = vld [vmem:[%s1712 + $0xc8] sm:$0xff]
  %v1739 = vld [vmem:[%s1712 + $0xd0] sm:$0xff]
  %v1740 = vld [vmem:[%s1712 + $0xd8] sm:$0xff]
  %v1741 = vld [vmem:[%s1712 + $0xe0] sm:$0xff]
  %v1742 = vld [vmem:[%s1712 + $0xe8] sm:$0xff]
  %v1743 = vld [vmem:[%s1712 + $0xf0] sm:$0xff]
  %v1744 = vld [vmem:[%s1712 + $0xf8] sm:$0xff]
  %v1745 = vld [vmem:[%s1712 + $0x100] sm:$0xff]
  %v1746 = vld [vmem:[%s1712 + $0x108] sm:$0xff]
  %v1747 = vld [vmem:[%s1712 + $0x110] sm:$0xff]
  %v1748 = vld [vmem:[%s1712 + $0x118] sm:$0xff]
  %v1749 = vld [vmem:[%s1712 + $0x120] sm:$0xff]
  %v1750 = vld [vmem:[%s1712 + $0x128] sm:$0xff]
  %v1751 = vld [vmem:[%s1712 + $0x130] sm:$0xff]
  %v1752 = vld [vmem:[%s1712 + $0x138] sm:$0xff]
  %v1753 = vld [vmem:[%s1712 + $0x140] sm:$0xff]
  %v1754 = vld [vmem:[%s1712 + $0x148] sm:$0xff]
  %v1755 = vld [vmem:[%s1712 + $0x150] sm:$0xff]
  %v1756 = vld [vmem:[%s1712 + $0x158] sm:$0xff]
  %v1757 = vld [vmem:[%s1712 + $0x160] sm:$0xff]
  %v1758 = vld [vmem:[%s1712 + $0x168] sm:$0xff]
  %v1759 = vld [vmem:[%s1712 + $0x170] sm:$0xff]
  %v1760 = vld [vmem:[%s1712 + $0x178] sm:$0xff]
  %s1761 = scalar_lea.vmem %s3, 192
  %v1762 = vld [vmem:[%s1761] sm:$0xff]
  %v1763 = vld [vmem:[%s1761 + $0x8] sm:$0xff]
  %v1764 = vld [vmem:[%s1761 + $0x10] sm:$0xff]
  %v1765 = vld [vmem:[%s1761 + $0x18] sm:$0xff]
  %v1766 = vld [vmem:[%s1761 + $0x20] sm:$0xff]
  %v1767 = vld [vmem:[%s1761 + $0x28] sm:$0xff]
  %v1768 = vld [vmem:[%s1761 + $0x30] sm:$0xff]
  %v1769 = vld [vmem:[%s1761 + $0x38] sm:$0xff]
  %v1770 = vpack.c.bf16 %v1763, %v1762
  %v1771 = vpack.c.bf16 %v1765, %v1764
  %v1772 = vpack.c.bf16 %v1767, %v1766
  %v1773 = vpack.c.bf16 %v1769, %v1768
  %1774 = vmatprep.subr.bf16.mxu0 0
  %1775 = vmatpush1.bf16.msra.mxu0 %v1770
  %1776 = vmatprep.subr.bf16.mxu0 0
  %1777 = vmatpush1.bf16.msra.mxu0 %v1771
  %1778 = vmatprep.subr.bf16.mxu0 0
  %1779 = vmatpush1.bf16.msra.mxu0 %v1772
  %1780 = vmatprep.subr.bf16.mxu0 0
  %1781 = vmatpush1.bf16.msra.mxu0 %v1773
  %1782 = vmatprep.subr.bf16.mxu0 0
  %1783 = vmatpush1.bf16.msra.mxu0 0
  %1784 = vmatprep.subr.bf16.mxu0 0
  %1785 = vmatpush1.bf16.msra.mxu0 0
  %1786 = vmatprep.subr.bf16.mxu0 0
  %1787 = vmatpush1.bf16.msra.mxu0 0
  %1788 = vmatprep.subr.bf16.mxu0 0
  %1789 = vmatpush1.bf16.msra.mxu0 0
  %1790 = vmatprep.subr.bf16.mxu0 0
  %1791 = vmatpush1.bf16.msra.mxu0 0
  %1792 = vmatprep.subr.bf16.mxu0 0
  %1793 = vmatpush1.bf16.msra.mxu0 0
  %1794 = vmatprep.subr.bf16.mxu0 0
  %1795 = vmatpush1.bf16.msra.mxu0 0
  %1796 = vmatprep.subr.bf16.mxu0 0
  %1797 = vmatpush1.bf16.msra.mxu0 0
  %1798 = vmatprep.subr.bf16.mxu0 0
  %1799 = vmatpush1.bf16.msra.mxu0 0
  %1800 = vmatprep.subr.bf16.mxu0 0
  %1801 = vmatpush1.bf16.msra.mxu0 0
  %1802 = vmatprep.subr.bf16.mxu0 0
  %1803 = vmatpush1.bf16.msra.mxu0 0
  %1804 = vmatprep.subr.bf16.mxu0 0
  %1805 = vmatpush1.bf16.msra.mxu0 0
  %1806 = vmatprep.mubr.bf16.mxu0 0
  %1807 = vmatmul.mubr.bf16.gmra.mrb[0].mxu0 %v302
  %v1808 = vpop.f32.mrb[0].mxu0
  %v1809 = vadd.f32 0.0, %v1808
  %v1810 = vpop.f32.mrb[0].mxu0
  %v1811 = vpop.f32.mrb[0].mxu0
  %v1812 = vadd.f32 0.0, %v1811
  %v1813 = vpop.f32.mrb[0].mxu0
  %1814 = vmatprep.mubr.bf16.mxu0 0
  %1815 = vmatmul.mubr.bf16.gmra.mrb[0].mxu0 %v305
  %v1816 = vpop.f32.mrb[0].mxu0
  %v1817 = vadd.f32 0.0, %v1816
  %v1818 = vpop.f32.mrb[0].mxu0
  %v1819 = vpop.f32.mrb[0].mxu0
  %v1820 = vadd.f32 0.0, %v1819
  %v1821 = vpop.f32.mrb[0].mxu0
  %1822 = vmatprep.mubr.bf16.mxu0 0
  %1823 = vmatmul.mubr.bf16.gmra.mrb[0].mxu0 %v308
  %v1824 = vpop.f32.mrb[0].mxu0
  %v1825 = vadd.f32 0.0, %v1824
  %v1826 = vpop.f32.mrb[0].mxu0
  %v1827 = vpop.f32.mrb[0].mxu0
  %v1828 = vadd.f32 0.0, %v1827
  %v1829 = vpop.f32.mrb[0].mxu0
  %1830 = vmatprep.mubr.bf16.mxu0 0
  %1831 = vmatmul.mubr.bf16.gmra.mrb[0].mxu0 %v311
  %v1832 = vpop.f32.mrb[0].mxu0
  %v1833 = vadd.f32 0.0, %v1832
  %v1834 = vpop.f32.mrb[0].mxu0
  %v1835 = vpop.f32.mrb[0].mxu0
  %v1836 = vadd.f32 0.0, %v1835
  %v1837 = vpop.f32.mrb[0].mxu0
  %1838 = vmatprep.mubr.bf16.mxu0 0
  %1839 = vmatmul.mubr.bf16.gmra.mrb[0].mxu0 %v314
  %v1840 = vpop.f32.mrb[0].mxu0
  %v1841 = vadd.f32 0.0, %v1840
  %v1842 = vpop.f32.mrb[0].mxu0
  %v1843 = vpop.f32.mrb[0].mxu0
  %v1844 = vadd.f32 0.0, %v1843
  %v1845 = vpop.f32.mrb[0].mxu0
  %1846 = vmatprep.mubr.bf16.mxu0 0
  %1847 = vmatmul.mubr.bf16.gmra.mrb[0].mxu0 %v317
  %v1848 = vpop.f32.mrb[0].mxu0
  %v1849 = vadd.f32 0.0, %v1848
  %v1850 = vpop.f32.mrb[0].mxu0
  %v1851 = vpop.f32.mrb[0].mxu0
  %v1852 = vadd.f32 0.0, %v1851
  %v1853 = vpop.f32.mrb[0].mxu0
  %1854 = vmatprep.mubr.bf16.mxu0 0
  %1855 = vmatmul.mubr.bf16.gmra.mrb[0].mxu0 %v320
  %v1856 = vpop.f32.mrb[0].mxu0
  %v1857 = vadd.f32 0.0, %v1856
  %v1858 = vpop.f32.mrb[0].mxu0
  %v1859 = vpop.f32.mrb[0].mxu0
  %v1860 = vadd.f32 0.0, %v1859
  %v1861 = vpop.f32.mrb[0].mxu0
  %1862 = vmatprep.mubr.bf16.mxu0 0
  %1863 = vmatmul.mubr.bf16.gmra.mrb[0].mxu0 %v323
  %v1864 = vpop.f32.mrb[0].mxu0
  %v1865 = vadd.f32 0.0, %v1864
  %v1866 = vpop.f32.mrb[0].mxu0
  %v1867 = vpop.f32.mrb[0].mxu0
  %v1868 = vadd.f32 0.0, %v1867
  %v1869 = vpop.f32.mrb[0].mxu0
  %1870 = vmatprep.mubr.bf16.mxu0 0
  %1871 = vmatmul.mubr.bf16.gmra.mrb[0].mxu0 %v326
  %v1872 = vpop.f32.mrb[0].mxu0
  %v1873 = vadd.f32 0.0, %v1872
  %v1874 = vpop.f32.mrb[0].mxu0
  %v1875 = vpop.f32.mrb[0].mxu0
  %v1876 = vadd.f32 0.0, %v1875
  %v1877 = vpop.f32.mrb[0].mxu0
  %1878 = vmatprep.mubr.bf16.mxu0 0
  %1879 = vmatmul.mubr.bf16.gmra.mrb[0].mxu0 %v329
  %v1880 = vpop.f32.mrb[0].mxu0
  %v1881 = vadd.f32 0.0, %v1880
  %v1882 = vpop.f32.mrb[0].mxu0
  %v1883 = vpop.f32.mrb[0].mxu0
  %v1884 = vadd.f32 0.0, %v1883
  %v1885 = vpop.f32.mrb[0].mxu0
  %1886 = vmatprep.mubr.bf16.mxu0 0
  %1887 = vmatmul.mubr.bf16.gmra.mrb[0].mxu0 %v332
  %v1888 = vpop.f32.mrb[0].mxu0
  %v1889 = vadd.f32 0.0, %v1888
  %v1890 = vpop.f32.mrb[0].mxu0
  %v1891 = vpop.f32.mrb[0].mxu0
  %v1892 = vadd.f32 0.0, %v1891
  %v1893 = vpop.f32.mrb[0].mxu0
  %1894 = vmatprep.mubr.bf16.mxu0 0
  %1895 = vmatmul.mubr.bf16.gmra.mrb[0].mxu0 %v335
  %v1896 = vpop.f32.mrb[0].mxu0
  %v1897 = vadd.f32 0.0, %v1896
  %v1898 = vpop.f32.mrb[0].mxu0
  %v1899 = vpop.f32.mrb[0].mxu0
  %v1900 = vadd.f32 0.0, %v1899
  %v1901 = vpop.f32.mrb[0].mxu0
  %1902 = vdwg.mxu0
  %v1903 = vpack.c.bf16 %v1715, %v1713
  %v1904 = vpack.c.bf16 %v1716, %v1714
  %v1905 = vpack.c.bf16 %v1719, %v1717
  %v1906 = vpack.c.bf16 %v1720, %v1718
  %v1907 = vpack.c.bf16 %v1723, %v1721
  %v1908 = vpack.c.bf16 %v1724, %v1722
  %v1909 = vpack.c.bf16 %v1727, %v1725
  %v1910 = vpack.c.bf16 %v1728, %v1726
  %v1911 = vpack.c.bf16 %v1731, %v1729
  %v1912 = vpack.c.bf16 %v1732, %v1730
  %v1913 = vpack.c.bf16 %v1735, %v1733
  %v1914 = vpack.c.bf16 %v1736, %v1734
  %v1915 = vpack.c.bf16 %v1739, %v1737
  %v1916 = vpack.c.bf16 %v1740, %v1738
  %v1917 = vpack.c.bf16 %v1743, %v1741
  %v1918 = vpack.c.bf16 %v1744, %v1742
  %v1919 = vpack.c.bf16 %v1747, %v1745
  %v1920 = vpack.c.bf16 %v1748, %v1746
  %v1921 = vpack.c.bf16 %v1751, %v1749
  %v1922 = vpack.c.bf16 %v1752, %v1750
  %v1923 = vpack.c.bf16 %v1755, %v1753
  %v1924 = vpack.c.bf16 %v1756, %v1754
  %v1925 = vpack.c.bf16 %v1759, %v1757
  %v1926 = vpack.c.bf16 %v1760, %v1758
  %v1927 = vpack.c.bf16 %v1812, %v1809
  %v1928 = vpack.c.bf16 %v1820, %v1817
  %v1929 = vpack.c.bf16 %v1828, %v1825
  %v1930 = vpack.c.bf16 %v1836, %v1833
  %v1931 = vpack.c.bf16 %v1844, %v1841
  %v1932 = vpack.c.bf16 %v1852, %v1849
  %v1933 = vpack.c.bf16 %v1860, %v1857
  %v1934 = vpack.c.bf16 %v1868, %v1865
  %v1935 = vpack.c.bf16 %v1876, %v1873
  %v1936 = vpack.c.bf16 %v1884, %v1881
  %v1937 = vpack.c.bf16 %v1892, %v1889
  %v1938 = vpack.c.bf16 %v1900, %v1897
  %v1940 = vsel %vm300, %v1904, 0
  %v1943 = vsel %vm300, %v1906, 0
  %v1946 = vsel %vm300, %v1908, 0
  %v1949 = vsel %vm300, %v1910, 0
  %v1952 = vsel %vm300, %v1912, 0
  %v1955 = vsel %vm300, %v1914, 0
  %v1958 = vsel %vm300, %v1916, 0
  %v1961 = vsel %vm300, %v1918, 0
  %v1964 = vsel %vm300, %v1920, 0
  %v1967 = vsel %vm300, %v1922, 0
  %v1970 = vsel %vm300, %v1924, 0
  %v1973 = vsel %vm300, %v1926, 0
  %1975 = vmatprep.subr.bf16.mxu0 0
  %1976 = vmatpush1.bf16.msra.mxu0 %v1927
  %1977 = vmatprep.subr.bf16.mxu0 0
  %1978 = vmatpush1.bf16.msra.mxu0 %v1928
  %1979 = vmatprep.subr.bf16.mxu0 0
  %1980 = vmatpush1.bf16.msra.mxu0 %v1929
  %1981 = vmatprep.subr.bf16.mxu0 0
  %1982 = vmatpush1.bf16.msra.mxu0 %v1930
  %1983 = vmatprep.subr.bf16.mxu0 0
  %1984 = vmatpush1.bf16.msra.mxu0 %v1931
  %1985 = vmatprep.subr.bf16.mxu0 0
  %1986 = vmatpush1.bf16.msra.mxu0 %v1932
  %1987 = vmatprep.subr.bf16.mxu0 0
  %1988 = vmatpush1.bf16.msra.mxu0 %v1933
  %1989 = vmatprep.subr.bf16.mxu0 0
  %1990 = vmatpush1.bf16.msra.mxu0 %v1934
  %1991 = vmatprep.subr.bf16.mxu0 0
  %1992 = vmatpush1.bf16.msra.mxu0 %v1935
  %1993 = vmatprep.subr.bf16.mxu0 0
  %1994 = vmatpush1.bf16.msra.mxu0 %v1936
  %1995 = vmatprep.subr.bf16.mxu0 0
  %1996 = vmatpush1.bf16.msra.mxu0 %v1937
  %1997 = vmatprep.subr.bf16.mxu0 0
  %1998 = vmatpush1.bf16.msra.mxu0 %v1938
  %1999 = vmatprep.subr.bf16.mxu0 0
  %2000 = vmatpush1.bf16.msra.mxu0 0
  %2001 = vmatprep.subr.bf16.mxu0 0
  %2002 = vmatpush1.bf16.msra.mxu0 0
  %2003 = vmatprep.subr.bf16.mxu0 0
  %2004 = vmatpush1.bf16.msra.mxu0 0
  %2005 = vmatprep.subr.bf16.mxu0 0
  %2006 = vmatpush1.bf16.msra.mxu0 0
  %2007 = vmatprep.mubr.bf16.mxu0 %v1940
  %2008 = vmatmul.mubr.bf16.gmra.mrb[0].mxu0 %v1903
  %v2009 = vpop.f32.mrb[0].mxu0
  %v2010 = vadd.f32 0.0, %v2009
  %v2011 = vpop.f32.mrb[0].mxu0
  %v2012 = vpop.f32.mrb[0].mxu0
  %v2013 = vadd.f32 0.0, %v2012
  %v2014 = vpop.f32.mrb[0].mxu0
  %2015 = vmatprep.mubr.bf16.mxu0 %v1943
  %2016 = vmatmul.mubr.bf16.gmra.mrb[0].mxu0 %v1905
  %v2017 = vpop.f32.mrb[0].mxu0
  %v2018 = vadd.f32 0.0, %v2017
  %v2019 = vpop.f32.mrb[0].mxu0
  %v2020 = vpop.f32.mrb[0].mxu0
  %v2021 = vadd.f32 0.0, %v2020
  %v2022 = vpop.f32.mrb[0].mxu0
  %2023 = vmatprep.mubr.bf16.mxu0 %v1946
  %2024 = vmatmul.mubr.bf16.gmra.mrb[0].mxu0 %v1907
  %v2025 = vpop.f32.mrb[0].mxu0
  %v2026 = vadd.f32 0.0, %v2025
  %v2027 = vpop.f32.mrb[0].mxu0
  %v2028 = vpop.f32.mrb[0].mxu0
  %v2029 = vadd.f32 0.0, %v2028
  %v2030 = vpop.f32.mrb[0].mxu0
  %2031 = vmatprep.mubr.bf16.mxu0 %v1949
  %2032 = vmatmul.mubr.bf16.gmra.mrb[0].mxu0 %v1909
  %v2033 = vpop.f32.mrb[0].mxu0
  %v2034 = vadd.f32 0.0, %v2033
  %v2035 = vpop.f32.mrb[0].mxu0
  %v2036 = vpop.f32.mrb[0].mxu0
  %v2037 = vadd.f32 0.0, %v2036
  %v2038 = vpop.f32.mrb[0].mxu0
  %2039 = vmatprep.mubr.bf16.mxu0 %v1952
  %2040 = vmatmul.mubr.bf16.gmra.mrb[0].mxu0 %v1911
  %v2041 = vpop.f32.mrb[0].mxu0
  %v2042 = vadd.f32 0.0, %v2041
  %v2043 = vpop.f32.mrb[0].mxu0
  %v2044 = vpop.f32.mrb[0].mxu0
  %v2045 = vadd.f32 0.0, %v2044
  %v2046 = vpop.f32.mrb[0].mxu0
  %2047 = vmatprep.mubr.bf16.mxu0 %v1955
  %2048 = vmatmul.mubr.bf16.gmra.mrb[0].mxu0 %v1913
  %v2049 = vpop.f32.mrb[0].mxu0
  %v2050 = vadd.f32 0.0, %v2049
  %v2051 = vpop.f32.mrb[0].mxu0
  %v2052 = vpop.f32.mrb[0].mxu0
  %v2053 = vadd.f32 0.0, %v2052
  %v2054 = vpop.f32.mrb[0].mxu0
  %2055 = vmatprep.mubr.bf16.mxu0 %v1958
  %2056 = vmatmul.mubr.bf16.gmra.mrb[0].mxu0 %v1915
  %v2057 = vpop.f32.mrb[0].mxu0
  %v2058 = vadd.f32 0.0, %v2057
  %v2059 = vpop.f32.mrb[0].mxu0
  %v2060 = vpop.f32.mrb[0].mxu0
  %v2061 = vadd.f32 0.0, %v2060
  %v2062 = vpop.f32.mrb[0].mxu0
  %2063 = vmatprep.mubr.bf16.mxu0 %v1961
  %2064 = vmatmul.mubr.bf16.gmra.mrb[0].mxu0 %v1917
  %v2065 = vpop.f32.mrb[0].mxu0
  %v2066 = vadd.f32 0.0, %v2065
  %v2067 = vpop.f32.mrb[0].mxu0
  %v2068 = vpop.f32.mrb[0].mxu0
  %v2069 = vadd.f32 0.0, %v2068
  %v2070 = vpop.f32.mrb[0].mxu0
  %2071 = vmatprep.mubr.bf16.mxu0 %v1964
  %2072 = vmatmul.mubr.bf16.gmra.mrb[0].mxu0 %v1919
  %v2073 = vpop.f32.mrb[0].mxu0
  %v2074 = vadd.f32 0.0, %v2073
  %v2075 = vpop.f32.mrb[0].mxu0
  %v2076 = vpop.f32.mrb[0].mxu0
  %v2077 = vadd.f32 0.0, %v2076
  %v2078 = vpop.f32.mrb[0].mxu0
  %2079 = vmatprep.mubr.bf16.mxu0 %v1967
  %2080 = vmatmul.mubr.bf16.gmra.mrb[0].mxu0 %v1921
  %v2081 = vpop.f32.mrb[0].mxu0
  %v2082 = vadd.f32 0.0, %v2081
  %v2083 = vpop.f32.mrb[0].mxu0
  %v2084 = vpop.f32.mrb[0].mxu0
  %v2085 = vadd.f32 0.0, %v2084
  %v2086 = vpop.f32.mrb[0].mxu0
  %2087 = vmatprep.mubr.bf16.mxu0 %v1970
  %2088 = vmatmul.mubr.bf16.gmra.mrb[0].mxu0 %v1923
  %v2089 = vpop.f32.mrb[0].mxu0
  %v2090 = vadd.f32 0.0, %v2089
  %v2091 = vpop.f32.mrb[0].mxu0
  %v2092 = vpop.f32.mrb[0].mxu0
  %v2093 = vadd.f32 0.0, %v2092
  %v2094 = vpop.f32.mrb[0].mxu0
  %2095 = vmatprep.mubr.bf16.mxu0 %v1973
  %2096 = vmatmul.mubr.bf16.gmra.mrb[0].mxu0 %v1925
  %v2097 = vpop.f32.mrb[0].mxu0
  %v2098 = vadd.f32 0.0, %v2097
  %v2099 = vpop.f32.mrb[0].mxu0
  %v2100 = vpop.f32.mrb[0].mxu0
  %v2101 = vadd.f32 0.0, %v2100
  %v2102 = vpop.f32.mrb[0].mxu0
  %2103 = vdwg.mxu0
  %v2104 = vadd.f32 %v1688, %v2010
  %v2105 = vadd.f32 %v1689, %v2013
  %v2106 = vadd.f32 %v1690, %v2018
  %v2107 = vadd.f32 %v1691, %v2021
  %v2108 = vadd.f32 %v1692, %v2026
  %v2109 = vadd.f32 %v1693, %v2029
  %v2110 = vadd.f32 %v1694, %v2034
  %v2111 = vadd.f32 %v1695, %v2037
  %v2112 = vadd.f32 %v1696, %v2042
  %v2113 = vadd.f32 %v1697, %v2045
  %v2114 = vadd.f32 %v1698, %v2050
  %v2115 = vadd.f32 %v1699, %v2053
  %v2116 = vadd.f32 %v1700, %v2058
  %v2117 = vadd.f32 %v1701, %v2061
  %v2118 = vadd.f32 %v1702, %v2066
  %v2119 = vadd.f32 %v1703, %v2069
  %v2120 = vadd.f32 %v1704, %v2074
  %v2121 = vadd.f32 %v1705, %v2077
  %v2122 = vadd.f32 %v1706, %v2082
  %v2123 = vadd.f32 %v1707, %v2085
  %v2124 = vadd.f32 %v1708, %v2090
  %v2125 = vadd.f32 %v1709, %v2093
  %v2126 = vadd.f32 %v1710, %v2098
  %v2127 = vadd.f32 %v1711, %v2101
  %v2128 = vld [vmem:[%s7] sm:$0xff]
  %v2129 = vld [vmem:[%s7 + $0x8] sm:$0xff]
  %v2130 = vld [vmem:[%s7 + $0x10] sm:$0xff]
  %v2131 = vld [vmem:[%s7 + $0x18] sm:$0xff]
  %v2132 = vld [vmem:[%s7 + $0x20] sm:$0xff]
  %v2133 = vld [vmem:[%s7 + $0x28] sm:$0xff]
  %v2134 = vld [vmem:[%s7 + $0x30] sm:$0xff]
  %v2135 = vld [vmem:[%s7 + $0x38] sm:$0xff]
  %v2136 = vld [vmem:[%s7 + $0x40] sm:$0xff]
  %v2137 = vld [vmem:[%s7 + $0x48] sm:$0xff]
  %v2138 = vld [vmem:[%s7 + $0x50] sm:$0xff]
  %v2139 = vld [vmem:[%s7 + $0x58] sm:$0xff]
  %v2140 = vld [vmem:[%s7 + $0x60] sm:$0xff]
  %v2141 = vld [vmem:[%s7 + $0x68] sm:$0xff]
  %v2142 = vld [vmem:[%s7 + $0x70] sm:$0xff]
  %v2143 = vld [vmem:[%s7 + $0x78] sm:$0xff]
  %v2144 = vld [vmem:[%s7 + $0x80] sm:$0xff]
  %v2145 = vld [vmem:[%s7 + $0x88] sm:$0xff]
  %v2146 = vld [vmem:[%s7 + $0x90] sm:$0xff]
  %v2147 = vld [vmem:[%s7 + $0x98] sm:$0xff]
  %v2148 = vld [vmem:[%s7 + $0xa0] sm:$0xff]
  %v2149 = vld [vmem:[%s7 + $0xa8] sm:$0xff]
  %v2150 = vld [vmem:[%s7 + $0xb0] sm:$0xff]
  %v2151 = vld [vmem:[%s7 + $0xb8] sm:$0xff]
  %v2152 = vadd.f32 %v2104, %v2128
  %v2153 = vadd.f32 %v2105, %v2129
  %v2154 = vadd.f32 %v2106, %v2130
  %v2155 = vadd.f32 %v2107, %v2131
  %v2156 = vadd.f32 %v2108, %v2132
  %v2157 = vadd.f32 %v2109, %v2133
  %v2158 = vadd.f32 %v2110, %v2134
  %v2159 = vadd.f32 %v2111, %v2135
  %v2160 = vadd.f32 %v2112, %v2136
  %v2161 = vadd.f32 %v2113, %v2137
  %v2162 = vadd.f32 %v2114, %v2138
  %v2163 = vadd.f32 %v2115, %v2139
  %v2164 = vadd.f32 %v2116, %v2140
  %v2165 = vadd.f32 %v2117, %v2141
  %v2166 = vadd.f32 %v2118, %v2142
  %v2167 = vadd.f32 %v2119, %v2143
  %v2168 = vadd.f32 %v2120, %v2144
  %v2169 = vadd.f32 %v2121, %v2145
  %v2170 = vadd.f32 %v2122, %v2146
  %v2171 = vadd.f32 %v2123, %v2147
  %v2172 = vadd.f32 %v2124, %v2148
  %v2173 = vadd.f32 %v2125, %v2149
  %v2174 = vadd.f32 %v2126, %v2150
  %v2175 = vadd.f32 %v2127, %v2151
  %2176 = vst.msk [vmem:[%s8] sm:$0xff] %vm300, %v2152
  %2177 = vst.msk [vmem:[%s8 + $0x8] sm:$0xff] %vm300, %v2153
  %2178 = vst.msk [vmem:[%s8 + $0x10] sm:$0xff] %vm300, %v2154
  %2179 = vst.msk [vmem:[%s8 + $0x18] sm:$0xff] %vm300, %v2155
  %2180 = vst.msk [vmem:[%s8 + $0x20] sm:$0xff] %vm300, %v2156
  %2181 = vst.msk [vmem:[%s8 + $0x28] sm:$0xff] %vm300, %v2157
  %2182 = vst.msk [vmem:[%s8 + $0x30] sm:$0xff] %vm300, %v2158
  %2183 = vst.msk [vmem:[%s8 + $0x38] sm:$0xff] %vm300, %v2159
  %2184 = vst.msk [vmem:[%s8 + $0x40] sm:$0xff] %vm300, %v2160
  %2185 = vst.msk [vmem:[%s8 + $0x48] sm:$0xff] %vm300, %v2161
  %2186 = vst.msk [vmem:[%s8 + $0x50] sm:$0xff] %vm300, %v2162
  %2187 = vst.msk [vmem:[%s8 + $0x58] sm:$0xff] %vm300, %v2163
  %2188 = vst.msk [vmem:[%s8 + $0x60] sm:$0xff] %vm300, %v2164
  %2189 = vst.msk [vmem:[%s8 + $0x68] sm:$0xff] %vm300, %v2165
  %2190 = vst.msk [vmem:[%s8 + $0x70] sm:$0xff] %vm300, %v2166
  %2191 = vst.msk [vmem:[%s8 + $0x78] sm:$0xff] %vm300, %v2167
  %2192 = vst.msk [vmem:[%s8 + $0x80] sm:$0xff] %vm300, %v2168
  %2193 = vst.msk [vmem:[%s8 + $0x88] sm:$0xff] %vm300, %v2169
  %2194 = vst.msk [vmem:[%s8 + $0x90] sm:$0xff] %vm300, %v2170
  %2195 = vst.msk [vmem:[%s8 + $0x98] sm:$0xff] %vm300, %v2171
  %2196 = vst.msk [vmem:[%s8 + $0xa0] sm:$0xff] %vm300, %v2172
  %2197 = vst.msk [vmem:[%s8 + $0xa8] sm:$0xff] %vm300, %v2173
  %2198 = vst.msk [vmem:[%s8 + $0xb0] sm:$0xff] %vm300, %v2174
  %2199 = vst.msk [vmem:[%s8 + $0xb8] sm:$0xff] %vm300, %v2175
  // Predicated region
  $region34: #{mrkgcn_forward.3} parent=0 // pred_check
    _
  $region35: #{mrkgcn_forward.3} parent=0 // pred_check_branch
    %2201 = sbr.rel (0) target = $region37
  $region36: #{mrkgcn_forward.3} parent=0 // pred_region
    _
  $region37: #{mrkgcn_forward.3} parent=0 // pred_fallthru
    _
  // Predicated region
  $region38: #{mrkgcn_forward.3} parent=0 // pred_check
    _
  $region39: #{mrkgcn_forward.3} parent=0 // pred_check_branch
    %2203 = sbr.rel (0) target = $region41
  $region40: #{mrkgcn_forward.3} parent=0 // pred_region
    _
  $region41: #{mrkgcn_forward.3} parent=0 // pred_fallthru
    _

// kernel: mrkgcn_forward.5
$region0: #{mrkgcn_forward.5}
  #allocation0 [shape = 'u32[]', space=smem, size = 0x4, offset = 0x4, fixed_abs, tag = 'smem constant byte address 0x4 - core index']
  #allocation1 [shape = 'u32[144,128]{1,0:T(1,128)}', space=vmem, size = 0x12000, scoped, tag = 'internal scratch']
  #allocation2 [shape = 'f32[1,1]{1,0:T(1,128)S(1)}', space=vmem, size = 0x200, scoped, tag = 'scoped memory for mrkgcn_forward.5']
  %s0 = inlined_call_operand.vmem [shape: f32[16,64], index: 0, kind: input, shape index: {}]
  %s1 = inlined_call_operand.vmem [shape: f32[24,32], index: 1, kind: input, shape index: {}]
  %s2 = inlined_call_operand.vmem [shape: f32[4,32,32], index: 2, kind: input, shape index: {}]
  %s3 = inlined_call_operand.vmem [shape: f32[4,24,24], index: 3, kind: input, shape index: {}]
  %s4 = inlined_call_operand.vmem [shape: f32[32,32], index: 4, kind: input, shape index: {}]
  %s5 = inlined_call_operand.vmem [shape: f32[1,32], index: 5, kind: input, shape index: {}]
  %s6 = inlined_call_operand.vmem [shape: f32[96,32], index: 6, kind: input, shape index: {}]
  %s7 = inlined_call_operand.vmem [shape: f32[96,32], index: 7, kind: input, shape index: {}]
  %s8 = inlined_call_operand.vmem [shape: f32[96,16], index: 8, kind: input, shape index: {}]
  %s9 = inlined_call_operand.vmem [shape: f32[16,1], index: 9, kind: input, shape index: {}]
  %s10 = inlined_call_operand.<no memory space> [shape: f32[1,1], index: 10, kind: input, shape index: {}]
  %s11 = inlined_call_operand.vmem [shape: f32[16,1], index: 11, kind: output, shape index: {}]
  %s12 = sld [smem:[#allocation0]]
  $region54: #{mrkgcn_forward.5} parent=0
    _
  %s14 = ssub.s32 1, %s12
  %s15 = scalar_select 0, %s14, %s12
  %v16 = vstv %s10
  %17 = vst [vmem:[#allocation2] sm:$0x1] %v16
  // Predicated region
  $region2: #{mrkgcn_forward.5} parent=0 // pred_check
    _
  $region3: #{mrkgcn_forward.5} parent=0 // pred_check_branch
    %19 = sbr.rel (0) target = $region5
  $region4: #{mrkgcn_forward.5} parent=0 // pred_region
    _
  $region5: #{mrkgcn_forward.5} parent=0 // pred_fallthru
    _
  // Predicated region
  $region6: #{mrkgcn_forward.5} parent=0 // pred_check
    _
  $region7: #{mrkgcn_forward.5} parent=0 // pred_check_branch
    %21 = sbr.rel (0) target = $region9
  $region8: #{mrkgcn_forward.5} parent=0 // pred_region
    _
  $region9: #{mrkgcn_forward.5} parent=0 // pred_fallthru
    _
  // Predicated region
  $region10: #{mrkgcn_forward.5} parent=0 // pred_check
    _
  $region11: #{mrkgcn_forward.5} parent=0 // pred_check_branch
    %23 = sbr.rel (0) target = $region13
  $region12: #{mrkgcn_forward.5} parent=0 // pred_region
    _
  $region13: #{mrkgcn_forward.5} parent=0 // pred_fallthru
    _
  // Predicated region
  $region14: #{mrkgcn_forward.5} parent=0 // pred_check
    _
  $region15: #{mrkgcn_forward.5} parent=0 // pred_check_branch
    %25 = sbr.rel (0) target = $region17
  $region16: #{mrkgcn_forward.5} parent=0 // pred_region
    _
  $region17: #{mrkgcn_forward.5} parent=0 // pred_fallthru
    _
  // Predicated region
  $region18: #{mrkgcn_forward.5} parent=0 // pred_check
    _
  $region19: #{mrkgcn_forward.5} parent=0 // pred_check_branch
    %27 = sbr.rel (0) target = $region21
  $region20: #{mrkgcn_forward.5} parent=0 // pred_region
    _
  $region21: #{mrkgcn_forward.5} parent=0 // pred_fallthru
    _
  // Predicated region
  $region22: #{mrkgcn_forward.5} parent=0 // pred_check
    _
  $region23: #{mrkgcn_forward.5} parent=0 // pred_check_branch
    %29 = sbr.rel (0) target = $region25
  $region24: #{mrkgcn_forward.5} parent=0 // pred_region
    _
  $region25: #{mrkgcn_forward.5} parent=0 // pred_fallthru
    _
  // Predicated region
  $region26: #{mrkgcn_forward.5} parent=0 // pred_check
    _
  $region27: #{mrkgcn_forward.5} parent=0 // pred_check_branch
    %31 = sbr.rel (0) target = $region29
  $region28: #{mrkgcn_forward.5} parent=0 // pred_region
    _
  $region29: #{mrkgcn_forward.5} parent=0 // pred_fallthru
    _
  // Predicated region
  $region30: #{mrkgcn_forward.5} parent=0 // pred_check
    _
  $region31: #{mrkgcn_forward.5} parent=0 // pred_check_branch
    %33 = sbr.rel (0) target = $region33
  $region32: #{mrkgcn_forward.5} parent=0 // pred_region
    _
  $region33: #{mrkgcn_forward.5} parent=0 // pred_fallthru
    _
  // Predicated region
  $region34: #{mrkgcn_forward.5} parent=0 // pred_check
    _
  $region35: #{mrkgcn_forward.5} parent=0 // pred_check_branch
    %35 = sbr.rel (0) target = $region37
  $region36: #{mrkgcn_forward.5} parent=0 // pred_region
    _
  $region37: #{mrkgcn_forward.5} parent=0 // pred_fallthru
    _
  // Predicated region
  $region38: #{mrkgcn_forward.5} parent=0 // pred_check
    _
  $region39: #{mrkgcn_forward.5} parent=0 // pred_check_branch
    %37 = sbr.rel (0) target = $region41
  $region40: #{mrkgcn_forward.5} parent=0 // pred_region
    _
  $region41: #{mrkgcn_forward.5} parent=0 // pred_fallthru
    _
  // Predicated region
  $region42: #{mrkgcn_forward.5} parent=0 // pred_check
    _
  $region43: #{mrkgcn_forward.5} parent=0 // pred_check_branch
    %39 = sbr.rel (0) target = $region45
  $region44: #{mrkgcn_forward.5} parent=0 // pred_region
    _
  $region45: #{mrkgcn_forward.5} parent=0 // pred_fallthru
    _
  %v41 = vld [vmem:[%s1] sm:$0xff]
  %v42 = vld [vmem:[%s1 + $0x8] sm:$0xff]
  %v43 = vld [vmem:[%s1 + $0x10] sm:$0xff]
  %v44 = vld [vmem:[%s4] sm:$0xff]
  %v45 = vld [vmem:[%s4 + $0x8] sm:$0xff]
  %v46 = vld [vmem:[%s4 + $0x10] sm:$0xff]
  %v47 = vld [vmem:[%s4 + $0x18] sm:$0xff]
  %v48 = vpack.c.bf16 %v42, %v41
  %v49 = vpack.c.bf16 %v43, %v43
  %v50 = vpack.c.bf16 %v45, %v44
  %v51 = vpack.c.bf16 %v47, %v46
  %v52 = vld [vmem:[%s5] sm:$0x1]
  %v54 = vlaneseq
  %v55 = vshrl.u32 %v54, 7
  %v56 = vsub.s32 0, %v55
  %v57 = vrot.slane %v52, %v56
  %vm59 = vcmask 261120
  %v61 = vsel %vm59, %v48, 0
  %v64 = vsel %vm59, %v49, 0
  %66 = vmatprep.subr.bf16.mxu0 0
  %67 = vmatpush1.bf16.msra.mxu0 %v50
  %68 = vmatprep.subr.bf16.mxu0 0
  %69 = vmatpush1.bf16.msra.mxu0 %v51
  %70 = vmatprep.subr.bf16.mxu0 0
  %71 = vmatpush1.bf16.msra.mxu0 0
  %72 = vmatprep.subr.bf16.mxu0 0
  %73 = vmatpush1.bf16.msra.mxu0 0
  %74 = vmatprep.subr.bf16.mxu0 0
  %75 = vmatpush1.bf16.msra.mxu0 0
  %76 = vmatprep.subr.bf16.mxu0 0
  %77 = vmatpush1.bf16.msra.mxu0 0
  %78 = vmatprep.subr.bf16.mxu0 0
  %79 = vmatpush1.bf16.msra.mxu0 0
  %80 = vmatprep.subr.bf16.mxu0 0
  %81 = vmatpush1.bf16.msra.mxu0 0
  %82 = vmatprep.subr.bf16.mxu0 0
  %83 = vmatpush1.bf16.msra.mxu0 0
  %84 = vmatprep.subr.bf16.mxu0 0
  %85 = vmatpush1.bf16.msra.mxu0 0
  %86 = vmatprep.subr.bf16.mxu0 0
  %87 = vmatpush1.bf16.msra.mxu0 0
  %88 = vmatprep.subr.bf16.mxu0 0
  %89 = vmatpush1.bf16.msra.mxu0 0
  %90 = vmatprep.subr.bf16.mxu0 0
  %91 = vmatpush1.bf16.msra.mxu0 0
  %92 = vmatprep.subr.bf16.mxu0 0
  %93 = vmatpush1.bf16.msra.mxu0 0
  %94 = vmatprep.subr.bf16.mxu0 0
  %95 = vmatpush1.bf16.msra.mxu0 0
  %96 = vmatprep.subr.bf16.mxu0 0
  %97 = vmatpush1.bf16.msra.mxu0 0
  %98 = vmatprep.mubr.bf16.mxu0 0
  %99 = vmatmul.mubr.bf16.gmra.mrb[0].mxu0 %v61
  %v100 = vpop.f32.mrb[0].mxu0
  %v101 = vadd.f32 %v57, %v100
  %v102 = vpop.f32.mrb[0].mxu0
  %v103 = vpop.f32.mrb[0].mxu0
  %v104 = vadd.f32 %v57, %v103
  %v105 = vpop.f32.mrb[0].mxu0
  %106 = vmatprep.mubr.bf16.mxu0 0
  %107 = vmatmul.mubr.bf16.gmra.mrb[0].mxu0 %v64
  %v108 = vpop.f32.mrb[0].mxu0
  %v109 = vpop.f32.mrb[0].mxu0
  %v110 = vpop.f32.mrb[0].mxu0
  %v111 = vpop.f32.mrb[0].mxu0
  %112 = vdwg.mxu0
  %v113 = vld [vmem:[%s3] sm:$0xff]
  %v114 = vld [vmem:[%s3 + $0x8] sm:$0xff]
  %v115 = vld [vmem:[%s3 + $0x10] sm:$0xff]
  %v116 = vld [vmem:[%s2] sm:$0xff]
  %v117 = vld [vmem:[%s2 + $0x8] sm:$0xff]
  %v118 = vld [vmem:[%s2 + $0x10] sm:$0xff]
  %v119 = vld [vmem:[%s2 + $0x18] sm:$0xff]
  %v120 = vpack.c.bf16 %v117, %v116
  %v121 = vpack.c.bf16 %v119, %v118
  %122 = vmatprep.subr.bf16.mxu0 0
  %123 = vmatpush1.bf16.msra.mxu0 %v120
  %124 = vmatprep.subr.bf16.mxu0 0
  %125 = vmatpush1.bf16.msra.mxu0 %v121
  %126 = vmatprep.subr.bf16.mxu0 0
  %127 = vmatpush1.bf16.msra.mxu0 0
  %128 = vmatprep.subr.bf16.mxu0 0
  %129 = vmatpush1.bf16.msra.mxu0 0
  %130 = vmatprep.subr.bf16.mxu0 0
  %131 = vmatpush1.bf16.msra.mxu0 0
  %132 = vmatprep.subr.bf16.mxu0 0
  %133 = vmatpush1.bf16.msra.mxu0 0
  %134 = vmatprep.subr.bf16.mxu0 0
  %135 = vmatpush1.bf16.msra.mxu0 0
  %136 = vmatprep.subr.bf16.mxu0 0
  %137 = vmatpush1.bf16.msra.mxu0 0
  %138 = vmatprep.subr.bf16.mxu0 0
  %139 = vmatpush1.bf16.msra.mxu0 0
  %140 = vmatprep.subr.bf16.mxu0 0
  %141 = vmatpush1.bf16.msra.mxu0 0
  %142 = vmatprep.subr.bf16.mxu0 0
  %143 = vmatpush1.bf16.msra.mxu0 0
  %144 = vmatprep.subr.bf16.mxu0 0
  %145 = vmatpush1.bf16.msra.mxu0 0
  %146 = vmatprep.subr.bf16.mxu0 0
  %147 = vmatpush1.bf16.msra.mxu0 0
  %148 = vmatprep.subr.bf16.mxu0 0
  %149 = vmatpush1.bf16.msra.mxu0 0
  %150 = vmatprep.subr.bf16.mxu0 0
  %151 = vmatpush1.bf16.msra.mxu0 0
  %152 = vmatprep.subr.bf16.mxu0 0
  %153 = vmatpush1.bf16.msra.mxu0 0
  %154 = vmatprep.mubr.bf16.mxu0 0
  %155 = vmatmul.mubr.bf16.gmra.mrb[0].mxu0 %v61
  %v156 = vpop.f32.mrb[0].mxu0
  %v157 = vadd.f32 0.0, %v156
  %v158 = vpop.f32.mrb[0].mxu0
  %v159 = vpop.f32.mrb[0].mxu0
  %v160 = vadd.f32 0.0, %v159
  %v161 = vpop.f32.mrb[0].mxu0
  %162 = vmatprep.mubr.bf16.mxu0 0
  %163 = vmatmul.mubr.bf16.gmra.mrb[0].mxu0 %v64
  %v164 = vpop.f32.mrb[0].mxu0
  %v165 = vadd.f32 0.0, %v164
  %v166 = vpop.f32.mrb[0].mxu0
  %v167 = vpop.f32.mrb[0].mxu0
  %v168 = vpop.f32.mrb[0].mxu0
  %169 = vdwg.mxu0
  %v170 = vpack.c.bf16 %v114, %v113
  %v171 = vpack.c.bf16 %v115, %v115
  %v172 = vpack.c.bf16 %v160, %v157
  %v173 = vpack.c.bf16 %v165, %v165
  %vm174 = vcmask 195584
  %v176 = vsel %vm174, %v170, 0
  %v179 = vsel %vm174, %v171, 0
  %vm181 = vcmask 1043456
  %v183 = vsel %vm181, %v173, 0
  %185 = vmatprep.subr.bf16.mxu0 0
  %186 = vmatpush1.bf16.msra.mxu0 %v172
  %187 = vmatprep.subr.bf16.mxu0 0
  %188 = vmatpush1.bf16.msra.mxu0 %v183
  %189 = vmatprep.subr.bf16.mxu0 0
  %190 = vmatpush1.bf16.msra.mxu0 0
  %191 = vmatprep.subr.bf16.mxu0 0
  %192 = vmatpush1.bf16.msra.mxu0 0
  %193 = vmatprep.subr.bf16.mxu0 0
  %194 = vmatpush1.bf16.msra.mxu0 0
  %195 = vmatprep.subr.bf16.mxu0 0
  %196 = vmatpush1.bf16.msra.mxu0 0
  %197 = vmatprep.subr.bf16.mxu0 0
  %198 = vmatpush1.bf16.msra.mxu0 0
  %199 = vmatprep.subr.bf16.mxu0 0
  %200 = vmatpush1.bf16.msra.mxu0 0
  %201 = vmatprep.subr.bf16.mxu0 0
  %202 = vmatpush1.bf16.msra.mxu0 0
  %203 = vmatprep.subr.bf16.mxu0 0
  %204 = vmatpush1.bf16.msra.mxu0 0
  %205 = vmatprep.subr.bf16.mxu0 0
  %206 = vmatpush1.bf16.msra.mxu0 0
  %207 = vmatprep.subr.bf16.mxu0 0
  %208 = vmatpush1.bf16.msra.mxu0 0
  %209 = vmatprep.subr.bf16.mxu0 0
  %210 = vmatpush1.bf16.msra.mxu0 0
  %211 = vmatprep.subr.bf16.mxu0 0
  %212 = vmatpush1.bf16.msra.mxu0 0
  %213 = vmatprep.subr.bf16.mxu0 0
  %214 = vmatpush1.bf16.msra.mxu0 0
  %215 = vmatprep.subr.bf16.mxu0 0
  %216 = vmatpush1.bf16.msra.mxu0 0
  %217 = vmatprep.mubr.bf16.mxu0 0
  %218 = vmatmul.mubr.bf16.gmra.mrb[0].mxu0 %v176
  %v219 = vpop.f32.mrb[0].mxu0
  %v220 = vadd.f32 0.0, %v219
  %v221 = vpop.f32.mrb[0].mxu0
  %v222 = vpop.f32.mrb[0].mxu0
  %v223 = vadd.f32 0.0, %v222
  %v224 = vpop.f32.mrb[0].mxu0
  %225 = vmatprep.mubr.bf16.mxu0 0
  %226 = vmatmul.mubr.bf16.gmra.mrb[0].mxu0 %v179
  %v227 = vpop.f32.mrb[0].mxu0
  %v228 = vpop.f32.mrb[0].mxu0
  %v229 = vpop.f32.mrb[0].mxu0
  %v230 = vpop.f32.mrb[0].mxu0
  %231 = vdwg.mxu0
  %v232 = vadd.f32 %v101, %v220
  %v233 = vadd.f32 %v104, %v223
  %s234 = scalar_lea.vmem %s3, 24
  %v235 = vld [vmem:[%s234] sm:$0xff]
  %v236 = vld [vmem:[%s234 + $0x8] sm:$0xff]
  %v237 = vld [vmem:[%s234 + $0x10] sm:$0xff]
  %s238 = scalar_lea.vmem %s2, 32
  %v239 = vld [vmem:[%s238] sm:$0xff]
  %v240 = vld [vmem:[%s238 + $0x8] sm:$0xff]
  %v241 = vld [vmem:[%s238 + $0x10] sm:$0xff]
  %v242 = vld [vmem:[%s238 + $0x18] sm:$0xff]
  %v243 = vpack.c.bf16 %v240, %v239
  %v244 = vpack.c.bf16 %v242, %v241
  %245 = vmatprep.subr.bf16.mxu0 0
  %246 = vmatpush1.bf16.msra.mxu0 %v243
  %247 = vmatprep.subr.bf16.mxu0 0
  %248 = vmatpush1.bf16.msra.mxu0 %v244
  %249 = vmatprep.subr.bf16.mxu0 0
  %250 = vmatpush1.bf16.msra.mxu0 0
  %251 = vmatprep.subr.bf16.mxu0 0
  %252 = vmatpush1.bf16.msra.mxu0 0
  %253 = vmatprep.subr.bf16.mxu0 0
  %254 = vmatpush1.bf16.msra.mxu0 0
  %255 = vmatprep.subr.bf16.mxu0 0
  %256 = vmatpush1.bf16.msra.mxu0 0
  %257 = vmatprep.subr.bf16.mxu0 0
  %258 = vmatpush1.bf16.msra.mxu0 0
  %259 = vmatprep.subr.bf16.mxu0 0
  %260 = vmatpush1.bf16.msra.mxu0 0
  %261 = vmatprep.subr.bf16.mxu0 0
  %262 = vmatpush1.bf16.msra.mxu0 0
  %263 = vmatprep.subr.bf16.mxu0 0
  %264 = vmatpush1.bf16.msra.mxu0 0
  %265 = vmatprep.subr.bf16.mxu0 0
  %266 = vmatpush1.bf16.msra.mxu0 0
  %267 = vmatprep.subr.bf16.mxu0 0
  %268 = vmatpush1.bf16.msra.mxu0 0
  %269 = vmatprep.subr.bf16.mxu0 0
  %270 = vmatpush1.bf16.msra.mxu0 0
  %271 = vmatprep.subr.bf16.mxu0 0
  %272 = vmatpush1.bf16.msra.mxu0 0
  %273 = vmatprep.subr.bf16.mxu0 0
  %274 = vmatpush1.bf16.msra.mxu0 0
  %275 = vmatprep.subr.bf16.mxu0 0
  %276 = vmatpush1.bf16.msra.mxu0 0
  %277 = vmatprep.mubr.bf16.mxu0 0
  %278 = vmatmul.mubr.bf16.gmra.mrb[0].mxu0 %v61
  %v279 = vpop.f32.mrb[0].mxu0
  %v280 = vadd.f32 0.0, %v279
  %v281 = vpop.f32.mrb[0].mxu0
  %v282 = vpop.f32.mrb[0].mxu0
  %v283 = vadd.f32 0.0, %v282
  %v284 = vpop.f32.mrb[0].mxu0
  %285 = vmatprep.mubr.bf16.mxu0 0
  %286 = vmatmul.mubr.bf16.gmra.mrb[0].mxu0 %v64
  %v287 = vpop.f32.mrb[0].mxu0
  %v288 = vadd.f32 0.0, %v287
  %v289 = vpop.f32.mrb[0].mxu0
  %v290 = vpop.f32.mrb[0].mxu0
  %v291 = vpop.f32.mrb[0].mxu0
  %292 = vdwg.mxu0
  %v293 = vpack.c.bf16 %v236, %v235
  %v294 = vpack.c.bf16 %v237, %v237
  %v295 = vpack.c.bf16 %v283, %v280
  %v296 = vpack.c.bf16 %v288, %v288
  %v298 = vsel %vm174, %v293, 0
  %v301 = vsel %vm174, %v294, 0
  %v304 = vsel %vm181, %v296, 0
  %306 = vmatprep.subr.bf16.mxu0 0
  %307 = vmatpush1.bf16.msra.mxu0 %v295
  %308 = vmatprep.subr.bf16.mxu0 0
  %309 = vmatpush1.bf16.msra.mxu0 %v304
  %310 = vmatprep.subr.bf16.mxu0 0
  %311 = vmatpush1.bf16.msra.mxu0 0
  %312 = vmatprep.subr.bf16.mxu0 0
  %313 = vmatpush1.bf16.msra.mxu0 0
  %314 = vmatprep.subr.bf16.mxu0 0
  %315 = vmatpush1.bf16.msra.mxu0 0
  %316 = vmatprep.subr.bf16.mxu0 0
  %317 = vmatpush1.bf16.msra.mxu0 0
  %318 = vmatprep.subr.bf16.mxu0 0
  %319 = vmatpush1.bf16.msra.mxu0 0
  %320 = vmatprep.subr.bf16.mxu0 0
  %321 = vmatpush1.bf16.msra.mxu0 0
  %322 = vmatprep.subr.bf16.mxu0 0
  %323 = vmatpush1.bf16.msra.mxu0 0
  %324 = vmatprep.subr.bf16.mxu0 0
  %325 = vmatpush1.bf16.msra.mxu0 0
  %326 = vmatprep.subr.bf16.mxu0 0
  %327 = vmatpush1.bf16.msra.mxu0 0
  %328 = vmatprep.subr.bf16.mxu0 0
  %329 = vmatpush1.bf16.msra.mxu0 0
  %330 = vmatprep.subr.bf16.mxu0 0
  %331 = vmatpush1.bf16.msra.mxu0 0
  %332 = vmatprep.subr.bf16.mxu0 0
  %333 = vmatpush1.bf16.msra.mxu0 0
  %334 = vmatprep.subr.bf16.mxu0 0
  %335 = vmatpush1.bf16.msra.mxu0 0
  %336 = vmatprep.subr.bf16.mxu0 0
  %337 = vmatpush1.bf16.msra.mxu0 0
  %338 = vmatprep.mubr.bf16.mxu0 0
  %339 = vmatmul.mubr.bf16.gmra.mrb[0].mxu0 %v298
  %v340 = vpop.f32.mrb[0].mxu0
  %v341 = vadd.f32 0.0, %v340
  %v342 = vpop.f32.mrb[0].mxu0
  %v343 = vpop.f32.mrb[0].mxu0
  %v344 = vadd.f32 0.0, %v343
  %v345 = vpop.f32.mrb[0].mxu0
  %346 = vmatprep.mubr.bf16.mxu0 0
  %347 = vmatmul.mubr.bf16.gmra.mrb[0].mxu0 %v301
  %v348 = vpop.f32.mrb[0].mxu0
  %v349 = vpop.f32.mrb[0].mxu0
  %v350 = vpop.f32.mrb[0].mxu0
  %v351 = vpop.f32.mrb[0].mxu0
  %352 = vdwg.mxu0
  %v353 = vadd.f32 %v232, %v341
  %v354 = vadd.f32 %v233, %v344
  %s355 = scalar_lea.vmem %s3, 48
  %v356 = vld [vmem:[%s355] sm:$0xff]
  %v357 = vld [vmem:[%s355 + $0x8] sm:$0xff]
  %v358 = vld [vmem:[%s355 + $0x10] sm:$0xff]
  %s359 = scalar_lea.vmem %s2, 64
  %v360 = vld [vmem:[%s359] sm:$0xff]
  %v361 = vld [vmem:[%s359 + $0x8] sm:$0xff]
  %v362 = vld [vmem:[%s359 + $0x10] sm:$0xff]
  %v363 = vld [vmem:[%s359 + $0x18] sm:$0xff]
  %v364 = vpack.c.bf16 %v361, %v360
  %v365 = vpack.c.bf16 %v363, %v362
  %366 = vmatprep.subr.bf16.mxu0 0
  %367 = vmatpush1.bf16.msra.mxu0 %v364
  %368 = vmatprep.subr.bf16.mxu0 0
  %369 = vmatpush1.bf16.msra.mxu0 %v365
  %370 = vmatprep.subr.bf16.mxu0 0
  %371 = vmatpush1.bf16.msra.mxu0 0
  %372 = vmatprep.subr.bf16.mxu0 0
  %373 = vmatpush1.bf16.msra.mxu0 0
  %374 = vmatprep.subr.bf16.mxu0 0
  %375 = vmatpush1.bf16.msra.mxu0 0
  %376 = vmatprep.subr.bf16.mxu0 0
  %377 = vmatpush1.bf16.msra.mxu0 0
  %378 = vmatprep.subr.bf16.mxu0 0
  %379 = vmatpush1.bf16.msra.mxu0 0
  %380 = vmatprep.subr.bf16.mxu0 0
  %381 = vmatpush1.bf16.msra.mxu0 0
  %382 = vmatprep.subr.bf16.mxu0 0
  %383 = vmatpush1.bf16.msra.mxu0 0
  %384 = vmatprep.subr.bf16.mxu0 0
  %385 = vmatpush1.bf16.msra.mxu0 0
  %386 = vmatprep.subr.bf16.mxu0 0
  %387 = vmatpush1.bf16.msra.mxu0 0
  %388 = vmatprep.subr.bf16.mxu0 0
  %389 = vmatpush1.bf16.msra.mxu0 0
  %390 = vmatprep.subr.bf16.mxu0 0
  %391 = vmatpush1.bf16.msra.mxu0 0
  %392 = vmatprep.subr.bf16.mxu0 0
  %393 = vmatpush1.bf16.msra.mxu0 0
  %394 = vmatprep.subr.bf16.mxu0 0
  %395 = vmatpush1.bf16.msra.mxu0 0
  %396 = vmatprep.subr.bf16.mxu0 0
  %397 = vmatpush1.bf16.msra.mxu0 0
  %398 = vmatprep.mubr.bf16.mxu0 0
  %399 = vmatmul.mubr.bf16.gmra.mrb[0].mxu0 %v61
  %v400 = vpop.f32.mrb[0].mxu0
  %v401 = vadd.f32 0.0, %v400
  %v402 = vpop.f32.mrb[0].mxu0
  %v403 = vpop.f32.mrb[0].mxu0
  %v404 = vadd.f32 0.0, %v403
  %v405 = vpop.f32.mrb[0].mxu0
  %406 = vmatprep.mubr.bf16.mxu0 0
  %407 = vmatmul.mubr.bf16.gmra.mrb[0].mxu0 %v64
  %v408 = vpop.f32.mrb[0].mxu0
  %v409 = vadd.f32 0.0, %v408
  %v410 = vpop.f32.mrb[0].mxu0
  %v411 = vpop.f32.mrb[0].mxu0
  %v412 = vpop.f32.mrb[0].mxu0
  %413 = vdwg.mxu0
  %v414 = vpack.c.bf16 %v357, %v356
  %v415 = vpack.c.bf16 %v358, %v358
  %v416 = vpack.c.bf16 %v404, %v401
  %v417 = vpack.c.bf16 %v409, %v409
  %v419 = vsel %vm174, %v414, 0
  %v422 = vsel %vm174, %v415, 0
  %v425 = vsel %vm181, %v417, 0
  %427 = vmatprep.subr.bf16.mxu0 0
  %428 = vmatpush1.bf16.msra.mxu0 %v416
  %429 = vmatprep.subr.bf16.mxu0 0
  %430 = vmatpush1.bf16.msra.mxu0 %v425
  %431 = vmatprep.subr.bf16.mxu0 0
  %432 = vmatpush1.bf16.msra.mxu0 0
  %433 = vmatprep.subr.bf16.mxu0 0
  %434 = vmatpush1.bf16.msra.mxu0 0
  %435 = vmatprep.subr.bf16.mxu0 0
  %436 = vmatpush1.bf16.msra.mxu0 0
  %437 = vmatprep.subr.bf16.mxu0 0
  %438 = vmatpush1.bf16.msra.mxu0 0
  %439 = vmatprep.subr.bf16.mxu0 0
  %440 = vmatpush1.bf16.msra.mxu0 0
  %441 = vmatprep.subr.bf16.mxu0 0
  %442 = vmatpush1.bf16.msra.mxu0 0
  %443 = vmatprep.subr.bf16.mxu0 0
  %444 = vmatpush1.bf16.msra.mxu0 0
  %445 = vmatprep.subr.bf16.mxu0 0
  %446 = vmatpush1.bf16.msra.mxu0 0
  %447 = vmatprep.subr.bf16.mxu0 0
  %448 = vmatpush1.bf16.msra.mxu0 0
  %449 = vmatprep.subr.bf16.mxu0 0
  %450 = vmatpush1.bf16.msra.mxu0 0
  %451 = vmatprep.subr.bf16.mxu0 0
  %452 = vmatpush1.bf16.msra.mxu0 0
  %453 = vmatprep.subr.bf16.mxu0 0
  %454 = vmatpush1.bf16.msra.mxu0 0
  %455 = vmatprep.subr.bf16.mxu0 0
  %456 = vmatpush1.bf16.msra.mxu0 0
  %457 = vmatprep.subr.bf16.mxu0 0
  %458 = vmatpush1.bf16.msra.mxu0 0
  %459 = vmatprep.mubr.bf16.mxu0 0
  %460 = vmatmul.mubr.bf16.gmra.mrb[0].mxu0 %v419
  %v461 = vpop.f32.mrb[0].mxu0
  %v462 = vadd.f32 0.0, %v461
  %v463 = vpop.f32.mrb[0].mxu0
  %v464 = vpop.f32.mrb[0].mxu0
  %v465 = vadd.f32 0.0, %v464
  %v466 = vpop.f32.mrb[0].mxu0
  %467 = vmatprep.mubr.bf16.mxu0 0
  %468 = vmatmul.mubr.bf16.gmra.mrb[0].mxu0 %v422
  %v469 = vpop.f32.mrb[0].mxu0
  %v470 = vpop.f32.mrb[0].mxu0
  %v471 = vpop.f32.mrb[0].mxu0
  %v472 = vpop.f32.mrb[0].mxu0
  %473 = vdwg.mxu0
  %v474 = vadd.f32 %v353, %v462
  %v475 = vadd.f32 %v354, %v465
  %s476 = scalar_lea.vmem %s3, 72
  %v477 = vld [vmem:[%s476] sm:$0xff]
  %v478 = vld [vmem:[%s476 + $0x8] sm:$0xff]
  %v479 = vld [vmem:[%s476 + $0x10] sm:$0xff]
  %s480 = scalar_lea.vmem %s2, 96
  %v481 = vld [vmem:[%s480] sm:$0xff]
  %v482 = vld [vmem:[%s480 + $0x8] sm:$0xff]
  %v483 = vld [vmem:[%s480 + $0x10] sm:$0xff]
  %v484 = vld [vmem:[%s480 + $0x18] sm:$0xff]
  %v485 = vpack.c.bf16 %v482, %v481
  %v486 = vpack.c.bf16 %v484, %v483
  %487 = vmatprep.subr.bf16.mxu0 0
  %488 = vmatpush1.bf16.msra.mxu0 %v485
  %489 = vmatprep.subr.bf16.mxu0 0
  %490 = vmatpush1.bf16.msra.mxu0 %v486
  %491 = vmatprep.subr.bf16.mxu0 0
  %492 = vmatpush1.bf16.msra.mxu0 0
  %493 = vmatprep.subr.bf16.mxu0 0
  %494 = vmatpush1.bf16.msra.mxu0 0
  %495 = vmatprep.subr.bf16.mxu0 0
  %496 = vmatpush1.bf16.msra.mxu0 0
  %497 = vmatprep.subr.bf16.mxu0 0
  %498 = vmatpush1.bf16.msra.mxu0 0
  %499 = vmatprep.subr.bf16.mxu0 0
  %500 = vmatpush1.bf16.msra.mxu0 0
  %501 = vmatprep.subr.bf16.mxu0 0
  %502 = vmatpush1.bf16.msra.mxu0 0
  %503 = vmatprep.subr.bf16.mxu0 0
  %504 = vmatpush1.bf16.msra.mxu0 0
  %505 = vmatprep.subr.bf16.mxu0 0
  %506 = vmatpush1.bf16.msra.mxu0 0
  %507 = vmatprep.subr.bf16.mxu0 0
  %508 = vmatpush1.bf16.msra.mxu0 0
  %509 = vmatprep.subr.bf16.mxu0 0
  %510 = vmatpush1.bf16.msra.mxu0 0
  %511 = vmatprep.subr.bf16.mxu0 0
  %512 = vmatpush1.bf16.msra.mxu0 0
  %513 = vmatprep.subr.bf16.mxu0 0
  %514 = vmatpush1.bf16.msra.mxu0 0
  %515 = vmatprep.subr.bf16.mxu0 0
  %516 = vmatpush1.bf16.msra.mxu0 0
  %517 = vmatprep.subr.bf16.mxu0 0
  %518 = vmatpush1.bf16.msra.mxu0 0
  %519 = vmatprep.mubr.bf16.mxu0 0
  %520 = vmatmul.mubr.bf16.gmra.mrb[0].mxu0 %v61
  %v521 = vpop.f32.mrb[0].mxu0
  %v522 = vadd.f32 0.0, %v521
  %v523 = vpop.f32.mrb[0].mxu0
  %v524 = vpop.f32.mrb[0].mxu0
  %v525 = vadd.f32 0.0, %v524
  %v526 = vpop.f32.mrb[0].mxu0
  %527 = vmatprep.mubr.bf16.mxu0 0
  %528 = vmatmul.mubr.bf16.gmra.mrb[0].mxu0 %v64
  %v529 = vpop.f32.mrb[0].mxu0
  %v530 = vadd.f32 0.0, %v529
  %v531 = vpop.f32.mrb[0].mxu0
  %v532 = vpop.f32.mrb[0].mxu0
  %v533 = vpop.f32.mrb[0].mxu0
  %534 = vdwg.mxu0
  %v535 = vpack.c.bf16 %v478, %v477
  %v536 = vpack.c.bf16 %v479, %v479
  %v537 = vpack.c.bf16 %v525, %v522
  %v538 = vpack.c.bf16 %v530, %v530
  %v540 = vsel %vm174, %v535, 0
  %v543 = vsel %vm174, %v536, 0
  %v546 = vsel %vm181, %v538, 0
  %548 = vmatprep.subr.bf16.mxu0 0
  %549 = vmatpush1.bf16.msra.mxu0 %v537
  %550 = vmatprep.subr.bf16.mxu0 0
  %551 = vmatpush1.bf16.msra.mxu0 %v546
  %552 = vmatprep.subr.bf16.mxu0 0
  %553 = vmatpush1.bf16.msra.mxu0 0
  %554 = vmatprep.subr.bf16.mxu0 0
  %555 = vmatpush1.bf16.msra.mxu0 0
  %556 = vmatprep.subr.bf16.mxu0 0
  %557 = vmatpush1.bf16.msra.mxu0 0
  %558 = vmatprep.subr.bf16.mxu0 0
  %559 = vmatpush1.bf16.msra.mxu0 0
  %560 = vmatprep.subr.bf16.mxu0 0
  %561 = vmatpush1.bf16.msra.mxu0 0
  %562 = vmatprep.subr.bf16.mxu0 0
  %563 = vmatpush1.bf16.msra.mxu0 0
  %564 = vmatprep.subr.bf16.mxu0 0
  %565 = vmatpush1.bf16.msra.mxu0 0
  %566 = vmatprep.subr.bf16.mxu0 0
  %567 = vmatpush1.bf16.msra.mxu0 0
  %568 = vmatprep.subr.bf16.mxu0 0
  %569 = vmatpush1.bf16.msra.mxu0 0
  %570 = vmatprep.subr.bf16.mxu0 0
  %571 = vmatpush1.bf16.msra.mxu0 0
  %572 = vmatprep.subr.bf16.mxu0 0
  %573 = vmatpush1.bf16.msra.mxu0 0
  %574 = vmatprep.subr.bf16.mxu0 0
  %575 = vmatpush1.bf16.msra.mxu0 0
  %576 = vmatprep.subr.bf16.mxu0 0
  %577 = vmatpush1.bf16.msra.mxu0 0
  %578 = vmatprep.subr.bf16.mxu0 0
  %579 = vmatpush1.bf16.msra.mxu0 0
  %580 = vmatprep.mubr.bf16.mxu0 0
  %581 = vmatmul.mubr.bf16.gmra.mrb[0].mxu0 %v540
  %v582 = vpop.f32.mrb[0].mxu0
  %v583 = vadd.f32 0.0, %v582
  %v584 = vpop.f32.mrb[0].mxu0
  %v585 = vpop.f32.mrb[0].mxu0
  %v586 = vadd.f32 0.0, %v585
  %v587 = vpop.f32.mrb[0].mxu0
  %588 = vmatprep.mubr.bf16.mxu0 0
  %589 = vmatmul.mubr.bf16.gmra.mrb[0].mxu0 %v543
  %v590 = vpop.f32.mrb[0].mxu0
  %v591 = vpop.f32.mrb[0].mxu0
  %v592 = vpop.f32.mrb[0].mxu0
  %v593 = vpop.f32.mrb[0].mxu0
  %594 = vdwg.mxu0
  %v595 = vadd.f32 %v474, %v583
  %v596 = vadd.f32 %v475, %v586
  %v597 = vld [vmem:[%s0] sm:$0xff]
  %v598 = vld [vmem:[%s0 + $0x8] sm:$0xff]
  %601 = vrot.lane.b32.xlu0 %v595, 64
  %v602 = vpop.permute.xlu0 %601
  %603 = vrot.lane.b32.xlu0 %v596, 64
  %v604 = vpop.permute.xlu0 %603
  %vm607 = vcmask 523264
  %v608 = vsel %vm607, %v597, %v602
  %v609 = vsel %vm607, %v598, %v604
  %v610 = vld [vmem:[%s6] sm:$0xff]
  %v611 = vld [vmem:[%s6 + $0x8] sm:$0xff]
  %v612 = vld [vmem:[%s6 + $0x10] sm:$0xff]
  %v613 = vld [vmem:[%s6 + $0x18] sm:$0xff]
  %v614 = vld [vmem:[%s6 + $0x20] sm:$0xff]
  %v615 = vld [vmem:[%s6 + $0x28] sm:$0xff]
  %v616 = vld [vmem:[%s6 + $0x30] sm:$0xff]
  %v617 = vld [vmem:[%s6 + $0x38] sm:$0xff]
  %v618 = vld [vmem:[%s6 + $0x40] sm:$0xff]
  %v619 = vld [vmem:[%s6 + $0x48] sm:$0xff]
  %v620 = vld [vmem:[%s6 + $0x50] sm:$0xff]
  %v621 = vld [vmem:[%s6 + $0x58] sm:$0xff]
  %v622 = vpack.c.bf16 %v609, %v608
  %v623 = vpack.c.bf16 %v611, %v610
  %v624 = vpack.c.bf16 %v613, %v612
  %v625 = vpack.c.bf16 %v615, %v614
  %v626 = vpack.c.bf16 %v617, %v616
  %v627 = vpack.c.bf16 %v619, %v618
  %v628 = vpack.c.bf16 %v621, %v620
  %vm629 = vcmask 785408
  %v631 = vsel %vm629, %v622, 0
  %633 = vmatprep.subr.bf16.mxu0 0
  %634 = vmatpush1.bf16.msra.mxu0 %v623
  %635 = vmatprep.subr.bf16.mxu0 0
  %636 = vmatpush1.bf16.msra.mxu0 %v624
  %637 = vmatprep.subr.bf16.mxu0 0
  %638 = vmatpush1.bf16.msra.mxu0 %v625
  %639 = vmatprep.subr.bf16.mxu0 0
  %640 = vmatpush1.bf16.msra.mxu0 %v626
  %641 = vmatprep.subr.bf16.mxu0 0
  %642 = vmatpush1.bf16.msra.mxu0 %v627
  %643 = vmatprep.subr.bf16.mxu0 0
  %644 = vmatpush1.bf16.msra.mxu0 %v628
  %645 = vmatprep.subr.bf16.mxu0 0
  %646 = vmatpush1.bf16.msra.mxu0 0
  %647 = vmatprep.subr.bf16.mxu0 0
  %648 = vmatpush1.bf16.msra.mxu0 0
  %649 = vmatprep.subr.bf16.mxu0 0
  %650 = vmatpush1.bf16.msra.mxu0 0
  %651 = vmatprep.subr.bf16.mxu0 0
  %652 = vmatpush1.bf16.msra.mxu0 0
  %653 = vmatprep.subr.bf16.mxu0 0
  %654 = vmatpush1.bf16.msra.mxu0 0
  %655 = vmatprep.subr.bf16.mxu0 0
  %656 = vmatpush1.bf16.msra.mxu0 0
  %657 = vmatprep.subr.bf16.mxu0 0
  %658 = vmatpush1.bf16.msra.mxu0 0
  %659 = vmatprep.subr.bf16.mxu0 0
  %660 = vmatpush1.bf16.msra.mxu0 0
  %661 = vmatprep.subr.bf16.mxu0 0
  %662 = vmatpush1.bf16.msra.mxu0 0
  %663 = vmatprep.subr.bf16.mxu0 0
  %664 = vmatpush1.bf16.msra.mxu0 0
  %665 = vmatprep.mubr.bf16.mxu0 0
  %666 = vmatmul.mubr.bf16.gmra.mrb[0].mxu0 %v631
  %v667 = vpop.f32.mrb[0].mxu0
  %v668 = vadd.f32 0.0, %v667
  %v669 = vpop.f32.mrb[0].mxu0
  %v670 = vpop.f32.mrb[0].mxu0
  %v671 = vadd.f32 0.0, %v670
  %v672 = vpop.f32.mrb[0].mxu0
  %673 = vdwg.mxu0
  %v674 = vld [vmem:[%s7] sm:$0xff]
  %v675 = vld [vmem:[%s7 + $0x8] sm:$0xff]
  %v676 = vld [vmem:[%s7 + $0x10] sm:$0xff]
  %v677 = vld [vmem:[%s7 + $0x18] sm:$0xff]
  %v678 = vld [vmem:[%s7 + $0x20] sm:$0xff]
  %v679 = vld [vmem:[%s7 + $0x28] sm:$0xff]
  %v680 = vld [vmem:[%s7 + $0x30] sm:$0xff]
  %v681 = vld [vmem:[%s7 + $0x38] sm:$0xff]
  %v682 = vld [vmem:[%s7 + $0x40] sm:$0xff]
  %v683 = vld [vmem:[%s7 + $0x48] sm:$0xff]
  %v684 = vld [vmem:[%s7 + $0x50] sm:$0xff]
  %v685 = vld [vmem:[%s7 + $0x58] sm:$0xff]
  %v686 = vpack.c.bf16 %v675, %v674
  %v687 = vpack.c.bf16 %v677, %v676
  %v688 = vpack.c.bf16 %v679, %v678
  %v689 = vpack.c.bf16 %v681, %v680
  %v690 = vpack.c.bf16 %v683, %v682
  %v691 = vpack.c.bf16 %v685, %v684
  %692 = vmatprep.subr.bf16.mxu0 0
  %693 = vmatpush1.bf16.msra.mxu0 %v686
  %694 = vmatprep.subr.bf16.mxu0 0
  %695 = vmatpush1.bf16.msra.mxu0 %v687
  %696 = vmatprep.subr.bf16.mxu0 0
  %697 = vmatpush1.bf16.msra.mxu0 %v688
  %698 = vmatprep.subr.bf16.mxu0 0
  %699 = vmatpush1.bf16.msra.mxu0 %v689
  %700 = vmatprep.subr.bf16.mxu0 0
  %701 = vmatpush1.bf16.msra.mxu0 %v690
  %702 = vmatprep.subr.bf16.mxu0 0
  %703 = vmatpush1.bf16.msra.mxu0 %v691
  %704 = vmatprep.subr.bf16.mxu0 0
  %705 = vmatpush1.bf16.msra.mxu0 0
  %706 = vmatprep.subr.bf16.mxu0 0
  %707 = vmatpush1.bf16.msra.mxu0 0
  %708 = vmatprep.subr.bf16.mxu0 0
  %709 = vmatpush1.bf16.msra.mxu0 0
  %710 = vmatprep.subr.bf16.mxu0 0
  %711 = vmatpush1.bf16.msra.mxu0 0
  %712 = vmatprep.subr.bf16.mxu0 0
  %713 = vmatpush1.bf16.msra.mxu0 0
  %714 = vmatprep.subr.bf16.mxu0 0
  %715 = vmatpush1.bf16.msra.mxu0 0
  %716 = vmatprep.subr.bf16.mxu0 0
  %717 = vmatpush1.bf16.msra.mxu0 0
  %718 = vmatprep.subr.bf16.mxu0 0
  %719 = vmatpush1.bf16.msra.mxu0 0
  %720 = vmatprep.subr.bf16.mxu0 0
  %721 = vmatpush1.bf16.msra.mxu0 0
  %722 = vmatprep.subr.bf16.mxu0 0
  %723 = vmatpush1.bf16.msra.mxu0 0
  %724 = vmatprep.mubr.bf16.mxu0 0
  %725 = vmatmul.mubr.bf16.gmra.mrb[0].mxu0 %v631
  %v726 = vpop.f32.mrb[0].mxu0
  %v727 = vadd.f32 0.0, %v726
  %v728 = vpop.f32.mrb[0].mxu0
  %v729 = vpop.f32.mrb[0].mxu0
  %v730 = vadd.f32 0.0, %v729
  %v731 = vpop.f32.mrb[0].mxu0
  %732 = vdwg.mxu0
  %v733 = vld [vmem:[%s8] sm:$0xff]
  %v734 = vld [vmem:[%s8 + $0x8] sm:$0xff]
  %v735 = vld [vmem:[%s8 + $0x10] sm:$0xff]
  %v736 = vld [vmem:[%s8 + $0x18] sm:$0xff]
  %v737 = vld [vmem:[%s8 + $0x20] sm:$0xff]
  %v738 = vld [vmem:[%s8 + $0x28] sm:$0xff]
  %v739 = vld [vmem:[%s8 + $0x30] sm:$0xff]
  %v740 = vld [vmem:[%s8 + $0x38] sm:$0xff]
  %v741 = vld [vmem:[%s8 + $0x40] sm:$0xff]
  %v742 = vld [vmem:[%s8 + $0x48] sm:$0xff]
  %v743 = vld [vmem:[%s8 + $0x50] sm:$0xff]
  %v744 = vld [vmem:[%s8 + $0x58] sm:$0xff]
  %v745 = vpack.c.bf16 %v734, %v733
  %v746 = vpack.c.bf16 %v736, %v735
  %v747 = vpack.c.bf16 %v738, %v737
  %v748 = vpack.c.bf16 %v740, %v739
  %v749 = vpack.c.bf16 %v742, %v741
  %v750 = vpack.c.bf16 %v744, %v743
  %751 = vmatprep.subr.bf16.mxu0 0
  %752 = vmatpush1.bf16.msra.mxu0 %v745
  %753 = vmatprep.subr.bf16.mxu0 0
  %754 = vmatpush1.bf16.msra.mxu0 %v746
  %755 = vmatprep.subr.bf16.mxu0 0
  %756 = vmatpush1.bf16.msra.mxu0 %v747
  %757 = vmatprep.subr.bf16.mxu0 0
  %758 = vmatpush1.bf16.msra.mxu0 %v748
  %759 = vmatprep.subr.bf16.mxu0 0
  %760 = vmatpush1.bf16.msra.mxu0 %v749
  %761 = vmatprep.subr.bf16.mxu0 0
  %762 = vmatpush1.bf16.msra.mxu0 %v750
  %763 = vmatprep.subr.bf16.mxu0 0
  %764 = vmatpush1.bf16.msra.mxu0 0
  %765 = vmatprep.subr.bf16.mxu0 0
  %766 = vmatpush1.bf16.msra.mxu0 0
  %767 = vmatprep.subr.bf16.mxu0 0
  %768 = vmatpush1.bf16.msra.mxu0 0
  %769 = vmatprep.subr.bf16.mxu0 0
  %770 = vmatpush1.bf16.msra.mxu0 0
  %771 = vmatprep.subr.bf16.mxu0 0
  %772 = vmatpush1.bf16.msra.mxu0 0
  %773 = vmatprep.subr.bf16.mxu0 0
  %774 = vmatpush1.bf16.msra.mxu0 0
  %775 = vmatprep.subr.bf16.mxu0 0
  %776 = vmatpush1.bf16.msra.mxu0 0
  %777 = vmatprep.subr.bf16.mxu0 0
  %778 = vmatpush1.bf16.msra.mxu0 0
  %779 = vmatprep.subr.bf16.mxu0 0
  %780 = vmatpush1.bf16.msra.mxu0 0
  %781 = vmatprep.subr.bf16.mxu0 0
  %782 = vmatpush1.bf16.msra.mxu0 0
  %783 = vmatprep.mubr.bf16.mxu0 0
  %784 = vmatmul.mubr.bf16.gmra.mrb[0].mxu0 %v631
  %v785 = vpop.f32.mrb[0].mxu0
  %v786 = vadd.f32 0.0, %v785
  %v787 = vpop.f32.mrb[0].mxu0
  %v788 = vpop.f32.mrb[0].mxu0
  %v789 = vadd.f32 0.0, %v788
  %v790 = vpop.f32.mrb[0].mxu0
  %791 = vdwg.mxu0
  %v792 = vpack.c.bf16 %v671, %v668
  %v793 = vpack.c.bf16 %v730, %v727
  %v795 = vsel %vm59, %v792, 0
  %v798 = vsel %vm59, %v793, 0
  %800 = vmatprep.subr.bf16.mxu0 0
  %801 = vmatpush1.bf16.xpose.msra.mxu0 %v798
  %802 = vmatprep.subr.bf16.mxu0 0
  %803 = vmatpush1.bf16.xpose.msra.mxu0 0
  %804 = vmatprep.subr.bf16.mxu0 0
  %805 = vmatpush1.bf16.xpose.msra.mxu0 0
  %806 = vmatprep.subr.bf16.mxu0 0
  %807 = vmatpush1.bf16.xpose.msra.mxu0 0
  %808 = vmatprep.subr.bf16.mxu0 0
  %809 = vmatpush1.bf16.xpose.msra.mxu0 0
  %810 = vmatprep.subr.bf16.mxu0 0
  %811 = vmatpush1.bf16.xpose.msra.mxu0 0
  %812 = vmatprep.subr.bf16.mxu0 0
  %813 = vmatpush1.bf16.xpose.msra.mxu0 0
  %814 = vmatprep.subr.bf16.mxu0 0
  %815 = vmatpush1.bf16.xpose.msra.mxu0 0
  %816 = vmatprep.subr.bf16.mxu0 0
  %817 = vmatpush1.bf16.xpose.msra.mxu0 0
  %818 = vmatprep.subr.bf16.mxu0 0
  %819 = vmatpush1.bf16.xpose.msra.mxu0 0
  %820 = vmatprep.subr.bf16.mxu0 0
  %821 = vmatpush1.bf16.xpose.msra.mxu0 0
  %822 = vmatprep.subr.bf16.mxu0 0
  %823 = vmatpush1.bf16.xpose.msra.mxu0 0
  %824 = vmatprep.subr.bf16.mxu0 0
  %825 = vmatpush1.bf16.xpose.msra.mxu0 0
  %826 = vmatprep.subr.bf16.mxu0 0
  %827 = vmatpush1.bf16.xpose.msra.mxu0 0
  %828 = vmatprep.subr.bf16.mxu0 0
  %829 = vmatpush1.bf16.xpose.msra.mxu0 0
  %830 = vmatprep.subr.bf16.mxu0 0
  %831 = vmatpush1.bf16.xpose.msra.mxu0 0
  %832 = vmatprep.mubr.bf16.mxu0 0
  %833 = vmatmul.mubr.bf16.gmra.mrb[0].mxu0 %v795
  %v834 = vpop.f32.mrb[0].mxu0
  %v835 = vadd.f32 0.0, %v834
  %v836 = vpop.f32.mrb[0].mxu0
  %v837 = vpop.f32.mrb[0].mxu0
  %v838 = vadd.f32 0.0, %v837
  %v839 = vpop.f32.mrb[0].mxu0
  %840 = vdwg.mxu0
  %v841 = vmul.f32 %v835, 0.17677669
  %v842 = vmul.f32 %v838, 0.17677669
  %vm843 = vcmask 130048
  %v844 = vsel %vm843, %v841, -inf
  %845 = vmax.xlane.f32.xlu0 %v844
  %v846 = vpop.xlane.xlu0 %845
  %v847 = vsel %vm843, %v842, -inf
  %848 = vmax.xlane.f32.xlu0 %v847
  %v849 = vpop.xlane.xlu0 %848
  %v850 = vsub.f32 %v841, %v846
  %v851 = vsub.f32 %v842, %v849
  %v852 = vmul.f32 %v850, 1.442695
  %v853 = vpow.pop %v852
  %v854 = vmul.f32 %v851, 1.442695
  %v855 = vpow.pop %v854
  %v856 = vsel %vm843, %v853, 0.0
  %857 = vadd.xlane.f32.xlu0 %v856
  %v858 = vpop.xlane.xlu0 %857
  %v859 = vsel %vm843, %v855, 0.0
  %860 = vadd.xlane.f32.xlu0 %v859
  %v861 = vpop.xlane.xlu0 %860
  %v862 = vrcp.pop %v858
  %v863 = vrcp.pop %v861
  %v864 = vmul.f32 %v853, %v862
  %v865 = vmul.f32 %v855, %v863
  %v866 = vpack.c.bf16 %v865, %v864
  %v867 = vpack.c.bf16 %v789, %v786
  %v869 = vsel %vm843, %v866, 0
  %871 = vmatprep.subr.bf16.mxu0 0
  %872 = vmatpush1.bf16.msra.mxu0 %v867
  %873 = vmatprep.subr.bf16.mxu0 0
  %874 = vmatpush1.bf16.msra.mxu0 0
  %875 = vmatprep.subr.bf16.mxu0 0
  %876 = vmatpush1.bf16.msra.mxu0 0
  %877 = vmatprep.subr.bf16.mxu0 0
  %878 = vmatpush1.bf16.msra.mxu0 0
  %879 = vmatprep.subr.bf16.mxu0 0
  %880 = vmatpush1.bf16.msra.mxu0 0
  %881 = vmatprep.subr.bf16.mxu0 0
  %882 = vmatpush1.bf16.msra.mxu0 0
  %883 = vmatprep.subr.bf16.mxu0 0
  %884 = vmatpush1.bf16.msra.mxu0 0
  %885 = vmatprep.subr.bf16.mxu0 0
  %886 = vmatpush1.bf16.msra.mxu0 0
  %887 = vmatprep.subr.bf16.mxu0 0
  %888 = vmatpush1.bf16.msra.mxu0 0
  %889 = vmatprep.subr.bf16.mxu0 0
  %890 = vmatpush1.bf16.msra.mxu0 0
  %891 = vmatprep.subr.bf16.mxu0 0
  %892 = vmatpush1.bf16.msra.mxu0 0
  %893 = vmatprep.subr.bf16.mxu0 0
  %894 = vmatpush1.bf16.msra.mxu0 0
  %895 = vmatprep.subr.bf16.mxu0 0
  %896 = vmatpush1.bf16.msra.mxu0 0
  %897 = vmatprep.subr.bf16.mxu0 0
  %898 = vmatpush1.bf16.msra.mxu0 0
  %899 = vmatprep.subr.bf16.mxu0 0
  %900 = vmatpush1.bf16.msra.mxu0 0
  %901 = vmatprep.subr.bf16.mxu0 0
  %902 = vmatpush1.bf16.msra.mxu0 0
  %903 = vmatprep.mubr.bf16.mxu0 0
  %904 = vmatmul.mubr.bf16.gmra.mrb[0].mxu0 %v869
  %v905 = vpop.f32.mrb[0].mxu0
  %v906 = vadd.f32 0.0, %v905
  %v907 = vpop.f32.mrb[0].mxu0
  %v908 = vpop.f32.mrb[0].mxu0
  %v909 = vadd.f32 0.0, %v908
  %v910 = vpop.f32.mrb[0].mxu0
  %911 = vdwg.mxu0
  %v912 = vld [vmem:[%s9] sm:$0xff]
  %v913 = vld [vmem:[%s9 + $0x8] sm:$0xff]
  %v914 = vpack.c.bf16 %v909, %v906
  %v915 = vpack.c.bf16 %v913, %v912
  %v916 = vld [vmem:[#allocation2] sm:$0x1]
  %v918 = vlaneseq
  %v919 = vshrl.u32 %v918, 7
  %v920 = vsub.s32 0, %v919
  %v921 = vrot.slane %v916, %v920
  %v924 = vsel %vm843, %v914, 0
  %926 = vmatprep.subr.bf16.mxu0 0
  %927 = vmatpush1.bf16.msra.mxu0 %v915
  %928 = vmatprep.subr.bf16.mxu0 0
  %929 = vmatpush1.bf16.msra.mxu0 0
  %930 = vmatprep.subr.bf16.mxu0 0
  %931 = vmatpush1.bf16.msra.mxu0 0
  %932 = vmatprep.subr.bf16.mxu0 0
  %933 = vmatpush1.bf16.msra.mxu0 0
  %934 = vmatprep.subr.bf16.mxu0 0
  %935 = vmatpush1.bf16.msra.mxu0 0
  %936 = vmatprep.subr.bf16.mxu0 0
  %937 = vmatpush1.bf16.msra.mxu0 0
  %938 = vmatprep.subr.bf16.mxu0 0
  %939 = vmatpush1.bf16.msra.mxu0 0
  %940 = vmatprep.subr.bf16.mxu0 0
  %941 = vmatpush1.bf16.msra.mxu0 0
  %942 = vmatprep.subr.bf16.mxu0 0
  %943 = vmatpush1.bf16.msra.mxu0 0
  %944 = vmatprep.subr.bf16.mxu0 0
  %945 = vmatpush1.bf16.msra.mxu0 0
  %946 = vmatprep.subr.bf16.mxu0 0
  %947 = vmatpush1.bf16.msra.mxu0 0
  %948 = vmatprep.subr.bf16.mxu0 0
  %949 = vmatpush1.bf16.msra.mxu0 0
  %950 = vmatprep.subr.bf16.mxu0 0
  %951 = vmatpush1.bf16.msra.mxu0 0
  %952 = vmatprep.subr.bf16.mxu0 0
  %953 = vmatpush1.bf16.msra.mxu0 0
  %954 = vmatprep.subr.bf16.mxu0 0
  %955 = vmatpush1.bf16.msra.mxu0 0
  %956 = vmatprep.subr.bf16.mxu0 0
  %957 = vmatpush1.bf16.msra.mxu0 0
  %958 = vmatprep.mubr.bf16.mxu0 0
  %959 = vmatmul.mubr.bf16.gmra.mrb[0].mxu0 %v924
  %v960 = vpop.f32.mrb[0].mxu0
  %v961 = vadd.f32 %v921, %v960
  %v962 = vpop.f32.mrb[0].mxu0
  %v963 = vpop.f32.mrb[0].mxu0
  %v964 = vadd.f32 %v921, %v963
  %v965 = vpop.f32.mrb[0].mxu0
  %966 = vdwg.mxu0
  %vm967 = vcmask 7168
  %968 = vst.msk [vmem:[%s11] sm:$0xff] %vm967, %v961
  %969 = vst.msk [vmem:[%s11 + $0x8] sm:$0xff] %vm967, %v964
  // Predicated region
  $region46: #{mrkgcn_forward.5} parent=0 // pred_check
    _
  $region47: #{mrkgcn_forward.5} parent=0 // pred_check_branch
    %971 = sbr.rel (0) target = $region49
  $region48: #{mrkgcn_forward.5} parent=0 // pred_region
    _
  $region49: #{mrkgcn_forward.5} parent=0 // pred_fallthru
    _
  // Predicated region
  $region50: #{mrkgcn_forward.5} parent=0 // pred_check
    _
  $region51: #{mrkgcn_forward.5} parent=0 // pred_check_branch
    %973 = sbr.rel (0) target = $region53
  $region52: #{mrkgcn_forward.5} parent=0 // pred_region
    _
  $region53: #{mrkgcn_forward.5} parent=0 // pred_fallthru
    _

// kernel: mrkgcn_forward.4
$region0: #{mrkgcn_forward.4}
  #allocation0 [shape = 'u32[]', space=smem, size = 0x4, offset = 0x4, fixed_abs, tag = 'smem constant byte address 0x4 - core index']
  #allocation1 [shape = 'u32[144,128]{1,0:T(1,128)}', space=vmem, size = 0x12000, scoped, tag = 'internal scratch']
  %s0 = inlined_call_operand.vmem [shape: f32[192,64], index: 0, kind: input, shape index: {}]
  %s1 = inlined_call_operand.vmem [shape: f32[96,96], index: 1, kind: input, shape index: {}]
  %s2 = inlined_call_operand.vmem [shape: f32[64,192], index: 2, kind: input, shape index: {}]
  %s3 = inlined_call_operand.vmem [shape: f32[1,192], index: 3, kind: input, shape index: {}]
  %s4 = inlined_call_operand.vmem [shape: f32[64,64], index: 4, kind: input, shape index: {}]
  %s5 = inlined_call_operand.vmem [shape: f32[1,64], index: 5, kind: input, shape index: {}]
  %s6 = inlined_call_operand.vmem [shape: f32[64,2048], index: 6, kind: input, shape index: {}]
  %s7 = inlined_call_operand.vmem [shape: f32[1,2048], index: 7, kind: input, shape index: {}]
  %s8 = inlined_call_operand.vmem [shape: f32[2048,64], index: 8, kind: input, shape index: {}]
  %s9 = inlined_call_operand.vmem [shape: f32[1,64], index: 9, kind: input, shape index: {}]
  %s10 = inlined_call_operand.vmem [shape: f32[1,64], index: 10, kind: input, shape index: {}]
  %s11 = inlined_call_operand.vmem [shape: f32[1,64], index: 11, kind: input, shape index: {}]
  %s12 = inlined_call_operand.vmem [shape: f32[1,64], index: 12, kind: input, shape index: {}]
  %s13 = inlined_call_operand.vmem [shape: f32[1,64], index: 13, kind: input, shape index: {}]
  %s14 = inlined_call_operand.vmem [shape: f32[16,64], index: 14, kind: output, shape index: {}]
  %s15 = sld [smem:[#allocation0]]
  $region89: #{mrkgcn_forward.4} parent=0
    _
  %s17 = ssub.s32 1, %s15
  %s18 = scalar_select 0, %s17, %s15
  loop: start=0, step=1, limit=4
  $region2: #{mrkgcn_forward.4} parent=0 // loop_pre_header
    _
  $region3: #{mrkgcn_forward.4} parent=0 // loop_header
    %s20 = sphi 0, %s24
    %p21 = scmp.ge.s32.totalorder %s20, 4
    %s30 = sphi 0, %s32
    %s33 = sphi 0, %s30
    %s34 = sphi 0, %s33
    %s50 = sphi 0, %s34
    %s54 = sphi 0, %s54
    %s56 = sphi 0, %s54
    %s57 = sphi 0, %s56
    %s71 = sphi 0, %s57
    %s75 = sphi 0, %s75
    %s77 = sphi 0, %s75
    %s78 = sphi 0, %s77
    %s92 = sphi 0, %s78
    %s96 = sphi 0, %s96
    %s98 = sphi 0, %s96
    %s99 = sphi 0, %s98
    %s113 = sphi 0, %s99
    %s117 = sphi 0, %s117
    %s119 = sphi 0, %s117
    %s120 = sphi 0, %s119
    %s134 = sphi 0, %s120
    %s138 = sphi 0, %s138
    %s140 = sphi 0, %s138
    %s141 = sphi 0, %s140
    %s155 = sphi 0, %s141
    %s159 = sphi 0, %s159
    %s161 = sphi 0, %s159
    %s162 = sphi 0, %s161
    %s176 = sphi 0, %s162
    %s180 = sphi 0, %s180
    %s182 = sphi 0, %s180
    %s183 = sphi 0, %s182
    %s197 = sphi 0, %s183
    %s201 = sphi 0, %s201
    %s203 = sphi 0, %s201
    %s204 = sphi 0, %s203
    %s218 = sphi 0, %s204
    %s222 = sphi 0, %s222
    %s224 = sphi 0, %s222
    %s225 = sphi 0, %s224
    %s239 = sphi 0, %s225
    %s243 = sphi 0, %s243
    %s245 = sphi 0, %s243
    %s246 = sphi 0, %s245
    %s260 = sphi 0, %s246
    %s264 = sphi 0, %s264
    %s266 = sphi 0, %s264
    %s267 = sphi 0, %s266
    %s281 = sphi 0, %s267
    %s285 = sphi 0, %s285
    %s287 = sphi 0, %s285
    %s288 = sphi 0, %s287
    %s302 = sphi 0, %s288
    %s306 = sphi 0, %s306
    %s308 = sphi 0, %s306
    %s309 = sphi 0, %s308
    %s323 = sphi 0, %s309
    %s329 = sphi 0, %s331
    %s332 = sphi 0, %s329
    %s333 = sphi 0, %s332
    %s349 = sphi 0, %s333
  $region4: #{mrkgcn_forward.4} parent=0 // loop_header_branch
    %23 = sbr.rel (%p21) target = $region8
  $region5: #{mrkgcn_forward.4} parent=0 // loop_body
    %s25 = ssub.s32 %s20, 1
    %s26 = ssub.s32 %s20, 2
    %s27 = sadd.s32 %s20, 1
    %s28 = ssub.s32 %s20, %s27
    %p29 = scmp.eq.s32.totalorder %s28, 0
    %s31 = sadd.s32 %s30, 1
    %s32 = scalar_select %p29, %s30, %s31
    %p35 = pneg %p29
    %p36 = scmp.eq.s32.totalorder %s20, 1
    %p37 = por %p35, %p36
    %p38 = scmp.ne.s32.totalorder %s30, %s33
    %p39 = scmp.eq.s32.totalorder %s20, 0
    %p40 = por %p38, %p39
    %p41 = scmp.ne.s32.totalorder %s30, %s33
    %p42 = scmp.eq.s32.totalorder %s25, 1
    %p43 = por %p41, %p42
    %p44 = scmp.ne.s32.totalorder %s33, %s34
    %p45 = scmp.eq.s32.totalorder %s25, 0
    %p46 = por %p44, %p45
    %p47 = scmp.ne.s32.totalorder %s33, %s34
    %p48 = scmp.eq.s32.totalorder %s26, 1
    %p49 = por %p47, %p48
    %p51 = scmp.ne.s32.totalorder %s34, %s50
    %p52 = scmp.eq.s32.totalorder %s26, 0
    %p53 = por %p51, %p52
    %s55 = sadd.s32 %s54, 1
    %p58 = scmp.eq.s32.totalorder %s20, 1
    %p59 = scmp.ne.s32.totalorder %s54, %s56
    %p60 = scmp.eq.s32.totalorder %s20, 0
    %p61 = por %p59, %p60
    %p62 = scmp.ne.s32.totalorder %s54, %s56
    %p63 = scmp.eq.s32.totalorder %s25, 1
    %p64 = por %p62, %p63
    %p65 = scmp.ne.s32.totalorder %s56, %s57
    %p66 = scmp.eq.s32.totalorder %s25, 0
    %p67 = por %p65, %p66
    %p68 = scmp.ne.s32.totalorder %s56, %s57
    %p69 = scmp.eq.s32.totalorder %s26, 1
    %p70 = por %p68, %p69
    %p72 = scmp.ne.s32.totalorder %s57, %s71
    %p73 = scmp.eq.s32.totalorder %s26, 0
    %p74 = por %p72, %p73
    %s76 = sadd.s32 %s75, 1
    %p79 = scmp.eq.s32.totalorder %s20, 1
    %p80 = scmp.ne.s32.totalorder %s75, %s77
    %p81 = scmp.eq.s32.totalorder %s20, 0
    %p82 = por %p80, %p81
    %p83 = scmp.ne.s32.totalorder %s75, %s77
    %p84 = scmp.eq.s32.totalorder %s25, 1
    %p85 = por %p83, %p84
    %p86 = scmp.ne.s32.totalorder %s77, %s78
    %p87 = scmp.eq.s32.totalorder %s25, 0
    %p88 = por %p86, %p87
    %p89 = scmp.ne.s32.totalorder %s77, %s78
    %p90 = scmp.eq.s32.totalorder %s26, 1
    %p91 = por %p89, %p90
    %p93 = scmp.ne.s32.totalorder %s78, %s92
    %p94 = scmp.eq.s32.totalorder %s26, 0
    %p95 = por %p93, %p94
    %s97 = sadd.s32 %s96, 1
    %p100 = scmp.eq.s32.totalorder %s20, 1
    %p101 = scmp.ne.s32.totalorder %s96, %s98
    %p102 = scmp.eq.s32.totalorder %s20, 0
    %p103 = por %p101, %p102
    %p104 = scmp.ne.s32.totalorder %s96, %s98
    %p105 = scmp.eq.s32.totalorder %s25, 1
    %p106 = por %p104, %p105
    %p107 = scmp.ne.s32.totalorder %s98, %s99
    %p108 = scmp.eq.s32.totalorder %s25, 0
    %p109 = por %p107, %p108
    %p110 = scmp.ne.s32.totalorder %s98, %s99
    %p111 = scmp.eq.s32.totalorder %s26, 1
    %p112 = por %p110, %p111
    %p114 = scmp.ne.s32.totalorder %s99, %s113
    %p115 = scmp.eq.s32.totalorder %s26, 0
    %p116 = por %p114, %p115
    %s118 = sadd.s32 %s117, 1
    %p121 = scmp.eq.s32.totalorder %s20, 1
    %p122 = scmp.ne.s32.totalorder %s117, %s119
    %p123 = scmp.eq.s32.totalorder %s20, 0
    %p124 = por %p122, %p123
    %p125 = scmp.ne.s32.totalorder %s117, %s119
    %p126 = scmp.eq.s32.totalorder %s25, 1
    %p127 = por %p125, %p126
    %p128 = scmp.ne.s32.totalorder %s119, %s120
    %p129 = scmp.eq.s32.totalorder %s25, 0
    %p130 = por %p128, %p129
    %p131 = scmp.ne.s32.totalorder %s119, %s120
    %p132 = scmp.eq.s32.totalorder %s26, 1
    %p133 = por %p131, %p132
    %p135 = scmp.ne.s32.totalorder %s120, %s134
    %p136 = scmp.eq.s32.totalorder %s26, 0
    %p137 = por %p135, %p136
    %s139 = sadd.s32 %s138, 1
    %p142 = scmp.eq.s32.totalorder %s20, 1
    %p143 = scmp.ne.s32.totalorder %s138, %s140
    %p144 = scmp.eq.s32.totalorder %s20, 0
    %p145 = por %p143, %p144
    %p146 = scmp.ne.s32.totalorder %s138, %s140
    %p147 = scmp.eq.s32.totalorder %s25, 1
    %p148 = por %p146, %p147
    %p149 = scmp.ne.s32.totalorder %s140, %s141
    %p150 = scmp.eq.s32.totalorder %s25, 0
    %p151 = por %p149, %p150
    %p152 = scmp.ne.s32.totalorder %s140, %s141
    %p153 = scmp.eq.s32.totalorder %s26, 1
    %p154 = por %p152, %p153
    %p156 = scmp.ne.s32.totalorder %s141, %s155
    %p157 = scmp.eq.s32.totalorder %s26, 0
    %p158 = por %p156, %p157
    %s160 = sadd.s32 %s159, 1
    %p163 = scmp.eq.s32.totalorder %s20, 1
    %p164 = scmp.ne.s32.totalorder %s159, %s161
    %p165 = scmp.eq.s32.totalorder %s20, 0
    %p166 = por %p164, %p165
    %p167 = scmp.ne.s32.totalorder %s159, %s161
    %p168 = scmp.eq.s32.totalorder %s25, 1
    %p169 = por %p167, %p168
    %p170 = scmp.ne.s32.totalorder %s161, %s162
    %p171 = scmp.eq.s32.totalorder %s25, 0
    %p172 = por %p170, %p171
    %p173 = scmp.ne.s32.totalorder %s161, %s162
    %p174 = scmp.eq.s32.totalorder %s26, 1
    %p175 = por %p173, %p174
    %p177 = scmp.ne.s32.totalorder %s162, %s176
    %p178 = scmp.eq.s32.totalorder %s26, 0
    %p179 = por %p177, %p178
    %s181 = sadd.s32 %s180, 1
    %p184 = scmp.eq.s32.totalorder %s20, 1
    %p185 = scmp.ne.s32.totalorder %s180, %s182
    %p186 = scmp.eq.s32.totalorder %s20, 0
    %p187 = por %p185, %p186
    %p188 = scmp.ne.s32.totalorder %s180, %s182
    %p189 = scmp.eq.s32.totalorder %s25, 1
    %p190 = por %p188, %p189
    %p191 = scmp.ne.s32.totalorder %s182, %s183
    %p192 = scmp.eq.s32.totalorder %s25, 0
    %p193 = por %p191, %p192
    %p194 = scmp.ne.s32.totalorder %s182, %s183
    %p195 = scmp.eq.s32.totalorder %s26, 1
    %p196 = por %p194, %p195
    %p198 = scmp.ne.s32.totalorder %s183, %s197
    %p199 = scmp.eq.s32.totalorder %s26, 0
    %p200 = por %p198, %p199
    %s202 = sadd.s32 %s201, 1
    %p205 = scmp.eq.s32.totalorder %s20, 1
    %p206 = scmp.ne.s32.totalorder %s201, %s203
    %p207 = scmp.eq.s32.totalorder %s20, 0
    %p208 = por %p206, %p207
    %p209 = scmp.ne.s32.totalorder %s201, %s203
    %p210 = scmp.eq.s32.totalorder %s25, 1
    %p211 = por %p209, %p210
    %p212 = scmp.ne.s32.totalorder %s203, %s204
    %p213 = scmp.eq.s32.totalorder %s25, 0
    %p214 = por %p212, %p213
    %p215 = scmp.ne.s32.totalorder %s203, %s204
    %p216 = scmp.eq.s32.totalorder %s26, 1
    %p217 = por %p215, %p216
    %p219 = scmp.ne.s32.totalorder %s204, %s218
    %p220 = scmp.eq.s32.totalorder %s26, 0
    %p221 = por %p219, %p220
    %s223 = sadd.s32 %s222, 1
    %p226 = scmp.eq.s32.totalorder %s20, 1
    %p227 = scmp.ne.s32.totalorder %s222, %s224
    %p228 = scmp.eq.s32.totalorder %s20, 0
    %p229 = por %p227, %p228
    %p230 = scmp.ne.s32.totalorder %s222, %s224
    %p231 = scmp.eq.s32.totalorder %s25, 1
    %p232 = por %p230, %p231
    %p233 = scmp.ne.s32.totalorder %s224, %s225
    %p234 = scmp.eq.s32.totalorder %s25, 0
    %p235 = por %p233, %p234
    %p236 = scmp.ne.s32.totalorder %s224, %s225
    %p237 = scmp.eq.s32.totalorder %s26, 1
    %p238 = por %p236, %p237
    %p240 = scmp.ne.s32.totalorder %s225, %s239
    %p241 = scmp.eq.s32.totalorder %s26, 0
    %p242 = por %p240, %p241
    %s244 = sadd.s32 %s243, 1
    %p247 = scmp.eq.s32.totalorder %s20, 1
    %p248 = scmp.ne.s32.totalorder %s243, %s245
    %p249 = scmp.eq.s32.totalorder %s20, 0
    %p250 = por %p248, %p249
    %p251 = scmp.ne.s32.totalorder %s243, %s245
    %p252 = scmp.eq.s32.totalorder %s25, 1
    %p253 = por %p251, %p252
    %p254 = scmp.ne.s32.totalorder %s245, %s246
    %p255 = scmp.eq.s32.totalorder %s25, 0
    %p256 = por %p254, %p255
    %p257 = scmp.ne.s32.totalorder %s245, %s246
    %p258 = scmp.eq.s32.totalorder %s26, 1
    %p259 = por %p257, %p258
    %p261 = scmp.ne.s32.totalorder %s246, %s260
    %p262 = scmp.eq.s32.totalorder %s26, 0
    %p263 = por %p261, %p262
    %s265 = sadd.s32 %s264, 1
    %p268 = scmp.eq.s32.totalorder %s20, 1
    %p269 = scmp.ne.s32.totalorder %s264, %s266
    %p270 = scmp.eq.s32.totalorder %s20, 0
    %p271 = por %p269, %p270
    %p272 = scmp.ne.s32.totalorder %s264, %s266
    %p273 = scmp.eq.s32.totalorder %s25, 1
    %p274 = por %p272, %p273
    %p275 = scmp.ne.s32.totalorder %s266, %s267
    %p276 = scmp.eq.s32.totalorder %s25, 0
    %p277 = por %p275, %p276
    %p278 = scmp.ne.s32.totalorder %s266, %s267
    %p279 = scmp.eq.s32.totalorder %s26, 1
    %p280 = por %p278, %p279
    %p282 = scmp.ne.s32.totalorder %s267, %s281
    %p283 = scmp.eq.s32.totalorder %s26, 0
    %p284 = por %p282, %p283
    %s286 = sadd.s32 %s285, 1
    %p289 = scmp.eq.s32.totalorder %s20, 1
    %p290 = scmp.ne.s32.totalorder %s285, %s287
    %p291 = scmp.eq.s32.totalorder %s20, 0
    %p292 = por %p290, %p291
    %p293 = scmp.ne.s32.totalorder %s285, %s287
    %p294 = scmp.eq.s32.totalorder %s25, 1
    %p295 = por %p293, %p294
    %p296 = scmp.ne.s32.totalorder %s287, %s288
    %p297 = scmp.eq.s32.totalorder %s25, 0
    %p298 = por %p296, %p297
    %p299 = scmp.ne.s32.totalorder %s287, %s288
    %p300 = scmp.eq.s32.totalorder %s26, 1
    %p301 = por %p299, %p300
    %p303 = scmp.ne.s32.totalorder %s288, %s302
    %p304 = scmp.eq.s32.totalorder %s26, 0
    %p305 = por %p303, %p304
    %s307 = sadd.s32 %s306, 1
    %p310 = scmp.eq.s32.totalorder %s20, 1
    %p311 = scmp.ne.s32.totalorder %s306, %s308
    %p312 = scmp.eq.s32.totalorder %s20, 0
    %p313 = por %p311, %p312
    %p314 = scmp.ne.s32.totalorder %s306, %s308
    %p315 = scmp.eq.s32.totalorder %s25, 1
    %p316 = por %p314, %p315
    %p317 = scmp.ne.s32.totalorder %s308, %s309
    %p318 = scmp.eq.s32.totalorder %s25, 0
    %p319 = por %p317, %p318
    %p320 = scmp.ne.s32.totalorder %s308, %s309
    %p321 = scmp.eq.s32.totalorder %s26, 1
    %p322 = por %p320, %p321
    %p324 = scmp.ne.s32.totalorder %s309, %s323
    %p325 = scmp.eq.s32.totalorder %s26, 0
    %p326 = por %p324, %p325
    %s327 = ssub.s32 %s20, %s27
    %p328 = scmp.eq.s32.totalorder %s327, 0
    %s330 = sadd.s32 %s329, 1
    %s331 = scalar_select %p328, %s329, %s330
    %p334 = pneg %p328
    %p335 = scmp.eq.s32.totalorder %s20, 1
    %p336 = por %p334, %p335
    %p337 = scmp.ne.s32.totalorder %s329, %s332
    %p338 = scmp.eq.s32.totalorder %s20, 0
    %p339 = por %p337, %p338
    %p340 = scmp.ne.s32.totalorder %s329, %s332
    %p341 = scmp.eq.s32.totalorder %s25, 1
    %p342 = por %p340, %p341
    %p343 = scmp.ne.s32.totalorder %s332, %s333
    %p344 = scmp.eq.s32.totalorder %s25, 0
    %p345 = por %p343, %p344
    %p346 = scmp.ne.s32.totalorder %s332, %s333
    %p347 = scmp.eq.s32.totalorder %s26, 1
    %p348 = por %p346, %p347
    %p350 = scmp.ne.s32.totalorder %s333, %s349
    %p351 = scmp.eq.s32.totalorder %s26, 0
    %p352 = por %p350, %p351
    %p353 = scmp.le.s32.totalorder 1, %s20
    %p354 = scmp.lt.s32.totalorder %s20, 3
    %p355 = pnand %p353, %p354
    %p356 = pneg %p355
    // Predicated region
    $region9: #{mrkgcn_forward.4} parent=5 // pred_check
      _
    $region10: #{mrkgcn_forward.4} parent=5 // pred_check_branch
      %358 = sbr.rel (%p355) target = $region12
    $region11: #{mrkgcn_forward.4} parent=5 // pred_region
      %s359 = ssub.s32 %s20, 1
      // Predicated region
      $region13: #{mrkgcn_forward.4} parent=11 // pred_check
        %p360 = pneg %p67
      $region14: #{mrkgcn_forward.4} parent=11 // pred_check_branch
        %362 = sbr.rel (%p360) target = $region16
      $region15: #{mrkgcn_forward.4} parent=11 // pred_region
        _
      $region16: #{mrkgcn_forward.4} parent=11 // pred_fallthru
        _
      // Predicated region
      $region17: #{mrkgcn_forward.4} parent=11 // pred_check
        %p363 = pneg %p88
      $region18: #{mrkgcn_forward.4} parent=11 // pred_check_branch
        %365 = sbr.rel (%p363) target = $region20
      $region19: #{mrkgcn_forward.4} parent=11 // pred_region
        _
      $region20: #{mrkgcn_forward.4} parent=11 // pred_fallthru
        _
      // Predicated region
      $region21: #{mrkgcn_forward.4} parent=11 // pred_check
        %p366 = pneg %p109
      $region22: #{mrkgcn_forward.4} parent=11 // pred_check_branch
        %368 = sbr.rel (%p366) target = $region24
      $region23: #{mrkgcn_forward.4} parent=11 // pred_region
        _
      $region24: #{mrkgcn_forward.4} parent=11 // pred_fallthru
        _
      // Predicated region
      $region25: #{mrkgcn_forward.4} parent=11 // pred_check
        %p369 = pneg %p130
      $region26: #{mrkgcn_forward.4} parent=11 // pred_check_branch
        %371 = sbr.rel (%p369) target = $region28
      $region27: #{mrkgcn_forward.4} parent=11 // pred_region
        _
      $region28: #{mrkgcn_forward.4} parent=11 // pred_fallthru
        _
      // Predicated region
      $region29: #{mrkgcn_forward.4} parent=11 // pred_check
        %p372 = pneg %p151
      $region30: #{mrkgcn_forward.4} parent=11 // pred_check_branch
        %374 = sbr.rel (%p372) target = $region32
      $region31: #{mrkgcn_forward.4} parent=11 // pred_region
        _
      $region32: #{mrkgcn_forward.4} parent=11 // pred_fallthru
        _
      // Predicated region
      $region33: #{mrkgcn_forward.4} parent=11 // pred_check
        %p375 = pneg %p172
      $region34: #{mrkgcn_forward.4} parent=11 // pred_check_branch
        %377 = sbr.rel (%p375) target = $region36
      $region35: #{mrkgcn_forward.4} parent=11 // pred_region
        _
      $region36: #{mrkgcn_forward.4} parent=11 // pred_fallthru
        _
      // Predicated region
      $region37: #{mrkgcn_forward.4} parent=11 // pred_check
        %p378 = pneg %p193
      $region38: #{mrkgcn_forward.4} parent=11 // pred_check_branch
        %380 = sbr.rel (%p378) target = $region40
      $region39: #{mrkgcn_forward.4} parent=11 // pred_region
        _
      $region40: #{mrkgcn_forward.4} parent=11 // pred_fallthru
        _
      // Predicated region
      $region41: #{mrkgcn_forward.4} parent=11 // pred_check
        %p381 = pneg %p214
      $region42: #{mrkgcn_forward.4} parent=11 // pred_check_branch
        %383 = sbr.rel (%p381) target = $region44
      $region43: #{mrkgcn_forward.4} parent=11 // pred_region
        _
      $region44: #{mrkgcn_forward.4} parent=11 // pred_fallthru
        _
      // Predicated region
      $region45: #{mrkgcn_forward.4} parent=11 // pred_check
        %p384 = pneg %p235
      $region46: #{mrkgcn_forward.4} parent=11 // pred_check_branch
        %386 = sbr.rel (%p384) target = $region48
      $region47: #{mrkgcn_forward.4} parent=11 // pred_region
        _
      $region48: #{mrkgcn_forward.4} parent=11 // pred_fallthru
        _
      // Predicated region
      $region49: #{mrkgcn_forward.4} parent=11 // pred_check
        %p387 = pneg %p256
      $region50: #{mrkgcn_forward.4} parent=11 // pred_check_branch
        %389 = sbr.rel (%p387) target = $region52
      $region51: #{mrkgcn_forward.4} parent=11 // pred_region
        _
      $region52: #{mrkgcn_forward.4} parent=11 // pred_fallthru
        _
      // Predicated region
      $region53: #{mrkgcn_forward.4} parent=11 // pred_check
        %p390 = pneg %p277
      $region54: #{mrkgcn_forward.4} parent=11 // pred_check_branch
        %392 = sbr.rel (%p390) target = $region56
      $region55: #{mrkgcn_forward.4} parent=11 // pred_region
        _
      $region56: #{mrkgcn_forward.4} parent=11 // pred_fallthru
        _
      // Predicated region
      $region57: #{mrkgcn_forward.4} parent=11 // pred_check
        %p393 = pneg %p298
      $region58: #{mrkgcn_forward.4} parent=11 // pred_check_branch
        %395 = sbr.rel (%p393) target = $region60
      $region59: #{mrkgcn_forward.4} parent=11 // pred_region
        _
      $region60: #{mrkgcn_forward.4} parent=11 // pred_fallthru
        _
      // Predicated region
      $region61: #{mrkgcn_forward.4} parent=11 // pred_check
        %p396 = pneg %p319
      $region62: #{mrkgcn_forward.4} parent=11 // pred_check_branch
        %398 = sbr.rel (%p396) target = $region64
      $region63: #{mrkgcn_forward.4} parent=11 // pred_region
        _
      $region64: #{mrkgcn_forward.4} parent=11 // pred_fallthru
        _
    $region12: #{mrkgcn_forward.4} parent=5 // pred_fallthru
      _
    %p399 = scmp.lt.s32.totalorder %s20, 2
    // Predicated region
    $region65: #{mrkgcn_forward.4} parent=5 // pred_check
      %p400 = pneg %p399
    $region66: #{mrkgcn_forward.4} parent=5 // pred_check_branch
      %402 = sbr.rel (%p400) target = $region68
    $region67: #{mrkgcn_forward.4} parent=5 // pred_region
      // Predicated region
      $region69: #{mrkgcn_forward.4} parent=67 // pred_check
        %p403 = pneg %p40
      $region70: #{mrkgcn_forward.4} parent=67 // pred_check_branch
        %405 = sbr.rel (%p403) target = $region72
      $region71: #{mrkgcn_forward.4} parent=67 // pred_region
        %s406 = smul.u32 12, %s20
        %p407 = scmp.lt.s32.totalorder %s406, 23
        %s408 = scalar_select %p407, %s406, 23
        %s409 = smul.addr %s408, 8
        %s410 = scalar_lea.vmem %s0, %s409
        %s411 = smul.u32 12, %s20
      $region72: #{mrkgcn_forward.4} parent=67 // pred_fallthru
        _
    $region68: #{mrkgcn_forward.4} parent=5 // pred_fallthru
      _
    %p412 = scmp.le.s32.totalorder 1, %s20
    %p413 = scmp.lt.s32.totalorder %s20, 3
    %p414 = pnand %p412, %p413
    %p415 = pneg %p414
    // Predicated region
    $region73: #{mrkgcn_forward.4} parent=5 // pred_check
      _
    $region74: #{mrkgcn_forward.4} parent=5 // pred_check_branch
      %417 = sbr.rel (%p414) target = $region76
    $region75: #{mrkgcn_forward.4} parent=5 // pred_region
      %s418 = ssub.s32 %s20, 1
      %s419 = smul.u32 12, %s25
      %p420 = scmp.lt.s32.totalorder %s419, 23
      %s421 = scalar_select %p420, %s419, 23
      %s422 = smul.addr %s421, 8
      %s423 = scalar_lea.vmem %s0, %s422
      %p424 = pneg %p46
      %p425 = pneg %p43
      %p426 = pneg %p67
      %p427 = pneg %p64
      %p428 = pneg %p88
      %p429 = pneg %p85
      %p430 = pneg %p109
      %p431 = pneg %p106
      %p432 = pneg %p130
      %p433 = pneg %p127
      %p434 = pneg %p151
      %p435 = pneg %p148
      %p436 = pneg %p172
      %p437 = pneg %p169
      %p438 = pneg %p193
      %p439 = pneg %p190
      %p440 = pneg %p214
      %p441 = pneg %p211
      %p442 = pneg %p235
      %p443 = pneg %p232
      %p444 = pneg %p256
      %p445 = pneg %p253
      %p446 = pneg %p277
      %p447 = pneg %p274
      %p448 = pneg %p298
      %p449 = pneg %p295
      %p450 = pneg %p319
      %p451 = pneg %p316
      %p452 = pneg %p345
      %p453 = pneg %p342
      %p454 = scmp.lt.s32.totalorder %s25, 1
      %s455 = scalar_select %p454, %s25, 1
      %s456 = smul.addr %s455, 8
      %s457 = scalar_lea.vmem %s14, %s456
      %s458 = smul.u32 12, %s25
      %p459 = scmp.lt.s32.totalorder %s458, 23
      %s460 = scalar_select %p459, %s458, 23
      %s461 = smul.addr %s460, 8
      %s462 = scalar_lea.vmem %s0, %s461
      %s463 = smul.u32 12, %s25
      %p464 = scmp.lt.s32.totalorder %s25, 1
      %s465 = scalar_select %p464, %s25, 1
      %s466 = smul.addr %s465, 8
      %s467 = scalar_lea.vmem %s14, %s466
      %v469 = vld [vmem:[%s462] sm:$0xff]
      %v470 = vld [vmem:[%s462 + $0x8] sm:$0xff]
      %v471 = vld [vmem:[%s462 + $0x10] sm:$0xff]
      %v472 = vld [vmem:[%s462 + $0x18] sm:$0xff]
      %v473 = vld [vmem:[%s462 + $0x20] sm:$0xff]
      %v474 = vld [vmem:[%s462 + $0x28] sm:$0xff]
      %v475 = vld [vmem:[%s462 + $0x30] sm:$0xff]
      %v476 = vld [vmem:[%s462 + $0x38] sm:$0xff]
      %v477 = vld [vmem:[%s462 + $0x40] sm:$0xff]
      %v478 = vld [vmem:[%s462 + $0x48] sm:$0xff]
      %v479 = vld [vmem:[%s462 + $0x50] sm:$0xff]
      %v480 = vld [vmem:[%s462 + $0x58] sm:$0xff]
      %v481 = vld [vmem:[%s1] sm:$0xff]
      %v482 = vld [vmem:[%s1 + $0x8] sm:$0xff]
      %v483 = vld [vmem:[%s1 + $0x10] sm:$0xff]
      %v484 = vld [vmem:[%s1 + $0x18] sm:$0xff]
      %v485 = vld [vmem:[%s1 + $0x20] sm:$0xff]
      %v486 = vld [vmem:[%s1 + $0x28] sm:$0xff]
      %v487 = vld [vmem:[%s1 + $0x30] sm:$0xff]
      %v488 = vld [vmem:[%s1 + $0x38] sm:$0xff]
      %v489 = vld [vmem:[%s1 + $0x40] sm:$0xff]
      %v490 = vld [vmem:[%s1 + $0x48] sm:$0xff]
      %v491 = vld [vmem:[%s1 + $0x50] sm:$0xff]
      %v492 = vld [vmem:[%s1 + $0x58] sm:$0xff]
      %v493 = vld [vmem:[%s2] sm:$0xff]
      %v494 = vld [vmem:[%s2 + $0x8] sm:$0xff]
      %v495 = vld [vmem:[%s2 + $0x10] sm:$0xff]
      %v496 = vld [vmem:[%s2 + $0x18] sm:$0xff]
      %v497 = vld [vmem:[%s2 + $0x20] sm:$0xff]
      %v498 = vld [vmem:[%s2 + $0x28] sm:$0xff]
      %v499 = vld [vmem:[%s2 + $0x30] sm:$0xff]
      %v500 = vld [vmem:[%s2 + $0x38] sm:$0xff]
      %v501 = vld [vmem:[%s2 + $0x40] sm:$0xff]
      %v502 = vld [vmem:[%s2 + $0x48] sm:$0xff]
      %v503 = vld [vmem:[%s2 + $0x50] sm:$0xff]
      %v504 = vld [vmem:[%s2 + $0x58] sm:$0xff]
      %v505 = vld [vmem:[%s2 + $0x60] sm:$0xff]
      %v506 = vld [vmem:[%s2 + $0x68] sm:$0xff]
      %v507 = vld [vmem:[%s2 + $0x70] sm:$0xff]
      %v508 = vld [vmem:[%s2 + $0x78] sm:$0xff]
      %v509 = vpack.c.bf16 %v470, %v469
      %v510 = vpack.c.bf16 %v472, %v471
      %v511 = vpack.c.bf16 %v474, %v473
      %v512 = vpack.c.bf16 %v476, %v475
      %v513 = vpack.c.bf16 %v478, %v477
      %v514 = vpack.c.bf16 %v480, %v479
      %v515 = vpack.c.bf16 %v495, %v493
      %v516 = vpack.c.bf16 %v496, %v494
      %v517 = vpack.c.bf16 %v499, %v497
      %v518 = vpack.c.bf16 %v500, %v498
      %v519 = vpack.c.bf16 %v503, %v501
      %v520 = vpack.c.bf16 %v504, %v502
      %v521 = vpack.c.bf16 %v507, %v505
      %v522 = vpack.c.bf16 %v508, %v506
      %v523 = vld [vmem:[%s3] sm:$0x3]
      %v525 = vlaneseq
      %v526 = vshrl.u32 %v525, 7
      %v527 = vsub.s32 0, %v526
      %v528 = vrot.slane %v523, %v527
      %v529 = vlaneseq
      %v530 = vshrl.u32 %v529, 7
      %v531 = vsub.s32 1, %v530
      %v532 = vrot.slane %v523, %v531
      %vm535 = vcmask 523264
      %v537 = vsel %vm535, %v509, 0
      %v540 = vsel %vm535, %v510, 0
      %v543 = vsel %vm535, %v511, 0
      %v546 = vsel %vm535, %v512, 0
      %v549 = vsel %vm535, %v513, 0
      %v552 = vsel %vm535, %v514, 0
      %554 = vmatprep.subr.bf16.mxu0 %v516
      %555 = vmatpush1.bf16.msra.mxu0 %v515
      %556 = vmatprep.subr.bf16.mxu0 %v518
      %557 = vmatpush1.bf16.msra.mxu0 %v517
      %558 = vmatprep.subr.bf16.mxu0 %v520
      %559 = vmatpush1.bf16.msra.mxu0 %v519
      %560 = vmatprep.subr.bf16.mxu0 %v522
      %561 = vmatpush1.bf16.msra.mxu0 %v521
      %562 = vmatprep.subr.bf16.mxu0 0
      %563 = vmatpush1.bf16.msra.mxu0 0
      %564 = vmatprep.subr.bf16.mxu0 0
      %565 = vmatpush1.bf16.msra.mxu0 0
      %566 = vmatprep.subr.bf16.mxu0 0
      %567 = vmatpush1.bf16.msra.mxu0 0
      %568 = vmatprep.subr.bf16.mxu0 0
      %569 = vmatpush1.bf16.msra.mxu0 0
      %570 = vmatprep.subr.bf16.mxu0 0
      %571 = vmatpush1.bf16.msra.mxu0 0
      %572 = vmatprep.subr.bf16.mxu0 0
      %573 = vmatpush1.bf16.msra.mxu0 0
      %574 = vmatprep.subr.bf16.mxu0 0
      %575 = vmatpush1.bf16.msra.mxu0 0
      %576 = vmatprep.subr.bf16.mxu0 0
      %577 = vmatpush1.bf16.msra.mxu0 0
      %578 = vmatprep.subr.bf16.mxu0 0
      %579 = vmatpush1.bf16.msra.mxu0 0
      %580 = vmatprep.subr.bf16.mxu0 0
      %581 = vmatpush1.bf16.msra.mxu0 0
      %582 = vmatprep.subr.bf16.mxu0 0
      %583 = vmatpush1.bf16.msra.mxu0 0
      %584 = vmatprep.subr.bf16.mxu0 0
      %585 = vmatpush1.bf16.msra.mxu0 0
      %586 = vmatprep.mubr.bf16.mxu0 0
      %587 = vmatmul.mubr.bf16.gmra.mrb[0].mxu0 %v537
      %v588 = vpop.f32.mrb[0].mxu0
      %v589 = vadd.f32 %v528, %v588
      %v590 = vpop.f32.mrb[0].mxu0
      %v591 = vadd.f32 %v532, %v590
      %v592 = vpop.f32.mrb[0].mxu0
      %v593 = vadd.f32 %v528, %v592
      %v594 = vpop.f32.mrb[0].mxu0
      %v595 = vadd.f32 %v532, %v594
      %596 = vmatprep.mubr.bf16.mxu0 0
      %597 = vmatmul.mubr.bf16.gmra.mrb[0].mxu0 %v540
      %v598 = vpop.f32.mrb[0].mxu0
      %v599 = vadd.f32 %v528, %v598
      %v600 = vpop.f32.mrb[0].mxu0
      %v601 = vadd.f32 %v532, %v600
      %v602 = vpop.f32.mrb[0].mxu0
      %v603 = vadd.f32 %v528, %v602
      %v604 = vpop.f32.mrb[0].mxu0
      %v605 = vadd.f32 %v532, %v604
      %606 = vmatprep.mubr.bf16.mxu0 0
      %607 = vmatmul.mubr.bf16.gmra.mrb[0].mxu0 %v543
      %v608 = vpop.f32.mrb[0].mxu0
      %v609 = vadd.f32 %v528, %v608
      %v610 = vpop.f32.mrb[0].mxu0
      %v611 = vadd.f32 %v532, %v610
      %v612 = vpop.f32.mrb[0].mxu0
      %v613 = vadd.f32 %v528, %v612
      %v614 = vpop.f32.mrb[0].mxu0
      %v615 = vadd.f32 %v532, %v614
      %616 = vmatprep.mubr.bf16.mxu0 0
      %617 = vmatmul.mubr.bf16.gmra.mrb[0].mxu0 %v546
      %v618 = vpop.f32.mrb[0].mxu0
      %v619 = vadd.f32 %v528, %v618
      %v620 = vpop.f32.mrb[0].mxu0
      %v621 = vadd.f32 %v532, %v620
      %v622 = vpop.f32.mrb[0].mxu0
      %v623 = vadd.f32 %v528, %v622
      %v624 = vpop.f32.mrb[0].mxu0
      %v625 = vadd.f32 %v532, %v624
      %626 = vmatprep.mubr.bf16.mxu0 0
      %627 = vmatmul.mubr.bf16.gmra.mrb[0].mxu0 %v549
      %v628 = vpop.f32.mrb[0].mxu0
      %v629 = vadd.f32 %v528, %v628
      %v630 = vpop.f32.mrb[0].mxu0
      %v631 = vadd.f32 %v532, %v630
      %v632 = vpop.f32.mrb[0].mxu0
      %v633 = vadd.f32 %v528, %v632
      %v634 = vpop.f32.mrb[0].mxu0
      %v635 = vadd.f32 %v532, %v634
      %636 = vmatprep.mubr.bf16.mxu0 0
      %637 = vmatmul.mubr.bf16.gmra.mrb[0].mxu0 %v552
      %v638 = vpop.f32.mrb[0].mxu0
      %v639 = vadd.f32 %v528, %v638
      %v640 = vpop.f32.mrb[0].mxu0
      %v641 = vadd.f32 %v532, %v640
      %v642 = vpop.f32.mrb[0].mxu0
      %v643 = vadd.f32 %v528, %v642
      %v644 = vpop.f32.mrb[0].mxu0
      %v645 = vadd.f32 %v532, %v644
      %646 = vdwg.mxu0
      %v647 = vpack.c.bf16 %v593, %v589
      %v648 = vpack.c.bf16 %v603, %v599
      %v649 = vpack.c.bf16 %v613, %v609
      %v650 = vpack.c.bf16 %v623, %v619
      %v651 = vpack.c.bf16 %v633, %v629
      %v652 = vpack.c.bf16 %v643, %v639
      %659 = vrot.lane.b32.xlu0 %v647, 64
      %v660 = vpop.permute.xlu0 %659
      %661 = vrot.lane.b32.xlu0 %v648, 64
      %v662 = vpop.permute.xlu0 %661
      %663 = vrot.lane.b32.xlu0 %v649, 64
      %v664 = vpop.permute.xlu0 %663
      %665 = vrot.lane.b32.xlu0 %v650, 64
      %v666 = vpop.permute.xlu0 %665
      %667 = vrot.lane.b32.xlu0 %v651, 64
      %v668 = vpop.permute.xlu0 %667
      %669 = vrot.lane.b32.xlu0 %v652, 64
      %v670 = vpop.permute.xlu0 %669
      %vm671 = vcmask 64512
      %v673 = vsel %vm671, %v647, 0
      %v676 = vsel %vm671, %v648, 0
      %v679 = vsel %vm671, %v649, 0
      %v682 = vsel %vm671, %v650, 0
      %v685 = vsel %vm671, %v651, 0
      %v688 = vsel %vm671, %v652, 0
      %v691 = vsel %vm671, %v660, 0
      %v694 = vsel %vm671, %v662, 0
      %v697 = vsel %vm671, %v664, 0
      %v700 = vsel %vm671, %v666, 0
      %v703 = vsel %vm671, %v668, 0
      %v706 = vsel %vm671, %v670, 0
      %708 = vmatprep.subr.bf16.mxu0 0
      %709 = vmatpush1.bf16.xpose.msra.mxu0 %v691
      %710 = vmatprep.subr.bf16.mxu0 0
      %711 = vmatpush1.bf16.xpose.msra.mxu0 %v694
      %712 = vmatprep.subr.bf16.mxu0 0
      %713 = vmatpush1.bf16.xpose.msra.mxu0 %v697
      %714 = vmatprep.subr.bf16.mxu0 0
      %715 = vmatpush1.bf16.xpose.msra.mxu0 %v700
      %716 = vmatprep.subr.bf16.mxu0 0
      %717 = vmatpush1.bf16.xpose.msra.mxu0 %v703
      %718 = vmatprep.subr.bf16.mxu0 0
      %719 = vmatpush1.bf16.xpose.msra.mxu0 %v706
      %720 = vmatprep.subr.bf16.mxu0 0
      %721 = vmatpush1.bf16.xpose.msra.mxu0 0
      %722 = vmatprep.subr.bf16.mxu0 0
      %723 = vmatpush1.bf16.xpose.msra.mxu0 0
      %724 = vmatprep.subr.bf16.mxu0 0
      %725 = vmatpush1.bf16.xpose.msra.mxu0 0
      %726 = vmatprep.subr.bf16.mxu0 0
      %727 = vmatpush1.bf16.xpose.msra.mxu0 0
      %728 = vmatprep.subr.bf16.mxu0 0
      %729 = vmatpush1.bf16.xpose.msra.mxu0 0
      %730 = vmatprep.subr.bf16.mxu0 0
      %731 = vmatpush1.bf16.xpose.msra.mxu0 0
      %732 = vmatprep.subr.bf16.mxu0 0
      %733 = vmatpush1.bf16.xpose.msra.mxu0 0
      %734 = vmatprep.subr.bf16.mxu0 0
      %735 = vmatpush1.bf16.xpose.msra.mxu0 0
      %736 = vmatprep.subr.bf16.mxu0 0
      %737 = vmatpush1.bf16.xpose.msra.mxu0 0
      %738 = vmatprep.subr.bf16.mxu0 0
      %739 = vmatpush1.bf16.xpose.msra.mxu0 0
      %740 = vmatprep.mubr.bf16.mxu0 0
      %741 = vmatmul.mubr.bf16.gmra.mrb[0].mxu0 %v673
      %v742 = vpop.f32.mrb[0].mxu0
      %v743 = vadd.f32 0.0, %v742
      %v744 = vpop.f32.mrb[0].mxu0
      %v745 = vpop.f32.mrb[0].mxu0
      %v746 = vadd.f32 0.0, %v745
      %v747 = vpop.f32.mrb[0].mxu0
      %748 = vmatprep.mubr.bf16.mxu0 0
      %749 = vmatmul.mubr.bf16.gmra.mrb[0].mxu0 %v676
      %v750 = vpop.f32.mrb[0].mxu0
      %v751 = vadd.f32 0.0, %v750
      %v752 = vpop.f32.mrb[0].mxu0
      %v753 = vpop.f32.mrb[0].mxu0
      %v754 = vadd.f32 0.0, %v753
      %v755 = vpop.f32.mrb[0].mxu0
      %756 = vmatprep.mubr.bf16.mxu0 0
      %757 = vmatmul.mubr.bf16.gmra.mrb[0].mxu0 %v679
      %v758 = vpop.f32.mrb[0].mxu0
      %v759 = vadd.f32 0.0, %v758
      %v760 = vpop.f32.mrb[0].mxu0
      %v761 = vpop.f32.mrb[0].mxu0
      %v762 = vadd.f32 0.0, %v761
      %v763 = vpop.f32.mrb[0].mxu0
      %764 = vmatprep.mubr.bf16.mxu0 0
      %765 = vmatmul.mubr.bf16.gmra.mrb[0].mxu0 %v682
      %v766 = vpop.f32.mrb[0].mxu0
      %v767 = vadd.f32 0.0, %v766
      %v768 = vpop.f32.mrb[0].mxu0
      %v769 = vpop.f32.mrb[0].mxu0
      %v770 = vadd.f32 0.0, %v769
      %v771 = vpop.f32.mrb[0].mxu0
      %772 = vmatprep.mubr.bf16.mxu0 0
      %773 = vmatmul.mubr.bf16.gmra.mrb[0].mxu0 %v685
      %v774 = vpop.f32.mrb[0].mxu0
      %v775 = vadd.f32 0.0, %v774
      %v776 = vpop.f32.mrb[0].mxu0
      %v777 = vpop.f32.mrb[0].mxu0
      %v778 = vadd.f32 0.0, %v777
      %v779 = vpop.f32.mrb[0].mxu0
      %780 = vmatprep.mubr.bf16.mxu0 0
      %781 = vmatmul.mubr.bf16.gmra.mrb[0].mxu0 %v688
      %v782 = vpop.f32.mrb[0].mxu0
      %v783 = vadd.f32 0.0, %v782
      %v784 = vpop.f32.mrb[0].mxu0
      %v785 = vpop.f32.mrb[0].mxu0
      %v786 = vadd.f32 0.0, %v785
      %v787 = vpop.f32.mrb[0].mxu0
      %788 = vdwg.mxu0
      %v789 = vmul.f32 %v743, 0.35355338
      %v790 = vmul.f32 %v746, 0.35355338
      %v791 = vmul.f32 %v751, 0.35355338
      %v792 = vmul.f32 %v754, 0.35355338
      %v793 = vmul.f32 %v759, 0.35355338
      %v794 = vmul.f32 %v762, 0.35355338
      %v795 = vmul.f32 %v767, 0.35355338
      %v796 = vmul.f32 %v770, 0.35355338
      %v797 = vmul.f32 %v775, 0.35355338
      %v798 = vmul.f32 %v778, 0.35355338
      %v799 = vmul.f32 %v783, 0.35355338
      %v800 = vmul.f32 %v786, 0.35355338
      %v801 = vadd.f32 %v789, %v481
      %v802 = vadd.f32 %v790, %v482
      %v803 = vadd.f32 %v791, %v483
      %v804 = vadd.f32 %v792, %v484
      %v805 = vadd.f32 %v793, %v485
      %v806 = vadd.f32 %v794, %v486
      %v807 = vadd.f32 %v795, %v487
      %v808 = vadd.f32 %v796, %v488
      %v809 = vadd.f32 %v797, %v489
      %v810 = vadd.f32 %v798, %v490
      %v811 = vadd.f32 %v799, %v491
      %v812 = vadd.f32 %v800, %v492
      %vm813 = vcmask 785408
      %v814 = vsel %vm813, %v801, -inf
      %815 = vmax.xlane.f32.xlu0 %v814
      %v816 = vpop.xlane.xlu0 %815
      %v817 = vsel %vm813, %v802, -inf
      %818 = vmax.xlane.f32.xlu0 %v817
      %v819 = vpop.xlane.xlu0 %818
      %v820 = vsel %vm813, %v803, -inf
      %821 = vmax.xlane.f32.xlu0 %v820
      %v822 = vpop.xlane.xlu0 %821
      %v823 = vsel %vm813, %v804, -inf
      %824 = vmax.xlane.f32.xlu0 %v823
      %v825 = vpop.xlane.xlu0 %824
      %v826 = vsel %vm813, %v805, -inf
      %827 = vmax.xlane.f32.xlu0 %v826
      %v828 = vpop.xlane.xlu0 %827
      %v829 = vsel %vm813, %v806, -inf
      %830 = vmax.xlane.f32.xlu0 %v829
      %v831 = vpop.xlane.xlu0 %830
      %v832 = vsel %vm813, %v807, -inf
      %833 = vmax.xlane.f32.xlu0 %v832
      %v834 = vpop.xlane.xlu0 %833
      %v835 = vsel %vm813, %v808, -inf
      %836 = vmax.xlane.f32.xlu0 %v835
      %v837 = vpop.xlane.xlu0 %836
      %v838 = vsel %vm813, %v809, -inf
      %839 = vmax.xlane.f32.xlu0 %v838
      %v840 = vpop.xlane.xlu0 %839
      %v841 = vsel %vm813, %v810, -inf
      %842 = vmax.xlane.f32.xlu0 %v841
      %v843 = vpop.xlane.xlu0 %842
      %v844 = vsel %vm813, %v811, -inf
      %845 = vmax.xlane.f32.xlu0 %v844
      %v846 = vpop.xlane.xlu0 %845
      %v847 = vsel %vm813, %v812, -inf
      %848 = vmax.xlane.f32.xlu0 %v847
      %v849 = vpop.xlane.xlu0 %848
      %v850 = vsub.f32 %v801, %v816
      %v851 = vsub.f32 %v802, %v819
      %v852 = vsub.f32 %v803, %v822
      %v853 = vsub.f32 %v804, %v825
      %v854 = vsub.f32 %v805, %v828
      %v855 = vsub.f32 %v806, %v831
      %v856 = vsub.f32 %v807, %v834
      %v857 = vsub.f32 %v808, %v837
      %v858 = vsub.f32 %v809, %v840
      %v859 = vsub.f32 %v810, %v843
      %v860 = vsub.f32 %v811, %v846
      %v861 = vsub.f32 %v812, %v849
      %v862 = vmul.f32 %v850, 1.442695
      %v863 = vpow.pop %v862
      %v864 = vmul.f32 %v851, 1.442695
      %v865 = vpow.pop %v864
      %v866 = vmul.f32 %v852, 1.442695
      %v867 = vpow.pop %v866
      %v868 = vmul.f32 %v853, 1.442695
      %v869 = vpow.pop %v868
      %v870 = vmul.f32 %v854, 1.442695
      %v871 = vpow.pop %v870
      %v872 = vmul.f32 %v855, 1.442695
      %v873 = vpow.pop %v872
      %v874 = vmul.f32 %v856, 1.442695
      %v875 = vpow.pop %v874
      %v876 = vmul.f32 %v857, 1.442695
      %v877 = vpow.pop %v876
      %v878 = vmul.f32 %v858, 1.442695
      %v879 = vpow.pop %v878
      %v880 = vmul.f32 %v859, 1.442695
      %v881 = vpow.pop %v880
      %v882 = vmul.f32 %v860, 1.442695
      %v883 = vpow.pop %v882
      %v884 = vmul.f32 %v861, 1.442695
      %v885 = vpow.pop %v884
      %v886 = vsel %vm813, %v863, 0.0
      %887 = vadd.xlane.f32.xlu0 %v886
      %v888 = vpop.xlane.xlu0 %887
      %v889 = vsel %vm813, %v865, 0.0
      %890 = vadd.xlane.f32.xlu0 %v889
      %v891 = vpop.xlane.xlu0 %890
      %v892 = vsel %vm813, %v867, 0.0
      %893 = vadd.xlane.f32.xlu0 %v892
      %v894 = vpop.xlane.xlu0 %893
      %v895 = vsel %vm813, %v869, 0.0
      %896 = vadd.xlane.f32.xlu0 %v895
      %v897 = vpop.xlane.xlu0 %896
      %v898 = vsel %vm813, %v871, 0.0
      %899 = vadd.xlane.f32.xlu0 %v898
      %v900 = vpop.xlane.xlu0 %899
      %v901 = vsel %vm813, %v873, 0.0
      %902 = vadd.xlane.f32.xlu0 %v901
      %v903 = vpop.xlane.xlu0 %902
      %v904 = vsel %vm813, %v875, 0.0
      %905 = vadd.xlane.f32.xlu0 %v904
      %v906 = vpop.xlane.xlu0 %905
      %v907 = vsel %vm813, %v877, 0.0
      %908 = vadd.xlane.f32.xlu0 %v907
      %v909 = vpop.xlane.xlu0 %908
      %v910 = vsel %vm813, %v879, 0.0
      %911 = vadd.xlane.f32.xlu0 %v910
      %v912 = vpop.xlane.xlu0 %911
      %v913 = vsel %vm813, %v881, 0.0
      %914 = vadd.xlane.f32.xlu0 %v913
      %v915 = vpop.xlane.xlu0 %914
      %v916 = vsel %vm813, %v883, 0.0
      %917 = vadd.xlane.f32.xlu0 %v916
      %v918 = vpop.xlane.xlu0 %917
      %v919 = vsel %vm813, %v885, 0.0
      %920 = vadd.xlane.f32.xlu0 %v919
      %v921 = vpop.xlane.xlu0 %920
      %v922 = vrcp.pop %v888
      %v923 = vrcp.pop %v891
      %v924 = vrcp.pop %v894
      %v925 = vrcp.pop %v897
      %v926 = vrcp.pop %v900
      %v927 = vrcp.pop %v903
      %v928 = vrcp.pop %v906
      %v929 = vrcp.pop %v909
      %v930 = vrcp.pop %v912
      %v931 = vrcp.pop %v915
      %v932 = vrcp.pop %v918
      %v933 = vrcp.pop %v921
      %v934 = vmul.f32 %v863, %v922
      %v935 = vmul.f32 %v865, %v923
      %v936 = vmul.f32 %v867, %v924
      %v937 = vmul.f32 %v869, %v925
      %v938 = vmul.f32 %v871, %v926
      %v939 = vmul.f32 %v873, %v927
      %v940 = vmul.f32 %v875, %v928
      %v941 = vmul.f32 %v877, %v929
      %v942 = vmul.f32 %v879, %v930
      %v943 = vmul.f32 %v881, %v931
      %v944 = vmul.f32 %v883, %v932
      %v945 = vmul.f32 %v885, %v933
      %v946 = vpack.c.bf16 %v935, %v934
      %v947 = vpack.c.bf16 %v937, %v936
      %v948 = vpack.c.bf16 %v939, %v938
      %v949 = vpack.c.bf16 %v941, %v940
      %v950 = vpack.c.bf16 %v943, %v942
      %v951 = vpack.c.bf16 %v945, %v944
      %v952 = vpack.c.bf16 %v595, %v591
      %v953 = vpack.c.bf16 %v605, %v601
      %v954 = vpack.c.bf16 %v615, %v611
      %v955 = vpack.c.bf16 %v625, %v621
      %v956 = vpack.c.bf16 %v635, %v631
      %v957 = vpack.c.bf16 %v645, %v641
      %v959 = vsel %vm813, %v946, 0
      %v962 = vsel %vm813, %v947, 0
      %v965 = vsel %vm813, %v948, 0
      %v968 = vsel %vm813, %v949, 0
      %v971 = vsel %vm813, %v950, 0
      %v974 = vsel %vm813, %v951, 0
      %976 = vmatprep.subr.bf16.mxu0 0
      %977 = vmatpush1.bf16.msra.mxu0 %v952
      %978 = vmatprep.subr.bf16.mxu0 0
      %979 = vmatpush1.bf16.msra.mxu0 %v953
      %980 = vmatprep.subr.bf16.mxu0 0
      %981 = vmatpush1.bf16.msra.mxu0 %v954
      %982 = vmatprep.subr.bf16.mxu0 0
      %983 = vmatpush1.bf16.msra.mxu0 %v955
      %984 = vmatprep.subr.bf16.mxu0 0
      %985 = vmatpush1.bf16.msra.mxu0 %v956
      %986 = vmatprep.subr.bf16.mxu0 0
      %987 = vmatpush1.bf16.msra.mxu0 %v957
      %988 = vmatprep.subr.bf16.mxu0 0
      %989 = vmatpush1.bf16.msra.mxu0 0
      %990 = vmatprep.subr.bf16.mxu0 0
      %991 = vmatpush1.bf16.msra.mxu0 0
      %992 = vmatprep.subr.bf16.mxu0 0
      %993 = vmatpush1.bf16.msra.mxu0 0
      %994 = vmatprep.subr.bf16.mxu0 0
      %995 = vmatpush1.bf16.msra.mxu0 0
      %996 = vmatprep.subr.bf16.mxu0 0
      %997 = vmatpush1.bf16.msra.mxu0 0
      %998 = vmatprep.subr.bf16.mxu0 0
      %999 = vmatpush1.bf16.msra.mxu0 0
      %1000 = vmatprep.subr.bf16.mxu0 0
      %1001 = vmatpush1.bf16.msra.mxu0 0
      %1002 = vmatprep.subr.bf16.mxu0 0
      %1003 = vmatpush1.bf16.msra.mxu0 0
      %1004 = vmatprep.subr.bf16.mxu0 0
      %1005 = vmatpush1.bf16.msra.mxu0 0
      %1006 = vmatprep.subr.bf16.mxu0 0
      %1007 = vmatpush1.bf16.msra.mxu0 0
      %1008 = vmatprep.mubr.bf16.mxu0 0
      %1009 = vmatmul.mubr.bf16.gmra.mrb[0].mxu0 %v959
      %v1010 = vpop.f32.mrb[0].mxu0
      %v1011 = vadd.f32 0.0, %v1010
      %v1012 = vpop.f32.mrb[0].mxu0
      %v1013 = vpop.f32.mrb[0].mxu0
      %v1014 = vadd.f32 0.0, %v1013
      %v1015 = vpop.f32.mrb[0].mxu0
      %1016 = vmatprep.mubr.bf16.mxu0 0
      %1017 = vmatmul.mubr.bf16.gmra.mrb[0].mxu0 %v962
      %v1018 = vpop.f32.mrb[0].mxu0
      %v1019 = vadd.f32 0.0, %v1018
      %v1020 = vpop.f32.mrb[0].mxu0
      %v1021 = vpop.f32.mrb[0].mxu0
      %v1022 = vadd.f32 0.0, %v1021
      %v1023 = vpop.f32.mrb[0].mxu0
      %1024 = vmatprep.mubr.bf16.mxu0 0
      %1025 = vmatmul.mubr.bf16.gmra.mrb[0].mxu0 %v965
      %v1026 = vpop.f32.mrb[0].mxu0
      %v1027 = vadd.f32 0.0, %v1026
      %v1028 = vpop.f32.mrb[0].mxu0
      %v1029 = vpop.f32.mrb[0].mxu0
      %v1030 = vadd.f32 0.0, %v1029
      %v1031 = vpop.f32.mrb[0].mxu0
      %1032 = vmatprep.mubr.bf16.mxu0 0
      %1033 = vmatmul.mubr.bf16.gmra.mrb[0].mxu0 %v968
      %v1034 = vpop.f32.mrb[0].mxu0
      %v1035 = vadd.f32 0.0, %v1034
      %v1036 = vpop.f32.mrb[0].mxu0
      %v1037 = vpop.f32.mrb[0].mxu0
      %v1038 = vadd.f32 0.0, %v1037
      %v1039 = vpop.f32.mrb[0].mxu0
      %1040 = vmatprep.mubr.bf16.mxu0 0
      %1041 = vmatmul.mubr.bf16.gmra.mrb[0].mxu0 %v971
      %v1042 = vpop.f32.mrb[0].mxu0
      %v1043 = vadd.f32 0.0, %v1042
      %v1044 = vpop.f32.mrb[0].mxu0
      %v1045 = vpop.f32.mrb[0].mxu0
      %v1046 = vadd.f32 0.0, %v1045
      %v1047 = vpop.f32.mrb[0].mxu0
      %1048 = vmatprep.mubr.bf16.mxu0 0
      %1049 = vmatmul.mubr.bf16.gmra.mrb[0].mxu0 %v974
      %v1050 = vpop.f32.mrb[0].mxu0
      %v1051 = vadd.f32 0.0, %v1050
      %v1052 = vpop.f32.mrb[0].mxu0
      %v1053 = vpop.f32.mrb[0].mxu0
      %v1054 = vadd.f32 0.0, %v1053
      %v1055 = vpop.f32.mrb[0].mxu0
      %1056 = vdwg.mxu0
      %1057 = vrot.lane.b32.xlu0 %v647, 120
      %v1058 = vpop.permute.xlu0 %1057
      %1059 = vrot.lane.b32.xlu0 %v648, 120
      %v1060 = vpop.permute.xlu0 %1059
      %1061 = vrot.lane.b32.xlu0 %v649, 120
      %v1062 = vpop.permute.xlu0 %1061
      %1063 = vrot.lane.b32.xlu0 %v650, 120
      %v1064 = vpop.permute.xlu0 %1063
      %1065 = vrot.lane.b32.xlu0 %v651, 120
      %v1066 = vpop.permute.xlu0 %1065
      %1067 = vrot.lane.b32.xlu0 %v652, 120
      %v1068 = vpop.permute.xlu0 %1067
      %1069 = vrot.lane.b32.xlu0 %v647, 56
      %v1070 = vpop.permute.xlu0 %1069
      %1071 = vrot.lane.b32.xlu0 %v648, 56
      %v1072 = vpop.permute.xlu0 %1071
      %1073 = vrot.lane.b32.xlu0 %v649, 56
      %v1074 = vpop.permute.xlu0 %1073
      %1075 = vrot.lane.b32.xlu0 %v650, 56
      %v1076 = vpop.permute.xlu0 %1075
      %1077 = vrot.lane.b32.xlu0 %v651, 56
      %v1078 = vpop.permute.xlu0 %1077
      %1079 = vrot.lane.b32.xlu0 %v652, 56
      %v1080 = vpop.permute.xlu0 %1079
      %v1082 = vsel %vm671, %v1058, 0
      %v1085 = vsel %vm671, %v1060, 0
      %v1088 = vsel %vm671, %v1062, 0
      %v1091 = vsel %vm671, %v1064, 0
      %v1094 = vsel %vm671, %v1066, 0
      %v1097 = vsel %vm671, %v1068, 0
      %v1100 = vsel %vm671, %v1070, 0
      %v1103 = vsel %vm671, %v1072, 0
      %v1106 = vsel %vm671, %v1074, 0
      %v1109 = vsel %vm671, %v1076, 0
      %v1112 = vsel %vm671, %v1078, 0
      %v1115 = vsel %vm671, %v1080, 0
      %1117 = vmatprep.subr.bf16.mxu0 0
      %1118 = vmatpush1.bf16.xpose.msra.mxu0 %v1100
      %1119 = vmatprep.subr.bf16.mxu0 0
      %1120 = vmatpush1.bf16.xpose.msra.mxu0 %v1103
      %1121 = vmatprep.subr.bf16.mxu0 0
      %1122 = vmatpush1.bf16.xpose.msra.mxu0 %v1106
      %1123 = vmatprep.subr.bf16.mxu0 0
      %1124 = vmatpush1.bf16.xpose.msra.mxu0 %v1109
      %1125 = vmatprep.subr.bf16.mxu0 0
      %1126 = vmatpush1.bf16.xpose.msra.mxu0 %v1112
      %1127 = vmatprep.subr.bf16.mxu0 0
      %1128 = vmatpush1.bf16.xpose.msra.mxu0 %v1115
      %1129 = vmatprep.subr.bf16.mxu0 0
      %1130 = vmatpush1.bf16.xpose.msra.mxu0 0
      %1131 = vmatprep.subr.bf16.mxu0 0
      %1132 = vmatpush1.bf16.xpose.msra.mxu0 0
      %1133 = vmatprep.subr.bf16.mxu0 0
      %1134 = vmatpush1.bf16.xpose.msra.mxu0 0
      %1135 = vmatprep.subr.bf16.mxu0 0
      %1136 = vmatpush1.bf16.xpose.msra.mxu0 0
      %1137 = vmatprep.subr.bf16.mxu0 0
      %1138 = vmatpush1.bf16.xpose.msra.mxu0 0
      %1139 = vmatprep.subr.bf16.mxu0 0
      %1140 = vmatpush1.bf16.xpose.msra.mxu0 0
      %1141 = vmatprep.subr.bf16.mxu0 0
      %1142 = vmatpush1.bf16.xpose.msra.mxu0 0
      %1143 = vmatprep.subr.bf16.mxu0 0
      %1144 = vmatpush1.bf16.xpose.msra.mxu0 0
      %1145 = vmatprep.subr.bf16.mxu0 0
      %1146 = vmatpush1.bf16.xpose.msra.mxu0 0
      %1147 = vmatprep.subr.bf16.mxu0 0
      %1148 = vmatpush1.bf16.xpose.msra.mxu0 0
      %1149 = vmatprep.mubr.bf16.mxu0 0
      %1150 = vmatmul.mubr.bf16.gmra.mrb[0].mxu0 %v1082
      %v1151 = vpop.f32.mrb[0].mxu0
      %v1152 = vadd.f32 0.0, %v1151
      %v1153 = vpop.f32.mrb[0].mxu0
      %v1154 = vpop.f32.mrb[0].mxu0
      %v1155 = vadd.f32 0.0, %v1154
      %v1156 = vpop.f32.mrb[0].mxu0
      %1157 = vmatprep.mubr.bf16.mxu0 0
      %1158 = vmatmul.mubr.bf16.gmra.mrb[0].mxu0 %v1085
      %v1159 = vpop.f32.mrb[0].mxu0
      %v1160 = vadd.f32 0.0, %v1159
      %v1161 = vpop.f32.mrb[0].mxu0
      %v1162 = vpop.f32.mrb[0].mxu0
      %v1163 = vadd.f32 0.0, %v1162
      %v1164 = vpop.f32.mrb[0].mxu0
      %1165 = vmatprep.mubr.bf16.mxu0 0
      %1166 = vmatmul.mubr.bf16.gmra.mrb[0].mxu0 %v1088
      %v1167 = vpop.f32.mrb[0].mxu0
      %v1168 = vadd.f32 0.0, %v1167
      %v1169 = vpop.f32.mrb[0].mxu0
      %v1170 = vpop.f32.mrb[0].mxu0
      %v1171 = vadd.f32 0.0, %v1170
      %v1172 = vpop.f32.mrb[0].mxu0
      %1173 = vmatprep.mubr.bf16.mxu0 0
      %1174 = vmatmul.mubr.bf16.gmra.mrb[0].mxu0 %v1091
      %v1175 = vpop.f32.mrb[0].mxu0
      %v1176 = vadd.f32 0.0, %v1175
      %v1177 = vpop.f32.mrb[0].mxu0
      %v1178 = vpop.f32.mrb[0].mxu0
      %v1179 = vadd.f32 0.0, %v1178
      %v1180 = vpop.f32.mrb[0].mxu0
      %1181 = vmatprep.mubr.bf16.mxu0 0
      %1182 = vmatmul.mubr.bf16.gmra.mrb[0].mxu0 %v1094
      %v1183 = vpop.f32.mrb[0].mxu0
      %v1184 = vadd.f32 0.0, %v1183
      %v1185 = vpop.f32.mrb[0].mxu0
      %v1186 = vpop.f32.mrb[0].mxu0
      %v1187 = vadd.f32 0.0, %v1186
      %v1188 = vpop.f32.mrb[0].mxu0
      %1189 = vmatprep.mubr.bf16.mxu0 0
      %1190 = vmatmul.mubr.bf16.gmra.mrb[0].mxu0 %v1097
      %v1191 = vpop.f32.mrb[0].mxu0
      %v1192 = vadd.f32 0.0, %v1191
      %v1193 = vpop.f32.mrb[0].mxu0
      %v1194 = vpop.f32.mrb[0].mxu0
      %v1195 = vadd.f32 0.0, %v1194
      %v1196 = vpop.f32.mrb[0].mxu0
      %1197 = vdwg.mxu0
      %v1198 = vmul.f32 %v1152, 0.35355338
      %v1199 = vmul.f32 %v1155, 0.35355338
      %v1200 = vmul.f32 %v1160, 0.35355338
      %v1201 = vmul.f32 %v1163, 0.35355338
      %v1202 = vmul.f32 %v1168, 0.35355338
      %v1203 = vmul.f32 %v1171, 0.35355338
      %v1204 = vmul.f32 %v1176, 0.35355338
      %v1205 = vmul.f32 %v1179, 0.35355338
      %v1206 = vmul.f32 %v1184, 0.35355338
      %v1207 = vmul.f32 %v1187, 0.35355338
      %v1208 = vmul.f32 %v1192, 0.35355338
      %v1209 = vmul.f32 %v1195, 0.35355338
      %v1210 = vadd.f32 %v1198, %v481
      %v1211 = vadd.f32 %v1199, %v482
      %v1212 = vadd.f32 %v1200, %v483
      %v1213 = vadd.f32 %v1201, %v484
      %v1214 = vadd.f32 %v1202, %v485
      %v1215 = vadd.f32 %v1203, %v486
      %v1216 = vadd.f32 %v1204, %v487
      %v1217 = vadd.f32 %v1205, %v488
      %v1218 = vadd.f32 %v1206, %v489
      %v1219 = vadd.f32 %v1207, %v490
      %v1220 = vadd.f32 %v1208, %v491
      %v1221 = vadd.f32 %v1209, %v492
      %v1222 = vsel %vm813, %v1210, -inf
      %1223 = vmax.xlane.f32.xlu0 %v1222
      %v1224 = vpop.xlane.xlu0 %1223
      %v1225 = vsel %vm813, %v1211, -inf
      %1226 = vmax.xlane.f32.xlu0 %v1225
      %v1227 = vpop.xlane.xlu0 %1226
      %v1228 = vsel %vm813, %v1212, -inf
      %1229 = vmax.xlane.f32.xlu0 %v1228
      %v1230 = vpop.xlane.xlu0 %1229
      %v1231 = vsel %vm813, %v1213, -inf
      %1232 = vmax.xlane.f32.xlu0 %v1231
      %v1233 = vpop.xlane.xlu0 %1232
      %v1234 = vsel %vm813, %v1214, -inf
      %1235 = vmax.xlane.f32.xlu0 %v1234
      %v1236 = vpop.xlane.xlu0 %1235
      %v1237 = vsel %vm813, %v1215, -inf
      %1238 = vmax.xlane.f32.xlu0 %v1237
      %v1239 = vpop.xlane.xlu0 %1238
      %v1240 = vsel %vm813, %v1216, -inf
      %1241 = vmax.xlane.f32.xlu0 %v1240
      %v1242 = vpop.xlane.xlu0 %1241
      %v1243 = vsel %vm813, %v1217, -inf
      %1244 = vmax.xlane.f32.xlu0 %v1243
      %v1245 = vpop.xlane.xlu0 %1244
      %v1246 = vsel %vm813, %v1218, -inf
      %1247 = vmax.xlane.f32.xlu0 %v1246
      %v1248 = vpop.xlane.xlu0 %1247
      %v1249 = vsel %vm813, %v1219, -inf
      %1250 = vmax.xlane.f32.xlu0 %v1249
      %v1251 = vpop.xlane.xlu0 %1250
      %v1252 = vsel %vm813, %v1220, -inf
      %1253 = vmax.xlane.f32.xlu0 %v1252
      %v1254 = vpop.xlane.xlu0 %1253
      %v1255 = vsel %vm813, %v1221, -inf
      %1256 = vmax.xlane.f32.xlu0 %v1255
      %v1257 = vpop.xlane.xlu0 %1256
      %v1258 = vsub.f32 %v1210, %v1224
      %v1259 = vsub.f32 %v1211, %v1227
      %v1260 = vsub.f32 %v1212, %v1230
      %v1261 = vsub.f32 %v1213, %v1233
      %v1262 = vsub.f32 %v1214, %v1236
      %v1263 = vsub.f32 %v1215, %v1239
      %v1264 = vsub.f32 %v1216, %v1242
      %v1265 = vsub.f32 %v1217, %v1245
      %v1266 = vsub.f32 %v1218, %v1248
      %v1267 = vsub.f32 %v1219, %v1251
      %v1268 = vsub.f32 %v1220, %v1254
      %v1269 = vsub.f32 %v1221, %v1257
      %v1270 = vmul.f32 %v1258, 1.442695
      %v1271 = vpow.pop %v1270
      %v1272 = vmul.f32 %v1259, 1.442695
      %v1273 = vpow.pop %v1272
      %v1274 = vmul.f32 %v1260, 1.442695
      %v1275 = vpow.pop %v1274
      %v1276 = vmul.f32 %v1261, 1.442695
      %v1277 = vpow.pop %v1276
      %v1278 = vmul.f32 %v1262, 1.442695
      %v1279 = vpow.pop %v1278
      %v1280 = vmul.f32 %v1263, 1.442695
      %v1281 = vpow.pop %v1280
      %v1282 = vmul.f32 %v1264, 1.442695
      %v1283 = vpow.pop %v1282
      %v1284 = vmul.f32 %v1265, 1.442695
      %v1285 = vpow.pop %v1284
      %v1286 = vmul.f32 %v1266, 1.442695
      %v1287 = vpow.pop %v1286
      %v1288 = vmul.f32 %v1267, 1.442695
      %v1289 = vpow.pop %v1288
      %v1290 = vmul.f32 %v1268, 1.442695
      %v1291 = vpow.pop %v1290
      %v1292 = vmul.f32 %v1269, 1.442695
      %v1293 = vpow.pop %v1292
      %v1294 = vsel %vm813, %v1271, 0.0
      %1295 = vadd.xlane.f32.xlu0 %v1294
      %v1296 = vpop.xlane.xlu0 %1295
      %v1297 = vsel %vm813, %v1273, 0.0
      %1298 = vadd.xlane.f32.xlu0 %v1297
      %v1299 = vpop.xlane.xlu0 %1298
      %v1300 = vsel %vm813, %v1275, 0.0
      %1301 = vadd.xlane.f32.xlu0 %v1300
      %v1302 = vpop.xlane.xlu0 %1301
      %v1303 = vsel %vm813, %v1277, 0.0
      %1304 = vadd.xlane.f32.xlu0 %v1303
      %v1305 = vpop.xlane.xlu0 %1304
      %v1306 = vsel %vm813, %v1279, 0.0
      %1307 = vadd.xlane.f32.xlu0 %v1306
      %v1308 = vpop.xlane.xlu0 %1307
      %v1309 = vsel %vm813, %v1281, 0.0
      %1310 = vadd.xlane.f32.xlu0 %v1309
      %v1311 = vpop.xlane.xlu0 %1310
      %v1312 = vsel %vm813, %v1283, 0.0
      %1313 = vadd.xlane.f32.xlu0 %v1312
      %v1314 = vpop.xlane.xlu0 %1313
      %v1315 = vsel %vm813, %v1285, 0.0
      %1316 = vadd.xlane.f32.xlu0 %v1315
      %v1317 = vpop.xlane.xlu0 %1316
      %v1318 = vsel %vm813, %v1287, 0.0
      %1319 = vadd.xlane.f32.xlu0 %v1318
      %v1320 = vpop.xlane.xlu0 %1319
      %v1321 = vsel %vm813, %v1289, 0.0
      %1322 = vadd.xlane.f32.xlu0 %v1321
      %v1323 = vpop.xlane.xlu0 %1322
      %v1324 = vsel %vm813, %v1291, 0.0
      %1325 = vadd.xlane.f32.xlu0 %v1324
      %v1326 = vpop.xlane.xlu0 %1325
      %v1327 = vsel %vm813, %v1293, 0.0
      %1328 = vadd.xlane.f32.xlu0 %v1327
      %v1329 = vpop.xlane.xlu0 %1328
      %v1330 = vrcp.pop %v1296
      %v1331 = vrcp.pop %v1299
      %v1332 = vrcp.pop %v1302
      %v1333 = vrcp.pop %v1305
      %v1334 = vrcp.pop %v1308
      %v1335 = vrcp.pop %v1311
      %v1336 = vrcp.pop %v1314
      %v1337 = vrcp.pop %v1317
      %v1338 = vrcp.pop %v1320
      %v1339 = vrcp.pop %v1323
      %v1340 = vrcp.pop %v1326
      %v1341 = vrcp.pop %v1329
      %v1342 = vmul.f32 %v1271, %v1330
      %v1343 = vmul.f32 %v1273, %v1331
      %v1344 = vmul.f32 %v1275, %v1332
      %v1345 = vmul.f32 %v1277, %v1333
      %v1346 = vmul.f32 %v1279, %v1334
      %v1347 = vmul.f32 %v1281, %v1335
      %v1348 = vmul.f32 %v1283, %v1336
      %v1349 = vmul.f32 %v1285, %v1337
      %v1350 = vmul.f32 %v1287, %v1338
      %v1351 = vmul.f32 %v1289, %v1339
      %v1352 = vmul.f32 %v1291, %v1340
      %v1353 = vmul.f32 %v1293, %v1341
      %v1354 = vpack.c.bf16 %v1343, %v1342
      %v1355 = vpack.c.bf16 %v1345, %v1344
      %v1356 = vpack.c.bf16 %v1347, %v1346
      %v1357 = vpack.c.bf16 %v1349, %v1348
      %v1358 = vpack.c.bf16 %v1351, %v1350
      %v1359 = vpack.c.bf16 %v1353, %v1352
      %1366 = vrot.lane.b32.xlu0 %v952, 120
      %v1367 = vpop.permute.xlu0 %1366
      %1368 = vrot.lane.b32.xlu0 %v953, 120
      %v1369 = vpop.permute.xlu0 %1368
      %1370 = vrot.lane.b32.xlu0 %v954, 120
      %v1371 = vpop.permute.xlu0 %1370
      %1372 = vrot.lane.b32.xlu0 %v955, 120
      %v1373 = vpop.permute.xlu0 %1372
      %1374 = vrot.lane.b32.xlu0 %v956, 120
      %v1375 = vpop.permute.xlu0 %1374
      %1376 = vrot.lane.b32.xlu0 %v957, 120
      %v1377 = vpop.permute.xlu0 %1376
      %v1385 = vsel %vm813, %v1354, 0
      %v1388 = vsel %vm813, %v1355, 0
      %v1391 = vsel %vm813, %v1356, 0
      %v1394 = vsel %vm813, %v1357, 0
      %v1397 = vsel %vm813, %v1358, 0
      %v1400 = vsel %vm813, %v1359, 0
      %1402 = vmatprep.subr.bf16.mxu0 0
      %1403 = vmatpush1.bf16.msra.mxu0 %v1367
      %1404 = vmatprep.subr.bf16.mxu0 0
      %1405 = vmatpush1.bf16.msra.mxu0 %v1369
      %1406 = vmatprep.subr.bf16.mxu0 0
      %1407 = vmatpush1.bf16.msra.mxu0 %v1371
      %1408 = vmatprep.subr.bf16.mxu0 0
      %1409 = vmatpush1.bf16.msra.mxu0 %v1373
      %1410 = vmatprep.subr.bf16.mxu0 0
      %1411 = vmatpush1.bf16.msra.mxu0 %v1375
      %1412 = vmatprep.subr.bf16.mxu0 0
      %1413 = vmatpush1.bf16.msra.mxu0 %v1377
      %1414 = vmatprep.subr.bf16.mxu0 0
      %1415 = vmatpush1.bf16.msra.mxu0 0
      %1416 = vmatprep.subr.bf16.mxu0 0
      %1417 = vmatpush1.bf16.msra.mxu0 0
      %1418 = vmatprep.subr.bf16.mxu0 0
      %1419 = vmatpush1.bf16.msra.mxu0 0
      %1420 = vmatprep.subr.bf16.mxu0 0
      %1421 = vmatpush1.bf16.msra.mxu0 0
      %1422 = vmatprep.subr.bf16.mxu0 0
      %1423 = vmatpush1.bf16.msra.mxu0 0
      %1424 = vmatprep.subr.bf16.mxu0 0
      %1425 = vmatpush1.bf16.msra.mxu0 0
      %1426 = vmatprep.subr.bf16.mxu0 0
      %1427 = vmatpush1.bf16.msra.mxu0 0
      %1428 = vmatprep.subr.bf16.mxu0 0
      %1429 = vmatpush1.bf16.msra.mxu0 0
      %1430 = vmatprep.subr.bf16.mxu0 0
      %1431 = vmatpush1.bf16.msra.mxu0 0
      %1432 = vmatprep.subr.bf16.mxu0 0
      %1433 = vmatpush1.bf16.msra.mxu0 0
      %1434 = vmatprep.mubr.bf16.mxu0 0
      %1435 = vmatmul.mubr.bf16.gmra.mrb[0].mxu0 %v1385
      %v1436 = vpop.f32.mrb[0].mxu0
      %v1437 = vadd.f32 0.0, %v1436
      %v1438 = vpop.f32.mrb[0].mxu0
      %v1439 = vpop.f32.mrb[0].mxu0
      %v1440 = vadd.f32 0.0, %v1439
      %v1441 = vpop.f32.mrb[0].mxu0
      %1442 = vmatprep.mubr.bf16.mxu0 0
      %1443 = vmatmul.mubr.bf16.gmra.mrb[0].mxu0 %v1388
      %v1444 = vpop.f32.mrb[0].mxu0
      %v1445 = vadd.f32 0.0, %v1444
      %v1446 = vpop.f32.mrb[0].mxu0
      %v1447 = vpop.f32.mrb[0].mxu0
      %v1448 = vadd.f32 0.0, %v1447
      %v1449 = vpop.f32.mrb[0].mxu0
      %1450 = vmatprep.mubr.bf16.mxu0 0
      %1451 = vmatmul.mubr.bf16.gmra.mrb[0].mxu0 %v1391
      %v1452 = vpop.f32.mrb[0].mxu0
      %v1453 = vadd.f32 0.0, %v1452
      %v1454 = vpop.f32.mrb[0].mxu0
      %v1455 = vpop.f32.mrb[0].mxu0
      %v1456 = vadd.f32 0.0, %v1455
      %v1457 = vpop.f32.mrb[0].mxu0
      %1458 = vmatprep.mubr.bf16.mxu0 0
      %1459 = vmatmul.mubr.bf16.gmra.mrb[0].mxu0 %v1394
      %v1460 = vpop.f32.mrb[0].mxu0
      %v1461 = vadd.f32 0.0, %v1460
      %v1462 = vpop.f32.mrb[0].mxu0
      %v1463 = vpop.f32.mrb[0].mxu0
      %v1464 = vadd.f32 0.0, %v1463
      %v1465 = vpop.f32.mrb[0].mxu0
      %1466 = vmatprep.mubr.bf16.mxu0 0
      %1467 = vmatmul.mubr.bf16.gmra.mrb[0].mxu0 %v1397
      %v1468 = vpop.f32.mrb[0].mxu0
      %v1469 = vadd.f32 0.0, %v1468
      %v1470 = vpop.f32.mrb[0].mxu0
      %v1471 = vpop.f32.mrb[0].mxu0
      %v1472 = vadd.f32 0.0, %v1471
      %v1473 = vpop.f32.mrb[0].mxu0
      %1474 = vmatprep.mubr.bf16.mxu0 0
      %1475 = vmatmul.mubr.bf16.gmra.mrb[0].mxu0 %v1400
      %v1476 = vpop.f32.mrb[0].mxu0
      %v1477 = vadd.f32 0.0, %v1476
      %v1478 = vpop.f32.mrb[0].mxu0
      %v1479 = vpop.f32.mrb[0].mxu0
      %v1480 = vadd.f32 0.0, %v1479
      %v1481 = vpop.f32.mrb[0].mxu0
      %1482 = vdwg.mxu0
      %1483 = vrot.lane.b32.xlu0 %v647, 112
      %v1484 = vpop.permute.xlu0 %1483
      %1485 = vrot.lane.b32.xlu0 %v648, 112
      %v1486 = vpop.permute.xlu0 %1485
      %1487 = vrot.lane.b32.xlu0 %v649, 112
      %v1488 = vpop.permute.xlu0 %1487
      %1489 = vrot.lane.b32.xlu0 %v650, 112
      %v1490 = vpop.permute.xlu0 %1489
      %1491 = vrot.lane.b32.xlu0 %v651, 112
      %v1492 = vpop.permute.xlu0 %1491
      %1493 = vrot.lane.b32.xlu0 %v652, 112
      %v1494 = vpop.permute.xlu0 %1493
      %1495 = vrot.lane.b32.xlu0 %v647, 48
      %v1496 = vpop.permute.xlu0 %1495
      %1497 = vrot.lane.b32.xlu0 %v648, 48
      %v1498 = vpop.permute.xlu0 %1497
      %1499 = vrot.lane.b32.xlu0 %v649, 48
      %v1500 = vpop.permute.xlu0 %1499
      %1501 = vrot.lane.b32.xlu0 %v650, 48
      %v1502 = vpop.permute.xlu0 %1501
      %1503 = vrot.lane.b32.xlu0 %v651, 48
      %v1504 = vpop.permute.xlu0 %1503
      %1505 = vrot.lane.b32.xlu0 %v652, 48
      %v1506 = vpop.permute.xlu0 %1505
      %v1508 = vsel %vm671, %v1484, 0
      %v1511 = vsel %vm671, %v1486, 0
      %v1514 = vsel %vm671, %v1488, 0
      %v1517 = vsel %vm671, %v1490, 0
      %v1520 = vsel %vm671, %v1492, 0
      %v1523 = vsel %vm671, %v1494, 0
      %v1526 = vsel %vm671, %v1496, 0
      %v1529 = vsel %vm671, %v1498, 0
      %v1532 = vsel %vm671, %v1500, 0
      %v1535 = vsel %vm671, %v1502, 0
      %v1538 = vsel %vm671, %v1504, 0
      %v1541 = vsel %vm671, %v1506, 0
      %1543 = vmatprep.subr.bf16.mxu0 0
      %1544 = vmatpush1.bf16.xpose.msra.mxu0 %v1526
      %1545 = vmatprep.subr.bf16.mxu0 0
      %1546 = vmatpush1.bf16.xpose.msra.mxu0 %v1529
      %1547 = vmatprep.subr.bf16.mxu0 0
      %1548 = vmatpush1.bf16.xpose.msra.mxu0 %v1532
      %1549 = vmatprep.subr.bf16.mxu0 0
      %1550 = vmatpush1.bf16.xpose.msra.mxu0 %v1535
      %1551 = vmatprep.subr.bf16.mxu0 0
      %1552 = vmatpush1.bf16.xpose.msra.mxu0 %v1538
      %1553 = vmatprep.subr.bf16.mxu0 0
      %1554 = vmatpush1.bf16.xpose.msra.mxu0 %v1541
      %1555 = vmatprep.subr.bf16.mxu0 0
      %1556 = vmatpush1.bf16.xpose.msra.mxu0 0
      %1557 = vmatprep.subr.bf16.mxu0 0
      %1558 = vmatpush1.bf16.xpose.msra.mxu0 0
      %1559 = vmatprep.subr.bf16.mxu0 0
      %1560 = vmatpush1.bf16.xpose.msra.mxu0 0
      %1561 = vmatprep.subr.bf16.mxu0 0
      %1562 = vmatpush1.bf16.xpose.msra.mxu0 0
      %1563 = vmatprep.subr.bf16.mxu0 0
      %1564 = vmatpush1.bf16.xpose.msra.mxu0 0
      %1565 = vmatprep.subr.bf16.mxu0 0
      %1566 = vmatpush1.bf16.xpose.msra.mxu0 0
      %1567 = vmatprep.subr.bf16.mxu0 0
      %1568 = vmatpush1.bf16.xpose.msra.mxu0 0
      %1569 = vmatprep.subr.bf16.mxu0 0
      %1570 = vmatpush1.bf16.xpose.msra.mxu0 0
      %1571 = vmatprep.subr.bf16.mxu0 0
      %1572 = vmatpush1.bf16.xpose.msra.mxu0 0
      %1573 = vmatprep.subr.bf16.mxu0 0
      %1574 = vmatpush1.bf16.xpose.msra.mxu0 0
      %1575 = vmatprep.mubr.bf16.mxu0 0
      %1576 = vmatmul.mubr.bf16.gmra.mrb[0].mxu0 %v1508
      %v1577 = vpop.f32.mrb[0].mxu0
      %v1578 = vadd.f32 0.0, %v1577
      %v1579 = vpop.f32.mrb[0].mxu0
      %v1580 = vpop.f32.mrb[0].mxu0
      %v1581 = vadd.f32 0.0, %v1580
      %v1582 = vpop.f32.mrb[0].mxu0
      %1583 = vmatprep.mubr.bf16.mxu0 0
      %1584 = vmatmul.mubr.bf16.gmra.mrb[0].mxu0 %v1511
      %v1585 = vpop.f32.mrb[0].mxu0
      %v1586 = vadd.f32 0.0, %v1585
      %v1587 = vpop.f32.mrb[0].mxu0
      %v1588 = vpop.f32.mrb[0].mxu0
      %v1589 = vadd.f32 0.0, %v1588
      %v1590 = vpop.f32.mrb[0].mxu0
      %1591 = vmatprep.mubr.bf16.mxu0 0
      %1592 = vmatmul.mubr.bf16.gmra.mrb[0].mxu0 %v1514
      %v1593 = vpop.f32.mrb[0].mxu0
      %v1594 = vadd.f32 0.0, %v1593
      %v1595 = vpop.f32.mrb[0].mxu0
      %v1596 = vpop.f32.mrb[0].mxu0
      %v1597 = vadd.f32 0.0, %v1596
      %v1598 = vpop.f32.mrb[0].mxu0
      %1599 = vmatprep.mubr.bf16.mxu0 0
      %1600 = vmatmul.mubr.bf16.gmra.mrb[0].mxu0 %v1517
      %v1601 = vpop.f32.mrb[0].mxu0
      %v1602 = vadd.f32 0.0, %v1601
      %v1603 = vpop.f32.mrb[0].mxu0
      %v1604 = vpop.f32.mrb[0].mxu0
      %v1605 = vadd.f32 0.0, %v1604
      %v1606 = vpop.f32.mrb[0].mxu0
      %1607 = vmatprep.mubr.bf16.mxu0 0
      %1608 = vmatmul.mubr.bf16.gmra.mrb[0].mxu0 %v1520
      %v1609 = vpop.f32.mrb[0].mxu0
      %v1610 = vadd.f32 0.0, %v1609
      %v1611 = vpop.f32.mrb[0].mxu0
      %v1612 = vpop.f32.mrb[0].mxu0
      %v1613 = vadd.f32 0.0, %v1612
      %v1614 = vpop.f32.mrb[0].mxu0
      %1615 = vmatprep.mubr.bf16.mxu0 0
      %1616 = vmatmul.mubr.bf16.gmra.mrb[0].mxu0 %v1523
      %v1617 = vpop.f32.mrb[0].mxu0
      %v1618 = vadd.f32 0.0, %v1617
      %v1619 = vpop.f32.mrb[0].mxu0
      %v1620 = vpop.f32.mrb[0].mxu0
      %v1621 = vadd.f32 0.0, %v1620
      %v1622 = vpop.f32.mrb[0].mxu0
      %1623 = vdwg.mxu0
      %v1624 = vmul.f32 %v1578, 0.35355338
      %v1625 = vmul.f32 %v1581, 0.35355338
      %v1626 = vmul.f32 %v1586, 0.35355338
      %v1627 = vmul.f32 %v1589, 0.35355338
      %v1628 = vmul.f32 %v1594, 0.35355338
      %v1629 = vmul.f32 %v1597, 0.35355338
      %v1630 = vmul.f32 %v1602, 0.35355338
      %v1631 = vmul.f32 %v1605, 0.35355338
      %v1632 = vmul.f32 %v1610, 0.35355338
      %v1633 = vmul.f32 %v1613, 0.35355338
      %v1634 = vmul.f32 %v1618, 0.35355338
      %v1635 = vmul.f32 %v1621, 0.35355338
      %v1636 = vadd.f32 %v1624, %v481
      %v1637 = vadd.f32 %v1625, %v482
      %v1638 = vadd.f32 %v1626, %v483
      %v1639 = vadd.f32 %v1627, %v484
      %v1640 = vadd.f32 %v1628, %v485
      %v1641 = vadd.f32 %v1629, %v486
      %v1642 = vadd.f32 %v1630, %v487
      %v1643 = vadd.f32 %v1631, %v488
      %v1644 = vadd.f32 %v1632, %v489
      %v1645 = vadd.f32 %v1633, %v490
      %v1646 = vadd.f32 %v1634, %v491
      %v1647 = vadd.f32 %v1635, %v492
      %v1648 = vsel %vm813, %v1636, -inf
      %1649 = vmax.xlane.f32.xlu0 %v1648
      %v1650 = vpop.xlane.xlu0 %1649
      %v1651 = vsel %vm813, %v1637, -inf
      %1652 = vmax.xlane.f32.xlu0 %v1651
      %v1653 = vpop.xlane.xlu0 %1652
      %v1654 = vsel %vm813, %v1638, -inf
      %1655 = vmax.xlane.f32.xlu0 %v1654
      %v1656 = vpop.xlane.xlu0 %1655
      %v1657 = vsel %vm813, %v1639, -inf
      %1658 = vmax.xlane.f32.xlu0 %v1657
      %v1659 = vpop.xlane.xlu0 %1658
      %v1660 = vsel %vm813, %v1640, -inf
      %1661 = vmax.xlane.f32.xlu0 %v1660
      %v1662 = vpop.xlane.xlu0 %1661
      %v1663 = vsel %vm813, %v1641, -inf
      %1664 = vmax.xlane.f32.xlu0 %v1663
      %v1665 = vpop.xlane.xlu0 %1664
      %v1666 = vsel %vm813, %v1642, -inf
      %1667 = vmax.xlane.f32.xlu0 %v1666
      %v1668 = vpop.xlane.xlu0 %1667
      %v1669 = vsel %vm813, %v1643, -inf
      %1670 = vmax.xlane.f32.xlu0 %v1669
      %v1671 = vpop.xlane.xlu0 %1670
      %v1672 = vsel %vm813, %v1644, -inf
      %1673 = vmax.xlane.f32.xlu0 %v1672
      %v1674 = vpop.xlane.xlu0 %1673
      %v1675 = vsel %vm813, %v1645, -inf
      %1676 = vmax.xlane.f32.xlu0 %v1675
      %v1677 = vpop.xlane.xlu0 %1676
      %v1678 = vsel %vm813, %v1646, -inf
      %1679 = vmax.xlane.f32.xlu0 %v1678
      %v1680 = vpop.xlane.xlu0 %1679
      %v1681 = vsel %vm813, %v1647, -inf
      %1682 = vmax.xlane.f32.xlu0 %v1681
      %v1683 = vpop.xlane.xlu0 %1682
      %v1684 = vsub.f32 %v1636, %v1650
      %v1685 = vsub.f32 %v1637, %v1653
      %v1686 = vsub.f32 %v1638, %v1656
      %v1687 = vsub.f32 %v1639, %v1659
      %v1688 = vsub.f32 %v1640, %v1662
      %v1689 = vsub.f32 %v1641, %v1665
      %v1690 = vsub.f32 %v1642, %v1668
      %v1691 = vsub.f32 %v1643, %v1671
      %v1692 = vsub.f32 %v1644, %v1674
      %v1693 = vsub.f32 %v1645, %v1677
      %v1694 = vsub.f32 %v1646, %v1680
      %v1695 = vsub.f32 %v1647, %v1683
      %v1696 = vmul.f32 %v1684, 1.442695
      %v1697 = vpow.pop %v1696
      %v1698 = vmul.f32 %v1685, 1.442695
      %v1699 = vpow.pop %v1698
      %v1700 = vmul.f32 %v1686, 1.442695
      %v1701 = vpow.pop %v1700
      %v1702 = vmul.f32 %v1687, 1.442695
      %v1703 = vpow.pop %v1702
      %v1704 = vmul.f32 %v1688, 1.442695
      %v1705 = vpow.pop %v1704
      %v1706 = vmul.f32 %v1689, 1.442695
      %v1707 = vpow.pop %v1706
      %v1708 = vmul.f32 %v1690, 1.442695
      %v1709 = vpow.pop %v1708
      %v1710 = vmul.f32 %v1691, 1.442695
      %v1711 = vpow.pop %v1710
      %v1712 = vmul.f32 %v1692, 1.442695
      %v1713 = vpow.pop %v1712
      %v1714 = vmul.f32 %v1693, 1.442695
      %v1715 = vpow.pop %v1714
      %v1716 = vmul.f32 %v1694, 1.442695
      %v1717 = vpow.pop %v1716
      %v1718 = vmul.f32 %v1695, 1.442695
      %v1719 = vpow.pop %v1718
      %v1720 = vsel %vm813, %v1697, 0.0
      %1721 = vadd.xlane.f32.xlu0 %v1720
      %v1722 = vpop.xlane.xlu0 %1721
      %v1723 = vsel %vm813, %v1699, 0.0
      %1724 = vadd.xlane.f32.xlu0 %v1723
      %v1725 = vpop.xlane.xlu0 %1724
      %v1726 = vsel %vm813, %v1701, 0.0
      %1727 = vadd.xlane.f32.xlu0 %v1726
      %v1728 = vpop.xlane.xlu0 %1727
      %v1729 = vsel %vm813, %v1703, 0.0
      %1730 = vadd.xlane.f32.xlu0 %v1729
      %v1731 = vpop.xlane.xlu0 %1730
      %v1732 = vsel %vm813, %v1705, 0.0
      %1733 = vadd.xlane.f32.xlu0 %v1732
      %v1734 = vpop.xlane.xlu0 %1733
      %v1735 = vsel %vm813, %v1707, 0.0
      %1736 = vadd.xlane.f32.xlu0 %v1735
      %v1737 = vpop.xlane.xlu0 %1736
      %v1738 = vsel %vm813, %v1709, 0.0
      %1739 = vadd.xlane.f32.xlu0 %v1738
      %v1740 = vpop.xlane.xlu0 %1739
      %v1741 = vsel %vm813, %v1711, 0.0
      %1742 = vadd.xlane.f32.xlu0 %v1741
      %v1743 = vpop.xlane.xlu0 %1742
      %v1744 = vsel %vm813, %v1713, 0.0
      %1745 = vadd.xlane.f32.xlu0 %v1744
      %v1746 = vpop.xlane.xlu0 %1745
      %v1747 = vsel %vm813, %v1715, 0.0
      %1748 = vadd.xlane.f32.xlu0 %v1747
      %v1749 = vpop.xlane.xlu0 %1748
      %v1750 = vsel %vm813, %v1717, 0.0
      %1751 = vadd.xlane.f32.xlu0 %v1750
      %v1752 = vpop.xlane.xlu0 %1751
      %v1753 = vsel %vm813, %v1719, 0.0
      %1754 = vadd.xlane.f32.xlu0 %v1753
      %v1755 = vpop.xlane.xlu0 %1754
      %v1756 = vrcp.pop %v1722
      %v1757 = vrcp.pop %v1725
      %v1758 = vrcp.pop %v1728
      %v1759 = vrcp.pop %v1731
      %v1760 = vrcp.pop %v1734
      %v1761 = vrcp.pop %v1737
      %v1762 = vrcp.pop %v1740
      %v1763 = vrcp.pop %v1743
      %v1764 = vrcp.pop %v1746
      %v1765 = vrcp.pop %v1749
      %v1766 = vrcp.pop %v1752
      %v1767 = vrcp.pop %v1755
      %v1768 = vmul.f32 %v1697, %v1756
      %v1769 = vmul.f32 %v1699, %v1757
      %v1770 = vmul.f32 %v1701, %v1758
      %v1771 = vmul.f32 %v1703, %v1759
      %v1772 = vmul.f32 %v1705, %v1760
      %v1773 = vmul.f32 %v1707, %v1761
      %v1774 = vmul.f32 %v1709, %v1762
      %v1775 = vmul.f32 %v1711, %v1763
      %v1776 = vmul.f32 %v1713, %v1764
      %v1777 = vmul.f32 %v1715, %v1765
      %v1778 = vmul.f32 %v1717, %v1766
      %v1779 = vmul.f32 %v1719, %v1767
      %v1780 = vpack.c.bf16 %v1769, %v1768
      %v1781 = vpack.c.bf16 %v1771, %v1770
      %v1782 = vpack.c.bf16 %v1773, %v1772
      %v1783 = vpack.c.bf16 %v1775, %v1774
      %v1784 = vpack.c.bf16 %v1777, %v1776
      %v1785 = vpack.c.bf16 %v1779, %v1778
      %1786 = vrot.lane.b32.xlu0 %v952, 112
      %v1787 = vpop.permute.xlu0 %1786
      %1788 = vrot.lane.b32.xlu0 %v953, 112
      %v1789 = vpop.permute.xlu0 %1788
      %1790 = vrot.lane.b32.xlu0 %v954, 112
      %v1791 = vpop.permute.xlu0 %1790
      %1792 = vrot.lane.b32.xlu0 %v955, 112
      %v1793 = vpop.permute.xlu0 %1792
      %1794 = vrot.lane.b32.xlu0 %v956, 112
      %v1795 = vpop.permute.xlu0 %1794
      %1796 = vrot.lane.b32.xlu0 %v957, 112
      %v1797 = vpop.permute.xlu0 %1796
      %v1805 = vsel %vm813, %v1780, 0
      %v1808 = vsel %vm813, %v1781, 0
      %v1811 = vsel %vm813, %v1782, 0
      %v1814 = vsel %vm813, %v1783, 0
      %v1817 = vsel %vm813, %v1784, 0
      %v1820 = vsel %vm813, %v1785, 0
      %1822 = vmatprep.subr.bf16.mxu0 0
      %1823 = vmatpush1.bf16.msra.mxu0 %v1787
      %1824 = vmatprep.subr.bf16.mxu0 0
      %1825 = vmatpush1.bf16.msra.mxu0 %v1789
      %1826 = vmatprep.subr.bf16.mxu0 0
      %1827 = vmatpush1.bf16.msra.mxu0 %v1791
      %1828 = vmatprep.subr.bf16.mxu0 0
      %1829 = vmatpush1.bf16.msra.mxu0 %v1793
      %1830 = vmatprep.subr.bf16.mxu0 0
      %1831 = vmatpush1.bf16.msra.mxu0 %v1795
      %1832 = vmatprep.subr.bf16.mxu0 0
      %1833 = vmatpush1.bf16.msra.mxu0 %v1797
      %1834 = vmatprep.subr.bf16.mxu0 0
      %1835 = vmatpush1.bf16.msra.mxu0 0
      %1836 = vmatprep.subr.bf16.mxu0 0
      %1837 = vmatpush1.bf16.msra.mxu0 0
      %1838 = vmatprep.subr.bf16.mxu0 0
      %1839 = vmatpush1.bf16.msra.mxu0 0
      %1840 = vmatprep.subr.bf16.mxu0 0
      %1841 = vmatpush1.bf16.msra.mxu0 0
      %1842 = vmatprep.subr.bf16.mxu0 0
      %1843 = vmatpush1.bf16.msra.mxu0 0
      %1844 = vmatprep.subr.bf16.mxu0 0
      %1845 = vmatpush1.bf16.msra.mxu0 0
      %1846 = vmatprep.subr.bf16.mxu0 0
      %1847 = vmatpush1.bf16.msra.mxu0 0
      %1848 = vmatprep.subr.bf16.mxu0 0
      %1849 = vmatpush1.bf16.msra.mxu0 0
      %1850 = vmatprep.subr.bf16.mxu0 0
      %1851 = vmatpush1.bf16.msra.mxu0 0
      %1852 = vmatprep.subr.bf16.mxu0 0
      %1853 = vmatpush1.bf16.msra.mxu0 0
      %1854 = vmatprep.mubr.bf16.mxu0 0
      %1855 = vmatmul.mubr.bf16.gmra.mrb[0].mxu0 %v1805
      %v1856 = vpop.f32.mrb[0].mxu0
      %v1857 = vadd.f32 0.0, %v1856
      %v1858 = vpop.f32.mrb[0].mxu0
      %v1859 = vpop.f32.mrb[0].mxu0
      %v1860 = vadd.f32 0.0, %v1859
      %v1861 = vpop.f32.mrb[0].mxu0
      %1862 = vmatprep.mubr.bf16.mxu0 0
      %1863 = vmatmul.mubr.bf16.gmra.mrb[0].mxu0 %v1808
      %v1864 = vpop.f32.mrb[0].mxu0
      %v1865 = vadd.f32 0.0, %v1864
      %v1866 = vpop.f32.mrb[0].mxu0
      %v1867 = vpop.f32.mrb[0].mxu0
      %v1868 = vadd.f32 0.0, %v1867
      %v1869 = vpop.f32.mrb[0].mxu0
      %1870 = vmatprep.mubr.bf16.mxu0 0
      %1871 = vmatmul.mubr.bf16.gmra.mrb[0].mxu0 %v1811
      %v1872 = vpop.f32.mrb[0].mxu0
      %v1873 = vadd.f32 0.0, %v1872
      %v1874 = vpop.f32.mrb[0].mxu0
      %v1875 = vpop.f32.mrb[0].mxu0
      %v1876 = vadd.f32 0.0, %v1875
      %v1877 = vpop.f32.mrb[0].mxu0
      %1878 = vmatprep.mubr.bf16.mxu0 0
      %1879 = vmatmul.mubr.bf16.gmra.mrb[0].mxu0 %v1814
      %v1880 = vpop.f32.mrb[0].mxu0
      %v1881 = vadd.f32 0.0, %v1880
      %v1882 = vpop.f32.mrb[0].mxu0
      %v1883 = vpop.f32.mrb[0].mxu0
      %v1884 = vadd.f32 0.0, %v1883
      %v1885 = vpop.f32.mrb[0].mxu0
      %1886 = vmatprep.mubr.bf16.mxu0 0
      %1887 = vmatmul.mubr.bf16.gmra.mrb[0].mxu0 %v1817
      %v1888 = vpop.f32.mrb[0].mxu0
      %v1889 = vadd.f32 0.0, %v1888
      %v1890 = vpop.f32.mrb[0].mxu0
      %v1891 = vpop.f32.mrb[0].mxu0
      %v1892 = vadd.f32 0.0, %v1891
      %v1893 = vpop.f32.mrb[0].mxu0
      %1894 = vmatprep.mubr.bf16.mxu0 0
      %1895 = vmatmul.mubr.bf16.gmra.mrb[0].mxu0 %v1820
      %v1896 = vpop.f32.mrb[0].mxu0
      %v1897 = vadd.f32 0.0, %v1896
      %v1898 = vpop.f32.mrb[0].mxu0
      %v1899 = vpop.f32.mrb[0].mxu0
      %v1900 = vadd.f32 0.0, %v1899
      %v1901 = vpop.f32.mrb[0].mxu0
      %1902 = vdwg.mxu0
      %1903 = vrot.lane.b32.xlu0 %v647, 104
      %v1904 = vpop.permute.xlu0 %1903
      %1905 = vrot.lane.b32.xlu0 %v648, 104
      %v1906 = vpop.permute.xlu0 %1905
      %1907 = vrot.lane.b32.xlu0 %v649, 104
      %v1908 = vpop.permute.xlu0 %1907
      %1909 = vrot.lane.b32.xlu0 %v650, 104
      %v1910 = vpop.permute.xlu0 %1909
      %1911 = vrot.lane.b32.xlu0 %v651, 104
      %v1912 = vpop.permute.xlu0 %1911
      %1913 = vrot.lane.b32.xlu0 %v652, 104
      %v1914 = vpop.permute.xlu0 %1913
      %1915 = vrot.lane.b32.xlu0 %v647, 40
      %v1916 = vpop.permute.xlu0 %1915
      %1917 = vrot.lane.b32.xlu0 %v648, 40
      %v1918 = vpop.permute.xlu0 %1917
      %1919 = vrot.lane.b32.xlu0 %v649, 40
      %v1920 = vpop.permute.xlu0 %1919
      %1921 = vrot.lane.b32.xlu0 %v650, 40
      %v1922 = vpop.permute.xlu0 %1921
      %1923 = vrot.lane.b32.xlu0 %v651, 40
      %v1924 = vpop.permute.xlu0 %1923
      %1925 = vrot.lane.b32.xlu0 %v652, 40
      %v1926 = vpop.permute.xlu0 %1925
      %v1928 = vsel %vm671, %v1904, 0
      %v1931 = vsel %vm671, %v1906, 0
      %v1934 = vsel %vm671, %v1908, 0
      %v1937 = vsel %vm671, %v1910, 0
      %v1940 = vsel %vm671, %v1912, 0
      %v1943 = vsel %vm671, %v1914, 0
      %v1946 = vsel %vm671, %v1916, 0
      %v1949 = vsel %vm671, %v1918, 0
      %v1952 = vsel %vm671, %v1920, 0
      %v1955 = vsel %vm671, %v1922, 0
      %v1958 = vsel %vm671, %v1924, 0
      %v1961 = vsel %vm671, %v1926, 0
      %1963 = vmatprep.subr.bf16.mxu0 0
      %1964 = vmatpush1.bf16.xpose.msra.mxu0 %v1946
      %1965 = vmatprep.subr.bf16.mxu0 0
      %1966 = vmatpush1.bf16.xpose.msra.mxu0 %v1949
      %1967 = vmatprep.subr.bf16.mxu0 0
      %1968 = vmatpush1.bf16.xpose.msra.mxu0 %v1952
      %1969 = vmatprep.subr.bf16.mxu0 0
      %1970 = vmatpush1.bf16.xpose.msra.mxu0 %v1955
      %1971 = vmatprep.subr.bf16.mxu0 0
      %1972 = vmatpush1.bf16.xpose.msra.mxu0 %v1958
      %1973 = vmatprep.subr.bf16.mxu0 0
      %1974 = vmatpush1.bf16.xpose.msra.mxu0 %v1961
      %1975 = vmatprep.subr.bf16.mxu0 0
      %1976 = vmatpush1.bf16.xpose.msra.mxu0 0
      %1977 = vmatprep.subr.bf16.mxu0 0
      %1978 = vmatpush1.bf16.xpose.msra.mxu0 0
      %1979 = vmatprep.subr.bf16.mxu0 0
      %1980 = vmatpush1.bf16.xpose.msra.mxu0 0
      %1981 = vmatprep.subr.bf16.mxu0 0
      %1982 = vmatpush1.bf16.xpose.msra.mxu0 0
      %1983 = vmatprep.subr.bf16.mxu0 0
      %1984 = vmatpush1.bf16.xpose.msra.mxu0 0
      %1985 = vmatprep.subr.bf16.mxu0 0
      %1986 = vmatpush1.bf16.xpose.msra.mxu0 0
      %1987 = vmatprep.subr.bf16.mxu0 0
      %1988 = vmatpush1.bf16.xpose.msra.mxu0 0
      %1989 = vmatprep.subr.bf16.mxu0 0
      %1990 = vmatpush1.bf16.xpose.msra.mxu0 0
      %1991 = vmatprep.subr.bf16.mxu0 0
      %1992 = vmatpush1.bf16.xpose.msra.mxu0 0
      %1993 = vmatprep.subr.bf16.mxu0 0
      %1994 = vmatpush1.bf16.xpose.msra.mxu0 0
      %1995 = vmatprep.mubr.bf16.mxu0 0
      %1996 = vmatmul.mubr.bf16.gmra.mrb[0].mxu0 %v1928
      %v1997 = vpop.f32.mrb[0].mxu0
      %v1998 = vadd.f32 0.0, %v1997
      %v1999 = vpop.f32.mrb[0].mxu0
      %v2000 = vpop.f32.mrb[0].mxu0
      %v2001 = vadd.f32 0.0, %v2000
      %v2002 = vpop.f32.mrb[0].mxu0
      %2003 = vmatprep.mubr.bf16.mxu0 0
      %2004 = vmatmul.mubr.bf16.gmra.mrb[0].mxu0 %v1931
      %v2005 = vpop.f32.mrb[0].mxu0
      %v2006 = vadd.f32 0.0, %v2005
      %v2007 = vpop.f32.mrb[0].mxu0
      %v2008 = vpop.f32.mrb[0].mxu0
      %v2009 = vadd.f32 0.0, %v2008
      %v2010 = vpop.f32.mrb[0].mxu0
      %2011 = vmatprep.mubr.bf16.mxu0 0
      %2012 = vmatmul.mubr.bf16.gmra.mrb[0].mxu0 %v1934
      %v2013 = vpop.f32.mrb[0].mxu0
      %v2014 = vadd.f32 0.0, %v2013
      %v2015 = vpop.f32.mrb[0].mxu0
      %v2016 = vpop.f32.mrb[0].mxu0
      %v2017 = vadd.f32 0.0, %v2016
      %v2018 = vpop.f32.mrb[0].mxu0
      %2019 = vmatprep.mubr.bf16.mxu0 0
      %2020 = vmatmul.mubr.bf16.gmra.mrb[0].mxu0 %v1937
      %v2021 = vpop.f32.mrb[0].mxu0
      %v2022 = vadd.f32 0.0, %v2021
      %v2023 = vpop.f32.mrb[0].mxu0
      %v2024 = vpop.f32.mrb[0].mxu0
      %v2025 = vadd.f32 0.0, %v2024
      %v2026 = vpop.f32.mrb[0].mxu0
      %2027 = vmatprep.mubr.bf16.mxu0 0
      %2028 = vmatmul.mubr.bf16.gmra.mrb[0].mxu0 %v1940
      %v2029 = vpop.f32.mrb[0].mxu0
      %v2030 = vadd.f32 0.0, %v2029
      %v2031 = vpop.f32.mrb[0].mxu0
      %v2032 = vpop.f32.mrb[0].mxu0
      %v2033 = vadd.f32 0.0, %v2032
      %v2034 = vpop.f32.mrb[0].mxu0
      %2035 = vmatprep.mubr.bf16.mxu0 0
      %2036 = vmatmul.mubr.bf16.gmra.mrb[0].mxu0 %v1943
      %v2037 = vpop.f32.mrb[0].mxu0
      %v2038 = vadd.f32 0.0, %v2037
      %v2039 = vpop.f32.mrb[0].mxu0
      %v2040 = vpop.f32.mrb[0].mxu0
      %v2041 = vadd.f32 0.0, %v2040
      %v2042 = vpop.f32.mrb[0].mxu0
      %2043 = vdwg.mxu0
      %v2044 = vmul.f32 %v1998, 0.35355338
      %v2045 = vmul.f32 %v2001, 0.35355338
      %v2046 = vmul.f32 %v2006, 0.35355338
      %v2047 = vmul.f32 %v2009, 0.35355338
      %v2048 = vmul.f32 %v2014, 0.35355338
      %v2049 = vmul.f32 %v2017, 0.35355338
      %v2050 = vmul.f32 %v2022, 0.35355338
      %v2051 = vmul.f32 %v2025, 0.35355338
      %v2052 = vmul.f32 %v2030, 0.35355338
      %v2053 = vmul.f32 %v2033, 0.35355338
      %v2054 = vmul.f32 %v2038, 0.35355338
      %v2055 = vmul.f32 %v2041, 0.35355338
      %v2056 = vadd.f32 %v2044, %v481
      %v2057 = vadd.f32 %v2045, %v482
      %v2058 = vadd.f32 %v2046, %v483
      %v2059 = vadd.f32 %v2047, %v484
      %v2060 = vadd.f32 %v2048, %v485
      %v2061 = vadd.f32 %v2049, %v486
      %v2062 = vadd.f32 %v2050, %v487
      %v2063 = vadd.f32 %v2051, %v488
      %v2064 = vadd.f32 %v2052, %v489
      %v2065 = vadd.f32 %v2053, %v490
      %v2066 = vadd.f32 %v2054, %v491
      %v2067 = vadd.f32 %v2055, %v492
      %v2068 = vsel %vm813, %v2056, -inf
      %2069 = vmax.xlane.f32.xlu0 %v2068
      %v2070 = vpop.xlane.xlu0 %2069
      %v2071 = vsel %vm813, %v2057, -inf
      %2072 = vmax.xlane.f32.xlu0 %v2071
      %v2073 = vpop.xlane.xlu0 %2072
      %v2074 = vsel %vm813, %v2058, -inf
      %2075 = vmax.xlane.f32.xlu0 %v2074
      %v2076 = vpop.xlane.xlu0 %2075
      %v2077 = vsel %vm813, %v2059, -inf
      %2078 = vmax.xlane.f32.xlu0 %v2077
      %v2079 = vpop.xlane.xlu0 %2078
      %v2080 = vsel %vm813, %v2060, -inf
      %2081 = vmax.xlane.f32.xlu0 %v2080
      %v2082 = vpop.xlane.xlu0 %2081
      %v2083 = vsel %vm813, %v2061, -inf
      %2084 = vmax.xlane.f32.xlu0 %v2083
      %v2085 = vpop.xlane.xlu0 %2084
      %v2086 = vsel %vm813, %v2062, -inf
      %2087 = vmax.xlane.f32.xlu0 %v2086
      %v2088 = vpop.xlane.xlu0 %2087
      %v2089 = vsel %vm813, %v2063, -inf
      %2090 = vmax.xlane.f32.xlu0 %v2089
      %v2091 = vpop.xlane.xlu0 %2090
      %v2092 = vsel %vm813, %v2064, -inf
      %2093 = vmax.xlane.f32.xlu0 %v2092
      %v2094 = vpop.xlane.xlu0 %2093
      %v2095 = vsel %vm813, %v2065, -inf
      %2096 = vmax.xlane.f32.xlu0 %v2095
      %v2097 = vpop.xlane.xlu0 %2096
      %v2098 = vsel %vm813, %v2066, -inf
      %2099 = vmax.xlane.f32.xlu0 %v2098
      %v2100 = vpop.xlane.xlu0 %2099
      %v2101 = vsel %vm813, %v2067, -inf
      %2102 = vmax.xlane.f32.xlu0 %v2101
      %v2103 = vpop.xlane.xlu0 %2102
      %v2104 = vsub.f32 %v2056, %v2070
      %v2105 = vsub.f32 %v2057, %v2073
      %v2106 = vsub.f32 %v2058, %v2076
      %v2107 = vsub.f32 %v2059, %v2079
      %v2108 = vsub.f32 %v2060, %v2082
      %v2109 = vsub.f32 %v2061, %v2085
      %v2110 = vsub.f32 %v2062, %v2088
      %v2111 = vsub.f32 %v2063, %v2091
      %v2112 = vsub.f32 %v2064, %v2094
      %v2113 = vsub.f32 %v2065, %v2097
      %v2114 = vsub.f32 %v2066, %v2100
      %v2115 = vsub.f32 %v2067, %v2103
      %v2116 = vmul.f32 %v2104, 1.442695
      %v2117 = vpow.pop %v2116
      %v2118 = vmul.f32 %v2105, 1.442695
      %v2119 = vpow.pop %v2118
      %v2120 = vmul.f32 %v2106, 1.442695
      %v2121 = vpow.pop %v2120
      %v2122 = vmul.f32 %v2107, 1.442695
      %v2123 = vpow.pop %v2122
      %v2124 = vmul.f32 %v2108, 1.442695
      %v2125 = vpow.pop %v2124
      %v2126 = vmul.f32 %v2109, 1.442695
      %v2127 = vpow.pop %v2126
      %v2128 = vmul.f32 %v2110, 1.442695
      %v2129 = vpow.pop %v2128
      %v2130 = vmul.f32 %v2111, 1.442695
      %v2131 = vpow.pop %v2130
      %v2132 = vmul.f32 %v2112, 1.442695
      %v2133 = vpow.pop %v2132
      %v2134 = vmul.f32 %v2113, 1.442695
      %v2135 = vpow.pop %v2134
      %v2136 = vmul.f32 %v2114, 1.442695
      %v2137 = vpow.pop %v2136
      %v2138 = vmul.f32 %v2115, 1.442695
      %v2139 = vpow.pop %v2138
      %v2140 = vsel %vm813, %v2117, 0.0
      %2141 = vadd.xlane.f32.xlu0 %v2140
      %v2142 = vpop.xlane.xlu0 %2141
      %v2143 = vsel %vm813, %v2119, 0.0
      %2144 = vadd.xlane.f32.xlu0 %v2143
      %v2145 = vpop.xlane.xlu0 %2144
      %v2146 = vsel %vm813, %v2121, 0.0
      %2147 = vadd.xlane.f32.xlu0 %v2146
      %v2148 = vpop.xlane.xlu0 %2147
      %v2149 = vsel %vm813, %v2123, 0.0
      %2150 = vadd.xlane.f32.xlu0 %v2149
      %v2151 = vpop.xlane.xlu0 %2150
      %v2152 = vsel %vm813, %v2125, 0.0
      %2153 = vadd.xlane.f32.xlu0 %v2152
      %v2154 = vpop.xlane.xlu0 %2153
      %v2155 = vsel %vm813, %v2127, 0.0
      %2156 = vadd.xlane.f32.xlu0 %v2155
      %v2157 = vpop.xlane.xlu0 %2156
      %v2158 = vsel %vm813, %v2129, 0.0
      %2159 = vadd.xlane.f32.xlu0 %v2158
      %v2160 = vpop.xlane.xlu0 %2159
      %v2161 = vsel %vm813, %v2131, 0.0
      %2162 = vadd.xlane.f32.xlu0 %v2161
      %v2163 = vpop.xlane.xlu0 %2162
      %v2164 = vsel %vm813, %v2133, 0.0
      %2165 = vadd.xlane.f32.xlu0 %v2164
      %v2166 = vpop.xlane.xlu0 %2165
      %v2167 = vsel %vm813, %v2135, 0.0
      %2168 = vadd.xlane.f32.xlu0 %v2167
      %v2169 = vpop.xlane.xlu0 %2168
      %v2170 = vsel %vm813, %v2137, 0.0
      %2171 = vadd.xlane.f32.xlu0 %v2170
      %v2172 = vpop.xlane.xlu0 %2171
      %v2173 = vsel %vm813, %v2139, 0.0
      %2174 = vadd.xlane.f32.xlu0 %v2173
      %v2175 = vpop.xlane.xlu0 %2174
      %v2176 = vrcp.pop %v2142
      %v2177 = vrcp.pop %v2145
      %v2178 = vrcp.pop %v2148
      %v2179 = vrcp.pop %v2151
      %v2180 = vrcp.pop %v2154
      %v2181 = vrcp.pop %v2157
      %v2182 = vrcp.pop %v2160
      %v2183 = vrcp.pop %v2163
      %v2184 = vrcp.pop %v2166
      %v2185 = vrcp.pop %v2169
      %v2186 = vrcp.pop %v2172
      %v2187 = vrcp.pop %v2175
      %v2188 = vmul.f32 %v2117, %v2176
      %v2189 = vmul.f32 %v2119, %v2177
      %v2190 = vmul.f32 %v2121, %v2178
      %v2191 = vmul.f32 %v2123, %v2179
      %v2192 = vmul.f32 %v2125, %v2180
      %v2193 = vmul.f32 %v2127, %v2181
      %v2194 = vmul.f32 %v2129, %v2182
      %v2195 = vmul.f32 %v2131, %v2183
      %v2196 = vmul.f32 %v2133, %v2184
      %v2197 = vmul.f32 %v2135, %v2185
      %v2198 = vmul.f32 %v2137, %v2186
      %v2199 = vmul.f32 %v2139, %v2187
      %v2200 = vpack.c.bf16 %v2189, %v2188
      %v2201 = vpack.c.bf16 %v2191, %v2190
      %v2202 = vpack.c.bf16 %v2193, %v2192
      %v2203 = vpack.c.bf16 %v2195, %v2194
      %v2204 = vpack.c.bf16 %v2197, %v2196
      %v2205 = vpack.c.bf16 %v2199, %v2198
      %2206 = vrot.lane.b32.xlu0 %v952, 104
      %v2207 = vpop.permute.xlu0 %2206
      %2208 = vrot.lane.b32.xlu0 %v953, 104
      %v2209 = vpop.permute.xlu0 %2208
      %2210 = vrot.lane.b32.xlu0 %v954, 104
      %v2211 = vpop.permute.xlu0 %2210
      %2212 = vrot.lane.b32.xlu0 %v955, 104
      %v2213 = vpop.permute.xlu0 %2212
      %2214 = vrot.lane.b32.xlu0 %v956, 104
      %v2215 = vpop.permute.xlu0 %2214
      %2216 = vrot.lane.b32.xlu0 %v957, 104
      %v2217 = vpop.permute.xlu0 %2216
      %v2225 = vsel %vm813, %v2200, 0
      %v2228 = vsel %vm813, %v2201, 0
      %v2231 = vsel %vm813, %v2202, 0
      %v2234 = vsel %vm813, %v2203, 0
      %v2237 = vsel %vm813, %v2204, 0
      %v2240 = vsel %vm813, %v2205, 0
      %2242 = vmatprep.subr.bf16.mxu0 0
      %2243 = vmatpush1.bf16.msra.mxu0 %v2207
      %2244 = vmatprep.subr.bf16.mxu0 0
      %2245 = vmatpush1.bf16.msra.mxu0 %v2209
      %2246 = vmatprep.subr.bf16.mxu0 0
      %2247 = vmatpush1.bf16.msra.mxu0 %v2211
      %2248 = vmatprep.subr.bf16.mxu0 0
      %2249 = vmatpush1.bf16.msra.mxu0 %v2213
      %2250 = vmatprep.subr.bf16.mxu0 0
      %2251 = vmatpush1.bf16.msra.mxu0 %v2215
      %2252 = vmatprep.subr.bf16.mxu0 0
      %2253 = vmatpush1.bf16.msra.mxu0 %v2217
      %2254 = vmatprep.subr.bf16.mxu0 0
      %2255 = vmatpush1.bf16.msra.mxu0 0
      %2256 = vmatprep.subr.bf16.mxu0 0
      %2257 = vmatpush1.bf16.msra.mxu0 0
      %2258 = vmatprep.subr.bf16.mxu0 0
      %2259 = vmatpush1.bf16.msra.mxu0 0
      %2260 = vmatprep.subr.bf16.mxu0 0
      %2261 = vmatpush1.bf16.msra.mxu0 0
      %2262 = vmatprep.subr.bf16.mxu0 0
      %2263 = vmatpush1.bf16.msra.mxu0 0
      %2264 = vmatprep.subr.bf16.mxu0 0
      %2265 = vmatpush1.bf16.msra.mxu0 0
      %2266 = vmatprep.subr.bf16.mxu0 0
      %2267 = vmatpush1.bf16.msra.mxu0 0
      %2268 = vmatprep.subr.bf16.mxu0 0
      %2269 = vmatpush1.bf16.msra.mxu0 0
      %2270 = vmatprep.subr.bf16.mxu0 0
      %2271 = vmatpush1.bf16.msra.mxu0 0
      %2272 = vmatprep.subr.bf16.mxu0 0
      %2273 = vmatpush1.bf16.msra.mxu0 0
      %2274 = vmatprep.mubr.bf16.mxu0 0
      %2275 = vmatmul.mubr.bf16.gmra.mrb[0].mxu0 %v2225
      %v2276 = vpop.f32.mrb[0].mxu0
      %v2277 = vadd.f32 0.0, %v2276
      %v2278 = vpop.f32.mrb[0].mxu0
      %v2279 = vpop.f32.mrb[0].mxu0
      %v2280 = vadd.f32 0.0, %v2279
      %v2281 = vpop.f32.mrb[0].mxu0
      %2282 = vmatprep.mubr.bf16.mxu0 0
      %2283 = vmatmul.mubr.bf16.gmra.mrb[0].mxu0 %v2228
      %v2284 = vpop.f32.mrb[0].mxu0
      %v2285 = vadd.f32 0.0, %v2284
      %v2286 = vpop.f32.mrb[0].mxu0
      %v2287 = vpop.f32.mrb[0].mxu0
      %v2288 = vadd.f32 0.0, %v2287
      %v2289 = vpop.f32.mrb[0].mxu0
      %2290 = vmatprep.mubr.bf16.mxu0 0
      %2291 = vmatmul.mubr.bf16.gmra.mrb[0].mxu0 %v2231
      %v2292 = vpop.f32.mrb[0].mxu0
      %v2293 = vadd.f32 0.0, %v2292
      %v2294 = vpop.f32.mrb[0].mxu0
      %v2295 = vpop.f32.mrb[0].mxu0
      %v2296 = vadd.f32 0.0, %v2295
      %v2297 = vpop.f32.mrb[0].mxu0
      %2298 = vmatprep.mubr.bf16.mxu0 0
      %2299 = vmatmul.mubr.bf16.gmra.mrb[0].mxu0 %v2234
      %v2300 = vpop.f32.mrb[0].mxu0
      %v2301 = vadd.f32 0.0, %v2300
      %v2302 = vpop.f32.mrb[0].mxu0
      %v2303 = vpop.f32.mrb[0].mxu0
      %v2304 = vadd.f32 0.0, %v2303
      %v2305 = vpop.f32.mrb[0].mxu0
      %2306 = vmatprep.mubr.bf16.mxu0 0
      %2307 = vmatmul.mubr.bf16.gmra.mrb[0].mxu0 %v2237
      %v2308 = vpop.f32.mrb[0].mxu0
      %v2309 = vadd.f32 0.0, %v2308
      %v2310 = vpop.f32.mrb[0].mxu0
      %v2311 = vpop.f32.mrb[0].mxu0
      %v2312 = vadd.f32 0.0, %v2311
      %v2313 = vpop.f32.mrb[0].mxu0
      %2314 = vmatprep.mubr.bf16.mxu0 0
      %2315 = vmatmul.mubr.bf16.gmra.mrb[0].mxu0 %v2240
      %v2316 = vpop.f32.mrb[0].mxu0
      %v2317 = vadd.f32 0.0, %v2316
      %v2318 = vpop.f32.mrb[0].mxu0
      %v2319 = vpop.f32.mrb[0].mxu0
      %v2320 = vadd.f32 0.0, %v2319
      %v2321 = vpop.f32.mrb[0].mxu0
      %2322 = vdwg.mxu0
      %2323 = vrot.lane.b32.xlu0 %v647, 96
      %v2324 = vpop.permute.xlu0 %2323
      %2325 = vrot.lane.b32.xlu0 %v648, 96
      %v2326 = vpop.permute.xlu0 %2325
      %2327 = vrot.lane.b32.xlu0 %v649, 96
      %v2328 = vpop.permute.xlu0 %2327
      %2329 = vrot.lane.b32.xlu0 %v650, 96
      %v2330 = vpop.permute.xlu0 %2329
      %2331 = vrot.lane.b32.xlu0 %v651, 96
      %v2332 = vpop.permute.xlu0 %2331
      %2333 = vrot.lane.b32.xlu0 %v652, 96
      %v2334 = vpop.permute.xlu0 %2333
      %2335 = vrot.lane.b32.xlu0 %v647, 32
      %v2336 = vpop.permute.xlu0 %2335
      %2337 = vrot.lane.b32.xlu0 %v648, 32
      %v2338 = vpop.permute.xlu0 %2337
      %2339 = vrot.lane.b32.xlu0 %v649, 32
      %v2340 = vpop.permute.xlu0 %2339
      %2341 = vrot.lane.b32.xlu0 %v650, 32
      %v2342 = vpop.permute.xlu0 %2341
      %2343 = vrot.lane.b32.xlu0 %v651, 32
      %v2344 = vpop.permute.xlu0 %2343
      %2345 = vrot.lane.b32.xlu0 %v652, 32
      %v2346 = vpop.permute.xlu0 %2345
      %v2348 = vsel %vm671, %v2324, 0
      %v2351 = vsel %vm671, %v2326, 0
      %v2354 = vsel %vm671, %v2328, 0
      %v2357 = vsel %vm671, %v2330, 0
      %v2360 = vsel %vm671, %v2332, 0
      %v2363 = vsel %vm671, %v2334, 0
      %v2366 = vsel %vm671, %v2336, 0
      %v2369 = vsel %vm671, %v2338, 0
      %v2372 = vsel %vm671, %v2340, 0
      %v2375 = vsel %vm671, %v2342, 0
      %v2378 = vsel %vm671, %v2344, 0
      %v2381 = vsel %vm671, %v2346, 0
      %2383 = vmatprep.subr.bf16.mxu0 0
      %2384 = vmatpush1.bf16.xpose.msra.mxu0 %v2366
      %2385 = vmatprep.subr.bf16.mxu0 0
      %2386 = vmatpush1.bf16.xpose.msra.mxu0 %v2369
      %2387 = vmatprep.subr.bf16.mxu0 0
      %2388 = vmatpush1.bf16.xpose.msra.mxu0 %v2372
      %2389 = vmatprep.subr.bf16.mxu0 0
      %2390 = vmatpush1.bf16.xpose.msra.mxu0 %v2375
      %2391 = vmatprep.subr.bf16.mxu0 0
      %2392 = vmatpush1.bf16.xpose.msra.mxu0 %v2378
      %2393 = vmatprep.subr.bf16.mxu0 0
      %2394 = vmatpush1.bf16.xpose.msra.mxu0 %v2381
      %2395 = vmatprep.subr.bf16.mxu0 0
      %2396 = vmatpush1.bf16.xpose.msra.mxu0 0
      %2397 = vmatprep.subr.bf16.mxu0 0
      %2398 = vmatpush1.bf16.xpose.msra.mxu0 0
      %2399 = vmatprep.subr.bf16.mxu0 0
      %2400 = vmatpush1.bf16.xpose.msra.mxu0 0
      %2401 = vmatprep.subr.bf16.mxu0 0
      %2402 = vmatpush1.bf16.xpose.msra.mxu0 0
      %2403 = vmatprep.subr.bf16.mxu0 0
      %2404 = vmatpush1.bf16.xpose.msra.mxu0 0
      %2405 = vmatprep.subr.bf16.mxu0 0
      %2406 = vmatpush1.bf16.xpose.msra.mxu0 0
      %2407 = vmatprep.subr.bf16.mxu0 0
      %2408 = vmatpush1.bf16.xpose.msra.mxu0 0
      %2409 = vmatprep.subr.bf16.mxu0 0
      %2410 = vmatpush1.bf16.xpose.msra.mxu0 0
      %2411 = vmatprep.subr.bf16.mxu0 0
      %2412 = vmatpush1.bf16.xpose.msra.mxu0 0
      %2413 = vmatprep.subr.bf16.mxu0 0
      %2414 = vmatpush1.bf16.xpose.msra.mxu0 0
      %2415 = vmatprep.mubr.bf16.mxu0 0
      %2416 = vmatmul.mubr.bf16.gmra.mrb[0].mxu0 %v2348
      %v2417 = vpop.f32.mrb[0].mxu0
      %v2418 = vadd.f32 0.0, %v2417
      %v2419 = vpop.f32.mrb[0].mxu0
      %v2420 = vpop.f32.mrb[0].mxu0
      %v2421 = vadd.f32 0.0, %v2420
      %v2422 = vpop.f32.mrb[0].mxu0
      %2423 = vmatprep.mubr.bf16.mxu0 0
      %2424 = vmatmul.mubr.bf16.gmra.mrb[0].mxu0 %v2351
      %v2425 = vpop.f32.mrb[0].mxu0
      %v2426 = vadd.f32 0.0, %v2425
      %v2427 = vpop.f32.mrb[0].mxu0
      %v2428 = vpop.f32.mrb[0].mxu0
      %v2429 = vadd.f32 0.0, %v2428
      %v2430 = vpop.f32.mrb[0].mxu0
      %2431 = vmatprep.mubr.bf16.mxu0 0
      %2432 = vmatmul.mubr.bf16.gmra.mrb[0].mxu0 %v2354
      %v2433 = vpop.f32.mrb[0].mxu0
      %v2434 = vadd.f32 0.0, %v2433
      %v2435 = vpop.f32.mrb[0].mxu0
      %v2436 = vpop.f32.mrb[0].mxu0
      %v2437 = vadd.f32 0.0, %v2436
      %v2438 = vpop.f32.mrb[0].mxu0
      %2439 = vmatprep.mubr.bf16.mxu0 0
      %2440 = vmatmul.mubr.bf16.gmra.mrb[0].mxu0 %v2357
      %v2441 = vpop.f32.mrb[0].mxu0
      %v2442 = vadd.f32 0.0, %v2441
      %v2443 = vpop.f32.mrb[0].mxu0
      %v2444 = vpop.f32.mrb[0].mxu0
      %v2445 = vadd.f32 0.0, %v2444
      %v2446 = vpop.f32.mrb[0].mxu0
      %2447 = vmatprep.mubr.bf16.mxu0 0
      %2448 = vmatmul.mubr.bf16.gmra.mrb[0].mxu0 %v2360
      %v2449 = vpop.f32.mrb[0].mxu0
      %v2450 = vadd.f32 0.0, %v2449
      %v2451 = vpop.f32.mrb[0].mxu0
      %v2452 = vpop.f32.mrb[0].mxu0
      %v2453 = vadd.f32 0.0, %v2452
      %v2454 = vpop.f32.mrb[0].mxu0
      %2455 = vmatprep.mubr.bf16.mxu0 0
      %2456 = vmatmul.mubr.bf16.gmra.mrb[0].mxu0 %v2363
      %v2457 = vpop.f32.mrb[0].mxu0
      %v2458 = vadd.f32 0.0, %v2457
      %v2459 = vpop.f32.mrb[0].mxu0
      %v2460 = vpop.f32.mrb[0].mxu0
      %v2461 = vadd.f32 0.0, %v2460
      %v2462 = vpop.f32.mrb[0].mxu0
      %2463 = vdwg.mxu0
      %v2464 = vmul.f32 %v2418, 0.35355338
      %v2465 = vmul.f32 %v2421, 0.35355338
      %v2466 = vmul.f32 %v2426, 0.35355338
      %v2467 = vmul.f32 %v2429, 0.35355338
      %v2468 = vmul.f32 %v2434, 0.35355338
      %v2469 = vmul.f32 %v2437, 0.35355338
      %v2470 = vmul.f32 %v2442, 0.35355338
      %v2471 = vmul.f32 %v2445, 0.35355338
      %v2472 = vmul.f32 %v2450, 0.35355338
      %v2473 = vmul.f32 %v2453, 0.35355338
      %v2474 = vmul.f32 %v2458, 0.35355338
      %v2475 = vmul.f32 %v2461, 0.35355338
      %v2476 = vadd.f32 %v2464, %v481
      %v2477 = vadd.f32 %v2465, %v482
      %v2478 = vadd.f32 %v2466, %v483
      %v2479 = vadd.f32 %v2467, %v484
      %v2480 = vadd.f32 %v2468, %v485
      %v2481 = vadd.f32 %v2469, %v486
      %v2482 = vadd.f32 %v2470, %v487
      %v2483 = vadd.f32 %v2471, %v488
      %v2484 = vadd.f32 %v2472, %v489
      %v2485 = vadd.f32 %v2473, %v490
      %v2486 = vadd.f32 %v2474, %v491
      %v2487 = vadd.f32 %v2475, %v492
      %v2488 = vsel %vm813, %v2476, -inf
      %2489 = vmax.xlane.f32.xlu0 %v2488
      %v2490 = vpop.xlane.xlu0 %2489
      %v2491 = vsel %vm813, %v2477, -inf
      %2492 = vmax.xlane.f32.xlu0 %v2491
      %v2493 = vpop.xlane.xlu0 %2492
      %v2494 = vsel %vm813, %v2478, -inf
      %2495 = vmax.xlane.f32.xlu0 %v2494
      %v2496 = vpop.xlane.xlu0 %2495
      %v2497 = vsel %vm813, %v2479, -inf
      %2498 = vmax.xlane.f32.xlu0 %v2497
      %v2499 = vpop.xlane.xlu0 %2498
      %v2500 = vsel %vm813, %v2480, -inf
      %2501 = vmax.xlane.f32.xlu0 %v2500
      %v2502 = vpop.xlane.xlu0 %2501
      %v2503 = vsel %vm813, %v2481, -inf
      %2504 = vmax.xlane.f32.xlu0 %v2503
      %v2505 = vpop.xlane.xlu0 %2504
      %v2506 = vsel %vm813, %v2482, -inf
      %2507 = vmax.xlane.f32.xlu0 %v2506
      %v2508 = vpop.xlane.xlu0 %2507
      %v2509 = vsel %vm813, %v2483, -inf
      %2510 = vmax.xlane.f32.xlu0 %v2509
      %v2511 = vpop.xlane.xlu0 %2510
      %v2512 = vsel %vm813, %v2484, -inf
      %2513 = vmax.xlane.f32.xlu0 %v2512
      %v2514 = vpop.xlane.xlu0 %2513
      %v2515 = vsel %vm813, %v2485, -inf
      %2516 = vmax.xlane.f32.xlu0 %v2515
      %v2517 = vpop.xlane.xlu0 %2516
      %v2518 = vsel %vm813, %v2486, -inf
      %2519 = vmax.xlane.f32.xlu0 %v2518
      %v2520 = vpop.xlane.xlu0 %2519
      %v2521 = vsel %vm813, %v2487, -inf
      %2522 = vmax.xlane.f32.xlu0 %v2521
      %v2523 = vpop.xlane.xlu0 %2522
      %v2524 = vsub.f32 %v2476, %v2490
      %v2525 = vsub.f32 %v2477, %v2493
      %v2526 = vsub.f32 %v2478, %v2496
      %v2527 = vsub.f32 %v2479, %v2499
      %v2528 = vsub.f32 %v2480, %v2502
      %v2529 = vsub.f32 %v2481, %v2505
      %v2530 = vsub.f32 %v2482, %v2508
      %v2531 = vsub.f32 %v2483, %v2511
      %v2532 = vsub.f32 %v2484, %v2514
      %v2533 = vsub.f32 %v2485, %v2517
      %v2534 = vsub.f32 %v2486, %v2520
      %v2535 = vsub.f32 %v2487, %v2523
      %v2536 = vmul.f32 %v2524, 1.442695
      %v2537 = vpow.pop %v2536
      %v2538 = vmul.f32 %v2525, 1.442695
      %v2539 = vpow.pop %v2538
      %v2540 = vmul.f32 %v2526, 1.442695
      %v2541 = vpow.pop %v2540
      %v2542 = vmul.f32 %v2527, 1.442695
      %v2543 = vpow.pop %v2542
      %v2544 = vmul.f32 %v2528, 1.442695
      %v2545 = vpow.pop %v2544
      %v2546 = vmul.f32 %v2529, 1.442695
      %v2547 = vpow.pop %v2546
      %v2548 = vmul.f32 %v2530, 1.442695
      %v2549 = vpow.pop %v2548
      %v2550 = vmul.f32 %v2531, 1.442695
      %v2551 = vpow.pop %v2550
      %v2552 = vmul.f32 %v2532, 1.442695
      %v2553 = vpow.pop %v2552
      %v2554 = vmul.f32 %v2533, 1.442695
      %v2555 = vpow.pop %v2554
      %v2556 = vmul.f32 %v2534, 1.442695
      %v2557 = vpow.pop %v2556
      %v2558 = vmul.f32 %v2535, 1.442695
      %v2559 = vpow.pop %v2558
      %v2560 = vsel %vm813, %v2537, 0.0
      %2561 = vadd.xlane.f32.xlu0 %v2560
      %v2562 = vpop.xlane.xlu0 %2561
      %v2563 = vsel %vm813, %v2539, 0.0
      %2564 = vadd.xlane.f32.xlu0 %v2563
      %v2565 = vpop.xlane.xlu0 %2564
      %v2566 = vsel %vm813, %v2541, 0.0
      %2567 = vadd.xlane.f32.xlu0 %v2566
      %v2568 = vpop.xlane.xlu0 %2567
      %v2569 = vsel %vm813, %v2543, 0.0
      %2570 = vadd.xlane.f32.xlu0 %v2569
      %v2571 = vpop.xlane.xlu0 %2570
      %v2572 = vsel %vm813, %v2545, 0.0
      %2573 = vadd.xlane.f32.xlu0 %v2572
      %v2574 = vpop.xlane.xlu0 %2573
      %v2575 = vsel %vm813, %v2547, 0.0
      %2576 = vadd.xlane.f32.xlu0 %v2575
      %v2577 = vpop.xlane.xlu0 %2576
      %v2578 = vsel %vm813, %v2549, 0.0
      %2579 = vadd.xlane.f32.xlu0 %v2578
      %v2580 = vpop.xlane.xlu0 %2579
      %v2581 = vsel %vm813, %v2551, 0.0
      %2582 = vadd.xlane.f32.xlu0 %v2581
      %v2583 = vpop.xlane.xlu0 %2582
      %v2584 = vsel %vm813, %v2553, 0.0
      %2585 = vadd.xlane.f32.xlu0 %v2584
      %v2586 = vpop.xlane.xlu0 %2585
      %v2587 = vsel %vm813, %v2555, 0.0
      %2588 = vadd.xlane.f32.xlu0 %v2587
      %v2589 = vpop.xlane.xlu0 %2588
      %v2590 = vsel %vm813, %v2557, 0.0
      %2591 = vadd.xlane.f32.xlu0 %v2590
      %v2592 = vpop.xlane.xlu0 %2591
      %v2593 = vsel %vm813, %v2559, 0.0
      %2594 = vadd.xlane.f32.xlu0 %v2593
      %v2595 = vpop.xlane.xlu0 %2594
      %v2596 = vrcp.pop %v2562
      %v2597 = vrcp.pop %v2565
      %v2598 = vrcp.pop %v2568
      %v2599 = vrcp.pop %v2571
      %v2600 = vrcp.pop %v2574
      %v2601 = vrcp.pop %v2577
      %v2602 = vrcp.pop %v2580
      %v2603 = vrcp.pop %v2583
      %v2604 = vrcp.pop %v2586
      %v2605 = vrcp.pop %v2589
      %v2606 = vrcp.pop %v2592
      %v2607 = vrcp.pop %v2595
      %v2608 = vmul.f32 %v2537, %v2596
      %v2609 = vmul.f32 %v2539, %v2597
      %v2610 = vmul.f32 %v2541, %v2598
      %v2611 = vmul.f32 %v2543, %v2599
      %v2612 = vmul.f32 %v2545, %v2600
      %v2613 = vmul.f32 %v2547, %v2601
      %v2614 = vmul.f32 %v2549, %v2602
      %v2615 = vmul.f32 %v2551, %v2603
      %v2616 = vmul.f32 %v2553, %v2604
      %v2617 = vmul.f32 %v2555, %v2605
      %v2618 = vmul.f32 %v2557, %v2606
      %v2619 = vmul.f32 %v2559, %v2607
      %v2620 = vpack.c.bf16 %v2609, %v2608
      %v2621 = vpack.c.bf16 %v2611, %v2610
      %v2622 = vpack.c.bf16 %v2613, %v2612
      %v2623 = vpack.c.bf16 %v2615, %v2614
      %v2624 = vpack.c.bf16 %v2617, %v2616
      %v2625 = vpack.c.bf16 %v2619, %v2618
      %2626 = vrot.lane.b32.xlu0 %v952, 96
      %v2627 = vpop.permute.xlu0 %2626
      %2628 = vrot.lane.b32.xlu0 %v953, 96
      %v2629 = vpop.permute.xlu0 %2628
      %2630 = vrot.lane.b32.xlu0 %v954, 96
      %v2631 = vpop.permute.xlu0 %2630
      %2632 = vrot.lane.b32.xlu0 %v955, 96
      %v2633 = vpop.permute.xlu0 %2632
      %2634 = vrot.lane.b32.xlu0 %v956, 96
      %v2635 = vpop.permute.xlu0 %2634
      %2636 = vrot.lane.b32.xlu0 %v957, 96
      %v2637 = vpop.permute.xlu0 %2636
      %v2645 = vsel %vm813, %v2620, 0
      %v2648 = vsel %vm813, %v2621, 0
      %v2651 = vsel %vm813, %v2622, 0
      %v2654 = vsel %vm813, %v2623, 0
      %v2657 = vsel %vm813, %v2624, 0
      %v2660 = vsel %vm813, %v2625, 0
      %2662 = vmatprep.subr.bf16.mxu0 0
      %2663 = vmatpush1.bf16.msra.mxu0 %v2627
      %2664 = vmatprep.subr.bf16.mxu0 0
      %2665 = vmatpush1.bf16.msra.mxu0 %v2629
      %2666 = vmatprep.subr.bf16.mxu0 0
      %2667 = vmatpush1.bf16.msra.mxu0 %v2631
      %2668 = vmatprep.subr.bf16.mxu0 0
      %2669 = vmatpush1.bf16.msra.mxu0 %v2633
      %2670 = vmatprep.subr.bf16.mxu0 0
      %2671 = vmatpush1.bf16.msra.mxu0 %v2635
      %2672 = vmatprep.subr.bf16.mxu0 0
      %2673 = vmatpush1.bf16.msra.mxu0 %v2637
      %2674 = vmatprep.subr.bf16.mxu0 0
      %2675 = vmatpush1.bf16.msra.mxu0 0
      %2676 = vmatprep.subr.bf16.mxu0 0
      %2677 = vmatpush1.bf16.msra.mxu0 0
      %2678 = vmatprep.subr.bf16.mxu0 0
      %2679 = vmatpush1.bf16.msra.mxu0 0
      %2680 = vmatprep.subr.bf16.mxu0 0
      %2681 = vmatpush1.bf16.msra.mxu0 0
      %2682 = vmatprep.subr.bf16.mxu0 0
      %2683 = vmatpush1.bf16.msra.mxu0 0
      %2684 = vmatprep.subr.bf16.mxu0 0
      %2685 = vmatpush1.bf16.msra.mxu0 0
      %2686 = vmatprep.subr.bf16.mxu0 0
      %2687 = vmatpush1.bf16.msra.mxu0 0
      %2688 = vmatprep.subr.bf16.mxu0 0
      %2689 = vmatpush1.bf16.msra.mxu0 0
      %2690 = vmatprep.subr.bf16.mxu0 0
      %2691 = vmatpush1.bf16.msra.mxu0 0
      %2692 = vmatprep.subr.bf16.mxu0 0
      %2693 = vmatpush1.bf16.msra.mxu0 0
      %2694 = vmatprep.mubr.bf16.mxu0 0
      %2695 = vmatmul.mubr.bf16.gmra.mrb[0].mxu0 %v2645
      %v2696 = vpop.f32.mrb[0].mxu0
      %v2697 = vadd.f32 0.0, %v2696
      %v2698 = vpop.f32.mrb[0].mxu0
      %v2699 = vpop.f32.mrb[0].mxu0
      %v2700 = vadd.f32 0.0, %v2699
      %v2701 = vpop.f32.mrb[0].mxu0
      %2702 = vmatprep.mubr.bf16.mxu0 0
      %2703 = vmatmul.mubr.bf16.gmra.mrb[0].mxu0 %v2648
      %v2704 = vpop.f32.mrb[0].mxu0
      %v2705 = vadd.f32 0.0, %v2704
      %v2706 = vpop.f32.mrb[0].mxu0
      %v2707 = vpop.f32.mrb[0].mxu0
      %v2708 = vadd.f32 0.0, %v2707
      %v2709 = vpop.f32.mrb[0].mxu0
      %2710 = vmatprep.mubr.bf16.mxu0 0
      %2711 = vmatmul.mubr.bf16.gmra.mrb[0].mxu0 %v2651
      %v2712 = vpop.f32.mrb[0].mxu0
      %v2713 = vadd.f32 0.0, %v2712
      %v2714 = vpop.f32.mrb[0].mxu0
      %v2715 = vpop.f32.mrb[0].mxu0
      %v2716 = vadd.f32 0.0, %v2715
      %v2717 = vpop.f32.mrb[0].mxu0
      %2718 = vmatprep.mubr.bf16.mxu0 0
      %2719 = vmatmul.mubr.bf16.gmra.mrb[0].mxu0 %v2654
      %v2720 = vpop.f32.mrb[0].mxu0
      %v2721 = vadd.f32 0.0, %v2720
      %v2722 = vpop.f32.mrb[0].mxu0
      %v2723 = vpop.f32.mrb[0].mxu0
      %v2724 = vadd.f32 0.0, %v2723
      %v2725 = vpop.f32.mrb[0].mxu0
      %2726 = vmatprep.mubr.bf16.mxu0 0
      %2727 = vmatmul.mubr.bf16.gmra.mrb[0].mxu0 %v2657
      %v2728 = vpop.f32.mrb[0].mxu0
      %v2729 = vadd.f32 0.0, %v2728
      %v2730 = vpop.f32.mrb[0].mxu0
      %v2731 = vpop.f32.mrb[0].mxu0
      %v2732 = vadd.f32 0.0, %v2731
      %v2733 = vpop.f32.mrb[0].mxu0
      %2734 = vmatprep.mubr.bf16.mxu0 0
      %2735 = vmatmul.mubr.bf16.gmra.mrb[0].mxu0 %v2660
      %v2736 = vpop.f32.mrb[0].mxu0
      %v2737 = vadd.f32 0.0, %v2736
      %v2738 = vpop.f32.mrb[0].mxu0
      %v2739 = vpop.f32.mrb[0].mxu0
      %v2740 = vadd.f32 0.0, %v2739
      %v2741 = vpop.f32.mrb[0].mxu0
      %2742 = vdwg.mxu0
      %2743 = vrot.lane.b32.xlu0 %v647, 88
      %v2744 = vpop.permute.xlu0 %2743
      %2745 = vrot.lane.b32.xlu0 %v648, 88
      %v2746 = vpop.permute.xlu0 %2745
      %2747 = vrot.lane.b32.xlu0 %v649, 88
      %v2748 = vpop.permute.xlu0 %2747
      %2749 = vrot.lane.b32.xlu0 %v650, 88
      %v2750 = vpop.permute.xlu0 %2749
      %2751 = vrot.lane.b32.xlu0 %v651, 88
      %v2752 = vpop.permute.xlu0 %2751
      %2753 = vrot.lane.b32.xlu0 %v652, 88
      %v2754 = vpop.permute.xlu0 %2753
      %2755 = vrot.lane.b32.xlu0 %v647, 24
      %v2756 = vpop.permute.xlu0 %2755
      %2757 = vrot.lane.b32.xlu0 %v648, 24
      %v2758 = vpop.permute.xlu0 %2757
      %2759 = vrot.lane.b32.xlu0 %v649, 24
      %v2760 = vpop.permute.xlu0 %2759
      %2761 = vrot.lane.b32.xlu0 %v650, 24
      %v2762 = vpop.permute.xlu0 %2761
      %2763 = vrot.lane.b32.xlu0 %v651, 24
      %v2764 = vpop.permute.xlu0 %2763
      %2765 = vrot.lane.b32.xlu0 %v652, 24
      %v2766 = vpop.permute.xlu0 %2765
      %v2768 = vsel %vm671, %v2744, 0
      %v2771 = vsel %vm671, %v2746, 0
      %v2774 = vsel %vm671, %v2748, 0
      %v2777 = vsel %vm671, %v2750, 0
      %v2780 = vsel %vm671, %v2752, 0
      %v2783 = vsel %vm671, %v2754, 0
      %v2786 = vsel %vm671, %v2756, 0
      %v2789 = vsel %vm671, %v2758, 0
      %v2792 = vsel %vm671, %v2760, 0
      %v2795 = vsel %vm671, %v2762, 0
      %v2798 = vsel %vm671, %v2764, 0
      %v2801 = vsel %vm671, %v2766, 0
      %2803 = vmatprep.subr.bf16.mxu0 0
      %2804 = vmatpush1.bf16.xpose.msra.mxu0 %v2786
      %2805 = vmatprep.subr.bf16.mxu0 0
      %2806 = vmatpush1.bf16.xpose.msra.mxu0 %v2789
      %2807 = vmatprep.subr.bf16.mxu0 0
      %2808 = vmatpush1.bf16.xpose.msra.mxu0 %v2792
      %2809 = vmatprep.subr.bf16.mxu0 0
      %2810 = vmatpush1.bf16.xpose.msra.mxu0 %v2795
      %2811 = vmatprep.subr.bf16.mxu0 0
      %2812 = vmatpush1.bf16.xpose.msra.mxu0 %v2798
      %2813 = vmatprep.subr.bf16.mxu0 0
      %2814 = vmatpush1.bf16.xpose.msra.mxu0 %v2801
      %2815 = vmatprep.subr.bf16.mxu0 0
      %2816 = vmatpush1.bf16.xpose.msra.mxu0 0
      %2817 = vmatprep.subr.bf16.mxu0 0
      %2818 = vmatpush1.bf16.xpose.msra.mxu0 0
      %2819 = vmatprep.subr.bf16.mxu0 0
      %2820 = vmatpush1.bf16.xpose.msra.mxu0 0
      %2821 = vmatprep.subr.bf16.mxu0 0
      %2822 = vmatpush1.bf16.xpose.msra.mxu0 0
      %2823 = vmatprep.subr.bf16.mxu0 0
      %2824 = vmatpush1.bf16.xpose.msra.mxu0 0
      %2825 = vmatprep.subr.bf16.mxu0 0
      %2826 = vmatpush1.bf16.xpose.msra.mxu0 0
      %2827 = vmatprep.subr.bf16.mxu0 0
      %2828 = vmatpush1.bf16.xpose.msra.mxu0 0
      %2829 = vmatprep.subr.bf16.mxu0 0
      %2830 = vmatpush1.bf16.xpose.msra.mxu0 0
      %2831 = vmatprep.subr.bf16.mxu0 0
      %2832 = vmatpush1.bf16.xpose.msra.mxu0 0
      %2833 = vmatprep.subr.bf16.mxu0 0
      %2834 = vmatpush1.bf16.xpose.msra.mxu0 0
      %2835 = vmatprep.mubr.bf16.mxu0 0
      %2836 = vmatmul.mubr.bf16.gmra.mrb[0].mxu0 %v2768
      %v2837 = vpop.f32.mrb[0].mxu0
      %v2838 = vadd.f32 0.0, %v2837
      %v2839 = vpop.f32.mrb[0].mxu0
      %v2840 = vpop.f32.mrb[0].mxu0
      %v2841 = vadd.f32 0.0, %v2840
      %v2842 = vpop.f32.mrb[0].mxu0
      %2843 = vmatprep.mubr.bf16.mxu0 0
      %2844 = vmatmul.mubr.bf16.gmra.mrb[0].mxu0 %v2771
      %v2845 = vpop.f32.mrb[0].mxu0
      %v2846 = vadd.f32 0.0, %v2845
      %v2847 = vpop.f32.mrb[0].mxu0
      %v2848 = vpop.f32.mrb[0].mxu0
      %v2849 = vadd.f32 0.0, %v2848
      %v2850 = vpop.f32.mrb[0].mxu0
      %2851 = vmatprep.mubr.bf16.mxu0 0
      %2852 = vmatmul.mubr.bf16.gmra.mrb[0].mxu0 %v2774
      %v2853 = vpop.f32.mrb[0].mxu0
      %v2854 = vadd.f32 0.0, %v2853
      %v2855 = vpop.f32.mrb[0].mxu0
      %v2856 = vpop.f32.mrb[0].mxu0
      %v2857 = vadd.f32 0.0, %v2856
      %v2858 = vpop.f32.mrb[0].mxu0
      %2859 = vmatprep.mubr.bf16.mxu0 0
      %2860 = vmatmul.mubr.bf16.gmra.mrb[0].mxu0 %v2777
      %v2861 = vpop.f32.mrb[0].mxu0
      %v2862 = vadd.f32 0.0, %v2861
      %v2863 = vpop.f32.mrb[0].mxu0
      %v2864 = vpop.f32.mrb[0].mxu0
      %v2865 = vadd.f32 0.0, %v2864
      %v2866 = vpop.f32.mrb[0].mxu0
      %2867 = vmatprep.mubr.bf16.mxu0 0
      %2868 = vmatmul.mubr.bf16.gmra.mrb[0].mxu0 %v2780
      %v2869 = vpop.f32.mrb[0].mxu0
      %v2870 = vadd.f32 0.0, %v2869
      %v2871 = vpop.f32.mrb[0].mxu0
      %v2872 = vpop.f32.mrb[0].mxu0
      %v2873 = vadd.f32 0.0, %v2872
      %v2874 = vpop.f32.mrb[0].mxu0
      %2875 = vmatprep.mubr.bf16.mxu0 0
      %2876 = vmatmul.mubr.bf16.gmra.mrb[0].mxu0 %v2783
      %v2877 = vpop.f32.mrb[0].mxu0
      %v2878 = vadd.f32 0.0, %v2877
      %v2879 = vpop.f32.mrb[0].mxu0
      %v2880 = vpop.f32.mrb[0].mxu0
      %v2881 = vadd.f32 0.0, %v2880
      %v2882 = vpop.f32.mrb[0].mxu0
      %2883 = vdwg.mxu0
      %v2884 = vmul.f32 %v2838, 0.35355338
      %v2885 = vmul.f32 %v2841, 0.35355338
      %v2886 = vmul.f32 %v2846, 0.35355338
      %v2887 = vmul.f32 %v2849, 0.35355338
      %v2888 = vmul.f32 %v2854, 0.35355338
      %v2889 = vmul.f32 %v2857, 0.35355338
      %v2890 = vmul.f32 %v2862, 0.35355338
      %v2891 = vmul.f32 %v2865, 0.35355338
      %v2892 = vmul.f32 %v2870, 0.35355338
      %v2893 = vmul.f32 %v2873, 0.35355338
      %v2894 = vmul.f32 %v2878, 0.35355338
      %v2895 = vmul.f32 %v2881, 0.35355338
      %v2896 = vadd.f32 %v2884, %v481
      %v2897 = vadd.f32 %v2885, %v482
      %v2898 = vadd.f32 %v2886, %v483
      %v2899 = vadd.f32 %v2887, %v484
      %v2900 = vadd.f32 %v2888, %v485
      %v2901 = vadd.f32 %v2889, %v486
      %v2902 = vadd.f32 %v2890, %v487
      %v2903 = vadd.f32 %v2891, %v488
      %v2904 = vadd.f32 %v2892, %v489
      %v2905 = vadd.f32 %v2893, %v490
      %v2906 = vadd.f32 %v2894, %v491
      %v2907 = vadd.f32 %v2895, %v492
      %v2908 = vsel %vm813, %v2896, -inf
      %2909 = vmax.xlane.f32.xlu0 %v2908
      %v2910 = vpop.xlane.xlu0 %2909
      %v2911 = vsel %vm813, %v2897, -inf
      %2912 = vmax.xlane.f32.xlu0 %v2911
      %v2913 = vpop.xlane.xlu0 %2912
      %v2914 = vsel %vm813, %v2898, -inf
      %2915 = vmax.xlane.f32.xlu0 %v2914
      %v2916 = vpop.xlane.xlu0 %2915
      %v2917 = vsel %vm813, %v2899, -inf
      %2918 = vmax.xlane.f32.xlu0 %v2917
      %v2919 = vpop.xlane.xlu0 %2918
      %v2920 = vsel %vm813, %v2900, -inf
      %2921 = vmax.xlane.f32.xlu0 %v2920
      %v2922 = vpop.xlane.xlu0 %2921
      %v2923 = vsel %vm813, %v2901, -inf
      %2924 = vmax.xlane.f32.xlu0 %v2923
      %v2925 = vpop.xlane.xlu0 %2924
      %v2926 = vsel %vm813, %v2902, -inf
      %2927 = vmax.xlane.f32.xlu0 %v2926
      %v2928 = vpop.xlane.xlu0 %2927
      %v2929 = vsel %vm813, %v2903, -inf
      %2930 = vmax.xlane.f32.xlu0 %v2929
      %v2931 = vpop.xlane.xlu0 %2930
      %v2932 = vsel %vm813, %v2904, -inf
      %2933 = vmax.xlane.f32.xlu0 %v2932
      %v2934 = vpop.xlane.xlu0 %2933
      %v2935 = vsel %vm813, %v2905, -inf
      %2936 = vmax.xlane.f32.xlu0 %v2935
      %v2937 = vpop.xlane.xlu0 %2936
      %v2938 = vsel %vm813, %v2906, -inf
      %2939 = vmax.xlane.f32.xlu0 %v2938
      %v2940 = vpop.xlane.xlu0 %2939
      %v2941 = vsel %vm813, %v2907, -inf
      %2942 = vmax.xlane.f32.xlu0 %v2941
      %v2943 = vpop.xlane.xlu0 %2942
      %v2944 = vsub.f32 %v2896, %v2910
      %v2945 = vsub.f32 %v2897, %v2913
      %v2946 = vsub.f32 %v2898, %v2916
      %v2947 = vsub.f32 %v2899, %v2919
      %v2948 = vsub.f32 %v2900, %v2922
      %v2949 = vsub.f32 %v2901, %v2925
      %v2950 = vsub.f32 %v2902, %v2928
      %v2951 = vsub.f32 %v2903, %v2931
      %v2952 = vsub.f32 %v2904, %v2934
      %v2953 = vsub.f32 %v2905, %v2937
      %v2954 = vsub.f32 %v2906, %v2940
      %v2955 = vsub.f32 %v2907, %v2943
      %v2956 = vmul.f32 %v2944, 1.442695
      %v2957 = vpow.pop %v2956
      %v2958 = vmul.f32 %v2945, 1.442695
      %v2959 = vpow.pop %v2958
      %v2960 = vmul.f32 %v2946, 1.442695
      %v2961 = vpow.pop %v2960
      %v2962 = vmul.f32 %v2947, 1.442695
      %v2963 = vpow.pop %v2962
      %v2964 = vmul.f32 %v2948, 1.442695
      %v2965 = vpow.pop %v2964
      %v2966 = vmul.f32 %v2949, 1.442695
      %v2967 = vpow.pop %v2966
      %v2968 = vmul.f32 %v2950, 1.442695
      %v2969 = vpow.pop %v2968
      %v2970 = vmul.f32 %v2951, 1.442695
      %v2971 = vpow.pop %v2970
      %v2972 = vmul.f32 %v2952, 1.442695
      %v2973 = vpow.pop %v2972
      %v2974 = vmul.f32 %v2953, 1.442695
      %v2975 = vpow.pop %v2974
      %v2976 = vmul.f32 %v2954, 1.442695
      %v2977 = vpow.pop %v2976
      %v2978 = vmul.f32 %v2955, 1.442695
      %v2979 = vpow.pop %v2978
      %v2980 = vsel %vm813, %v2957, 0.0
      %2981 = vadd.xlane.f32.xlu0 %v2980
      %v2982 = vpop.xlane.xlu0 %2981
      %v2983 = vsel %vm813, %v2959, 0.0
      %2984 = vadd.xlane.f32.xlu0 %v2983
      %v2985 = vpop.xlane.xlu0 %2984
      %v2986 = vsel %vm813, %v2961, 0.0
      %2987 = vadd.xlane.f32.xlu0 %v2986
      %v2988 = vpop.xlane.xlu0 %2987
      %v2989 = vsel %vm813, %v2963, 0.0
      %2990 = vadd.xlane.f32.xlu0 %v2989
      %v2991 = vpop.xlane.xlu0 %2990
      %v2992 = vsel %vm813, %v2965, 0.0
      %2993 = vadd.xlane.f32.xlu0 %v2992
      %v2994 = vpop.xlane.xlu0 %2993
      %v2995 = vsel %vm813, %v2967, 0.0
      %2996 = vadd.xlane.f32.xlu0 %v2995
      %v2997 = vpop.xlane.xlu0 %2996
      %v2998 = vsel %vm813, %v2969, 0.0
      %2999 = vadd.xlane.f32.xlu0 %v2998
      %v3000 = vpop.xlane.xlu0 %2999
      %v3001 = vsel %vm813, %v2971, 0.0
      %3002 = vadd.xlane.f32.xlu0 %v3001
      %v3003 = vpop.xlane.xlu0 %3002
      %v3004 = vsel %vm813, %v2973, 0.0
      %3005 = vadd.xlane.f32.xlu0 %v3004
      %v3006 = vpop.xlane.xlu0 %3005
      %v3007 = vsel %vm813, %v2975, 0.0
      %3008 = vadd.xlane.f32.xlu0 %v3007
      %v3009 = vpop.xlane.xlu0 %3008
      %v3010 = vsel %vm813, %v2977, 0.0
      %3011 = vadd.xlane.f32.xlu0 %v3010
      %v3012 = vpop.xlane.xlu0 %3011
      %v3013 = vsel %vm813, %v2979, 0.0
      %3014 = vadd.xlane.f32.xlu0 %v3013
      %v3015 = vpop.xlane.xlu0 %3014
      %v3016 = vrcp.pop %v2982
      %v3017 = vrcp.pop %v2985
      %v3018 = vrcp.pop %v2988
      %v3019 = vrcp.pop %v2991
      %v3020 = vrcp.pop %v2994
      %v3021 = vrcp.pop %v2997
      %v3022 = vrcp.pop %v3000
      %v3023 = vrcp.pop %v3003
      %v3024 = vrcp.pop %v3006
      %v3025 = vrcp.pop %v3009
      %v3026 = vrcp.pop %v3012
      %v3027 = vrcp.pop %v3015
      %v3028 = vmul.f32 %v2957, %v3016
      %v3029 = vmul.f32 %v2959, %v3017
      %v3030 = vmul.f32 %v2961, %v3018
      %v3031 = vmul.f32 %v2963, %v3019
      %v3032 = vmul.f32 %v2965, %v3020
      %v3033 = vmul.f32 %v2967, %v3021
      %v3034 = vmul.f32 %v2969, %v3022
      %v3035 = vmul.f32 %v2971, %v3023
      %v3036 = vmul.f32 %v2973, %v3024
      %v3037 = vmul.f32 %v2975, %v3025
      %v3038 = vmul.f32 %v2977, %v3026
      %v3039 = vmul.f32 %v2979, %v3027
      %v3040 = vpack.c.bf16 %v3029, %v3028
      %v3041 = vpack.c.bf16 %v3031, %v3030
      %v3042 = vpack.c.bf16 %v3033, %v3032
      %v3043 = vpack.c.bf16 %v3035, %v3034
      %v3044 = vpack.c.bf16 %v3037, %v3036
      %v3045 = vpack.c.bf16 %v3039, %v3038
      %3046 = vrot.lane.b32.xlu0 %v952, 88
      %v3047 = vpop.permute.xlu0 %3046
      %3048 = vrot.lane.b32.xlu0 %v953, 88
      %v3049 = vpop.permute.xlu0 %3048
      %3050 = vrot.lane.b32.xlu0 %v954, 88
      %v3051 = vpop.permute.xlu0 %3050
      %3052 = vrot.lane.b32.xlu0 %v955, 88
      %v3053 = vpop.permute.xlu0 %3052
      %3054 = vrot.lane.b32.xlu0 %v956, 88
      %v3055 = vpop.permute.xlu0 %3054
      %3056 = vrot.lane.b32.xlu0 %v957, 88
      %v3057 = vpop.permute.xlu0 %3056
      %v3065 = vsel %vm813, %v3040, 0
      %v3068 = vsel %vm813, %v3041, 0
      %v3071 = vsel %vm813, %v3042, 0
      %v3074 = vsel %vm813, %v3043, 0
      %v3077 = vsel %vm813, %v3044, 0
      %v3080 = vsel %vm813, %v3045, 0
      %3082 = vmatprep.subr.bf16.mxu0 0
      %3083 = vmatpush1.bf16.msra.mxu0 %v3047
      %3084 = vmatprep.subr.bf16.mxu0 0
      %3085 = vmatpush1.bf16.msra.mxu0 %v3049
      %3086 = vmatprep.subr.bf16.mxu0 0
      %3087 = vmatpush1.bf16.msra.mxu0 %v3051
      %3088 = vmatprep.subr.bf16.mxu0 0
      %3089 = vmatpush1.bf16.msra.mxu0 %v3053
      %3090 = vmatprep.subr.bf16.mxu0 0
      %3091 = vmatpush1.bf16.msra.mxu0 %v3055
      %3092 = vmatprep.subr.bf16.mxu0 0
      %3093 = vmatpush1.bf16.msra.mxu0 %v3057
      %3094 = vmatprep.subr.bf16.mxu0 0
      %3095 = vmatpush1.bf16.msra.mxu0 0
      %3096 = vmatprep.subr.bf16.mxu0 0
      %3097 = vmatpush1.bf16.msra.mxu0 0
      %3098 = vmatprep.subr.bf16.mxu0 0
      %3099 = vmatpush1.bf16.msra.mxu0 0
      %3100 = vmatprep.subr.bf16.mxu0 0
      %3101 = vmatpush1.bf16.msra.mxu0 0
      %3102 = vmatprep.subr.bf16.mxu0 0
      %3103 = vmatpush1.bf16.msra.mxu0 0
      %3104 = vmatprep.subr.bf16.mxu0 0
      %3105 = vmatpush1.bf16.msra.mxu0 0
      %3106 = vmatprep.subr.bf16.mxu0 0
      %3107 = vmatpush1.bf16.msra.mxu0 0
      %3108 = vmatprep.subr.bf16.mxu0 0
      %3109 = vmatpush1.bf16.msra.mxu0 0
      %3110 = vmatprep.subr.bf16.mxu0 0
      %3111 = vmatpush1.bf16.msra.mxu0 0
      %3112 = vmatprep.subr.bf16.mxu0 0
      %3113 = vmatpush1.bf16.msra.mxu0 0
      %3114 = vmatprep.mubr.bf16.mxu0 0
      %3115 = vmatmul.mubr.bf16.gmra.mrb[0].mxu0 %v3065
      %v3116 = vpop.f32.mrb[0].mxu0
      %v3117 = vadd.f32 0.0, %v3116
      %v3118 = vpop.f32.mrb[0].mxu0
      %v3119 = vpop.f32.mrb[0].mxu0
      %v3120 = vadd.f32 0.0, %v3119
      %v3121 = vpop.f32.mrb[0].mxu0
      %3122 = vmatprep.mubr.bf16.mxu0 0
      %3123 = vmatmul.mubr.bf16.gmra.mrb[0].mxu0 %v3068
      %v3124 = vpop.f32.mrb[0].mxu0
      %v3125 = vadd.f32 0.0, %v3124
      %v3126 = vpop.f32.mrb[0].mxu0
      %v3127 = vpop.f32.mrb[0].mxu0
      %v3128 = vadd.f32 0.0, %v3127
      %v3129 = vpop.f32.mrb[0].mxu0
      %3130 = vmatprep.mubr.bf16.mxu0 0
      %3131 = vmatmul.mubr.bf16.gmra.mrb[0].mxu0 %v3071
      %v3132 = vpop.f32.mrb[0].mxu0
      %v3133 = vadd.f32 0.0, %v3132
      %v3134 = vpop.f32.mrb[0].mxu0
      %v3135 = vpop.f32.mrb[0].mxu0
      %v3136 = vadd.f32 0.0, %v3135
      %v3137 = vpop.f32.mrb[0].mxu0
      %3138 = vmatprep.mubr.bf16.mxu0 0
      %3139 = vmatmul.mubr.bf16.gmra.mrb[0].mxu0 %v3074
      %v3140 = vpop.f32.mrb[0].mxu0
      %v3141 = vadd.f32 0.0, %v3140
      %v3142 = vpop.f32.mrb[0].mxu0
      %v3143 = vpop.f32.mrb[0].mxu0
      %v3144 = vadd.f32 0.0, %v3143
      %v3145 = vpop.f32.mrb[0].mxu0
      %3146 = vmatprep.mubr.bf16.mxu0 0
      %3147 = vmatmul.mubr.bf16.gmra.mrb[0].mxu0 %v3077
      %v3148 = vpop.f32.mrb[0].mxu0
      %v3149 = vadd.f32 0.0, %v3148
      %v3150 = vpop.f32.mrb[0].mxu0
      %v3151 = vpop.f32.mrb[0].mxu0
      %v3152 = vadd.f32 0.0, %v3151
      %v3153 = vpop.f32.mrb[0].mxu0
      %3154 = vmatprep.mubr.bf16.mxu0 0
      %3155 = vmatmul.mubr.bf16.gmra.mrb[0].mxu0 %v3080
      %v3156 = vpop.f32.mrb[0].mxu0
      %v3157 = vadd.f32 0.0, %v3156
      %v3158 = vpop.f32.mrb[0].mxu0
      %v3159 = vpop.f32.mrb[0].mxu0
      %v3160 = vadd.f32 0.0, %v3159
      %v3161 = vpop.f32.mrb[0].mxu0
      %3162 = vdwg.mxu0
      %3163 = vrot.lane.b32.xlu0 %v647, 80
      %v3164 = vpop.permute.xlu0 %3163
      %3165 = vrot.lane.b32.xlu0 %v648, 80
      %v3166 = vpop.permute.xlu0 %3165
      %3167 = vrot.lane.b32.xlu0 %v649, 80
      %v3168 = vpop.permute.xlu0 %3167
      %3169 = vrot.lane.b32.xlu0 %v650, 80
      %v3170 = vpop.permute.xlu0 %3169
      %3171 = vrot.lane.b32.xlu0 %v651, 80
      %v3172 = vpop.permute.xlu0 %3171
      %3173 = vrot.lane.b32.xlu0 %v652, 80
      %v3174 = vpop.permute.xlu0 %3173
      %3175 = vrot.lane.b32.xlu0 %v647, 16
      %v3176 = vpop.permute.xlu0 %3175
      %3177 = vrot.lane.b32.xlu0 %v648, 16
      %v3178 = vpop.permute.xlu0 %3177
      %3179 = vrot.lane.b32.xlu0 %v649, 16
      %v3180 = vpop.permute.xlu0 %3179
      %3181 = vrot.lane.b32.xlu0 %v650, 16
      %v3182 = vpop.permute.xlu0 %3181
      %3183 = vrot.lane.b32.xlu0 %v651, 16
      %v3184 = vpop.permute.xlu0 %3183
      %3185 = vrot.lane.b32.xlu0 %v652, 16
      %v3186 = vpop.permute.xlu0 %3185
      %v3188 = vsel %vm671, %v3164, 0
      %v3191 = vsel %vm671, %v3166, 0
      %v3194 = vsel %vm671, %v3168, 0
      %v3197 = vsel %vm671, %v3170, 0
      %v3200 = vsel %vm671, %v3172, 0
      %v3203 = vsel %vm671, %v3174, 0
      %v3206 = vsel %vm671, %v3176, 0
      %v3209 = vsel %vm671, %v3178, 0
      %v3212 = vsel %vm671, %v3180, 0
      %v3215 = vsel %vm671, %v3182, 0
      %v3218 = vsel %vm671, %v3184, 0
      %v3221 = vsel %vm671, %v3186, 0
      %3223 = vmatprep.subr.bf16.mxu0 0
      %3224 = vmatpush1.bf16.xpose.msra.mxu0 %v3206
      %3225 = vmatprep.subr.bf16.mxu0 0
      %3226 = vmatpush1.bf16.xpose.msra.mxu0 %v3209
      %3227 = vmatprep.subr.bf16.mxu0 0
      %3228 = vmatpush1.bf16.xpose.msra.mxu0 %v3212
      %3229 = vmatprep.subr.bf16.mxu0 0
      %3230 = vmatpush1.bf16.xpose.msra.mxu0 %v3215
      %3231 = vmatprep.subr.bf16.mxu0 0
      %3232 = vmatpush1.bf16.xpose.msra.mxu0 %v3218
      %3233 = vmatprep.subr.bf16.mxu0 0
      %3234 = vmatpush1.bf16.xpose.msra.mxu0 %v3221
      %3235 = vmatprep.subr.bf16.mxu0 0
      %3236 = vmatpush1.bf16.xpose.msra.mxu0 0
      %3237 = vmatprep.subr.bf16.mxu0 0
      %3238 = vmatpush1.bf16.xpose.msra.mxu0 0
      %3239 = vmatprep.subr.bf16.mxu0 0
      %3240 = vmatpush1.bf16.xpose.msra.mxu0 0
      %3241 = vmatprep.subr.bf16.mxu0 0
      %3242 = vmatpush1.bf16.xpose.msra.mxu0 0
      %3243 = vmatprep.subr.bf16.mxu0 0
      %3244 = vmatpush1.bf16.xpose.msra.mxu0 0
      %3245 = vmatprep.subr.bf16.mxu0 0
      %3246 = vmatpush1.bf16.xpose.msra.mxu0 0
      %3247 = vmatprep.subr.bf16.mxu0 0
      %3248 = vmatpush1.bf16.xpose.msra.mxu0 0
      %3249 = vmatprep.subr.bf16.mxu0 0
      %3250 = vmatpush1.bf16.xpose.msra.mxu0 0
      %3251 = vmatprep.subr.bf16.mxu0 0
      %3252 = vmatpush1.bf16.xpose.msra.mxu0 0
      %3253 = vmatprep.subr.bf16.mxu0 0
      %3254 = vmatpush1.bf16.xpose.msra.mxu0 0
      %3255 = vmatprep.mubr.bf16.mxu0 0
      %3256 = vmatmul.mubr.bf16.gmra.mrb[0].mxu0 %v3188
      %v3257 = vpop.f32.mrb[0].mxu0
      %v3258 = vadd.f32 0.0, %v3257
      %v3259 = vpop.f32.mrb[0].mxu0
      %v3260 = vpop.f32.mrb[0].mxu0
      %v3261 = vadd.f32 0.0, %v3260
      %v3262 = vpop.f32.mrb[0].mxu0
      %3263 = vmatprep.mubr.bf16.mxu0 0
      %3264 = vmatmul.mubr.bf16.gmra.mrb[0].mxu0 %v3191
      %v3265 = vpop.f32.mrb[0].mxu0
      %v3266 = vadd.f32 0.0, %v3265
      %v3267 = vpop.f32.mrb[0].mxu0
      %v3268 = vpop.f32.mrb[0].mxu0
      %v3269 = vadd.f32 0.0, %v3268
      %v3270 = vpop.f32.mrb[0].mxu0
      %3271 = vmatprep.mubr.bf16.mxu0 0
      %3272 = vmatmul.mubr.bf16.gmra.mrb[0].mxu0 %v3194
      %v3273 = vpop.f32.mrb[0].mxu0
      %v3274 = vadd.f32 0.0, %v3273
      %v3275 = vpop.f32.mrb[0].mxu0
      %v3276 = vpop.f32.mrb[0].mxu0
      %v3277 = vadd.f32 0.0, %v3276
      %v3278 = vpop.f32.mrb[0].mxu0
      %3279 = vmatprep.mubr.bf16.mxu0 0
      %3280 = vmatmul.mubr.bf16.gmra.mrb[0].mxu0 %v3197
      %v3281 = vpop.f32.mrb[0].mxu0
      %v3282 = vadd.f32 0.0, %v3281
      %v3283 = vpop.f32.mrb[0].mxu0
      %v3284 = vpop.f32.mrb[0].mxu0
      %v3285 = vadd.f32 0.0, %v3284
      %v3286 = vpop.f32.mrb[0].mxu0
      %3287 = vmatprep.mubr.bf16.mxu0 0
      %3288 = vmatmul.mubr.bf16.gmra.mrb[0].mxu0 %v3200
      %v3289 = vpop.f32.mrb[0].mxu0
      %v3290 = vadd.f32 0.0, %v3289
      %v3291 = vpop.f32.mrb[0].mxu0
      %v3292 = vpop.f32.mrb[0].mxu0
      %v3293 = vadd.f32 0.0, %v3292
      %v3294 = vpop.f32.mrb[0].mxu0
      %3295 = vmatprep.mubr.bf16.mxu0 0
      %3296 = vmatmul.mubr.bf16.gmra.mrb[0].mxu0 %v3203
      %v3297 = vpop.f32.mrb[0].mxu0
      %v3298 = vadd.f32 0.0, %v3297
      %v3299 = vpop.f32.mrb[0].mxu0
      %v3300 = vpop.f32.mrb[0].mxu0
      %v3301 = vadd.f32 0.0, %v3300
      %v3302 = vpop.f32.mrb[0].mxu0
      %3303 = vdwg.mxu0
      %v3304 = vmul.f32 %v3258, 0.35355338
      %v3305 = vmul.f32 %v3261, 0.35355338
      %v3306 = vmul.f32 %v3266, 0.35355338
      %v3307 = vmul.f32 %v3269, 0.35355338
      %v3308 = vmul.f32 %v3274, 0.35355338
      %v3309 = vmul.f32 %v3277, 0.35355338
      %v3310 = vmul.f32 %v3282, 0.35355338
      %v3311 = vmul.f32 %v3285, 0.35355338
      %v3312 = vmul.f32 %v3290, 0.35355338
      %v3313 = vmul.f32 %v3293, 0.35355338
      %v3314 = vmul.f32 %v3298, 0.35355338
      %v3315 = vmul.f32 %v3301, 0.35355338
      %v3316 = vadd.f32 %v3304, %v481
      %v3317 = vadd.f32 %v3305, %v482
      %v3318 = vadd.f32 %v3306, %v483
      %v3319 = vadd.f32 %v3307, %v484
      %v3320 = vadd.f32 %v3308, %v485
      %v3321 = vadd.f32 %v3309, %v486
      %v3322 = vadd.f32 %v3310, %v487
      %v3323 = vadd.f32 %v3311, %v488
      %v3324 = vadd.f32 %v3312, %v489
      %v3325 = vadd.f32 %v3313, %v490
      %v3326 = vadd.f32 %v3314, %v491
      %v3327 = vadd.f32 %v3315, %v492
      %v3328 = vsel %vm813, %v3316, -inf
      %3329 = vmax.xlane.f32.xlu0 %v3328
      %v3330 = vpop.xlane.xlu0 %3329
      %v3331 = vsel %vm813, %v3317, -inf
      %3332 = vmax.xlane.f32.xlu0 %v3331
      %v3333 = vpop.xlane.xlu0 %3332
      %v3334 = vsel %vm813, %v3318, -inf
      %3335 = vmax.xlane.f32.xlu0 %v3334
      %v3336 = vpop.xlane.xlu0 %3335
      %v3337 = vsel %vm813, %v3319, -inf
      %3338 = vmax.xlane.f32.xlu0 %v3337
      %v3339 = vpop.xlane.xlu0 %3338
      %v3340 = vsel %vm813, %v3320, -inf
      %3341 = vmax.xlane.f32.xlu0 %v3340
      %v3342 = vpop.xlane.xlu0 %3341
      %v3343 = vsel %vm813, %v3321, -inf
      %3344 = vmax.xlane.f32.xlu0 %v3343
      %v3345 = vpop.xlane.xlu0 %3344
      %v3346 = vsel %vm813, %v3322, -inf
      %3347 = vmax.xlane.f32.xlu0 %v3346
      %v3348 = vpop.xlane.xlu0 %3347
      %v3349 = vsel %vm813, %v3323, -inf
      %3350 = vmax.xlane.f32.xlu0 %v3349
      %v3351 = vpop.xlane.xlu0 %3350
      %v3352 = vsel %vm813, %v3324, -inf
      %3353 = vmax.xlane.f32.xlu0 %v3352
      %v3354 = vpop.xlane.xlu0 %3353
      %v3355 = vsel %vm813, %v3325, -inf
      %3356 = vmax.xlane.f32.xlu0 %v3355
      %v3357 = vpop.xlane.xlu0 %3356
      %v3358 = vsel %vm813, %v3326, -inf
      %3359 = vmax.xlane.f32.xlu0 %v3358
      %v3360 = vpop.xlane.xlu0 %3359
      %v3361 = vsel %vm813, %v3327, -inf
      %3362 = vmax.xlane.f32.xlu0 %v3361
      %v3363 = vpop.xlane.xlu0 %3362
      %v3364 = vsub.f32 %v3316, %v3330
      %v3365 = vsub.f32 %v3317, %v3333
      %v3366 = vsub.f32 %v3318, %v3336
      %v3367 = vsub.f32 %v3319, %v3339
      %v3368 = vsub.f32 %v3320, %v3342
      %v3369 = vsub.f32 %v3321, %v3345
      %v3370 = vsub.f32 %v3322, %v3348
      %v3371 = vsub.f32 %v3323, %v3351
      %v3372 = vsub.f32 %v3324, %v3354
      %v3373 = vsub.f32 %v3325, %v3357
      %v3374 = vsub.f32 %v3326, %v3360
      %v3375 = vsub.f32 %v3327, %v3363
      %v3376 = vmul.f32 %v3364, 1.442695
      %v3377 = vpow.pop %v3376
      %v3378 = vmul.f32 %v3365, 1.442695
      %v3379 = vpow.pop %v3378
      %v3380 = vmul.f32 %v3366, 1.442695
      %v3381 = vpow.pop %v3380
      %v3382 = vmul.f32 %v3367, 1.442695
      %v3383 = vpow.pop %v3382
      %v3384 = vmul.f32 %v3368, 1.442695
      %v3385 = vpow.pop %v3384
      %v3386 = vmul.f32 %v3369, 1.442695
      %v3387 = vpow.pop %v3386
      %v3388 = vmul.f32 %v3370, 1.442695
      %v3389 = vpow.pop %v3388
      %v3390 = vmul.f32 %v3371, 1.442695
      %v3391 = vpow.pop %v3390
      %v3392 = vmul.f32 %v3372, 1.442695
      %v3393 = vpow.pop %v3392
      %v3394 = vmul.f32 %v3373, 1.442695
      %v3395 = vpow.pop %v3394
      %v3396 = vmul.f32 %v3374, 1.442695
      %v3397 = vpow.pop %v3396
      %v3398 = vmul.f32 %v3375, 1.442695
      %v3399 = vpow.pop %v3398
      %v3400 = vsel %vm813, %v3377, 0.0
      %3401 = vadd.xlane.f32.xlu0 %v3400
      %v3402 = vpop.xlane.xlu0 %3401
      %v3403 = vsel %vm813, %v3379, 0.0
      %3404 = vadd.xlane.f32.xlu0 %v3403
      %v3405 = vpop.xlane.xlu0 %3404
      %v3406 = vsel %vm813, %v3381, 0.0
      %3407 = vadd.xlane.f32.xlu0 %v3406
      %v3408 = vpop.xlane.xlu0 %3407
      %v3409 = vsel %vm813, %v3383, 0.0
      %3410 = vadd.xlane.f32.xlu0 %v3409
      %v3411 = vpop.xlane.xlu0 %3410
      %v3412 = vsel %vm813, %v3385, 0.0
      %3413 = vadd.xlane.f32.xlu0 %v3412
      %v3414 = vpop.xlane.xlu0 %3413
      %v3415 = vsel %vm813, %v3387, 0.0
      %3416 = vadd.xlane.f32.xlu0 %v3415
      %v3417 = vpop.xlane.xlu0 %3416
      %v3418 = vsel %vm813, %v3389, 0.0
      %3419 = vadd.xlane.f32.xlu0 %v3418
      %v3420 = vpop.xlane.xlu0 %3419
      %v3421 = vsel %vm813, %v3391, 0.0
      %3422 = vadd.xlane.f32.xlu0 %v3421
      %v3423 = vpop.xlane.xlu0 %3422
      %v3424 = vsel %vm813, %v3393, 0.0
      %3425 = vadd.xlane.f32.xlu0 %v3424
      %v3426 = vpop.xlane.xlu0 %3425
      %v3427 = vsel %vm813, %v3395, 0.0
      %3428 = vadd.xlane.f32.xlu0 %v3427
      %v3429 = vpop.xlane.xlu0 %3428
      %v3430 = vsel %vm813, %v3397, 0.0
      %3431 = vadd.xlane.f32.xlu0 %v3430
      %v3432 = vpop.xlane.xlu0 %3431
      %v3433 = vsel %vm813, %v3399, 0.0
      %3434 = vadd.xlane.f32.xlu0 %v3433
      %v3435 = vpop.xlane.xlu0 %3434
      %v3436 = vrcp.pop %v3402
      %v3437 = vrcp.pop %v3405
      %v3438 = vrcp.pop %v3408
      %v3439 = vrcp.pop %v3411
      %v3440 = vrcp.pop %v3414
      %v3441 = vrcp.pop %v3417
      %v3442 = vrcp.pop %v3420
      %v3443 = vrcp.pop %v3423
      %v3444 = vrcp.pop %v3426
      %v3445 = vrcp.pop %v3429
      %v3446 = vrcp.pop %v3432
      %v3447 = vrcp.pop %v3435
      %v3448 = vmul.f32 %v3377, %v3436
      %v3449 = vmul.f32 %v3379, %v3437
      %v3450 = vmul.f32 %v3381, %v3438
      %v3451 = vmul.f32 %v3383, %v3439
      %v3452 = vmul.f32 %v3385, %v3440
      %v3453 = vmul.f32 %v3387, %v3441
      %v3454 = vmul.f32 %v3389, %v3442
      %v3455 = vmul.f32 %v3391, %v3443
      %v3456 = vmul.f32 %v3393, %v3444
      %v3457 = vmul.f32 %v3395, %v3445
      %v3458 = vmul.f32 %v3397, %v3446
      %v3459 = vmul.f32 %v3399, %v3447
      %v3460 = vpack.c.bf16 %v3449, %v3448
      %v3461 = vpack.c.bf16 %v3451, %v3450
      %v3462 = vpack.c.bf16 %v3453, %v3452
      %v3463 = vpack.c.bf16 %v3455, %v3454
      %v3464 = vpack.c.bf16 %v3457, %v3456
      %v3465 = vpack.c.bf16 %v3459, %v3458
      %3466 = vrot.lane.b32.xlu0 %v952, 80
      %v3467 = vpop.permute.xlu0 %3466
      %3468 = vrot.lane.b32.xlu0 %v953, 80
      %v3469 = vpop.permute.xlu0 %3468
      %3470 = vrot.lane.b32.xlu0 %v954, 80
      %v3471 = vpop.permute.xlu0 %3470
      %3472 = vrot.lane.b32.xlu0 %v955, 80
      %v3473 = vpop.permute.xlu0 %3472
      %3474 = vrot.lane.b32.xlu0 %v956, 80
      %v3475 = vpop.permute.xlu0 %3474
      %3476 = vrot.lane.b32.xlu0 %v957, 80
      %v3477 = vpop.permute.xlu0 %3476
      %v3485 = vsel %vm813, %v3460, 0
      %v3488 = vsel %vm813, %v3461, 0
      %v3491 = vsel %vm813, %v3462, 0
      %v3494 = vsel %vm813, %v3463, 0
      %v3497 = vsel %vm813, %v3464, 0
      %v3500 = vsel %vm813, %v3465, 0
      %3502 = vmatprep.subr.bf16.mxu0 0
      %3503 = vmatpush1.bf16.msra.mxu0 %v3467
      %3504 = vmatprep.subr.bf16.mxu0 0
      %3505 = vmatpush1.bf16.msra.mxu0 %v3469
      %3506 = vmatprep.subr.bf16.mxu0 0
      %3507 = vmatpush1.bf16.msra.mxu0 %v3471
      %3508 = vmatprep.subr.bf16.mxu0 0
      %3509 = vmatpush1.bf16.msra.mxu0 %v3473
      %3510 = vmatprep.subr.bf16.mxu0 0
      %3511 = vmatpush1.bf16.msra.mxu0 %v3475
      %3512 = vmatprep.subr.bf16.mxu0 0
      %3513 = vmatpush1.bf16.msra.mxu0 %v3477
      %3514 = vmatprep.subr.bf16.mxu0 0
      %3515 = vmatpush1.bf16.msra.mxu0 0
      %3516 = vmatprep.subr.bf16.mxu0 0
      %3517 = vmatpush1.bf16.msra.mxu0 0
      %3518 = vmatprep.subr.bf16.mxu0 0
      %3519 = vmatpush1.bf16.msra.mxu0 0
      %3520 = vmatprep.subr.bf16.mxu0 0
      %3521 = vmatpush1.bf16.msra.mxu0 0
      %3522 = vmatprep.subr.bf16.mxu0 0
      %3523 = vmatpush1.bf16.msra.mxu0 0
      %3524 = vmatprep.subr.bf16.mxu0 0
      %3525 = vmatpush1.bf16.msra.mxu0 0
      %3526 = vmatprep.subr.bf16.mxu0 0
      %3527 = vmatpush1.bf16.msra.mxu0 0
      %3528 = vmatprep.subr.bf16.mxu0 0
      %3529 = vmatpush1.bf16.msra.mxu0 0
      %3530 = vmatprep.subr.bf16.mxu0 0
      %3531 = vmatpush1.bf16.msra.mxu0 0
      %3532 = vmatprep.subr.bf16.mxu0 0
      %3533 = vmatpush1.bf16.msra.mxu0 0
      %3534 = vmatprep.mubr.bf16.mxu0 0
      %3535 = vmatmul.mubr.bf16.gmra.mrb[0].mxu0 %v3485
      %v3536 = vpop.f32.mrb[0].mxu0
      %v3537 = vadd.f32 0.0, %v3536
      %v3538 = vpop.f32.mrb[0].mxu0
      %v3539 = vpop.f32.mrb[0].mxu0
      %v3540 = vadd.f32 0.0, %v3539
      %v3541 = vpop.f32.mrb[0].mxu0
      %3542 = vmatprep.mubr.bf16.mxu0 0
      %3543 = vmatmul.mubr.bf16.gmra.mrb[0].mxu0 %v3488
      %v3544 = vpop.f32.mrb[0].mxu0
      %v3545 = vadd.f32 0.0, %v3544
      %v3546 = vpop.f32.mrb[0].mxu0
      %v3547 = vpop.f32.mrb[0].mxu0
      %v3548 = vadd.f32 0.0, %v3547
      %v3549 = vpop.f32.mrb[0].mxu0
      %3550 = vmatprep.mubr.bf16.mxu0 0
      %3551 = vmatmul.mubr.bf16.gmra.mrb[0].mxu0 %v3491
      %v3552 = vpop.f32.mrb[0].mxu0
      %v3553 = vadd.f32 0.0, %v3552
      %v3554 = vpop.f32.mrb[0].mxu0
      %v3555 = vpop.f32.mrb[0].mxu0
      %v3556 = vadd.f32 0.0, %v3555
      %v3557 = vpop.f32.mrb[0].mxu0
      %3558 = vmatprep.mubr.bf16.mxu0 0
      %3559 = vmatmul.mubr.bf16.gmra.mrb[0].mxu0 %v3494
      %v3560 = vpop.f32.mrb[0].mxu0
      %v3561 = vadd.f32 0.0, %v3560
      %v3562 = vpop.f32.mrb[0].mxu0
      %v3563 = vpop.f32.mrb[0].mxu0
      %v3564 = vadd.f32 0.0, %v3563
      %v3565 = vpop.f32.mrb[0].mxu0
      %3566 = vmatprep.mubr.bf16.mxu0 0
      %3567 = vmatmul.mubr.bf16.gmra.mrb[0].mxu0 %v3497
      %v3568 = vpop.f32.mrb[0].mxu0
      %v3569 = vadd.f32 0.0, %v3568
      %v3570 = vpop.f32.mrb[0].mxu0
      %v3571 = vpop.f32.mrb[0].mxu0
      %v3572 = vadd.f32 0.0, %v3571
      %v3573 = vpop.f32.mrb[0].mxu0
      %3574 = vmatprep.mubr.bf16.mxu0 0
      %3575 = vmatmul.mubr.bf16.gmra.mrb[0].mxu0 %v3500
      %v3576 = vpop.f32.mrb[0].mxu0
      %v3577 = vadd.f32 0.0, %v3576
      %v3578 = vpop.f32.mrb[0].mxu0
      %v3579 = vpop.f32.mrb[0].mxu0
      %v3580 = vadd.f32 0.0, %v3579
      %v3581 = vpop.f32.mrb[0].mxu0
      %3582 = vdwg.mxu0
      %3583 = vrot.lane.b32.xlu0 %v647, 72
      %v3584 = vpop.permute.xlu0 %3583
      %3585 = vrot.lane.b32.xlu0 %v648, 72
      %v3586 = vpop.permute.xlu0 %3585
      %3587 = vrot.lane.b32.xlu0 %v649, 72
      %v3588 = vpop.permute.xlu0 %3587
      %3589 = vrot.lane.b32.xlu0 %v650, 72
      %v3590 = vpop.permute.xlu0 %3589
      %3591 = vrot.lane.b32.xlu0 %v651, 72
      %v3592 = vpop.permute.xlu0 %3591
      %3593 = vrot.lane.b32.xlu0 %v652, 72
      %v3594 = vpop.permute.xlu0 %3593
      %3595 = vrot.lane.b32.xlu0 %v647, 8
      %v3596 = vpop.permute.xlu0 %3595
      %3597 = vrot.lane.b32.xlu0 %v648, 8
      %v3598 = vpop.permute.xlu0 %3597
      %3599 = vrot.lane.b32.xlu0 %v649, 8
      %v3600 = vpop.permute.xlu0 %3599
      %3601 = vrot.lane.b32.xlu0 %v650, 8
      %v3602 = vpop.permute.xlu0 %3601
      %3603 = vrot.lane.b32.xlu0 %v651, 8
      %v3604 = vpop.permute.xlu0 %3603
      %3605 = vrot.lane.b32.xlu0 %v652, 8
      %v3606 = vpop.permute.xlu0 %3605
      %v3608 = vsel %vm671, %v3584, 0
      %v3611 = vsel %vm671, %v3586, 0
      %v3614 = vsel %vm671, %v3588, 0
      %v3617 = vsel %vm671, %v3590, 0
      %v3620 = vsel %vm671, %v3592, 0
      %v3623 = vsel %vm671, %v3594, 0
      %v3626 = vsel %vm671, %v3596, 0
      %v3629 = vsel %vm671, %v3598, 0
      %v3632 = vsel %vm671, %v3600, 0
      %v3635 = vsel %vm671, %v3602, 0
      %v3638 = vsel %vm671, %v3604, 0
      %v3641 = vsel %vm671, %v3606, 0
      %3643 = vmatprep.subr.bf16.mxu0 0
      %3644 = vmatpush1.bf16.xpose.msra.mxu0 %v3626
      %3645 = vmatprep.subr.bf16.mxu0 0
      %3646 = vmatpush1.bf16.xpose.msra.mxu0 %v3629
      %3647 = vmatprep.subr.bf16.mxu0 0
      %3648 = vmatpush1.bf16.xpose.msra.mxu0 %v3632
      %3649 = vmatprep.subr.bf16.mxu0 0
      %3650 = vmatpush1.bf16.xpose.msra.mxu0 %v3635
      %3651 = vmatprep.subr.bf16.mxu0 0
      %3652 = vmatpush1.bf16.xpose.msra.mxu0 %v3638
      %3653 = vmatprep.subr.bf16.mxu0 0
      %3654 = vmatpush1.bf16.xpose.msra.mxu0 %v3641
      %3655 = vmatprep.subr.bf16.mxu0 0
      %3656 = vmatpush1.bf16.xpose.msra.mxu0 0
      %3657 = vmatprep.subr.bf16.mxu0 0
      %3658 = vmatpush1.bf16.xpose.msra.mxu0 0
      %3659 = vmatprep.subr.bf16.mxu0 0
      %3660 = vmatpush1.bf16.xpose.msra.mxu0 0
      %3661 = vmatprep.subr.bf16.mxu0 0
      %3662 = vmatpush1.bf16.xpose.msra.mxu0 0
      %3663 = vmatprep.subr.bf16.mxu0 0
      %3664 = vmatpush1.bf16.xpose.msra.mxu0 0
      %3665 = vmatprep.subr.bf16.mxu0 0
      %3666 = vmatpush1.bf16.xpose.msra.mxu0 0
      %3667 = vmatprep.subr.bf16.mxu0 0
      %3668 = vmatpush1.bf16.xpose.msra.mxu0 0
      %3669 = vmatprep.subr.bf16.mxu0 0
      %3670 = vmatpush1.bf16.xpose.msra.mxu0 0
      %3671 = vmatprep.subr.bf16.mxu0 0
      %3672 = vmatpush1.bf16.xpose.msra.mxu0 0
      %3673 = vmatprep.subr.bf16.mxu0 0
      %3674 = vmatpush1.bf16.xpose.msra.mxu0 0
      %3675 = vmatprep.mubr.bf16.mxu0 0
      %3676 = vmatmul.mubr.bf16.gmra.mrb[0].mxu0 %v3608
      %v3677 = vpop.f32.mrb[0].mxu0
      %v3678 = vadd.f32 0.0, %v3677
      %v3679 = vpop.f32.mrb[0].mxu0
      %v3680 = vpop.f32.mrb[0].mxu0
      %v3681 = vadd.f32 0.0, %v3680
      %v3682 = vpop.f32.mrb[0].mxu0
      %3683 = vmatprep.mubr.bf16.mxu0 0
      %3684 = vmatmul.mubr.bf16.gmra.mrb[0].mxu0 %v3611
      %v3685 = vpop.f32.mrb[0].mxu0
      %v3686 = vadd.f32 0.0, %v3685
      %v3687 = vpop.f32.mrb[0].mxu0
      %v3688 = vpop.f32.mrb[0].mxu0
      %v3689 = vadd.f32 0.0, %v3688
      %v3690 = vpop.f32.mrb[0].mxu0
      %3691 = vmatprep.mubr.bf16.mxu0 0
      %3692 = vmatmul.mubr.bf16.gmra.mrb[0].mxu0 %v3614
      %v3693 = vpop.f32.mrb[0].mxu0
      %v3694 = vadd.f32 0.0, %v3693
      %v3695 = vpop.f32.mrb[0].mxu0
      %v3696 = vpop.f32.mrb[0].mxu0
      %v3697 = vadd.f32 0.0, %v3696
      %v3698 = vpop.f32.mrb[0].mxu0
      %3699 = vmatprep.mubr.bf16.mxu0 0
      %3700 = vmatmul.mubr.bf16.gmra.mrb[0].mxu0 %v3617
      %v3701 = vpop.f32.mrb[0].mxu0
      %v3702 = vadd.f32 0.0, %v3701
      %v3703 = vpop.f32.mrb[0].mxu0
      %v3704 = vpop.f32.mrb[0].mxu0
      %v3705 = vadd.f32 0.0, %v3704
      %v3706 = vpop.f32.mrb[0].mxu0
      %3707 = vmatprep.mubr.bf16.mxu0 0
      %3708 = vmatmul.mubr.bf16.gmra.mrb[0].mxu0 %v3620
      %v3709 = vpop.f32.mrb[0].mxu0
      %v3710 = vadd.f32 0.0, %v3709
      %v3711 = vpop.f32.mrb[0].mxu0
      %v3712 = vpop.f32.mrb[0].mxu0
      %v3713 = vadd.f32 0.0, %v3712
      %v3714 = vpop.f32.mrb[0].mxu0
      %3715 = vmatprep.mubr.bf16.mxu0 0
      %3716 = vmatmul.mubr.bf16.gmra.mrb[0].mxu0 %v3623
      %v3717 = vpop.f32.mrb[0].mxu0
      %v3718 = vadd.f32 0.0, %v3717
      %v3719 = vpop.f32.mrb[0].mxu0
      %v3720 = vpop.f32.mrb[0].mxu0
      %v3721 = vadd.f32 0.0, %v3720
      %v3722 = vpop.f32.mrb[0].mxu0
      %3723 = vdwg.mxu0
      %v3724 = vmul.f32 %v3678, 0.35355338
      %v3725 = vmul.f32 %v3681, 0.35355338
      %v3726 = vmul.f32 %v3686, 0.35355338
      %v3727 = vmul.f32 %v3689, 0.35355338
      %v3728 = vmul.f32 %v3694, 0.35355338
      %v3729 = vmul.f32 %v3697, 0.35355338
      %v3730 = vmul.f32 %v3702, 0.35355338
      %v3731 = vmul.f32 %v3705, 0.35355338
      %v3732 = vmul.f32 %v3710, 0.35355338
      %v3733 = vmul.f32 %v3713, 0.35355338
      %v3734 = vmul.f32 %v3718, 0.35355338
      %v3735 = vmul.f32 %v3721, 0.35355338
      %v3736 = vadd.f32 %v3724, %v481
      %v3737 = vadd.f32 %v3725, %v482
      %v3738 = vadd.f32 %v3726, %v483
      %v3739 = vadd.f32 %v3727, %v484
      %v3740 = vadd.f32 %v3728, %v485
      %v3741 = vadd.f32 %v3729, %v486
      %v3742 = vadd.f32 %v3730, %v487
      %v3743 = vadd.f32 %v3731, %v488
      %v3744 = vadd.f32 %v3732, %v489
      %v3745 = vadd.f32 %v3733, %v490
      %v3746 = vadd.f32 %v3734, %v491
      %v3747 = vadd.f32 %v3735, %v492
      %v3748 = vsel %vm813, %v3736, -inf
      %3749 = vmax.xlane.f32.xlu0 %v3748
      %v3750 = vpop.xlane.xlu0 %3749
      %v3751 = vsel %vm813, %v3737, -inf
      %3752 = vmax.xlane.f32.xlu0 %v3751
      %v3753 = vpop.xlane.xlu0 %3752
      %v3754 = vsel %vm813, %v3738, -inf
      %3755 = vmax.xlane.f32.xlu0 %v3754
      %v3756 = vpop.xlane.xlu0 %3755
      %v3757 = vsel %vm813, %v3739, -inf
      %3758 = vmax.xlane.f32.xlu0 %v3757
      %v3759 = vpop.xlane.xlu0 %3758
      %v3760 = vsel %vm813, %v3740, -inf
      %3761 = vmax.xlane.f32.xlu0 %v3760
      %v3762 = vpop.xlane.xlu0 %3761
      %v3763 = vsel %vm813, %v3741, -inf
      %3764 = vmax.xlane.f32.xlu0 %v3763
      %v3765 = vpop.xlane.xlu0 %3764
      %v3766 = vsel %vm813, %v3742, -inf
      %3767 = vmax.xlane.f32.xlu0 %v3766
      %v3768 = vpop.xlane.xlu0 %3767
      %v3769 = vsel %vm813, %v3743, -inf
      %3770 = vmax.xlane.f32.xlu0 %v3769
      %v3771 = vpop.xlane.xlu0 %3770
      %v3772 = vsel %vm813, %v3744, -inf
      %3773 = vmax.xlane.f32.xlu0 %v3772
      %v3774 = vpop.xlane.xlu0 %3773
      %v3775 = vsel %vm813, %v3745, -inf
      %3776 = vmax.xlane.f32.xlu0 %v3775
      %v3777 = vpop.xlane.xlu0 %3776
      %v3778 = vsel %vm813, %v3746, -inf
      %3779 = vmax.xlane.f32.xlu0 %v3778
      %v3780 = vpop.xlane.xlu0 %3779
      %v3781 = vsel %vm813, %v3747, -inf
      %3782 = vmax.xlane.f32.xlu0 %v3781
      %v3783 = vpop.xlane.xlu0 %3782
      %v3784 = vsub.f32 %v3736, %v3750
      %v3785 = vsub.f32 %v3737, %v3753
      %v3786 = vsub.f32 %v3738, %v3756
      %v3787 = vsub.f32 %v3739, %v3759
      %v3788 = vsub.f32 %v3740, %v3762
      %v3789 = vsub.f32 %v3741, %v3765
      %v3790 = vsub.f32 %v3742, %v3768
      %v3791 = vsub.f32 %v3743, %v3771
      %v3792 = vsub.f32 %v3744, %v3774
      %v3793 = vsub.f32 %v3745, %v3777
      %v3794 = vsub.f32 %v3746, %v3780
      %v3795 = vsub.f32 %v3747, %v3783
      %v3796 = vmul.f32 %v3784, 1.442695
      %v3797 = vpow.pop %v3796
      %v3798 = vmul.f32 %v3785, 1.442695
      %v3799 = vpow.pop %v3798
      %v3800 = vmul.f32 %v3786, 1.442695
      %v3801 = vpow.pop %v3800
      %v3802 = vmul.f32 %v3787, 1.442695
      %v3803 = vpow.pop %v3802
      %v3804 = vmul.f32 %v3788, 1.442695
      %v3805 = vpow.pop %v3804
      %v3806 = vmul.f32 %v3789, 1.442695
      %v3807 = vpow.pop %v3806
      %v3808 = vmul.f32 %v3790, 1.442695
      %v3809 = vpow.pop %v3808
      %v3810 = vmul.f32 %v3791, 1.442695
      %v3811 = vpow.pop %v3810
      %v3812 = vmul.f32 %v3792, 1.442695
      %v3813 = vpow.pop %v3812
      %v3814 = vmul.f32 %v3793, 1.442695
      %v3815 = vpow.pop %v3814
      %v3816 = vmul.f32 %v3794, 1.442695
      %v3817 = vpow.pop %v3816
      %v3818 = vmul.f32 %v3795, 1.442695
      %v3819 = vpow.pop %v3818
      %v3820 = vsel %vm813, %v3797, 0.0
      %3821 = vadd.xlane.f32.xlu0 %v3820
      %v3822 = vpop.xlane.xlu0 %3821
      %v3823 = vsel %vm813, %v3799, 0.0
      %3824 = vadd.xlane.f32.xlu0 %v3823
      %v3825 = vpop.xlane.xlu0 %3824
      %v3826 = vsel %vm813, %v3801, 0.0
      %3827 = vadd.xlane.f32.xlu0 %v3826
      %v3828 = vpop.xlane.xlu0 %3827
      %v3829 = vsel %vm813, %v3803, 0.0
      %3830 = vadd.xlane.f32.xlu0 %v3829
      %v3831 = vpop.xlane.xlu0 %3830
      %v3832 = vsel %vm813, %v3805, 0.0
      %3833 = vadd.xlane.f32.xlu0 %v3832
      %v3834 = vpop.xlane.xlu0 %3833
      %v3835 = vsel %vm813, %v3807, 0.0
      %3836 = vadd.xlane.f32.xlu0 %v3835
      %v3837 = vpop.xlane.xlu0 %3836
      %v3838 = vsel %vm813, %v3809, 0.0
      %3839 = vadd.xlane.f32.xlu0 %v3838
      %v3840 = vpop.xlane.xlu0 %3839
      %v3841 = vsel %vm813, %v3811, 0.0
      %3842 = vadd.xlane.f32.xlu0 %v3841
      %v3843 = vpop.xlane.xlu0 %3842
      %v3844 = vsel %vm813, %v3813, 0.0
      %3845 = vadd.xlane.f32.xlu0 %v3844
      %v3846 = vpop.xlane.xlu0 %3845
      %v3847 = vsel %vm813, %v3815, 0.0
      %3848 = vadd.xlane.f32.xlu0 %v3847
      %v3849 = vpop.xlane.xlu0 %3848
      %v3850 = vsel %vm813, %v3817, 0.0
      %3851 = vadd.xlane.f32.xlu0 %v3850
      %v3852 = vpop.xlane.xlu0 %3851
      %v3853 = vsel %vm813, %v3819, 0.0
      %3854 = vadd.xlane.f32.xlu0 %v3853
      %v3855 = vpop.xlane.xlu0 %3854
      %v3856 = vrcp.pop %v3822
      %v3857 = vrcp.pop %v3825
      %v3858 = vrcp.pop %v3828
      %v3859 = vrcp.pop %v3831
      %v3860 = vrcp.pop %v3834
      %v3861 = vrcp.pop %v3837
      %v3862 = vrcp.pop %v3840
      %v3863 = vrcp.pop %v3843
      %v3864 = vrcp.pop %v3846
      %v3865 = vrcp.pop %v3849
      %v3866 = vrcp.pop %v3852
      %v3867 = vrcp.pop %v3855
      %v3868 = vmul.f32 %v3797, %v3856
      %v3869 = vmul.f32 %v3799, %v3857
      %v3870 = vmul.f32 %v3801, %v3858
      %v3871 = vmul.f32 %v3803, %v3859
      %v3872 = vmul.f32 %v3805, %v3860
      %v3873 = vmul.f32 %v3807, %v3861
      %v3874 = vmul.f32 %v3809, %v3862
      %v3875 = vmul.f32 %v3811, %v3863
      %v3876 = vmul.f32 %v3813, %v3864
      %v3877 = vmul.f32 %v3815, %v3865
      %v3878 = vmul.f32 %v3817, %v3866
      %v3879 = vmul.f32 %v3819, %v3867
      %v3880 = vpack.c.bf16 %v3869, %v3868
      %v3881 = vpack.c.bf16 %v3871, %v3870
      %v3882 = vpack.c.bf16 %v3873, %v3872
      %v3883 = vpack.c.bf16 %v3875, %v3874
      %v3884 = vpack.c.bf16 %v3877, %v3876
      %v3885 = vpack.c.bf16 %v3879, %v3878
      %3886 = vrot.lane.b32.xlu0 %v952, 72
      %v3887 = vpop.permute.xlu0 %3886
      %3888 = vrot.lane.b32.xlu0 %v953, 72
      %v3889 = vpop.permute.xlu0 %3888
      %3890 = vrot.lane.b32.xlu0 %v954, 72
      %v3891 = vpop.permute.xlu0 %3890
      %3892 = vrot.lane.b32.xlu0 %v955, 72
      %v3893 = vpop.permute.xlu0 %3892
      %3894 = vrot.lane.b32.xlu0 %v956, 72
      %v3895 = vpop.permute.xlu0 %3894
      %3896 = vrot.lane.b32.xlu0 %v957, 72
      %v3897 = vpop.permute.xlu0 %3896
      %v3905 = vsel %vm813, %v3880, 0
      %v3908 = vsel %vm813, %v3881, 0
      %v3911 = vsel %vm813, %v3882, 0
      %v3914 = vsel %vm813, %v3883, 0
      %v3917 = vsel %vm813, %v3884, 0
      %v3920 = vsel %vm813, %v3885, 0
      %3922 = vmatprep.subr.bf16.mxu0 0
      %3923 = vmatpush1.bf16.msra.mxu0 %v3887
      %3924 = vmatprep.subr.bf16.mxu0 0
      %3925 = vmatpush1.bf16.msra.mxu0 %v3889
      %3926 = vmatprep.subr.bf16.mxu0 0
      %3927 = vmatpush1.bf16.msra.mxu0 %v3891
      %3928 = vmatprep.subr.bf16.mxu0 0
      %3929 = vmatpush1.bf16.msra.mxu0 %v3893
      %3930 = vmatprep.subr.bf16.mxu0 0
      %3931 = vmatpush1.bf16.msra.mxu0 %v3895
      %3932 = vmatprep.subr.bf16.mxu0 0
      %3933 = vmatpush1.bf16.msra.mxu0 %v3897
      %3934 = vmatprep.subr.bf16.mxu0 0
      %3935 = vmatpush1.bf16.msra.mxu0 0
      %3936 = vmatprep.subr.bf16.mxu0 0
      %3937 = vmatpush1.bf16.msra.mxu0 0
      %3938 = vmatprep.subr.bf16.mxu0 0
      %3939 = vmatpush1.bf16.msra.mxu0 0
      %3940 = vmatprep.subr.bf16.mxu0 0
      %3941 = vmatpush1.bf16.msra.mxu0 0
      %3942 = vmatprep.subr.bf16.mxu0 0
      %3943 = vmatpush1.bf16.msra.mxu0 0
      %3944 = vmatprep.subr.bf16.mxu0 0
      %3945 = vmatpush1.bf16.msra.mxu0 0
      %3946 = vmatprep.subr.bf16.mxu0 0
      %3947 = vmatpush1.bf16.msra.mxu0 0
      %3948 = vmatprep.subr.bf16.mxu0 0
      %3949 = vmatpush1.bf16.msra.mxu0 0
      %3950 = vmatprep.subr.bf16.mxu0 0
      %3951 = vmatpush1.bf16.msra.mxu0 0
      %3952 = vmatprep.subr.bf16.mxu0 0
      %3953 = vmatpush1.bf16.msra.mxu0 0
      %3954 = vmatprep.mubr.bf16.mxu0 0
      %3955 = vmatmul.mubr.bf16.gmra.mrb[0].mxu0 %v3905
      %v3956 = vpop.f32.mrb[0].mxu0
      %v3957 = vadd.f32 0.0, %v3956
      %v3958 = vpop.f32.mrb[0].mxu0
      %v3959 = vpop.f32.mrb[0].mxu0
      %v3960 = vadd.f32 0.0, %v3959
      %v3961 = vpop.f32.mrb[0].mxu0
      %3962 = vmatprep.mubr.bf16.mxu0 0
      %3963 = vmatmul.mubr.bf16.gmra.mrb[0].mxu0 %v3908
      %v3964 = vpop.f32.mrb[0].mxu0
      %v3965 = vadd.f32 0.0, %v3964
      %v3966 = vpop.f32.mrb[0].mxu0
      %v3967 = vpop.f32.mrb[0].mxu0
      %v3968 = vadd.f32 0.0, %v3967
      %v3969 = vpop.f32.mrb[0].mxu0
      %3970 = vmatprep.mubr.bf16.mxu0 0
      %3971 = vmatmul.mubr.bf16.gmra.mrb[0].mxu0 %v3911
      %v3972 = vpop.f32.mrb[0].mxu0
      %v3973 = vadd.f32 0.0, %v3972
      %v3974 = vpop.f32.mrb[0].mxu0
      %v3975 = vpop.f32.mrb[0].mxu0
      %v3976 = vadd.f32 0.0, %v3975
      %v3977 = vpop.f32.mrb[0].mxu0
      %3978 = vmatprep.mubr.bf16.mxu0 0
      %3979 = vmatmul.mubr.bf16.gmra.mrb[0].mxu0 %v3914
      %v3980 = vpop.f32.mrb[0].mxu0
      %v3981 = vadd.f32 0.0, %v3980
      %v3982 = vpop.f32.mrb[0].mxu0
      %v3983 = vpop.f32.mrb[0].mxu0
      %v3984 = vadd.f32 0.0, %v3983
      %v3985 = vpop.f32.mrb[0].mxu0
      %3986 = vmatprep.mubr.bf16.mxu0 0
      %3987 = vmatmul.mubr.bf16.gmra.mrb[0].mxu0 %v3917
      %v3988 = vpop.f32.mrb[0].mxu0
      %v3989 = vadd.f32 0.0, %v3988
      %v3990 = vpop.f32.mrb[0].mxu0
      %v3991 = vpop.f32.mrb[0].mxu0
      %v3992 = vadd.f32 0.0, %v3991
      %v3993 = vpop.f32.mrb[0].mxu0
      %3994 = vmatprep.mubr.bf16.mxu0 0
      %3995 = vmatmul.mubr.bf16.gmra.mrb[0].mxu0 %v3920
      %v3996 = vpop.f32.mrb[0].mxu0
      %v3997 = vadd.f32 0.0, %v3996
      %v3998 = vpop.f32.mrb[0].mxu0
      %v3999 = vpop.f32.mrb[0].mxu0
      %v4000 = vadd.f32 0.0, %v3999
      %v4001 = vpop.f32.mrb[0].mxu0
      %4002 = vdwg.mxu0
      %4015 = vrot.lane.b32.xlu0 %v1437, 8
      %v4016 = vpop.permute.xlu0 %4015
      %4017 = vrot.lane.b32.xlu0 %v1440, 8
      %v4018 = vpop.permute.xlu0 %4017
      %4019 = vrot.lane.b32.xlu0 %v1445, 8
      %v4020 = vpop.permute.xlu0 %4019
      %4021 = vrot.lane.b32.xlu0 %v1448, 8
      %v4022 = vpop.permute.xlu0 %4021
      %4023 = vrot.lane.b32.xlu0 %v1453, 8
      %v4024 = vpop.permute.xlu0 %4023
      %4025 = vrot.lane.b32.xlu0 %v1456, 8
      %v4026 = vpop.permute.xlu0 %4025
      %4027 = vrot.lane.b32.xlu0 %v1461, 8
      %v4028 = vpop.permute.xlu0 %4027
      %4029 = vrot.lane.b32.xlu0 %v1464, 8
      %v4030 = vpop.permute.xlu0 %4029
      %4031 = vrot.lane.b32.xlu0 %v1469, 8
      %v4032 = vpop.permute.xlu0 %4031
      %4033 = vrot.lane.b32.xlu0 %v1472, 8
      %v4034 = vpop.permute.xlu0 %4033
      %4035 = vrot.lane.b32.xlu0 %v1477, 8
      %v4036 = vpop.permute.xlu0 %4035
      %4037 = vrot.lane.b32.xlu0 %v1480, 8
      %v4038 = vpop.permute.xlu0 %4037
      %4063 = vrot.lane.b32.xlu0 %v1857, 16
      %v4064 = vpop.permute.xlu0 %4063
      %4065 = vrot.lane.b32.xlu0 %v1860, 16
      %v4066 = vpop.permute.xlu0 %4065
      %4067 = vrot.lane.b32.xlu0 %v1865, 16
      %v4068 = vpop.permute.xlu0 %4067
      %4069 = vrot.lane.b32.xlu0 %v1868, 16
      %v4070 = vpop.permute.xlu0 %4069
      %4071 = vrot.lane.b32.xlu0 %v1873, 16
      %v4072 = vpop.permute.xlu0 %4071
      %4073 = vrot.lane.b32.xlu0 %v1876, 16
      %v4074 = vpop.permute.xlu0 %4073
      %4075 = vrot.lane.b32.xlu0 %v1881, 16
      %v4076 = vpop.permute.xlu0 %4075
      %4077 = vrot.lane.b32.xlu0 %v1884, 16
      %v4078 = vpop.permute.xlu0 %4077
      %4079 = vrot.lane.b32.xlu0 %v1889, 16
      %v4080 = vpop.permute.xlu0 %4079
      %4081 = vrot.lane.b32.xlu0 %v1892, 16
      %v4082 = vpop.permute.xlu0 %4081
      %4083 = vrot.lane.b32.xlu0 %v1897, 16
      %v4084 = vpop.permute.xlu0 %4083
      %4085 = vrot.lane.b32.xlu0 %v1900, 16
      %v4086 = vpop.permute.xlu0 %4085
      %4111 = vrot.lane.b32.xlu0 %v2277, 24
      %v4112 = vpop.permute.xlu0 %4111
      %4113 = vrot.lane.b32.xlu0 %v2280, 24
      %v4114 = vpop.permute.xlu0 %4113
      %4115 = vrot.lane.b32.xlu0 %v2285, 24
      %v4116 = vpop.permute.xlu0 %4115
      %4117 = vrot.lane.b32.xlu0 %v2288, 24
      %v4118 = vpop.permute.xlu0 %4117
      %4119 = vrot.lane.b32.xlu0 %v2293, 24
      %v4120 = vpop.permute.xlu0 %4119
      %4121 = vrot.lane.b32.xlu0 %v2296, 24
      %v4122 = vpop.permute.xlu0 %4121
      %4123 = vrot.lane.b32.xlu0 %v2301, 24
      %v4124 = vpop.permute.xlu0 %4123
      %4125 = vrot.lane.b32.xlu0 %v2304, 24
      %v4126 = vpop.permute.xlu0 %4125
      %4127 = vrot.lane.b32.xlu0 %v2309, 24
      %v4128 = vpop.permute.xlu0 %4127
      %4129 = vrot.lane.b32.xlu0 %v2312, 24
      %v4130 = vpop.permute.xlu0 %4129
      %4131 = vrot.lane.b32.xlu0 %v2317, 24
      %v4132 = vpop.permute.xlu0 %4131
      %4133 = vrot.lane.b32.xlu0 %v2320, 24
      %v4134 = vpop.permute.xlu0 %4133
      %4159 = vrot.lane.b32.xlu0 %v2697, 32
      %v4160 = vpop.permute.xlu0 %4159
      %4161 = vrot.lane.b32.xlu0 %v2700, 32
      %v4162 = vpop.permute.xlu0 %4161
      %4163 = vrot.lane.b32.xlu0 %v2705, 32
      %v4164 = vpop.permute.xlu0 %4163
      %4165 = vrot.lane.b32.xlu0 %v2708, 32
      %v4166 = vpop.permute.xlu0 %4165
      %4167 = vrot.lane.b32.xlu0 %v2713, 32
      %v4168 = vpop.permute.xlu0 %4167
      %4169 = vrot.lane.b32.xlu0 %v2716, 32
      %v4170 = vpop.permute.xlu0 %4169
      %4171 = vrot.lane.b32.xlu0 %v2721, 32
      %v4172 = vpop.permute.xlu0 %4171
      %4173 = vrot.lane.b32.xlu0 %v2724, 32
      %v4174 = vpop.permute.xlu0 %4173
      %4175 = vrot.lane.b32.xlu0 %v2729, 32
      %v4176 = vpop.permute.xlu0 %4175
      %4177 = vrot.lane.b32.xlu0 %v2732, 32
      %v4178 = vpop.permute.xlu0 %4177
      %4179 = vrot.lane.b32.xlu0 %v2737, 32
      %v4180 = vpop.permute.xlu0 %4179
      %4181 = vrot.lane.b32.xlu0 %v2740, 32
      %v4182 = vpop.permute.xlu0 %4181
      %4207 = vrot.lane.b32.xlu0 %v3117, 40
      %v4208 = vpop.permute.xlu0 %4207
      %4209 = vrot.lane.b32.xlu0 %v3120, 40
      %v4210 = vpop.permute.xlu0 %4209
      %4211 = vrot.lane.b32.xlu0 %v3125, 40
      %v4212 = vpop.permute.xlu0 %4211
      %4213 = vrot.lane.b32.xlu0 %v3128, 40
      %v4214 = vpop.permute.xlu0 %4213
      %4215 = vrot.lane.b32.xlu0 %v3133, 40
      %v4216 = vpop.permute.xlu0 %4215
      %4217 = vrot.lane.b32.xlu0 %v3136, 40
      %v4218 = vpop.permute.xlu0 %4217
      %4219 = vrot.lane.b32.xlu0 %v3141, 40
      %v4220 = vpop.permute.xlu0 %4219
      %4221 = vrot.lane.b32.xlu0 %v3144, 40
      %v4222 = vpop.permute.xlu0 %4221
      %4223 = vrot.lane.b32.xlu0 %v3149, 40
      %v4224 = vpop.permute.xlu0 %4223
      %4225 = vrot.lane.b32.xlu0 %v3152, 40
      %v4226 = vpop.permute.xlu0 %4225
      %4227 = vrot.lane.b32.xlu0 %v3157, 40
      %v4228 = vpop.permute.xlu0 %4227
      %4229 = vrot.lane.b32.xlu0 %v3160, 40
      %v4230 = vpop.permute.xlu0 %4229
      %4255 = vrot.lane.b32.xlu0 %v3537, 48
      %v4256 = vpop.permute.xlu0 %4255
      %4257 = vrot.lane.b32.xlu0 %v3540, 48
      %v4258 = vpop.permute.xlu0 %4257
      %4259 = vrot.lane.b32.xlu0 %v3545, 48
      %v4260 = vpop.permute.xlu0 %4259
      %4261 = vrot.lane.b32.xlu0 %v3548, 48
      %v4262 = vpop.permute.xlu0 %4261
      %4263 = vrot.lane.b32.xlu0 %v3553, 48
      %v4264 = vpop.permute.xlu0 %4263
      %4265 = vrot.lane.b32.xlu0 %v3556, 48
      %v4266 = vpop.permute.xlu0 %4265
      %4267 = vrot.lane.b32.xlu0 %v3561, 48
      %v4268 = vpop.permute.xlu0 %4267
      %4269 = vrot.lane.b32.xlu0 %v3564, 48
      %v4270 = vpop.permute.xlu0 %4269
      %4271 = vrot.lane.b32.xlu0 %v3569, 48
      %v4272 = vpop.permute.xlu0 %4271
      %4273 = vrot.lane.b32.xlu0 %v3572, 48
      %v4274 = vpop.permute.xlu0 %4273
      %4275 = vrot.lane.b32.xlu0 %v3577, 48
      %v4276 = vpop.permute.xlu0 %4275
      %4277 = vrot.lane.b32.xlu0 %v3580, 48
      %v4278 = vpop.permute.xlu0 %4277
      %4303 = vrot.lane.b32.xlu0 %v3957, 56
      %v4304 = vpop.permute.xlu0 %4303
      %4305 = vrot.lane.b32.xlu0 %v3960, 56
      %v4306 = vpop.permute.xlu0 %4305
      %4307 = vrot.lane.b32.xlu0 %v3965, 56
      %v4308 = vpop.permute.xlu0 %4307
      %4309 = vrot.lane.b32.xlu0 %v3968, 56
      %v4310 = vpop.permute.xlu0 %4309
      %4311 = vrot.lane.b32.xlu0 %v3973, 56
      %v4312 = vpop.permute.xlu0 %4311
      %4313 = vrot.lane.b32.xlu0 %v3976, 56
      %v4314 = vpop.permute.xlu0 %4313
      %4315 = vrot.lane.b32.xlu0 %v3981, 56
      %v4316 = vpop.permute.xlu0 %4315
      %4317 = vrot.lane.b32.xlu0 %v3984, 56
      %v4318 = vpop.permute.xlu0 %4317
      %4319 = vrot.lane.b32.xlu0 %v3989, 56
      %v4320 = vpop.permute.xlu0 %4319
      %4321 = vrot.lane.b32.xlu0 %v3992, 56
      %v4322 = vpop.permute.xlu0 %4321
      %4323 = vrot.lane.b32.xlu0 %v3997, 56
      %v4324 = vpop.permute.xlu0 %4323
      %4325 = vrot.lane.b32.xlu0 %v4000, 56
      %v4326 = vpop.permute.xlu0 %4325
      %v4339 = vsel %vm671, %v1011, %v4016
      %v4340 = vsel %vm671, %v1014, %v4018
      %v4341 = vsel %vm671, %v1019, %v4020
      %v4342 = vsel %vm671, %v1022, %v4022
      %v4343 = vsel %vm671, %v1027, %v4024
      %v4344 = vsel %vm671, %v1030, %v4026
      %v4345 = vsel %vm671, %v1035, %v4028
      %v4346 = vsel %vm671, %v1038, %v4030
      %v4347 = vsel %vm671, %v1043, %v4032
      %v4348 = vsel %vm671, %v1046, %v4034
      %v4349 = vsel %vm671, %v1051, %v4036
      %v4350 = vsel %vm671, %v1054, %v4038
      %vm4351 = vcmask 130048
      %v4352 = vsel %vm4351, %v4339, %v4064
      %v4353 = vsel %vm4351, %v4340, %v4066
      %v4354 = vsel %vm4351, %v4341, %v4068
      %v4355 = vsel %vm4351, %v4342, %v4070
      %v4356 = vsel %vm4351, %v4343, %v4072
      %v4357 = vsel %vm4351, %v4344, %v4074
      %v4358 = vsel %vm4351, %v4345, %v4076
      %v4359 = vsel %vm4351, %v4346, %v4078
      %v4360 = vsel %vm4351, %v4347, %v4080
      %v4361 = vsel %vm4351, %v4348, %v4082
      %v4362 = vsel %vm4351, %v4349, %v4084
      %v4363 = vsel %vm4351, %v4350, %v4086
      %vm4364 = vcmask 195584
      %v4365 = vsel %vm4364, %v4352, %v4112
      %v4366 = vsel %vm4364, %v4353, %v4114
      %v4367 = vsel %vm4364, %v4354, %v4116
      %v4368 = vsel %vm4364, %v4355, %v4118
      %v4369 = vsel %vm4364, %v4356, %v4120
      %v4370 = vsel %vm4364, %v4357, %v4122
      %v4371 = vsel %vm4364, %v4358, %v4124
      %v4372 = vsel %vm4364, %v4359, %v4126
      %v4373 = vsel %vm4364, %v4360, %v4128
      %v4374 = vsel %vm4364, %v4361, %v4130
      %v4375 = vsel %vm4364, %v4362, %v4132
      %v4376 = vsel %vm4364, %v4363, %v4134
      %vm4377 = vcmask 261120
      %v4378 = vsel %vm4377, %v4365, %v4160
      %v4379 = vsel %vm4377, %v4366, %v4162
      %v4380 = vsel %vm4377, %v4367, %v4164
      %v4381 = vsel %vm4377, %v4368, %v4166
      %v4382 = vsel %vm4377, %v4369, %v4168
      %v4383 = vsel %vm4377, %v4370, %v4170
      %v4384 = vsel %vm4377, %v4371, %v4172
      %v4385 = vsel %vm4377, %v4372, %v4174
      %v4386 = vsel %vm4377, %v4373, %v4176
      %v4387 = vsel %vm4377, %v4374, %v4178
      %v4388 = vsel %vm4377, %v4375, %v4180
      %v4389 = vsel %vm4377, %v4376, %v4182
      %vm4390 = vcmask 326656
      %v4391 = vsel %vm4390, %v4378, %v4208
      %v4392 = vsel %vm4390, %v4379, %v4210
      %v4393 = vsel %vm4390, %v4380, %v4212
      %v4394 = vsel %vm4390, %v4381, %v4214
      %v4395 = vsel %vm4390, %v4382, %v4216
      %v4396 = vsel %vm4390, %v4383, %v4218
      %v4397 = vsel %vm4390, %v4384, %v4220
      %v4398 = vsel %vm4390, %v4385, %v4222
      %v4399 = vsel %vm4390, %v4386, %v4224
      %v4400 = vsel %vm4390, %v4387, %v4226
      %v4401 = vsel %vm4390, %v4388, %v4228
      %v4402 = vsel %vm4390, %v4389, %v4230
      %vm4403 = vcmask 392192
      %v4404 = vsel %vm4403, %v4391, %v4256
      %v4405 = vsel %vm4403, %v4392, %v4258
      %v4406 = vsel %vm4403, %v4393, %v4260
      %v4407 = vsel %vm4403, %v4394, %v4262
      %v4408 = vsel %vm4403, %v4395, %v4264
      %v4409 = vsel %vm4403, %v4396, %v4266
      %v4410 = vsel %vm4403, %v4397, %v4268
      %v4411 = vsel %vm4403, %v4398, %v4270
      %v4412 = vsel %vm4403, %v4399, %v4272
      %v4413 = vsel %vm4403, %v4400, %v4274
      %v4414 = vsel %vm4403, %v4401, %v4276
      %v4415 = vsel %vm4403, %v4402, %v4278
      %vm4416 = vcmask 457728
      %v4417 = vsel %vm4416, %v4404, %v4304
      %v4418 = vsel %vm4416, %v4405, %v4306
      %v4419 = vsel %vm4416, %v4406, %v4308
      %v4420 = vsel %vm4416, %v4407, %v4310
      %v4421 = vsel %vm4416, %v4408, %v4312
      %v4422 = vsel %vm4416, %v4409, %v4314
      %v4423 = vsel %vm4416, %v4410, %v4316
      %v4424 = vsel %vm4416, %v4411, %v4318
      %v4425 = vsel %vm4416, %v4412, %v4320
      %v4426 = vsel %vm4416, %v4413, %v4322
      %v4427 = vsel %vm4416, %v4414, %v4324
      %v4428 = vsel %vm4416, %v4415, %v4326
      %v4429 = vld [vmem:[%s4] sm:$0xff]
      %v4430 = vld [vmem:[%s4 + $0x8] sm:$0xff]
      %v4431 = vld [vmem:[%s4 + $0x10] sm:$0xff]
      %v4432 = vld [vmem:[%s4 + $0x18] sm:$0xff]
      %v4433 = vld [vmem:[%s4 + $0x20] sm:$0xff]
      %v4434 = vld [vmem:[%s4 + $0x28] sm:$0xff]
      %v4435 = vld [vmem:[%s4 + $0x30] sm:$0xff]
      %v4436 = vld [vmem:[%s4 + $0x38] sm:$0xff]
      %v4437 = vpack.c.bf16 %v4418, %v4417
      %v4438 = vpack.c.bf16 %v4420, %v4419
      %v4439 = vpack.c.bf16 %v4422, %v4421
      %v4440 = vpack.c.bf16 %v4424, %v4423
      %v4441 = vpack.c.bf16 %v4426, %v4425
      %v4442 = vpack.c.bf16 %v4428, %v4427
      %v4443 = vpack.c.bf16 %v4430, %v4429
      %v4444 = vpack.c.bf16 %v4432, %v4431
      %v4445 = vpack.c.bf16 %v4434, %v4433
      %v4446 = vpack.c.bf16 %v4436, %v4435
      %v4447 = vld [vmem:[%s5] sm:$0x1]
      %v4449 = vlaneseq
      %v4450 = vshrl.u32 %v4449, 7
      %v4451 = vsub.s32 0, %v4450
      %v4452 = vrot.slane %v4447, %v4451
      %v4455 = vsel %vm535, %v4437, 0
      %v4458 = vsel %vm535, %v4438, 0
      %v4461 = vsel %vm535, %v4439, 0
      %v4464 = vsel %vm535, %v4440, 0
      %v4467 = vsel %vm535, %v4441, 0
      %v4470 = vsel %vm535, %v4442, 0
      %4472 = vmatprep.subr.bf16.mxu0 0
      %4473 = vmatpush1.bf16.msra.mxu0 %v4443
      %4474 = vmatprep.subr.bf16.mxu0 0
      %4475 = vmatpush1.bf16.msra.mxu0 %v4444
      %4476 = vmatprep.subr.bf16.mxu0 0
      %4477 = vmatpush1.bf16.msra.mxu0 %v4445
      %4478 = vmatprep.subr.bf16.mxu0 0
      %4479 = vmatpush1.bf16.msra.mxu0 %v4446
      %4480 = vmatprep.subr.bf16.mxu0 0
      %4481 = vmatpush1.bf16.msra.mxu0 0
      %4482 = vmatprep.subr.bf16.mxu0 0
      %4483 = vmatpush1.bf16.msra.mxu0 0
      %4484 = vmatprep.subr.bf16.mxu0 0
      %4485 = vmatpush1.bf16.msra.mxu0 0
      %4486 = vmatprep.subr.bf16.mxu0 0
      %4487 = vmatpush1.bf16.msra.mxu0 0
      %4488 = vmatprep.subr.bf16.mxu0 0
      %4489 = vmatpush1.bf16.msra.mxu0 0
      %4490 = vmatprep.subr.bf16.mxu0 0
      %4491 = vmatpush1.bf16.msra.mxu0 0
      %4492 = vmatprep.subr.bf16.mxu0 0
      %4493 = vmatpush1.bf16.msra.mxu0 0
      %4494 = vmatprep.subr.bf16.mxu0 0
      %4495 = vmatpush1.bf16.msra.mxu0 0
      %4496 = vmatprep.subr.bf16.mxu0 0
      %4497 = vmatpush1.bf16.msra.mxu0 0
      %4498 = vmatprep.subr.bf16.mxu0 0
      %4499 = vmatpush1.bf16.msra.mxu0 0
      %4500 = vmatprep.subr.bf16.mxu0 0
      %4501 = vmatpush1.bf16.msra.mxu0 0
      %4502 = vmatprep.subr.bf16.mxu0 0
      %4503 = vmatpush1.bf16.msra.mxu0 0
      %4504 = vmatprep.mubr.bf16.mxu0 0
      %4505 = vmatmul.mubr.bf16.gmra.mrb[0].mxu0 %v4455
      %v4506 = vpop.f32.mrb[0].mxu0
      %v4507 = vadd.f32 %v4452, %v4506
      %v4508 = vpop.f32.mrb[0].mxu0
      %v4509 = vpop.f32.mrb[0].mxu0
      %v4510 = vadd.f32 %v4452, %v4509
      %v4511 = vpop.f32.mrb[0].mxu0
      %4512 = vmatprep.mubr.bf16.mxu0 0
      %4513 = vmatmul.mubr.bf16.gmra.mrb[0].mxu0 %v4458
      %v4514 = vpop.f32.mrb[0].mxu0
      %v4515 = vadd.f32 %v4452, %v4514
      %v4516 = vpop.f32.mrb[0].mxu0
      %v4517 = vpop.f32.mrb[0].mxu0
      %v4518 = vadd.f32 %v4452, %v4517
      %v4519 = vpop.f32.mrb[0].mxu0
      %4520 = vmatprep.mubr.bf16.mxu0 0
      %4521 = vmatmul.mubr.bf16.gmra.mrb[0].mxu0 %v4461
      %v4522 = vpop.f32.mrb[0].mxu0
      %v4523 = vadd.f32 %v4452, %v4522
      %v4524 = vpop.f32.mrb[0].mxu0
      %v4525 = vpop.f32.mrb[0].mxu0
      %v4526 = vadd.f32 %v4452, %v4525
      %v4527 = vpop.f32.mrb[0].mxu0
      %4528 = vmatprep.mubr.bf16.mxu0 0
      %4529 = vmatmul.mubr.bf16.gmra.mrb[0].mxu0 %v4464
      %v4530 = vpop.f32.mrb[0].mxu0
      %v4531 = vadd.f32 %v4452, %v4530
      %v4532 = vpop.f32.mrb[0].mxu0
      %v4533 = vpop.f32.mrb[0].mxu0
      %v4534 = vadd.f32 %v4452, %v4533
      %v4535 = vpop.f32.mrb[0].mxu0
      %4536 = vmatprep.mubr.bf16.mxu0 0
      %4537 = vmatmul.mubr.bf16.gmra.mrb[0].mxu0 %v4467
      %v4538 = vpop.f32.mrb[0].mxu0
      %v4539 = vadd.f32 %v4452, %v4538
      %v4540 = vpop.f32.mrb[0].mxu0
      %v4541 = vpop.f32.mrb[0].mxu0
      %v4542 = vadd.f32 %v4452, %v4541
      %v4543 = vpop.f32.mrb[0].mxu0
      %4544 = vmatprep.mubr.bf16.mxu0 0
      %4545 = vmatmul.mubr.bf16.gmra.mrb[0].mxu0 %v4470
      %v4546 = vpop.f32.mrb[0].mxu0
      %v4547 = vadd.f32 %v4452, %v4546
      %v4548 = vpop.f32.mrb[0].mxu0
      %v4549 = vpop.f32.mrb[0].mxu0
      %v4550 = vadd.f32 %v4452, %v4549
      %v4551 = vpop.f32.mrb[0].mxu0
      %4552 = vdwg.mxu0
      %v4553 = vadd.f32 %v469, %v4507
      %v4554 = vadd.f32 %v470, %v4510
      %v4555 = vadd.f32 %v471, %v4515
      %v4556 = vadd.f32 %v472, %v4518
      %v4557 = vadd.f32 %v473, %v4523
      %v4558 = vadd.f32 %v474, %v4526
      %v4559 = vadd.f32 %v475, %v4531
      %v4560 = vadd.f32 %v476, %v4534
      %v4561 = vadd.f32 %v477, %v4539
      %v4562 = vadd.f32 %v478, %v4542
      %v4563 = vadd.f32 %v479, %v4547
      %v4564 = vadd.f32 %v480, %v4550
      %v4565 = vld [vmem:[%s10] sm:$0x1]
      %v4566 = vld [vmem:[%s11] sm:$0x1]
      %v4567 = vsel %vm535, %v4553, 0.0
      %4568 = vadd.xlane.f32.xlu0 %v4567
      %v4569 = vpop.xlane.xlu0 %4568
      %v4570 = vsel %vm535, %v4554, 0.0
      %4571 = vadd.xlane.f32.xlu0 %v4570
      %v4572 = vpop.xlane.xlu0 %4571
      %v4573 = vsel %vm535, %v4555, 0.0
      %4574 = vadd.xlane.f32.xlu0 %v4573
      %v4575 = vpop.xlane.xlu0 %4574
      %v4576 = vsel %vm535, %v4556, 0.0
      %4577 = vadd.xlane.f32.xlu0 %v4576
      %v4578 = vpop.xlane.xlu0 %4577
      %v4579 = vsel %vm535, %v4557, 0.0
      %4580 = vadd.xlane.f32.xlu0 %v4579
      %v4581 = vpop.xlane.xlu0 %4580
      %v4582 = vsel %vm535, %v4558, 0.0
      %4583 = vadd.xlane.f32.xlu0 %v4582
      %v4584 = vpop.xlane.xlu0 %4583
      %v4585 = vsel %vm535, %v4559, 0.0
      %4586 = vadd.xlane.f32.xlu0 %v4585
      %v4587 = vpop.xlane.xlu0 %4586
      %v4588 = vsel %vm535, %v4560, 0.0
      %4589 = vadd.xlane.f32.xlu0 %v4588
      %v4590 = vpop.xlane.xlu0 %4589
      %v4591 = vsel %vm535, %v4561, 0.0
      %4592 = vadd.xlane.f32.xlu0 %v4591
      %v4593 = vpop.xlane.xlu0 %4592
      %v4594 = vsel %vm535, %v4562, 0.0
      %4595 = vadd.xlane.f32.xlu0 %v4594
      %v4596 = vpop.xlane.xlu0 %4595
      %v4597 = vsel %vm535, %v4563, 0.0
      %4598 = vadd.xlane.f32.xlu0 %v4597
      %v4599 = vpop.xlane.xlu0 %4598
      %v4600 = vsel %vm535, %v4564, 0.0
      %4601 = vadd.xlane.f32.xlu0 %v4600
      %v4602 = vpop.xlane.xlu0 %4601
      %v4603 = vrcp.pop 64.0
      %v4604 = vmul.f32 %v4569, %v4603
      %v4605 = vmul.f32 %v4572, %v4603
      %v4606 = vmul.f32 %v4575, %v4603
      %v4607 = vmul.f32 %v4578, %v4603
      %v4608 = vmul.f32 %v4581, %v4603
      %v4609 = vmul.f32 %v4584, %v4603
      %v4610 = vmul.f32 %v4587, %v4603
      %v4611 = vmul.f32 %v4590, %v4603
      %v4612 = vmul.f32 %v4593, %v4603
      %v4613 = vmul.f32 %v4596, %v4603
      %v4614 = vmul.f32 %v4599, %v4603
      %v4615 = vmul.f32 %v4602, %v4603
      %v4616 = vsub.f32 %v4553, %v4604
      %v4617 = vsub.f32 %v4554, %v4605
      %v4618 = vsub.f32 %v4555, %v4606
      %v4619 = vsub.f32 %v4556, %v4607
      %v4620 = vsub.f32 %v4557, %v4608
      %v4621 = vsub.f32 %v4558, %v4609
      %v4622 = vsub.f32 %v4559, %v4610
      %v4623 = vsub.f32 %v4560, %v4611
      %v4624 = vsub.f32 %v4561, %v4612
      %v4625 = vsub.f32 %v4562, %v4613
      %v4626 = vsub.f32 %v4563, %v4614
      %v4627 = vsub.f32 %v4564, %v4615
      %v4628 = vmul.f32 %v4616, %v4616
      %v4629 = vmul.f32 %v4617, %v4617
      %v4630 = vmul.f32 %v4618, %v4618
      %v4631 = vmul.f32 %v4619, %v4619
      %v4632 = vmul.f32 %v4620, %v4620
      %v4633 = vmul.f32 %v4621, %v4621
      %v4634 = vmul.f32 %v4622, %v4622
      %v4635 = vmul.f32 %v4623, %v4623
      %v4636 = vmul.f32 %v4624, %v4624
      %v4637 = vmul.f32 %v4625, %v4625
      %v4638 = vmul.f32 %v4626, %v4626
      %v4639 = vmul.f32 %v4627, %v4627
      %v4640 = vsel %vm535, %v4628, 0.0
      %4641 = vadd.xlane.f32.xlu0 %v4640
      %v4642 = vpop.xlane.xlu0 %4641
      %v4643 = vsel %vm535, %v4629, 0.0
      %4644 = vadd.xlane.f32.xlu0 %v4643
      %v4645 = vpop.xlane.xlu0 %4644
      %v4646 = vsel %vm535, %v4630, 0.0
      %4647 = vadd.xlane.f32.xlu0 %v4646
      %v4648 = vpop.xlane.xlu0 %4647
      %v4649 = vsel %vm535, %v4631, 0.0
      %4650 = vadd.xlane.f32.xlu0 %v4649
      %v4651 = vpop.xlane.xlu0 %4650
      %v4652 = vsel %vm535, %v4632, 0.0
      %4653 = vadd.xlane.f32.xlu0 %v4652
      %v4654 = vpop.xlane.xlu0 %4653
      %v4655 = vsel %vm535, %v4633, 0.0
      %4656 = vadd.xlane.f32.xlu0 %v4655
      %v4657 = vpop.xlane.xlu0 %4656
      %v4658 = vsel %vm535, %v4634, 0.0
      %4659 = vadd.xlane.f32.xlu0 %v4658
      %v4660 = vpop.xlane.xlu0 %4659
      %v4661 = vsel %vm535, %v4635, 0.0
      %4662 = vadd.xlane.f32.xlu0 %v4661
      %v4663 = vpop.xlane.xlu0 %4662
      %v4664 = vsel %vm535, %v4636, 0.0
      %4665 = vadd.xlane.f32.xlu0 %v4664
      %v4666 = vpop.xlane.xlu0 %4665
      %v4667 = vsel %vm535, %v4637, 0.0
      %4668 = vadd.xlane.f32.xlu0 %v4667
      %v4669 = vpop.xlane.xlu0 %4668
      %v4670 = vsel %vm535, %v4638, 0.0
      %4671 = vadd.xlane.f32.xlu0 %v4670
      %v4672 = vpop.xlane.xlu0 %4671
      %v4673 = vsel %vm535, %v4639, 0.0
      %4674 = vadd.xlane.f32.xlu0 %v4673
      %v4675 = vpop.xlane.xlu0 %4674
      %v4676 = vmul.f32 %v4642, %v4603
      %v4677 = vmul.f32 %v4645, %v4603
      %v4678 = vmul.f32 %v4648, %v4603
      %v4679 = vmul.f32 %v4651, %v4603
      %v4680 = vmul.f32 %v4654, %v4603
      %v4681 = vmul.f32 %v4657, %v4603
      %v4682 = vmul.f32 %v4660, %v4603
      %v4683 = vmul.f32 %v4663, %v4603
      %v4684 = vmul.f32 %v4666, %v4603
      %v4685 = vmul.f32 %v4669, %v4603
      %v4686 = vmul.f32 %v4672, %v4603
      %v4687 = vmul.f32 %v4675, %v4603
      %v4688 = vadd.f32 %v4676, 1e-05
      %v4689 = vadd.f32 %v4677, 1e-05
      %v4690 = vadd.f32 %v4678, 1e-05
      %v4691 = vadd.f32 %v4679, 1e-05
      %v4692 = vadd.f32 %v4680, 1e-05
      %v4693 = vadd.f32 %v4681, 1e-05
      %v4694 = vadd.f32 %v4682, 1e-05
      %v4695 = vadd.f32 %v4683, 1e-05
      %v4696 = vadd.f32 %v4684, 1e-05
      %v4697 = vadd.f32 %v4685, 1e-05
      %v4698 = vadd.f32 %v4686, 1e-05
      %v4699 = vadd.f32 %v4687, 1e-05
      %v4700 = vrsqrt.pop %v4688
      %v4701 = vrsqrt.pop %v4689
      %v4702 = vrsqrt.pop %v4690
      %v4703 = vrsqrt.pop %v4691
      %v4704 = vrsqrt.pop %v4692
      %v4705 = vrsqrt.pop %v4693
      %v4706 = vrsqrt.pop %v4694
      %v4707 = vrsqrt.pop %v4695
      %v4708 = vrsqrt.pop %v4696
      %v4709 = vrsqrt.pop %v4697
      %v4710 = vrsqrt.pop %v4698
      %v4711 = vrsqrt.pop %v4699
      %v4712 = vmul.f32 %v4616, %v4700
      %v4713 = vmul.f32 %v4617, %v4701
      %v4714 = vmul.f32 %v4618, %v4702
      %v4715 = vmul.f32 %v4619, %v4703
      %v4716 = vmul.f32 %v4620, %v4704
      %v4717 = vmul.f32 %v4621, %v4705
      %v4718 = vmul.f32 %v4622, %v4706
      %v4719 = vmul.f32 %v4623, %v4707
      %v4720 = vmul.f32 %v4624, %v4708
      %v4721 = vmul.f32 %v4625, %v4709
      %v4722 = vmul.f32 %v4626, %v4710
      %v4723 = vmul.f32 %v4627, %v4711
      %v4725 = vlaneseq
      %v4726 = vshrl.u32 %v4725, 7
      %v4727 = vsub.s32 0, %v4726
      %v4728 = vrot.slane %v4565, %v4727
      %v4730 = vmul.f32 %v4712, %v4728
      %v4731 = vmul.f32 %v4713, %v4728
      %v4732 = vmul.f32 %v4714, %v4728
      %v4733 = vmul.f32 %v4715, %v4728
      %v4734 = vmul.f32 %v4716, %v4728
      %v4735 = vmul.f32 %v4717, %v4728
      %v4736 = vmul.f32 %v4718, %v4728
      %v4737 = vmul.f32 %v4719, %v4728
      %v4738 = vmul.f32 %v4720, %v4728
      %v4739 = vmul.f32 %v4721, %v4728
      %v4740 = vmul.f32 %v4722, %v4728
      %v4741 = vmul.f32 %v4723, %v4728
      %v4743 = vlaneseq
      %v4744 = vshrl.u32 %v4743, 7
      %v4745 = vsub.s32 0, %v4744
      %v4746 = vrot.slane %v4566, %v4745
      %v4748 = vadd.f32 %v4730, %v4746
      %v4749 = vadd.f32 %v4731, %v4746
      %v4750 = vadd.f32 %v4732, %v4746
      %v4751 = vadd.f32 %v4733, %v4746
      %v4752 = vadd.f32 %v4734, %v4746
      %v4753 = vadd.f32 %v4735, %v4746
      %v4754 = vadd.f32 %v4736, %v4746
      %v4755 = vadd.f32 %v4737, %v4746
      %v4756 = vadd.f32 %v4738, %v4746
      %v4757 = vadd.f32 %v4739, %v4746
      %v4758 = vadd.f32 %v4740, %v4746
      %v4759 = vadd.f32 %v4741, %v4746
      %v4760 = vld [vmem:[%s6] sm:$0xff]
      %v4761 = vld [vmem:[%s6 + $0x8] sm:$0xff]
      %v4762 = vld [vmem:[%s6 + $0x10] sm:$0xff]
      %v4763 = vld [vmem:[%s6 + $0x18] sm:$0xff]
      %v4764 = vld [vmem:[%s6 + $0x20] sm:$0xff]
      %v4765 = vld [vmem:[%s6 + $0x28] sm:$0xff]
      %v4766 = vld [vmem:[%s6 + $0x30] sm:$0xff]
      %v4767 = vld [vmem:[%s6 + $0x38] sm:$0xff]
      %v4768 = vld [vmem:[%s6 + $0x40] sm:$0xff]
      %v4769 = vld [vmem:[%s6 + $0x48] sm:$0xff]
      %v4770 = vld [vmem:[%s6 + $0x50] sm:$0xff]
      %v4771 = vld [vmem:[%s6 + $0x58] sm:$0xff]
      %v4772 = vld [vmem:[%s6 + $0x60] sm:$0xff]
      %v4773 = vld [vmem:[%s6 + $0x68] sm:$0xff]
      %v4774 = vld [vmem:[%s6 + $0x70] sm:$0xff]
      %v4775 = vld [vmem:[%s6 + $0x78] sm:$0xff]
      %v4776 = vld [vmem:[%s6 + $0x80] sm:$0xff]
      %v4777 = vld [vmem:[%s6 + $0x88] sm:$0xff]
      %v4778 = vld [vmem:[%s6 + $0x90] sm:$0xff]
      %v4779 = vld [vmem:[%s6 + $0x98] sm:$0xff]
      %v4780 = vld [vmem:[%s6 + $0xa0] sm:$0xff]
      %v4781 = vld [vmem:[%s6 + $0xa8] sm:$0xff]
      %v4782 = vld [vmem:[%s6 + $0xb0] sm:$0xff]
      %v4783 = vld [vmem:[%s6 + $0xb8] sm:$0xff]
      %v4784 = vld [vmem:[%s6 + $0xc0] sm:$0xff]
      %v4785 = vld [vmem:[%s6 + $0xc8] sm:$0xff]
      %v4786 = vld [vmem:[%s6 + $0xd0] sm:$0xff]
      %v4787 = vld [vmem:[%s6 + $0xd8] sm:$0xff]
      %v4788 = vld [vmem:[%s6 + $0xe0] sm:$0xff]
      %v4789 = vld [vmem:[%s6 + $0xe8] sm:$0xff]
      %v4790 = vld [vmem:[%s6 + $0xf0] sm:$0xff]
      %v4791 = vld [vmem:[%s6 + $0xf8] sm:$0xff]
      %v4792 = vld [vmem:[%s6 + $0x100] sm:$0xff]
      %v4793 = vld [vmem:[%s6 + $0x108] sm:$0xff]
      %v4794 = vld [vmem:[%s6 + $0x110] sm:$0xff]
      %v4795 = vld [vmem:[%s6 + $0x118] sm:$0xff]
      %v4796 = vld [vmem:[%s6 + $0x120] sm:$0xff]
      %v4797 = vld [vmem:[%s6 + $0x128] sm:$0xff]
      %v4798 = vld [vmem:[%s6 + $0x130] sm:$0xff]
      %v4799 = vld [vmem:[%s6 + $0x138] sm:$0xff]
      %v4800 = vld [vmem:[%s6 + $0x140] sm:$0xff]
      %v4801 = vld [vmem:[%s6 + $0x148] sm:$0xff]
      %v4802 = vld [vmem:[%s6 + $0x150] sm:$0xff]
      %v4803 = vld [vmem:[%s6 + $0x158] sm:$0xff]
      %v4804 = vld [vmem:[%s6 + $0x160] sm:$0xff]
      %v4805 = vld [vmem:[%s6 + $0x168] sm:$0xff]
      %v4806 = vld [vmem:[%s6 + $0x170] sm:$0xff]
      %v4807 = vld [vmem:[%s6 + $0x178] sm:$0xff]
      %v4808 = vld [vmem:[%s6 + $0x180] sm:$0xff]
      %v4809 = vld [vmem:[%s6 + $0x188] sm:$0xff]
      %v4810 = vld [vmem:[%s6 + $0x190] sm:$0xff]
      %v4811 = vld [vmem:[%s6 + $0x198] sm:$0xff]
      %v4812 = vld [vmem:[%s6 + $0x1a0] sm:$0xff]
      %v4813 = vld [vmem:[%s6 + $0x1a8] sm:$0xff]
      %v4814 = vld [vmem:[%s6 + $0x1b0] sm:$0xff]
      %v4815 = vld [vmem:[%s6 + $0x1b8] sm:$0xff]
      %v4816 = vld [vmem:[%s6 + $0x1c0] sm:$0xff]
      %v4817 = vld [vmem:[%s6 + $0x1c8] sm:$0xff]
      %v4818 = vld [vmem:[%s6 + $0x1d0] sm:$0xff]
      %v4819 = vld [vmem:[%s6 + $0x1d8] sm:$0xff]
      %v4820 = vld [vmem:[%s6 + $0x1e0] sm:$0xff]
      %v4821 = vld [vmem:[%s6 + $0x1e8] sm:$0xff]
      %v4822 = vld [vmem:[%s6 + $0x1f0] sm:$0xff]
      %v4823 = vld [vmem:[%s6 + $0x1f8] sm:$0xff]
      %v4824 = vld [vmem:[%s6 + $0x200] sm:$0xff]
      %v4825 = vld [vmem:[%s6 + $0x208] sm:$0xff]
      %v4826 = vld [vmem:[%s6 + $0x210] sm:$0xff]
      %v4827 = vld [vmem:[%s6 + $0x218] sm:$0xff]
      %v4828 = vld [vmem:[%s6 + $0x220] sm:$0xff]
      %v4829 = vld [vmem:[%s6 + $0x228] sm:$0xff]
      %v4830 = vld [vmem:[%s6 + $0x230] sm:$0xff]
      %v4831 = vld [vmem:[%s6 + $0x238] sm:$0xff]
      %v4832 = vld [vmem:[%s6 + $0x240] sm:$0xff]
      %v4833 = vld [vmem:[%s6 + $0x248] sm:$0xff]
      %v4834 = vld [vmem:[%s6 + $0x250] sm:$0xff]
      %v4835 = vld [vmem:[%s6 + $0x258] sm:$0xff]
      %v4836 = vld [vmem:[%s6 + $0x260] sm:$0xff]
      %v4837 = vld [vmem:[%s6 + $0x268] sm:$0xff]
      %v4838 = vld [vmem:[%s6 + $0x270] sm:$0xff]
      %v4839 = vld [vmem:[%s6 + $0x278] sm:$0xff]
      %v4840 = vld [vmem:[%s6 + $0x280] sm:$0xff]
      %v4841 = vld [vmem:[%s6 + $0x288] sm:$0xff]
      %v4842 = vld [vmem:[%s6 + $0x290] sm:$0xff]
      %v4843 = vld [vmem:[%s6 + $0x298] sm:$0xff]
      %v4844 = vld [vmem:[%s6 + $0x2a0] sm:$0xff]
      %v4845 = vld [vmem:[%s6 + $0x2a8] sm:$0xff]
      %v4846 = vld [vmem:[%s6 + $0x2b0] sm:$0xff]
      %v4847 = vld [vmem:[%s6 + $0x2b8] sm:$0xff]
      %v4848 = vld [vmem:[%s6 + $0x2c0] sm:$0xff]
      %v4849 = vld [vmem:[%s6 + $0x2c8] sm:$0xff]
      %v4850 = vld [vmem:[%s6 + $0x2d0] sm:$0xff]
      %v4851 = vld [vmem:[%s6 + $0x2d8] sm:$0xff]
      %v4852 = vld [vmem:[%s6 + $0x2e0] sm:$0xff]
      %v4853 = vld [vmem:[%s6 + $0x2e8] sm:$0xff]
      %v4854 = vld [vmem:[%s6 + $0x2f0] sm:$0xff]
      %v4855 = vld [vmem:[%s6 + $0x2f8] sm:$0xff]
      %v4856 = vld [vmem:[%s6 + $0x300] sm:$0xff]
      %v4857 = vld [vmem:[%s6 + $0x308] sm:$0xff]
      %v4858 = vld [vmem:[%s6 + $0x310] sm:$0xff]
      %v4859 = vld [vmem:[%s6 + $0x318] sm:$0xff]
      %v4860 = vld [vmem:[%s6 + $0x320] sm:$0xff]
      %v4861 = vld [vmem:[%s6 + $0x328] sm:$0xff]
      %v4862 = vld [vmem:[%s6 + $0x330] sm:$0xff]
      %v4863 = vld [vmem:[%s6 + $0x338] sm:$0xff]
      %v4864 = vld [vmem:[%s6 + $0x340] sm:$0xff]
      %v4865 = vld [vmem:[%s6 + $0x348] sm:$0xff]
      %v4866 = vld [vmem:[%s6 + $0x350] sm:$0xff]
      %v4867 = vld [vmem:[%s6 + $0x358] sm:$0xff]
      %v4868 = vld [vmem:[%s6 + $0x360] sm:$0xff]
      %v4869 = vld [vmem:[%s6 + $0x368] sm:$0xff]
      %v4870 = vld [vmem:[%s6 + $0x370] sm:$0xff]
      %v4871 = vld [vmem:[%s6 + $0x378] sm:$0xff]
      %v4872 = vld [vmem:[%s6 + $0x380] sm:$0xff]
      %v4873 = vld [vmem:[%s6 + $0x388] sm:$0xff]
      %v4874 = vld [vmem:[%s6 + $0x390] sm:$0xff]
      %v4875 = vld [vmem:[%s6 + $0x398] sm:$0xff]
      %v4876 = vld [vmem:[%s6 + $0x3a0] sm:$0xff]
      %v4877 = vld [vmem:[%s6 + $0x3a8] sm:$0xff]
      %v4878 = vld [vmem:[%s6 + $0x3b0] sm:$0xff]
      %v4879 = vld [vmem:[%s6 + $0x3b8] sm:$0xff]
      %v4880 = vld [vmem:[%s6 + $0x3c0] sm:$0xff]
      %v4881 = vld [vmem:[%s6 + $0x3c8] sm:$0xff]
      %v4882 = vld [vmem:[%s6 + $0x3d0] sm:$0xff]
      %v4883 = vld [vmem:[%s6 + $0x3d8] sm:$0xff]
      %v4884 = vld [vmem:[%s6 + $0x3e0] sm:$0xff]
      %v4885 = vld [vmem:[%s6 + $0x3e8] sm:$0xff]
      %v4886 = vld [vmem:[%s6 + $0x3f0] sm:$0xff]
      %v4887 = vld [vmem:[%s6 + $0x3f8] sm:$0xff]
      %v4888 = vpack.c.bf16 %v4749, %v4748
      %v4889 = vpack.c.bf16 %v4751, %v4750
      %v4890 = vpack.c.bf16 %v4753, %v4752
      %v4891 = vpack.c.bf16 %v4755, %v4754
      %v4892 = vpack.c.bf16 %v4757, %v4756
      %v4893 = vpack.c.bf16 %v4759, %v4758
      %v4894 = vpack.c.bf16 %v4776, %v4760
      %v4895 = vpack.c.bf16 %v4777, %v4761
      %v4896 = vpack.c.bf16 %v4778, %v4762
      %v4897 = vpack.c.bf16 %v4779, %v4763
      %v4898 = vpack.c.bf16 %v4780, %v4764
      %v4899 = vpack.c.bf16 %v4781, %v4765
      %v4900 = vpack.c.bf16 %v4782, %v4766
      %v4901 = vpack.c.bf16 %v4783, %v4767
      %v4902 = vpack.c.bf16 %v4784, %v4768
      %v4903 = vpack.c.bf16 %v4785, %v4769
      %v4904 = vpack.c.bf16 %v4786, %v4770
      %v4905 = vpack.c.bf16 %v4787, %v4771
      %v4906 = vpack.c.bf16 %v4788, %v4772
      %v4907 = vpack.c.bf16 %v4789, %v4773
      %v4908 = vpack.c.bf16 %v4790, %v4774
      %v4909 = vpack.c.bf16 %v4791, %v4775
      %v4910 = vpack.c.bf16 %v4808, %v4792
      %v4911 = vpack.c.bf16 %v4809, %v4793
      %v4912 = vpack.c.bf16 %v4810, %v4794
      %v4913 = vpack.c.bf16 %v4811, %v4795
      %v4914 = vpack.c.bf16 %v4812, %v4796
      %v4915 = vpack.c.bf16 %v4813, %v4797
      %v4916 = vpack.c.bf16 %v4814, %v4798
      %v4917 = vpack.c.bf16 %v4815, %v4799
      %v4918 = vpack.c.bf16 %v4816, %v4800
      %v4919 = vpack.c.bf16 %v4817, %v4801
      %v4920 = vpack.c.bf16 %v4818, %v4802
      %v4921 = vpack.c.bf16 %v4819, %v4803
      %v4922 = vpack.c.bf16 %v4820, %v4804
      %v4923 = vpack.c.bf16 %v4821, %v4805
      %v4924 = vpack.c.bf16 %v4822, %v4806
      %v4925 = vpack.c.bf16 %v4823, %v4807
      %v4926 = vpack.c.bf16 %v4840, %v4824
      %v4927 = vpack.c.bf16 %v4841, %v4825
      %v4928 = vpack.c.bf16 %v4842, %v4826
      %v4929 = vpack.c.bf16 %v4843, %v4827
      %v4930 = vpack.c.bf16 %v4844, %v4828
      %v4931 = vpack.c.bf16 %v4845, %v4829
      %v4932 = vpack.c.bf16 %v4846, %v4830
      %v4933 = vpack.c.bf16 %v4847, %v4831
      %v4934 = vpack.c.bf16 %v4848, %v4832
      %v4935 = vpack.c.bf16 %v4849, %v4833
      %v4936 = vpack.c.bf16 %v4850, %v4834
      %v4937 = vpack.c.bf16 %v4851, %v4835
      %v4938 = vpack.c.bf16 %v4852, %v4836
      %v4939 = vpack.c.bf16 %v4853, %v4837
      %v4940 = vpack.c.bf16 %v4854, %v4838
      %v4941 = vpack.c.bf16 %v4855, %v4839
      %v4942 = vpack.c.bf16 %v4872, %v4856
      %v4943 = vpack.c.bf16 %v4873, %v4857
      %v4944 = vpack.c.bf16 %v4874, %v4858
      %v4945 = vpack.c.bf16 %v4875, %v4859
      %v4946 = vpack.c.bf16 %v4876, %v4860
      %v4947 = vpack.c.bf16 %v4877, %v4861
      %v4948 = vpack.c.bf16 %v4878, %v4862
      %v4949 = vpack.c.bf16 %v4879, %v4863
      %v4950 = vpack.c.bf16 %v4880, %v4864
      %v4951 = vpack.c.bf16 %v4881, %v4865
      %v4952 = vpack.c.bf16 %v4882, %v4866
      %v4953 = vpack.c.bf16 %v4883, %v4867
      %v4954 = vpack.c.bf16 %v4884, %v4868
      %v4955 = vpack.c.bf16 %v4885, %v4869
      %v4956 = vpack.c.bf16 %v4886, %v4870
      %v4957 = vpack.c.bf16 %v4887, %v4871
      %v4958 = vld [vmem:[%s7] sm:$0xff]
      %v4959 = vld [vmem:[%s7 + $0x8] sm:$0xff]
      %v4962 = vlaneseq
      %v4963 = vshrl.u32 %v4962, 7
      %v4964 = vsub.s32 0, %v4963
      %v4965 = vrot.slane %v4958, %v4964
      %v4966 = vlaneseq
      %v4967 = vshrl.u32 %v4966, 7
      %v4968 = vsub.s32 1, %v4967
      %v4969 = vrot.slane %v4958, %v4968
      %v4970 = vlaneseq
      %v4971 = vshrl.u32 %v4970, 7
      %v4972 = vsub.s32 2, %v4971
      %v4973 = vrot.slane %v4958, %v4972
      %v4974 = vlaneseq
      %v4975 = vshrl.u32 %v4974, 7
      %v4976 = vsub.s32 3, %v4975
      %v4977 = vrot.slane %v4958, %v4976
      %v4978 = vlaneseq
      %v4979 = vshrl.u32 %v4978, 7
      %v4980 = vsub.s32 4, %v4979
      %v4981 = vrot.slane %v4958, %v4980
      %v4982 = vlaneseq
      %v4983 = vshrl.u32 %v4982, 7
      %v4984 = vsub.s32 5, %v4983
      %v4985 = vrot.slane %v4958, %v4984
      %v4986 = vlaneseq
      %v4987 = vshrl.u32 %v4986, 7
      %v4988 = vsub.s32 6, %v4987
      %v4989 = vrot.slane %v4958, %v4988
      %v4990 = vlaneseq
      %v4991 = vshrl.u32 %v4990, 7
      %v4992 = vsub.s32 7, %v4991
      %v4993 = vrot.slane %v4958, %v4992
      %v4994 = vlaneseq
      %v4995 = vshrl.u32 %v4994, 7
      %v4996 = vsub.s32 0, %v4995
      %v4997 = vrot.slane %v4959, %v4996
      %v4998 = vlaneseq
      %v4999 = vshrl.u32 %v4998, 7
      %v5000 = vsub.s32 1, %v4999
      %v5001 = vrot.slane %v4959, %v5000
      %v5002 = vlaneseq
      %v5003 = vshrl.u32 %v5002, 7
      %v5004 = vsub.s32 2, %v5003
      %v5005 = vrot.slane %v4959, %v5004
      %v5006 = vlaneseq
      %v5007 = vshrl.u32 %v5006, 7
      %v5008 = vsub.s32 3, %v5007
      %v5009 = vrot.slane %v4959, %v5008
      %v5010 = vlaneseq
      %v5011 = vshrl.u32 %v5010, 7
      %v5012 = vsub.s32 4, %v5011
      %v5013 = vrot.slane %v4959, %v5012
      %v5014 = vlaneseq
      %v5015 = vshrl.u32 %v5014, 7
      %v5016 = vsub.s32 5, %v5015
      %v5017 = vrot.slane %v4959, %v5016
      %v5018 = vlaneseq
      %v5019 = vshrl.u32 %v5018, 7
      %v5020 = vsub.s32 6, %v5019
      %v5021 = vrot.slane %v4959, %v5020
      %v5022 = vlaneseq
      %v5023 = vshrl.u32 %v5022, 7
      %v5024 = vsub.s32 7, %v5023
      %v5025 = vrot.slane %v4959, %v5024
      %v5043 = vsel %vm535, %v4888, 0
      %v5046 = vsel %vm535, %v4889, 0
      %v5049 = vsel %vm535, %v4890, 0
      %v5052 = vsel %vm535, %v4891, 0
      %v5055 = vsel %vm535, %v4892, 0
      %v5058 = vsel %vm535, %v4893, 0
      %5060 = vmatprep.subr.bf16.mxu0 %v4895
      %5061 = vmatpush1.bf16.msra.mxu0 %v4894
      %5062 = vmatprep.subr.bf16.mxu0 %v4911
      %5063 = vmatpush1.bf16.msra.mxu0 %v4910
      %5064 = vmatprep.subr.bf16.mxu0 %v4927
      %5065 = vmatpush1.bf16.msra.mxu0 %v4926
      %5066 = vmatprep.subr.bf16.mxu0 %v4943
      %5067 = vmatpush1.bf16.msra.mxu0 %v4942
      %5068 = vmatprep.subr.bf16.mxu0 0
      %5069 = vmatpush1.bf16.msra.mxu0 0
      %5070 = vmatprep.subr.bf16.mxu0 0
      %5071 = vmatpush1.bf16.msra.mxu0 0
      %5072 = vmatprep.subr.bf16.mxu0 0
      %5073 = vmatpush1.bf16.msra.mxu0 0
      %5074 = vmatprep.subr.bf16.mxu0 0
      %5075 = vmatpush1.bf16.msra.mxu0 0
      %5076 = vmatprep.subr.bf16.mxu0 0
      %5077 = vmatpush1.bf16.msra.mxu0 0
      %5078 = vmatprep.subr.bf16.mxu0 0
      %5079 = vmatpush1.bf16.msra.mxu0 0
      %5080 = vmatprep.subr.bf16.mxu0 0
      %5081 = vmatpush1.bf16.msra.mxu0 0
      %5082 = vmatprep.subr.bf16.mxu0 0
      %5083 = vmatpush1.bf16.msra.mxu0 0
      %5084 = vmatprep.subr.bf16.mxu0 0
      %5085 = vmatpush1.bf16.msra.mxu0 0
      %5086 = vmatprep.subr.bf16.mxu0 0
      %5087 = vmatpush1.bf16.msra.mxu0 0
      %5088 = vmatprep.subr.bf16.mxu0 0
      %5089 = vmatpush1.bf16.msra.mxu0 0
      %5090 = vmatprep.subr.bf16.mxu0 0
      %5091 = vmatpush1.bf16.msra.mxu0 0
      %5092 = vmatprep.mubr.bf16.mxu0 0
      %5093 = vmatmul.mubr.bf16.gmra.mrb[0].mxu0 %v5043
      %v5094 = vpop.f32.mrb[0].mxu0
      %v5095 = vadd.f32 %v4965, %v5094
      %v5096 = vpop.f32.mrb[0].mxu0
      %v5097 = vadd.f32 %v4969, %v5096
      %v5098 = vpop.f32.mrb[0].mxu0
      %v5099 = vadd.f32 %v4965, %v5098
      %v5100 = vpop.f32.mrb[0].mxu0
      %v5101 = vadd.f32 %v4969, %v5100
      %5102 = vmatprep.mubr.bf16.mxu0 0
      %5103 = vmatmul.mubr.bf16.gmra.mrb[0].mxu0 %v5046
      %v5104 = vpop.f32.mrb[0].mxu0
      %v5105 = vadd.f32 %v4965, %v5104
      %v5106 = vpop.f32.mrb[0].mxu0
      %v5107 = vadd.f32 %v4969, %v5106
      %v5108 = vpop.f32.mrb[0].mxu0
      %v5109 = vadd.f32 %v4965, %v5108
      %v5110 = vpop.f32.mrb[0].mxu0
      %v5111 = vadd.f32 %v4969, %v5110
      %5112 = vmatprep.mubr.bf16.mxu0 0
      %5113 = vmatmul.mubr.bf16.gmra.mrb[0].mxu0 %v5049
      %v5114 = vpop.f32.mrb[0].mxu0
      %v5115 = vadd.f32 %v4965, %v5114
      %v5116 = vpop.f32.mrb[0].mxu0
      %v5117 = vadd.f32 %v4969, %v5116
      %v5118 = vpop.f32.mrb[0].mxu0
      %v5119 = vadd.f32 %v4965, %v5118
      %v5120 = vpop.f32.mrb[0].mxu0
      %v5121 = vadd.f32 %v4969, %v5120
      %5122 = vmatprep.mubr.bf16.mxu0 0
      %5123 = vmatmul.mubr.bf16.gmra.mrb[0].mxu0 %v5052
      %v5124 = vpop.f32.mrb[0].mxu0
      %v5125 = vadd.f32 %v4965, %v5124
      %v5126 = vpop.f32.mrb[0].mxu0
      %v5127 = vadd.f32 %v4969, %v5126
      %v5128 = vpop.f32.mrb[0].mxu0
      %v5129 = vadd.f32 %v4965, %v5128
      %v5130 = vpop.f32.mrb[0].mxu0
      %v5131 = vadd.f32 %v4969, %v5130
      %5132 = vmatprep.mubr.bf16.mxu0 0
      %5133 = vmatmul.mubr.bf16.gmra.mrb[0].mxu0 %v5055
      %v5134 = vpop.f32.mrb[0].mxu0
      %v5135 = vadd.f32 %v4965, %v5134
      %v5136 = vpop.f32.mrb[0].mxu0
      %v5137 = vadd.f32 %v4969, %v5136
      %v5138 = vpop.f32.mrb[0].mxu0
      %v5139 = vadd.f32 %v4965, %v5138
      %v5140 = vpop.f32.mrb[0].mxu0
      %v5141 = vadd.f32 %v4969, %v5140
      %5142 = vmatprep.mubr.bf16.mxu0 0
      %5143 = vmatmul.mubr.bf16.gmra.mrb[0].mxu0 %v5058
      %v5144 = vpop.f32.mrb[0].mxu0
      %v5145 = vadd.f32 %v4965, %v5144
      %v5146 = vpop.f32.mrb[0].mxu0
      %v5147 = vadd.f32 %v4969, %v5146
      %v5148 = vpop.f32.mrb[0].mxu0
      %v5149 = vadd.f32 %v4965, %v5148
      %v5150 = vpop.f32.mrb[0].mxu0
      %v5151 = vadd.f32 %v4969, %v5150
      %5152 = vdwg.mxu0
      %5153 = vmatprep.subr.bf16.mxu0 %v4897
      %5154 = vmatpush1.bf16.msra.mxu0 %v4896
      %5155 = vmatprep.subr.bf16.mxu0 %v4913
      %5156 = vmatpush1.bf16.msra.mxu0 %v4912
      %5157 = vmatprep.subr.bf16.mxu0 %v4929
      %5158 = vmatpush1.bf16.msra.mxu0 %v4928
      %5159 = vmatprep.subr.bf16.mxu0 %v4945
      %5160 = vmatpush1.bf16.msra.mxu0 %v4944
      %5161 = vmatprep.subr.bf16.mxu0 0
      %5162 = vmatpush1.bf16.msra.mxu0 0
      %5163 = vmatprep.subr.bf16.mxu0 0
      %5164 = vmatpush1.bf16.msra.mxu0 0
      %5165 = vmatprep.subr.bf16.mxu0 0
      %5166 = vmatpush1.bf16.msra.mxu0 0
      %5167 = vmatprep.subr.bf16.mxu0 0
      %5168 = vmatpush1.bf16.msra.mxu0 0
      %5169 = vmatprep.subr.bf16.mxu0 0
      %5170 = vmatpush1.bf16.msra.mxu0 0
      %5171 = vmatprep.subr.bf16.mxu0 0
      %5172 = vmatpush1.bf16.msra.mxu0 0
      %5173 = vmatprep.subr.bf16.mxu0 0
      %5174 = vmatpush1.bf16.msra.mxu0 0
      %5175 = vmatprep.subr.bf16.mxu0 0
      %5176 = vmatpush1.bf16.msra.mxu0 0
      %5177 = vmatprep.subr.bf16.mxu0 0
      %5178 = vmatpush1.bf16.msra.mxu0 0
      %5179 = vmatprep.subr.bf16.mxu0 0
      %5180 = vmatpush1.bf16.msra.mxu0 0
      %5181 = vmatprep.subr.bf16.mxu0 0
      %5182 = vmatpush1.bf16.msra.mxu0 0
      %5183 = vmatprep.subr.bf16.mxu0 0
      %5184 = vmatpush1.bf16.msra.mxu0 0
      %5185 = vmatprep.mubr.bf16.mxu0 0
      %5186 = vmatmul.mubr.bf16.gmra.mrb[0].mxu0 %v5043
      %v5187 = vpop.f32.mrb[0].mxu0
      %v5188 = vadd.f32 %v4973, %v5187
      %v5189 = vpop.f32.mrb[0].mxu0
      %v5190 = vadd.f32 %v4977, %v5189
      %v5191 = vpop.f32.mrb[0].mxu0
      %v5192 = vadd.f32 %v4973, %v5191
      %v5193 = vpop.f32.mrb[0].mxu0
      %v5194 = vadd.f32 %v4977, %v5193
      %5195 = vmatprep.mubr.bf16.mxu0 0
      %5196 = vmatmul.mubr.bf16.gmra.mrb[0].mxu0 %v5046
      %v5197 = vpop.f32.mrb[0].mxu0
      %v5198 = vadd.f32 %v4973, %v5197
      %v5199 = vpop.f32.mrb[0].mxu0
      %v5200 = vadd.f32 %v4977, %v5199
      %v5201 = vpop.f32.mrb[0].mxu0
      %v5202 = vadd.f32 %v4973, %v5201
      %v5203 = vpop.f32.mrb[0].mxu0
      %v5204 = vadd.f32 %v4977, %v5203
      %5205 = vmatprep.mubr.bf16.mxu0 0
      %5206 = vmatmul.mubr.bf16.gmra.mrb[0].mxu0 %v5049
      %v5207 = vpop.f32.mrb[0].mxu0
      %v5208 = vadd.f32 %v4973, %v5207
      %v5209 = vpop.f32.mrb[0].mxu0
      %v5210 = vadd.f32 %v4977, %v5209
      %v5211 = vpop.f32.mrb[0].mxu0
      %v5212 = vadd.f32 %v4973, %v5211
      %v5213 = vpop.f32.mrb[0].mxu0
      %v5214 = vadd.f32 %v4977, %v5213
      %5215 = vmatprep.mubr.bf16.mxu0 0
      %5216 = vmatmul.mubr.bf16.gmra.mrb[0].mxu0 %v5052
      %v5217 = vpop.f32.mrb[0].mxu0
      %v5218 = vadd.f32 %v4973, %v5217
      %v5219 = vpop.f32.mrb[0].mxu0
      %v5220 = vadd.f32 %v4977, %v5219
      %v5221 = vpop.f32.mrb[0].mxu0
      %v5222 = vadd.f32 %v4973, %v5221
      %v5223 = vpop.f32.mrb[0].mxu0
      %v5224 = vadd.f32 %v4977, %v5223
      %5225 = vmatprep.mubr.bf16.mxu0 0
      %5226 = vmatmul.mubr.bf16.gmra.mrb[0].mxu0 %v5055
      %v5227 = vpop.f32.mrb[0].mxu0
      %v5228 = vadd.f32 %v4973, %v5227
      %v5229 = vpop.f32.mrb[0].mxu0
      %v5230 = vadd.f32 %v4977, %v5229
      %v5231 = vpop.f32.mrb[0].mxu0
      %v5232 = vadd.f32 %v4973, %v5231
      %v5233 = vpop.f32.mrb[0].mxu0
      %v5234 = vadd.f32 %v4977, %v5233
      %5235 = vmatprep.mubr.bf16.mxu0 0
      %5236 = vmatmul.mubr.bf16.gmra.mrb[0].mxu0 %v5058
      %v5237 = vpop.f32.mrb[0].mxu0
      %v5238 = vadd.f32 %v4973, %v5237
      %v5239 = vpop.f32.mrb[0].mxu0
      %v5240 = vadd.f32 %v4977, %v5239
      %v5241 = vpop.f32.mrb[0].mxu0
      %v5242 = vadd.f32 %v4973, %v5241
      %v5243 = vpop.f32.mrb[0].mxu0
      %v5244 = vadd.f32 %v4977, %v5243
      %5245 = vdwg.mxu0
      %5246 = vmatprep.subr.bf16.mxu0 %v4899
      %5247 = vmatpush1.bf16.msra.mxu0 %v4898
      %5248 = vmatprep.subr.bf16.mxu0 %v4915
      %5249 = vmatpush1.bf16.msra.mxu0 %v4914
      %5250 = vmatprep.subr.bf16.mxu0 %v4931
      %5251 = vmatpush1.bf16.msra.mxu0 %v4930
      %5252 = vmatprep.subr.bf16.mxu0 %v4947
      %5253 = vmatpush1.bf16.msra.mxu0 %v4946
      %5254 = vmatprep.subr.bf16.mxu0 0
      %5255 = vmatpush1.bf16.msra.mxu0 0
      %5256 = vmatprep.subr.bf16.mxu0 0
      %5257 = vmatpush1.bf16.msra.mxu0 0
      %5258 = vmatprep.subr.bf16.mxu0 0
      %5259 = vmatpush1.bf16.msra.mxu0 0
      %5260 = vmatprep.subr.bf16.mxu0 0
      %5261 = vmatpush1.bf16.msra.mxu0 0
      %5262 = vmatprep.subr.bf16.mxu0 0
      %5263 = vmatpush1.bf16.msra.mxu0 0
      %5264 = vmatprep.subr.bf16.mxu0 0
      %5265 = vmatpush1.bf16.msra.mxu0 0
      %5266 = vmatprep.subr.bf16.mxu0 0
      %5267 = vmatpush1.bf16.msra.mxu0 0
      %5268 = vmatprep.subr.bf16.mxu0 0
      %5269 = vmatpush1.bf16.msra.mxu0 0
      %5270 = vmatprep.subr.bf16.mxu0 0
      %5271 = vmatpush1.bf16.msra.mxu0 0
      %5272 = vmatprep.subr.bf16.mxu0 0
      %5273 = vmatpush1.bf16.msra.mxu0 0
      %5274 = vmatprep.subr.bf16.mxu0 0
      %5275 = vmatpush1.bf16.msra.mxu0 0
      %5276 = vmatprep.subr.bf16.mxu0 0
      %5277 = vmatpush1.bf16.msra.mxu0 0
      %5278 = vmatprep.mubr.bf16.mxu0 0
      %5279 = vmatmul.mubr.bf16.gmra.mrb[0].mxu0 %v5043
      %v5280 = vpop.f32.mrb[0].mxu0
      %v5281 = vadd.f32 %v4981, %v5280
      %v5282 = vpop.f32.mrb[0].mxu0
      %v5283 = vadd.f32 %v4985, %v5282
      %v5284 = vpop.f32.mrb[0].mxu0
      %v5285 = vadd.f32 %v4981, %v5284
      %v5286 = vpop.f32.mrb[0].mxu0
      %v5287 = vadd.f32 %v4985, %v5286
      %5288 = vmatprep.mubr.bf16.mxu0 0
      %5289 = vmatmul.mubr.bf16.gmra.mrb[0].mxu0 %v5046
      %v5290 = vpop.f32.mrb[0].mxu0
      %v5291 = vadd.f32 %v4981, %v5290
      %v5292 = vpop.f32.mrb[0].mxu0
      %v5293 = vadd.f32 %v4985, %v5292
      %v5294 = vpop.f32.mrb[0].mxu0
      %v5295 = vadd.f32 %v4981, %v5294
      %v5296 = vpop.f32.mrb[0].mxu0
      %v5297 = vadd.f32 %v4985, %v5296
      %5298 = vmatprep.mubr.bf16.mxu0 0
      %5299 = vmatmul.mubr.bf16.gmra.mrb[0].mxu0 %v5049
      %v5300 = vpop.f32.mrb[0].mxu0
      %v5301 = vadd.f32 %v4981, %v5300
      %v5302 = vpop.f32.mrb[0].mxu0
      %v5303 = vadd.f32 %v4985, %v5302
      %v5304 = vpop.f32.mrb[0].mxu0
      %v5305 = vadd.f32 %v4981, %v5304
      %v5306 = vpop.f32.mrb[0].mxu0
      %v5307 = vadd.f32 %v4985, %v5306
      %5308 = vmatprep.mubr.bf16.mxu0 0
      %5309 = vmatmul.mubr.bf16.gmra.mrb[0].mxu0 %v5052
      %v5310 = vpop.f32.mrb[0].mxu0
      %v5311 = vadd.f32 %v4981, %v5310
      %v5312 = vpop.f32.mrb[0].mxu0
      %v5313 = vadd.f32 %v4985, %v5312
      %v5314 = vpop.f32.mrb[0].mxu0
      %v5315 = vadd.f32 %v4981, %v5314
      %v5316 = vpop.f32.mrb[0].mxu0
      %v5317 = vadd.f32 %v4985, %v5316
      %5318 = vmatprep.mubr.bf16.mxu0 0
      %5319 = vmatmul.mubr.bf16.gmra.mrb[0].mxu0 %v5055
      %v5320 = vpop.f32.mrb[0].mxu0
      %v5321 = vadd.f32 %v4981, %v5320
      %v5322 = vpop.f32.mrb[0].mxu0
      %v5323 = vadd.f32 %v4985, %v5322
      %v5324 = vpop.f32.mrb[0].mxu0
      %v5325 = vadd.f32 %v4981, %v5324
      %v5326 = vpop.f32.mrb[0].mxu0
      %v5327 = vadd.f32 %v4985, %v5326
      %5328 = vmatprep.mubr.bf16.mxu0 0
      %5329 = vmatmul.mubr.bf16.gmra.mrb[0].mxu0 %v5058
      %v5330 = vpop.f32.mrb[0].mxu0
      %v5331 = vadd.f32 %v4981, %v5330
      %v5332 = vpop.f32.mrb[0].mxu0
      %v5333 = vadd.f32 %v4985, %v5332
      %v5334 = vpop.f32.mrb[0].mxu0
      %v5335 = vadd.f32 %v4981, %v5334
      %v5336 = vpop.f32.mrb[0].mxu0
      %v5337 = vadd.f32 %v4985, %v5336
      %5338 = vdwg.mxu0
      %5339 = vmatprep.subr.bf16.mxu0 %v4901
      %5340 = vmatpush1.bf16.msra.mxu0 %v4900
      %5341 = vmatprep.subr.bf16.mxu0 %v4917
      %5342 = vmatpush1.bf16.msra.mxu0 %v4916
      %5343 = vmatprep.subr.bf16.mxu0 %v4933
      %5344 = vmatpush1.bf16.msra.mxu0 %v4932
      %5345 = vmatprep.subr.bf16.mxu0 %v4949
      %5346 = vmatpush1.bf16.msra.mxu0 %v4948
      %5347 = vmatprep.subr.bf16.mxu0 0
      %5348 = vmatpush1.bf16.msra.mxu0 0
      %5349 = vmatprep.subr.bf16.mxu0 0
      %5350 = vmatpush1.bf16.msra.mxu0 0
      %5351 = vmatprep.subr.bf16.mxu0 0
      %5352 = vmatpush1.bf16.msra.mxu0 0
      %5353 = vmatprep.subr.bf16.mxu0 0
      %5354 = vmatpush1.bf16.msra.mxu0 0
      %5355 = vmatprep.subr.bf16.mxu0 0
      %5356 = vmatpush1.bf16.msra.mxu0 0
      %5357 = vmatprep.subr.bf16.mxu0 0
      %5358 = vmatpush1.bf16.msra.mxu0 0
      %5359 = vmatprep.subr.bf16.mxu0 0
      %5360 = vmatpush1.bf16.msra.mxu0 0
      %5361 = vmatprep.subr.bf16.mxu0 0
      %5362 = vmatpush1.bf16.msra.mxu0 0
      %5363 = vmatprep.subr.bf16.mxu0 0
      %5364 = vmatpush1.bf16.msra.mxu0 0
      %5365 = vmatprep.subr.bf16.mxu0 0
      %5366 = vmatpush1.bf16.msra.mxu0 0
      %5367 = vmatprep.subr.bf16.mxu0 0
      %5368 = vmatpush1.bf16.msra.mxu0 0
      %5369 = vmatprep.subr.bf16.mxu0 0
      %5370 = vmatpush1.bf16.msra.mxu0 0
      %5371 = vmatprep.mubr.bf16.mxu0 0
      %5372 = vmatmul.mubr.bf16.gmra.mrb[0].mxu0 %v5043
      %v5373 = vpop.f32.mrb[0].mxu0
      %v5374 = vadd.f32 %v4989, %v5373
      %v5375 = vpop.f32.mrb[0].mxu0
      %v5376 = vadd.f32 %v4993, %v5375
      %v5377 = vpop.f32.mrb[0].mxu0
      %v5378 = vadd.f32 %v4989, %v5377
      %v5379 = vpop.f32.mrb[0].mxu0
      %v5380 = vadd.f32 %v4993, %v5379
      %5381 = vmatprep.mubr.bf16.mxu0 0
      %5382 = vmatmul.mubr.bf16.gmra.mrb[0].mxu0 %v5046
      %v5383 = vpop.f32.mrb[0].mxu0
      %v5384 = vadd.f32 %v4989, %v5383
      %v5385 = vpop.f32.mrb[0].mxu0
      %v5386 = vadd.f32 %v4993, %v5385
      %v5387 = vpop.f32.mrb[0].mxu0
      %v5388 = vadd.f32 %v4989, %v5387
      %v5389 = vpop.f32.mrb[0].mxu0
      %v5390 = vadd.f32 %v4993, %v5389
      %5391 = vmatprep.mubr.bf16.mxu0 0
      %5392 = vmatmul.mubr.bf16.gmra.mrb[0].mxu0 %v5049
      %v5393 = vpop.f32.mrb[0].mxu0
      %v5394 = vadd.f32 %v4989, %v5393
      %v5395 = vpop.f32.mrb[0].mxu0
      %v5396 = vadd.f32 %v4993, %v5395
      %v5397 = vpop.f32.mrb[0].mxu0
      %v5398 = vadd.f32 %v4989, %v5397
      %v5399 = vpop.f32.mrb[0].mxu0
      %v5400 = vadd.f32 %v4993, %v5399
      %5401 = vmatprep.mubr.bf16.mxu0 0
      %5402 = vmatmul.mubr.bf16.gmra.mrb[0].mxu0 %v5052
      %v5403 = vpop.f32.mrb[0].mxu0
      %v5404 = vadd.f32 %v4989, %v5403
      %v5405 = vpop.f32.mrb[0].mxu0
      %v5406 = vadd.f32 %v4993, %v5405
      %v5407 = vpop.f32.mrb[0].mxu0
      %v5408 = vadd.f32 %v4989, %v5407
      %v5409 = vpop.f32.mrb[0].mxu0
      %v5410 = vadd.f32 %v4993, %v5409
      %5411 = vmatprep.mubr.bf16.mxu0 0
      %5412 = vmatmul.mubr.bf16.gmra.mrb[0].mxu0 %v5055
      %v5413 = vpop.f32.mrb[0].mxu0
      %v5414 = vadd.f32 %v4989, %v5413
      %v5415 = vpop.f32.mrb[0].mxu0
      %v5416 = vadd.f32 %v4993, %v5415
      %v5417 = vpop.f32.mrb[0].mxu0
      %v5418 = vadd.f32 %v4989, %v5417
      %v5419 = vpop.f32.mrb[0].mxu0
      %v5420 = vadd.f32 %v4993, %v5419
      %5421 = vmatprep.mubr.bf16.mxu0 0
      %5422 = vmatmul.mubr.bf16.gmra.mrb[0].mxu0 %v5058
      %v5423 = vpop.f32.mrb[0].mxu0
      %v5424 = vadd.f32 %v4989, %v5423
      %v5425 = vpop.f32.mrb[0].mxu0
      %v5426 = vadd.f32 %v4993, %v5425
      %v5427 = vpop.f32.mrb[0].mxu0
      %v5428 = vadd.f32 %v4989, %v5427
      %v5429 = vpop.f32.mrb[0].mxu0
      %v5430 = vadd.f32 %v4993, %v5429
      %5431 = vdwg.mxu0
      %5432 = vmatprep.subr.bf16.mxu0 %v4903
      %5433 = vmatpush1.bf16.msra.mxu0 %v4902
      %5434 = vmatprep.subr.bf16.mxu0 %v4919
      %5435 = vmatpush1.bf16.msra.mxu0 %v4918
      %5436 = vmatprep.subr.bf16.mxu0 %v4935
      %5437 = vmatpush1.bf16.msra.mxu0 %v4934
      %5438 = vmatprep.subr.bf16.mxu0 %v4951
      %5439 = vmatpush1.bf16.msra.mxu0 %v4950
      %5440 = vmatprep.subr.bf16.mxu0 0
      %5441 = vmatpush1.bf16.msra.mxu0 0
      %5442 = vmatprep.subr.bf16.mxu0 0
      %5443 = vmatpush1.bf16.msra.mxu0 0
      %5444 = vmatprep.subr.bf16.mxu0 0
      %5445 = vmatpush1.bf16.msra.mxu0 0
      %5446 = vmatprep.subr.bf16.mxu0 0
      %5447 = vmatpush1.bf16.msra.mxu0 0
      %5448 = vmatprep.subr.bf16.mxu0 0
      %5449 = vmatpush1.bf16.msra.mxu0 0
      %5450 = vmatprep.subr.bf16.mxu0 0
      %5451 = vmatpush1.bf16.msra.mxu0 0
      %5452 = vmatprep.subr.bf16.mxu0 0
      %5453 = vmatpush1.bf16.msra.mxu0 0
      %5454 = vmatprep.subr.bf16.mxu0 0
      %5455 = vmatpush1.bf16.msra.mxu0 0
      %5456 = vmatprep.subr.bf16.mxu0 0
      %5457 = vmatpush1.bf16.msra.mxu0 0
      %5458 = vmatprep.subr.bf16.mxu0 0
      %5459 = vmatpush1.bf16.msra.mxu0 0
      %5460 = vmatprep.subr.bf16.mxu0 0
      %5461 = vmatpush1.bf16.msra.mxu0 0
      %5462 = vmatprep.subr.bf16.mxu0 0
      %5463 = vmatpush1.bf16.msra.mxu0 0
      %5464 = vmatprep.mubr.bf16.mxu0 0
      %5465 = vmatmul.mubr.bf16.gmra.mrb[0].mxu0 %v5043
      %v5466 = vpop.f32.mrb[0].mxu0
      %v5467 = vadd.f32 %v4997, %v5466
      %v5468 = vpop.f32.mrb[0].mxu0
      %v5469 = vadd.f32 %v5001, %v5468
      %v5470 = vpop.f32.mrb[0].mxu0
      %v5471 = vadd.f32 %v4997, %v5470
      %v5472 = vpop.f32.mrb[0].mxu0
      %v5473 = vadd.f32 %v5001, %v5472
      %5474 = vmatprep.mubr.bf16.mxu0 0
      %5475 = vmatmul.mubr.bf16.gmra.mrb[0].mxu0 %v5046
      %v5476 = vpop.f32.mrb[0].mxu0
      %v5477 = vadd.f32 %v4997, %v5476
      %v5478 = vpop.f32.mrb[0].mxu0
      %v5479 = vadd.f32 %v5001, %v5478
      %v5480 = vpop.f32.mrb[0].mxu0
      %v5481 = vadd.f32 %v4997, %v5480
      %v5482 = vpop.f32.mrb[0].mxu0
      %v5483 = vadd.f32 %v5001, %v5482
      %5484 = vmatprep.mubr.bf16.mxu0 0
      %5485 = vmatmul.mubr.bf16.gmra.mrb[0].mxu0 %v5049
      %v5486 = vpop.f32.mrb[0].mxu0
      %v5487 = vadd.f32 %v4997, %v5486
      %v5488 = vpop.f32.mrb[0].mxu0
      %v5489 = vadd.f32 %v5001, %v5488
      %v5490 = vpop.f32.mrb[0].mxu0
      %v5491 = vadd.f32 %v4997, %v5490
      %v5492 = vpop.f32.mrb[0].mxu0
      %v5493 = vadd.f32 %v5001, %v5492
      %5494 = vmatprep.mubr.bf16.mxu0 0
      %5495 = vmatmul.mubr.bf16.gmra.mrb[0].mxu0 %v5052
      %v5496 = vpop.f32.mrb[0].mxu0
      %v5497 = vadd.f32 %v4997, %v5496
      %v5498 = vpop.f32.mrb[0].mxu0
      %v5499 = vadd.f32 %v5001, %v5498
      %v5500 = vpop.f32.mrb[0].mxu0
      %v5501 = vadd.f32 %v4997, %v5500
      %v5502 = vpop.f32.mrb[0].mxu0
      %v5503 = vadd.f32 %v5001, %v5502
      %5504 = vmatprep.mubr.bf16.mxu0 0
      %5505 = vmatmul.mubr.bf16.gmra.mrb[0].mxu0 %v5055
      %v5506 = vpop.f32.mrb[0].mxu0
      %v5507 = vadd.f32 %v4997, %v5506
      %v5508 = vpop.f32.mrb[0].mxu0
      %v5509 = vadd.f32 %v5001, %v5508
      %v5510 = vpop.f32.mrb[0].mxu0
      %v5511 = vadd.f32 %v4997, %v5510
      %v5512 = vpop.f32.mrb[0].mxu0
      %v5513 = vadd.f32 %v5001, %v5512
      %5514 = vmatprep.mubr.bf16.mxu0 0
      %5515 = vmatmul.mubr.bf16.gmra.mrb[0].mxu0 %v5058
      %v5516 = vpop.f32.mrb[0].mxu0
      %v5517 = vadd.f32 %v4997, %v5516
      %v5518 = vpop.f32.mrb[0].mxu0
      %v5519 = vadd.f32 %v5001, %v5518
      %v5520 = vpop.f32.mrb[0].mxu0
      %v5521 = vadd.f32 %v4997, %v5520
      %v5522 = vpop.f32.mrb[0].mxu0
      %v5523 = vadd.f32 %v5001, %v5522
      %5524 = vdwg.mxu0
      %5525 = vmatprep.subr.bf16.mxu0 %v4905
      %5526 = vmatpush1.bf16.msra.mxu0 %v4904
      %5527 = vmatprep.subr.bf16.mxu0 %v4921
      %5528 = vmatpush1.bf16.msra.mxu0 %v4920
      %5529 = vmatprep.subr.bf16.mxu0 %v4937
      %5530 = vmatpush1.bf16.msra.mxu0 %v4936
      %5531 = vmatprep.subr.bf16.mxu0 %v4953
      %5532 = vmatpush1.bf16.msra.mxu0 %v4952
      %5533 = vmatprep.subr.bf16.mxu0 0
      %5534 = vmatpush1.bf16.msra.mxu0 0
      %5535 = vmatprep.subr.bf16.mxu0 0
      %5536 = vmatpush1.bf16.msra.mxu0 0
      %5537 = vmatprep.subr.bf16.mxu0 0
      %5538 = vmatpush1.bf16.msra.mxu0 0
      %5539 = vmatprep.subr.bf16.mxu0 0
      %5540 = vmatpush1.bf16.msra.mxu0 0
      %5541 = vmatprep.subr.bf16.mxu0 0
      %5542 = vmatpush1.bf16.msra.mxu0 0
      %5543 = vmatprep.subr.bf16.mxu0 0
      %5544 = vmatpush1.bf16.msra.mxu0 0
      %5545 = vmatprep.subr.bf16.mxu0 0
      %5546 = vmatpush1.bf16.msra.mxu0 0
      %5547 = vmatprep.subr.bf16.mxu0 0
      %5548 = vmatpush1.bf16.msra.mxu0 0
      %5549 = vmatprep.subr.bf16.mxu0 0
      %5550 = vmatpush1.bf16.msra.mxu0 0
      %5551 = vmatprep.subr.bf16.mxu0 0
      %5552 = vmatpush1.bf16.msra.mxu0 0
      %5553 = vmatprep.subr.bf16.mxu0 0
      %5554 = vmatpush1.bf16.msra.mxu0 0
      %5555 = vmatprep.subr.bf16.mxu0 0
      %5556 = vmatpush1.bf16.msra.mxu0 0
      %5557 = vmatprep.mubr.bf16.mxu0 0
      %5558 = vmatmul.mubr.bf16.gmra.mrb[0].mxu0 %v5043
      %v5559 = vpop.f32.mrb[0].mxu0
      %v5560 = vadd.f32 %v5005, %v5559
      %v5561 = vpop.f32.mrb[0].mxu0
      %v5562 = vadd.f32 %v5009, %v5561
      %v5563 = vpop.f32.mrb[0].mxu0
      %v5564 = vadd.f32 %v5005, %v5563
      %v5565 = vpop.f32.mrb[0].mxu0
      %v5566 = vadd.f32 %v5009, %v5565
      %5567 = vmatprep.mubr.bf16.mxu0 0
      %5568 = vmatmul.mubr.bf16.gmra.mrb[0].mxu0 %v5046
      %v5569 = vpop.f32.mrb[0].mxu0
      %v5570 = vadd.f32 %v5005, %v5569
      %v5571 = vpop.f32.mrb[0].mxu0
      %v5572 = vadd.f32 %v5009, %v5571
      %v5573 = vpop.f32.mrb[0].mxu0
      %v5574 = vadd.f32 %v5005, %v5573
      %v5575 = vpop.f32.mrb[0].mxu0
      %v5576 = vadd.f32 %v5009, %v5575
      %5577 = vmatprep.mubr.bf16.mxu0 0
      %5578 = vmatmul.mubr.bf16.gmra.mrb[0].mxu0 %v5049
      %v5579 = vpop.f32.mrb[0].mxu0
      %v5580 = vadd.f32 %v5005, %v5579
      %v5581 = vpop.f32.mrb[0].mxu0
      %v5582 = vadd.f32 %v5009, %v5581
      %v5583 = vpop.f32.mrb[0].mxu0
      %v5584 = vadd.f32 %v5005, %v5583
      %v5585 = vpop.f32.mrb[0].mxu0
      %v5586 = vadd.f32 %v5009, %v5585
      %5587 = vmatprep.mubr.bf16.mxu0 0
      %5588 = vmatmul.mubr.bf16.gmra.mrb[0].mxu0 %v5052
      %v5589 = vpop.f32.mrb[0].mxu0
      %v5590 = vadd.f32 %v5005, %v5589
      %v5591 = vpop.f32.mrb[0].mxu0
      %v5592 = vadd.f32 %v5009, %v5591
      %v5593 = vpop.f32.mrb[0].mxu0
      %v5594 = vadd.f32 %v5005, %v5593
      %v5595 = vpop.f32.mrb[0].mxu0
      %v5596 = vadd.f32 %v5009, %v5595
      %5597 = vmatprep.mubr.bf16.mxu0 0
      %5598 = vmatmul.mubr.bf16.gmra.mrb[0].mxu0 %v5055
      %v5599 = vpop.f32.mrb[0].mxu0
      %v5600 = vadd.f32 %v5005, %v5599
      %v5601 = vpop.f32.mrb[0].mxu0
      %v5602 = vadd.f32 %v5009, %v5601
      %v5603 = vpop.f32.mrb[0].mxu0
      %v5604 = vadd.f32 %v5005, %v5603
      %v5605 = vpop.f32.mrb[0].mxu0
      %v5606 = vadd.f32 %v5009, %v5605
      %5607 = vmatprep.mubr.bf16.mxu0 0
      %5608 = vmatmul.mubr.bf16.gmra.mrb[0].mxu0 %v5058
      %v5609 = vpop.f32.mrb[0].mxu0
      %v5610 = vadd.f32 %v5005, %v5609
      %v5611 = vpop.f32.mrb[0].mxu0
      %v5612 = vadd.f32 %v5009, %v5611
      %v5613 = vpop.f32.mrb[0].mxu0
      %v5614 = vadd.f32 %v5005, %v5613
      %v5615 = vpop.f32.mrb[0].mxu0
      %v5616 = vadd.f32 %v5009, %v5615
      %5617 = vdwg.mxu0
      %5618 = vmatprep.subr.bf16.mxu0 %v4907
      %5619 = vmatpush1.bf16.msra.mxu0 %v4906
      %5620 = vmatprep.subr.bf16.mxu0 %v4923
      %5621 = vmatpush1.bf16.msra.mxu0 %v4922
      %5622 = vmatprep.subr.bf16.mxu0 %v4939
      %5623 = vmatpush1.bf16.msra.mxu0 %v4938
      %5624 = vmatprep.subr.bf16.mxu0 %v4955
      %5625 = vmatpush1.bf16.msra.mxu0 %v4954
      %5626 = vmatprep.subr.bf16.mxu0 0
      %5627 = vmatpush1.bf16.msra.mxu0 0
      %5628 = vmatprep.subr.bf16.mxu0 0
      %5629 = vmatpush1.bf16.msra.mxu0 0
      %5630 = vmatprep.subr.bf16.mxu0 0
      %5631 = vmatpush1.bf16.msra.mxu0 0
      %5632 = vmatprep.subr.bf16.mxu0 0
      %5633 = vmatpush1.bf16.msra.mxu0 0
      %5634 = vmatprep.subr.bf16.mxu0 0
      %5635 = vmatpush1.bf16.msra.mxu0 0
      %5636 = vmatprep.subr.bf16.mxu0 0
      %5637 = vmatpush1.bf16.msra.mxu0 0
      %5638 = vmatprep.subr.bf16.mxu0 0
      %5639 = vmatpush1.bf16.msra.mxu0 0
      %5640 = vmatprep.subr.bf16.mxu0 0
      %5641 = vmatpush1.bf16.msra.mxu0 0
      %5642 = vmatprep.subr.bf16.mxu0 0
      %5643 = vmatpush1.bf16.msra.mxu0 0
      %5644 = vmatprep.subr.bf16.mxu0 0
      %5645 = vmatpush1.bf16.msra.mxu0 0
      %5646 = vmatprep.subr.bf16.mxu0 0
      %5647 = vmatpush1.bf16.msra.mxu0 0
      %5648 = vmatprep.subr.bf16.mxu0 0
      %5649 = vmatpush1.bf16.msra.mxu0 0
      %5650 = vmatprep.mubr.bf16.mxu0 0
      %5651 = vmatmul.mubr.bf16.gmra.mrb[0].mxu0 %v5043
      %v5652 = vpop.f32.mrb[0].mxu0
      %v5653 = vadd.f32 %v5013, %v5652
      %v5654 = vpop.f32.mrb[0].mxu0
      %v5655 = vadd.f32 %v5017, %v5654
      %v5656 = vpop.f32.mrb[0].mxu0
      %v5657 = vadd.f32 %v5013, %v5656
      %v5658 = vpop.f32.mrb[0].mxu0
      %v5659 = vadd.f32 %v5017, %v5658
      %5660 = vmatprep.mubr.bf16.mxu0 0
      %5661 = vmatmul.mubr.bf16.gmra.mrb[0].mxu0 %v5046
      %v5662 = vpop.f32.mrb[0].mxu0
      %v5663 = vadd.f32 %v5013, %v5662
      %v5664 = vpop.f32.mrb[0].mxu0
      %v5665 = vadd.f32 %v5017, %v5664
      %v5666 = vpop.f32.mrb[0].mxu0
      %v5667 = vadd.f32 %v5013, %v5666
      %v5668 = vpop.f32.mrb[0].mxu0
      %v5669 = vadd.f32 %v5017, %v5668
      %5670 = vmatprep.mubr.bf16.mxu0 0
      %5671 = vmatmul.mubr.bf16.gmra.mrb[0].mxu0 %v5049
      %v5672 = vpop.f32.mrb[0].mxu0
      %v5673 = vadd.f32 %v5013, %v5672
      %v5674 = vpop.f32.mrb[0].mxu0
      %v5675 = vadd.f32 %v5017, %v5674
      %v5676 = vpop.f32.mrb[0].mxu0
      %v5677 = vadd.f32 %v5013, %v5676
      %v5678 = vpop.f32.mrb[0].mxu0
      %v5679 = vadd.f32 %v5017, %v5678
      %5680 = vmatprep.mubr.bf16.mxu0 0
      %5681 = vmatmul.mubr.bf16.gmra.mrb[0].mxu0 %v5052
      %v5682 = vpop.f32.mrb[0].mxu0
      %v5683 = vadd.f32 %v5013, %v5682
      %v5684 = vpop.f32.mrb[0].mxu0
      %v5685 = vadd.f32 %v5017, %v5684
      %v5686 = vpop.f32.mrb[0].mxu0
      %v5687 = vadd.f32 %v5013, %v5686
      %v5688 = vpop.f32.mrb[0].mxu0
      %v5689 = vadd.f32 %v5017, %v5688
      %5690 = vmatprep.mubr.bf16.mxu0 0
      %5691 = vmatmul.mubr.bf16.gmra.mrb[0].mxu0 %v5055
      %v5692 = vpop.f32.mrb[0].mxu0
      %v5693 = vadd.f32 %v5013, %v5692
      %v5694 = vpop.f32.mrb[0].mxu0
      %v5695 = vadd.f32 %v5017, %v5694
      %v5696 = vpop.f32.mrb[0].mxu0
      %v5697 = vadd.f32 %v5013, %v5696
      %v5698 = vpop.f32.mrb[0].mxu0
      %v5699 = vadd.f32 %v5017, %v5698
      %5700 = vmatprep.mubr.bf16.mxu0 0
      %5701 = vmatmul.mubr.bf16.gmra.mrb[0].mxu0 %v5058
      %v5702 = vpop.f32.mrb[0].mxu0
      %v5703 = vadd.f32 %v5013, %v5702
      %v5704 = vpop.f32.mrb[0].mxu0
      %v5705 = vadd.f32 %v5017, %v5704
      %v5706 = vpop.f32.mrb[0].mxu0
      %v5707 = vadd.f32 %v5013, %v5706
      %v5708 = vpop.f32.mrb[0].mxu0
      %v5709 = vadd.f32 %v5017, %v5708
      %5710 = vdwg.mxu0
      %5711 = vmatprep.subr.bf16.mxu0 %v4909
      %5712 = vmatpush1.bf16.msra.mxu0 %v4908
      %5713 = vmatprep.subr.bf16.mxu0 %v4925
      %5714 = vmatpush1.bf16.msra.mxu0 %v4924
      %5715 = vmatprep.subr.bf16.mxu0 %v4941
      %5716 = vmatpush1.bf16.msra.mxu0 %v4940
      %5717 = vmatprep.subr.bf16.mxu0 %v4957
      %5718 = vmatpush1.bf16.msra.mxu0 %v4956
      %5719 = vmatprep.subr.bf16.mxu0 0
      %5720 = vmatpush1.bf16.msra.mxu0 0
      %5721 = vmatprep.subr.bf16.mxu0 0
      %5722 = vmatpush1.bf16.msra.mxu0 0
      %5723 = vmatprep.subr.bf16.mxu0 0
      %5724 = vmatpush1.bf16.msra.mxu0 0
      %5725 = vmatprep.subr.bf16.mxu0 0
      %5726 = vmatpush1.bf16.msra.mxu0 0
      %5727 = vmatprep.subr.bf16.mxu0 0
      %5728 = vmatpush1.bf16.msra.mxu0 0
      %5729 = vmatprep.subr.bf16.mxu0 0
      %5730 = vmatpush1.bf16.msra.mxu0 0
      %5731 = vmatprep.subr.bf16.mxu0 0
      %5732 = vmatpush1.bf16.msra.mxu0 0
      %5733 = vmatprep.subr.bf16.mxu0 0
      %5734 = vmatpush1.bf16.msra.mxu0 0
      %5735 = vmatprep.subr.bf16.mxu0 0
      %5736 = vmatpush1.bf16.msra.mxu0 0
      %5737 = vmatprep.subr.bf16.mxu0 0
      %5738 = vmatpush1.bf16.msra.mxu0 0
      %5739 = vmatprep.subr.bf16.mxu0 0
      %5740 = vmatpush1.bf16.msra.mxu0 0
      %5741 = vmatprep.subr.bf16.mxu0 0
      %5742 = vmatpush1.bf16.msra.mxu0 0
      %5743 = vmatprep.mubr.bf16.mxu0 0
      %5744 = vmatmul.mubr.bf16.gmra.mrb[0].mxu0 %v5043
      %v5745 = vpop.f32.mrb[0].mxu0
      %v5746 = vadd.f32 %v5021, %v5745
      %v5747 = vpop.f32.mrb[0].mxu0
      %v5748 = vadd.f32 %v5025, %v5747
      %v5749 = vpop.f32.mrb[0].mxu0
      %v5750 = vadd.f32 %v5021, %v5749
      %v5751 = vpop.f32.mrb[0].mxu0
      %v5752 = vadd.f32 %v5025, %v5751
      %5753 = vmatprep.mubr.bf16.mxu0 0
      %5754 = vmatmul.mubr.bf16.gmra.mrb[0].mxu0 %v5046
      %v5755 = vpop.f32.mrb[0].mxu0
      %v5756 = vadd.f32 %v5021, %v5755
      %v5757 = vpop.f32.mrb[0].mxu0
      %v5758 = vadd.f32 %v5025, %v5757
      %v5759 = vpop.f32.mrb[0].mxu0
      %v5760 = vadd.f32 %v5021, %v5759
      %v5761 = vpop.f32.mrb[0].mxu0
      %v5762 = vadd.f32 %v5025, %v5761
      %5763 = vmatprep.mubr.bf16.mxu0 0
      %5764 = vmatmul.mubr.bf16.gmra.mrb[0].mxu0 %v5049
      %v5765 = vpop.f32.mrb[0].mxu0
      %v5766 = vadd.f32 %v5021, %v5765
      %v5767 = vpop.f32.mrb[0].mxu0
      %v5768 = vadd.f32 %v5025, %v5767
      %v5769 = vpop.f32.mrb[0].mxu0
      %v5770 = vadd.f32 %v5021, %v5769
      %v5771 = vpop.f32.mrb[0].mxu0
      %v5772 = vadd.f32 %v5025, %v5771
      %5773 = vmatprep.mubr.bf16.mxu0 0
      %5774 = vmatmul.mubr.bf16.gmra.mrb[0].mxu0 %v5052
      %v5775 = vpop.f32.mrb[0].mxu0
      %v5776 = vadd.f32 %v5021, %v5775
      %v5777 = vpop.f32.mrb[0].mxu0
      %v5778 = vadd.f32 %v5025, %v5777
      %v5779 = vpop.f32.mrb[0].mxu0
      %v5780 = vadd.f32 %v5021, %v5779
      %v5781 = vpop.f32.mrb[0].mxu0
      %v5782 = vadd.f32 %v5025, %v5781
      %5783 = vmatprep.mubr.bf16.mxu0 0
      %5784 = vmatmul.mubr.bf16.gmra.mrb[0].mxu0 %v5055
      %v5785 = vpop.f32.mrb[0].mxu0
      %v5786 = vadd.f32 %v5021, %v5785
      %v5787 = vpop.f32.mrb[0].mxu0
      %v5788 = vadd.f32 %v5025, %v5787
      %v5789 = vpop.f32.mrb[0].mxu0
      %v5790 = vadd.f32 %v5021, %v5789
      %v5791 = vpop.f32.mrb[0].mxu0
      %v5792 = vadd.f32 %v5025, %v5791
      %5793 = vmatprep.mubr.bf16.mxu0 0
      %5794 = vmatmul.mubr.bf16.gmra.mrb[0].mxu0 %v5058
      %v5795 = vpop.f32.mrb[0].mxu0
      %v5796 = vadd.f32 %v5021, %v5795
      %v5797 = vpop.f32.mrb[0].mxu0
      %v5798 = vadd.f32 %v5025, %v5797
      %v5799 = vpop.f32.mrb[0].mxu0
      %v5800 = vadd.f32 %v5021, %v5799
      %v5801 = vpop.f32.mrb[0].mxu0
      %v5802 = vadd.f32 %v5025, %v5801
      %5803 = vdwg.mxu0
      %v5804 = vmax.f32 %v5095, 0.0
      %v5805 = vmax.f32 %v5097, 0.0
      %v5806 = vmax.f32 %v5188, 0.0
      %v5807 = vmax.f32 %v5190, 0.0
      %v5808 = vmax.f32 %v5281, 0.0
      %v5809 = vmax.f32 %v5283, 0.0
      %v5810 = vmax.f32 %v5374, 0.0
      %v5811 = vmax.f32 %v5376, 0.0
      %v5812 = vmax.f32 %v5467, 0.0
      %v5813 = vmax.f32 %v5469, 0.0
      %v5814 = vmax.f32 %v5560, 0.0
      %v5815 = vmax.f32 %v5562, 0.0
      %v5816 = vmax.f32 %v5653, 0.0
      %v5817 = vmax.f32 %v5655, 0.0
      %v5818 = vmax.f32 %v5746, 0.0
      %v5819 = vmax.f32 %v5748, 0.0
      %v5820 = vmax.f32 %v5099, 0.0
      %v5821 = vmax.f32 %v5101, 0.0
      %v5822 = vmax.f32 %v5192, 0.0
      %v5823 = vmax.f32 %v5194, 0.0
      %v5824 = vmax.f32 %v5285, 0.0
      %v5825 = vmax.f32 %v5287, 0.0
      %v5826 = vmax.f32 %v5378, 0.0
      %v5827 = vmax.f32 %v5380, 0.0
      %v5828 = vmax.f32 %v5471, 0.0
      %v5829 = vmax.f32 %v5473, 0.0
      %v5830 = vmax.f32 %v5564, 0.0
      %v5831 = vmax.f32 %v5566, 0.0
      %v5832 = vmax.f32 %v5657, 0.0
      %v5833 = vmax.f32 %v5659, 0.0
      %v5834 = vmax.f32 %v5750, 0.0
      %v5835 = vmax.f32 %v5752, 0.0
      %v5836 = vmax.f32 %v5105, 0.0
      %v5837 = vmax.f32 %v5107, 0.0
      %v5838 = vmax.f32 %v5198, 0.0
      %v5839 = vmax.f32 %v5200, 0.0
      %v5840 = vmax.f32 %v5291, 0.0
      %v5841 = vmax.f32 %v5293, 0.0
      %v5842 = vmax.f32 %v5384, 0.0
      %v5843 = vmax.f32 %v5386, 0.0
      %v5844 = vmax.f32 %v5477, 0.0
      %v5845 = vmax.f32 %v5479, 0.0
      %v5846 = vmax.f32 %v5570, 0.0
      %v5847 = vmax.f32 %v5572, 0.0
      %v5848 = vmax.f32 %v5663, 0.0
      %v5849 = vmax.f32 %v5665, 0.0
      %v5850 = vmax.f32 %v5756, 0.0
      %v5851 = vmax.f32 %v5758, 0.0
      %v5852 = vmax.f32 %v5109, 0.0
      %v5853 = vmax.f32 %v5111, 0.0
      %v5854 = vmax.f32 %v5202, 0.0
      %v5855 = vmax.f32 %v5204, 0.0
      %v5856 = vmax.f32 %v5295, 0.0
      %v5857 = vmax.f32 %v5297, 0.0
      %v5858 = vmax.f32 %v5388, 0.0
      %v5859 = vmax.f32 %v5390, 0.0
      %v5860 = vmax.f32 %v5481, 0.0
      %v5861 = vmax.f32 %v5483, 0.0
      %v5862 = vmax.f32 %v5574, 0.0
      %v5863 = vmax.f32 %v5576, 0.0
      %v5864 = vmax.f32 %v5667, 0.0
      %v5865 = vmax.f32 %v5669, 0.0
      %v5866 = vmax.f32 %v5760, 0.0
      %v5867 = vmax.f32 %v5762, 0.0
      %v5868 = vmax.f32 %v5115, 0.0
      %v5869 = vmax.f32 %v5117, 0.0
      %v5870 = vmax.f32 %v5208, 0.0
      %v5871 = vmax.f32 %v5210, 0.0
      %v5872 = vmax.f32 %v5301, 0.0
      %v5873 = vmax.f32 %v5303, 0.0
      %v5874 = vmax.f32 %v5394, 0.0
      %v5875 = vmax.f32 %v5396, 0.0
      %v5876 = vmax.f32 %v5487, 0.0
      %v5877 = vmax.f32 %v5489, 0.0
      %v5878 = vmax.f32 %v5580, 0.0
      %v5879 = vmax.f32 %v5582, 0.0
      %v5880 = vmax.f32 %v5673, 0.0
      %v5881 = vmax.f32 %v5675, 0.0
      %v5882 = vmax.f32 %v5766, 0.0
      %v5883 = vmax.f32 %v5768, 0.0
      %v5884 = vmax.f32 %v5119, 0.0
      %v5885 = vmax.f32 %v5121, 0.0
      %v5886 = vmax.f32 %v5212, 0.0
      %v5887 = vmax.f32 %v5214, 0.0
      %v5888 = vmax.f32 %v5305, 0.0
      %v5889 = vmax.f32 %v5307, 0.0
      %v5890 = vmax.f32 %v5398, 0.0
      %v5891 = vmax.f32 %v5400, 0.0
      %v5892 = vmax.f32 %v5491, 0.0
      %v5893 = vmax.f32 %v5493, 0.0
      %v5894 = vmax.f32 %v5584, 0.0
      %v5895 = vmax.f32 %v5586, 0.0
      %v5896 = vmax.f32 %v5677, 0.0
      %v5897 = vmax.f32 %v5679, 0.0
      %v5898 = vmax.f32 %v5770, 0.0
      %v5899 = vmax.f32 %v5772, 0.0
      %v5900 = vmax.f32 %v5125, 0.0
      %v5901 = vmax.f32 %v5127, 0.0
      %v5902 = vmax.f32 %v5218, 0.0
      %v5903 = vmax.f32 %v5220, 0.0
      %v5904 = vmax.f32 %v5311, 0.0
      %v5905 = vmax.f32 %v5313, 0.0
      %v5906 = vmax.f32 %v5404, 0.0
      %v5907 = vmax.f32 %v5406, 0.0
      %v5908 = vmax.f32 %v5497, 0.0
      %v5909 = vmax.f32 %v5499, 0.0
      %v5910 = vmax.f32 %v5590, 0.0
      %v5911 = vmax.f32 %v5592, 0.0
      %v5912 = vmax.f32 %v5683, 0.0
      %v5913 = vmax.f32 %v5685, 0.0
      %v5914 = vmax.f32 %v5776, 0.0
      %v5915 = vmax.f32 %v5778, 0.0
      %v5916 = vmax.f32 %v5129, 0.0
      %v5917 = vmax.f32 %v5131, 0.0
      %v5918 = vmax.f32 %v5222, 0.0
      %v5919 = vmax.f32 %v5224, 0.0
      %v5920 = vmax.f32 %v5315, 0.0
      %v5921 = vmax.f32 %v5317, 0.0
      %v5922 = vmax.f32 %v5408, 0.0
      %v5923 = vmax.f32 %v5410, 0.0
      %v5924 = vmax.f32 %v5501, 0.0
      %v5925 = vmax.f32 %v5503, 0.0
      %v5926 = vmax.f32 %v5594, 0.0
      %v5927 = vmax.f32 %v5596, 0.0
      %v5928 = vmax.f32 %v5687, 0.0
      %v5929 = vmax.f32 %v5689, 0.0
      %v5930 = vmax.f32 %v5780, 0.0
      %v5931 = vmax.f32 %v5782, 0.0
      %v5932 = vmax.f32 %v5135, 0.0
      %v5933 = vmax.f32 %v5137, 0.0
      %v5934 = vmax.f32 %v5228, 0.0
      %v5935 = vmax.f32 %v5230, 0.0
      %v5936 = vmax.f32 %v5321, 0.0
      %v5937 = vmax.f32 %v5323, 0.0
      %v5938 = vmax.f32 %v5414, 0.0
      %v5939 = vmax.f32 %v5416, 0.0
      %v5940 = vmax.f32 %v5507, 0.0
      %v5941 = vmax.f32 %v5509, 0.0
      %v5942 = vmax.f32 %v5600, 0.0
      %v5943 = vmax.f32 %v5602, 0.0
      %v5944 = vmax.f32 %v5693, 0.0
      %v5945 = vmax.f32 %v5695, 0.0
      %v5946 = vmax.f32 %v5786, 0.0
      %v5947 = vmax.f32 %v5788, 0.0
      %v5948 = vmax.f32 %v5139, 0.0
      %v5949 = vmax.f32 %v5141, 0.0
      %v5950 = vmax.f32 %v5232, 0.0
      %v5951 = vmax.f32 %v5234, 0.0
      %v5952 = vmax.f32 %v5325, 0.0
      %v5953 = vmax.f32 %v5327, 0.0
      %v5954 = vmax.f32 %v5418, 0.0
      %v5955 = vmax.f32 %v5420, 0.0
      %v5956 = vmax.f32 %v5511, 0.0
      %v5957 = vmax.f32 %v5513, 0.0
      %v5958 = vmax.f32 %v5604, 0.0
      %v5959 = vmax.f32 %v5606, 0.0
      %v5960 = vmax.f32 %v5697, 0.0
      %v5961 = vmax.f32 %v5699, 0.0
      %v5962 = vmax.f32 %v5790, 0.0
      %v5963 = vmax.f32 %v5792, 0.0
      %v5964 = vmax.f32 %v5145, 0.0
      %v5965 = vmax.f32 %v5147, 0.0
      %v5966 = vmax.f32 %v5238, 0.0
      %v5967 = vmax.f32 %v5240, 0.0
      %v5968 = vmax.f32 %v5331, 0.0
      %v5969 = vmax.f32 %v5333, 0.0
      %v5970 = vmax.f32 %v5424, 0.0
      %v5971 = vmax.f32 %v5426, 0.0
      %v5972 = vmax.f32 %v5517, 0.0
      %v5973 = vmax.f32 %v5519, 0.0
      %v5974 = vmax.f32 %v5610, 0.0
      %v5975 = vmax.f32 %v5612, 0.0
      %v5976 = vmax.f32 %v5703, 0.0
      %v5977 = vmax.f32 %v5705, 0.0
      %v5978 = vmax.f32 %v5796, 0.0
      %v5979 = vmax.f32 %v5798, 0.0
      %v5980 = vmax.f32 %v5149, 0.0
      %v5981 = vmax.f32 %v5151, 0.0
      %v5982 = vmax.f32 %v5242, 0.0
      %v5983 = vmax.f32 %v5244, 0.0
      %v5984 = vmax.f32 %v5335, 0.0
      %v5985 = vmax.f32 %v5337, 0.0
      %v5986 = vmax.f32 %v5428, 0.0
      %v5987 = vmax.f32 %v5430, 0.0
      %v5988 = vmax.f32 %v5521, 0.0
      %v5989 = vmax.f32 %v5523, 0.0
      %v5990 = vmax.f32 %v5614, 0.0
      %v5991 = vmax.f32 %v5616, 0.0
      %v5992 = vmax.f32 %v5707, 0.0
      %v5993 = vmax.f32 %v5709, 0.0
      %v5994 = vmax.f32 %v5800, 0.0
      %v5995 = vmax.f32 %v5802, 0.0
      %v5996 = vld [vmem:[%s8] sm:$0xff]
      %v5997 = vld [vmem:[%s8 + $0x8] sm:$0xff]
      %v5998 = vld [vmem:[%s8 + $0x10] sm:$0xff]
      %v5999 = vld [vmem:[%s8 + $0x18] sm:$0xff]
      %v6000 = vld [vmem:[%s8 + $0x20] sm:$0xff]
      %v6001 = vld [vmem:[%s8 + $0x28] sm:$0xff]
      %v6002 = vld [vmem:[%s8 + $0x30] sm:$0xff]
      %v6003 = vld [vmem:[%s8 + $0x38] sm:$0xff]
      %v6004 = vld [vmem:[%s8 + $0x40] sm:$0xff]
      %v6005 = vld [vmem:[%s8 + $0x48] sm:$0xff]
      %v6006 = vld [vmem:[%s8 + $0x50] sm:$0xff]
      %v6007 = vld [vmem:[%s8 + $0x58] sm:$0xff]
      %v6008 = vld [vmem:[%s8 + $0x60] sm:$0xff]
      %v6009 = vld [vmem:[%s8 + $0x68] sm:$0xff]
      %v6010 = vld [vmem:[%s8 + $0x70] sm:$0xff]
      %v6011 = vld [vmem:[%s8 + $0x78] sm:$0xff]
      %v6012 = vld [vmem:[%s8 + $0x80] sm:$0xff]
      %v6013 = vld [vmem:[%s8 + $0x88] sm:$0xff]
      %v6014 = vld [vmem:[%s8 + $0x90] sm:$0xff]
      %v6015 = vld [vmem:[%s8 + $0x98] sm:$0xff]
      %v6016 = vld [vmem:[%s8 + $0xa0] sm:$0xff]
      %v6017 = vld [vmem:[%s8 + $0xa8] sm:$0xff]
      %v6018 = vld [vmem:[%s8 + $0xb0] sm:$0xff]
      %v6019 = vld [vmem:[%s8 + $0xb8] sm:$0xff]
      %v6020 = vld [vmem:[%s8 + $0xc0] sm:$0xff]
      %v6021 = vld [vmem:[%s8 + $0xc8] sm:$0xff]
      %v6022 = vld [vmem:[%s8 + $0xd0] sm:$0xff]
      %v6023 = vld [vmem:[%s8 + $0xd8] sm:$0xff]
      %v6024 = vld [vmem:[%s8 + $0xe0] sm:$0xff]
      %v6025 = vld [vmem:[%s8 + $0xe8] sm:$0xff]
      %v6026 = vld [vmem:[%s8 + $0xf0] sm:$0xff]
      %v6027 = vld [vmem:[%s8 + $0xf8] sm:$0xff]
      %v6028 = vld [vmem:[%s8 + $0x100] sm:$0xff]
      %v6029 = vld [vmem:[%s8 + $0x108] sm:$0xff]
      %v6030 = vld [vmem:[%s8 + $0x110] sm:$0xff]
      %v6031 = vld [vmem:[%s8 + $0x118] sm:$0xff]
      %v6032 = vld [vmem:[%s8 + $0x120] sm:$0xff]
      %v6033 = vld [vmem:[%s8 + $0x128] sm:$0xff]
      %v6034 = vld [vmem:[%s8 + $0x130] sm:$0xff]
      %v6035 = vld [vmem:[%s8 + $0x138] sm:$0xff]
      %v6036 = vld [vmem:[%s8 + $0x140] sm:$0xff]
      %v6037 = vld [vmem:[%s8 + $0x148] sm:$0xff]
      %v6038 = vld [vmem:[%s8 + $0x150] sm:$0xff]
      %v6039 = vld [vmem:[%s8 + $0x158] sm:$0xff]
      %v6040 = vld [vmem:[%s8 + $0x160] sm:$0xff]
      %v6041 = vld [vmem:[%s8 + $0x168] sm:$0xff]
      %v6042 = vld [vmem:[%s8 + $0x170] sm:$0xff]
      %v6043 = vld [vmem:[%s8 + $0x178] sm:$0xff]
      %v6044 = vld [vmem:[%s8 + $0x180] sm:$0xff]
      %v6045 = vld [vmem:[%s8 + $0x188] sm:$0xff]
      %v6046 = vld [vmem:[%s8 + $0x190] sm:$0xff]
      %v6047 = vld [vmem:[%s8 + $0x198] sm:$0xff]
      %v6048 = vld [vmem:[%s8 + $0x1a0] sm:$0xff]
      %v6049 = vld [vmem:[%s8 + $0x1a8] sm:$0xff]
      %v6050 = vld [vmem:[%s8 + $0x1b0] sm:$0xff]
      %v6051 = vld [vmem:[%s8 + $0x1b8] sm:$0xff]
      %v6052 = vld [vmem:[%s8 + $0x1c0] sm:$0xff]
      %v6053 = vld [vmem:[%s8 + $0x1c8] sm:$0xff]
      %v6054 = vld [vmem:[%s8 + $0x1d0] sm:$0xff]
      %v6055 = vld [vmem:[%s8 + $0x1d8] sm:$0xff]
      %v6056 = vld [vmem:[%s8 + $0x1e0] sm:$0xff]
      %v6057 = vld [vmem:[%s8 + $0x1e8] sm:$0xff]
      %v6058 = vld [vmem:[%s8 + $0x1f0] sm:$0xff]
      %v6059 = vld [vmem:[%s8 + $0x1f8] sm:$0xff]
      %v6060 = vld [vmem:[%s8 + $0x200] sm:$0xff]
      %v6061 = vld [vmem:[%s8 + $0x208] sm:$0xff]
      %v6062 = vld [vmem:[%s8 + $0x210] sm:$0xff]
      %v6063 = vld [vmem:[%s8 + $0x218] sm:$0xff]
      %v6064 = vld [vmem:[%s8 + $0x220] sm:$0xff]
      %v6065 = vld [vmem:[%s8 + $0x228] sm:$0xff]
      %v6066 = vld [vmem:[%s8 + $0x230] sm:$0xff]
      %v6067 = vld [vmem:[%s8 + $0x238] sm:$0xff]
      %v6068 = vld [vmem:[%s8 + $0x240] sm:$0xff]
      %v6069 = vld [vmem:[%s8 + $0x248] sm:$0xff]
      %v6070 = vld [vmem:[%s8 + $0x250] sm:$0xff]
      %v6071 = vld [vmem:[%s8 + $0x258] sm:$0xff]
      %v6072 = vld [vmem:[%s8 + $0x260] sm:$0xff]
      %v6073 = vld [vmem:[%s8 + $0x268] sm:$0xff]
      %v6074 = vld [vmem:[%s8 + $0x270] sm:$0xff]
      %v6075 = vld [vmem:[%s8 + $0x278] sm:$0xff]
      %v6076 = vld [vmem:[%s8 + $0x280] sm:$0xff]
      %v6077 = vld [vmem:[%s8 + $0x288] sm:$0xff]
      %v6078 = vld [vmem:[%s8 + $0x290] sm:$0xff]
      %v6079 = vld [vmem:[%s8 + $0x298] sm:$0xff]
      %v6080 = vld [vmem:[%s8 + $0x2a0] sm:$0xff]
      %v6081 = vld [vmem:[%s8 + $0x2a8] sm:$0xff]
      %v6082 = vld [vmem:[%s8 + $0x2b0] sm:$0xff]
      %v6083 = vld [vmem:[%s8 + $0x2b8] sm:$0xff]
      %v6084 = vld [vmem:[%s8 + $0x2c0] sm:$0xff]
      %v6085 = vld [vmem:[%s8 + $0x2c8] sm:$0xff]
      %v6086 = vld [vmem:[%s8 + $0x2d0] sm:$0xff]
      %v6087 = vld [vmem:[%s8 + $0x2d8] sm:$0xff]
      %v6088 = vld [vmem:[%s8 + $0x2e0] sm:$0xff]
      %v6089 = vld [vmem:[%s8 + $0x2e8] sm:$0xff]
      %v6090 = vld [vmem:[%s8 + $0x2f0] sm:$0xff]
      %v6091 = vld [vmem:[%s8 + $0x2f8] sm:$0xff]
      %v6092 = vld [vmem:[%s8 + $0x300] sm:$0xff]
      %v6093 = vld [vmem:[%s8 + $0x308] sm:$0xff]
      %v6094 = vld [vmem:[%s8 + $0x310] sm:$0xff]
      %v6095 = vld [vmem:[%s8 + $0x318] sm:$0xff]
      %v6096 = vld [vmem:[%s8 + $0x320] sm:$0xff]
      %v6097 = vld [vmem:[%s8 + $0x328] sm:$0xff]
      %v6098 = vld [vmem:[%s8 + $0x330] sm:$0xff]
      %v6099 = vld [vmem:[%s8 + $0x338] sm:$0xff]
      %v6100 = vld [vmem:[%s8 + $0x340] sm:$0xff]
      %v6101 = vld [vmem:[%s8 + $0x348] sm:$0xff]
      %v6102 = vld [vmem:[%s8 + $0x350] sm:$0xff]
      %v6103 = vld [vmem:[%s8 + $0x358] sm:$0xff]
      %v6104 = vld [vmem:[%s8 + $0x360] sm:$0xff]
      %v6105 = vld [vmem:[%s8 + $0x368] sm:$0xff]
      %v6106 = vld [vmem:[%s8 + $0x370] sm:$0xff]
      %v6107 = vld [vmem:[%s8 + $0x378] sm:$0xff]
      %v6108 = vld [vmem:[%s8 + $0x380] sm:$0xff]
      %v6109 = vld [vmem:[%s8 + $0x388] sm:$0xff]
      %v6110 = vld [vmem:[%s8 + $0x390] sm:$0xff]
      %v6111 = vld [vmem:[%s8 + $0x398] sm:$0xff]
      %v6112 = vld [vmem:[%s8 + $0x3a0] sm:$0xff]
      %v6113 = vld [vmem:[%s8 + $0x3a8] sm:$0xff]
      %v6114 = vld [vmem:[%s8 + $0x3b0] sm:$0xff]
      %v6115 = vld [vmem:[%s8 + $0x3b8] sm:$0xff]
      %v6116 = vld [vmem:[%s8 + $0x3c0] sm:$0xff]
      %v6117 = vld [vmem:[%s8 + $0x3c8] sm:$0xff]
      %v6118 = vld [vmem:[%s8 + $0x3d0] sm:$0xff]
      %v6119 = vld [vmem:[%s8 + $0x3d8] sm:$0xff]
      %v6120 = vld [vmem:[%s8 + $0x3e0] sm:$0xff]
      %v6121 = vld [vmem:[%s8 + $0x3e8] sm:$0xff]
      %v6122 = vld [vmem:[%s8 + $0x3f0] sm:$0xff]
      %v6123 = vld [vmem:[%s8 + $0x3f8] sm:$0xff]
      %v6124 = vld [vmem:[%s8 + $0x400] sm:$0xff]
      %v6125 = vld [vmem:[%s8 + $0x408] sm:$0xff]
      %v6126 = vld [vmem:[%s8 + $0x410] sm:$0xff]
      %v6127 = vld [vmem:[%s8 + $0x418] sm:$0xff]
      %v6128 = vld [vmem:[%s8 + $0x420] sm:$0xff]
      %v6129 = vld [vmem:[%s8 + $0x428] sm:$0xff]
      %v6130 = vld [vmem:[%s8 + $0x430] sm:$0xff]
      %v6131 = vld [vmem:[%s8 + $0x438] sm:$0xff]
      %v6132 = vld [vmem:[%s8 + $0x440] sm:$0xff]
      %v6133 = vld [vmem:[%s8 + $0x448] sm:$0xff]
      %v6134 = vld [vmem:[%s8 + $0x450] sm:$0xff]
      %v6135 = vld [vmem:[%s8 + $0x458] sm:$0xff]
      %v6136 = vld [vmem:[%s8 + $0x460] sm:$0xff]
      %v6137 = vld [vmem:[%s8 + $0x468] sm:$0xff]
      %v6138 = vld [vmem:[%s8 + $0x470] sm:$0xff]
      %v6139 = vld [vmem:[%s8 + $0x478] sm:$0xff]
      %v6140 = vld [vmem:[%s8 + $0x480] sm:$0xff]
      %v6141 = vld [vmem:[%s8 + $0x488] sm:$0xff]
      %v6142 = vld [vmem:[%s8 + $0x490] sm:$0xff]
      %v6143 = vld [vmem:[%s8 + $0x498] sm:$0xff]
      %v6144 = vld [vmem:[%s8 + $0x4a0] sm:$0xff]
      %v6145 = vld [vmem:[%s8 + $0x4a8] sm:$0xff]
      %v6146 = vld [vmem:[%s8 + $0x4b0] sm:$0xff]
      %v6147 = vld [vmem:[%s8 + $0x4b8] sm:$0xff]
      %v6148 = vld [vmem:[%s8 + $0x4c0] sm:$0xff]
      %v6149 = vld [vmem:[%s8 + $0x4c8] sm:$0xff]
      %v6150 = vld [vmem:[%s8 + $0x4d0] sm:$0xff]
      %v6151 = vld [vmem:[%s8 + $0x4d8] sm:$0xff]
      %v6152 = vld [vmem:[%s8 + $0x4e0] sm:$0xff]
      %v6153 = vld [vmem:[%s8 + $0x4e8] sm:$0xff]
      %v6154 = vld [vmem:[%s8 + $0x4f0] sm:$0xff]
      %v6155 = vld [vmem:[%s8 + $0x4f8] sm:$0xff]
      %v6156 = vld [vmem:[%s8 + $0x500] sm:$0xff]
      %v6157 = vld [vmem:[%s8 + $0x508] sm:$0xff]
      %v6158 = vld [vmem:[%s8 + $0x510] sm:$0xff]
      %v6159 = vld [vmem:[%s8 + $0x518] sm:$0xff]
      %v6160 = vld [vmem:[%s8 + $0x520] sm:$0xff]
      %v6161 = vld [vmem:[%s8 + $0x528] sm:$0xff]
      %v6162 = vld [vmem:[%s8 + $0x530] sm:$0xff]
      %v6163 = vld [vmem:[%s8 + $0x538] sm:$0xff]
      %v6164 = vld [vmem:[%s8 + $0x540] sm:$0xff]
      %v6165 = vld [vmem:[%s8 + $0x548] sm:$0xff]
      %v6166 = vld [vmem:[%s8 + $0x550] sm:$0xff]
      %v6167 = vld [vmem:[%s8 + $0x558] sm:$0xff]
      %v6168 = vld [vmem:[%s8 + $0x560] sm:$0xff]
      %v6169 = vld [vmem:[%s8 + $0x568] sm:$0xff]
      %v6170 = vld [vmem:[%s8 + $0x570] sm:$0xff]
      %v6171 = vld [vmem:[%s8 + $0x578] sm:$0xff]
      %v6172 = vld [vmem:[%s8 + $0x580] sm:$0xff]
      %v6173 = vld [vmem:[%s8 + $0x588] sm:$0xff]
      %v6174 = vld [vmem:[%s8 + $0x590] sm:$0xff]
      %v6175 = vld [vmem:[%s8 + $0x598] sm:$0xff]
      %v6176 = vld [vmem:[%s8 + $0x5a0] sm:$0xff]
      %v6177 = vld [vmem:[%s8 + $0x5a8] sm:$0xff]
      %v6178 = vld [vmem:[%s8 + $0x5b0] sm:$0xff]
      %v6179 = vld [vmem:[%s8 + $0x5b8] sm:$0xff]
      %v6180 = vld [vmem:[%s8 + $0x5c0] sm:$0xff]
      %v6181 = vld [vmem:[%s8 + $0x5c8] sm:$0xff]
      %v6182 = vld [vmem:[%s8 + $0x5d0] sm:$0xff]
      %v6183 = vld [vmem:[%s8 + $0x5d8] sm:$0xff]
      %v6184 = vld [vmem:[%s8 + $0x5e0] sm:$0xff]
      %v6185 = vld [vmem:[%s8 + $0x5e8] sm:$0xff]
      %v6186 = vld [vmem:[%s8 + $0x5f0] sm:$0xff]
      %v6187 = vld [vmem:[%s8 + $0x5f8] sm:$0xff]
      %v6188 = vld [vmem:[%s8 + $0x600] sm:$0xff]
      %v6189 = vld [vmem:[%s8 + $0x608] sm:$0xff]
      %v6190 = vld [vmem:[%s8 + $0x610] sm:$0xff]
      %v6191 = vld [vmem:[%s8 + $0x618] sm:$0xff]
      %v6192 = vld [vmem:[%s8 + $0x620] sm:$0xff]
      %v6193 = vld [vmem:[%s8 + $0x628] sm:$0xff]
      %v6194 = vld [vmem:[%s8 + $0x630] sm:$0xff]
      %v6195 = vld [vmem:[%s8 + $0x638] sm:$0xff]
      %v6196 = vld [vmem:[%s8 + $0x640] sm:$0xff]
      %v6197 = vld [vmem:[%s8 + $0x648] sm:$0xff]
      %v6198 = vld [vmem:[%s8 + $0x650] sm:$0xff]
      %v6199 = vld [vmem:[%s8 + $0x658] sm:$0xff]
      %v6200 = vld [vmem:[%s8 + $0x660] sm:$0xff]
      %v6201 = vld [vmem:[%s8 + $0x668] sm:$0xff]
      %v6202 = vld [vmem:[%s8 + $0x670] sm:$0xff]
      %v6203 = vld [vmem:[%s8 + $0x678] sm:$0xff]
      %v6204 = vld [vmem:[%s8 + $0x680] sm:$0xff]
      %v6205 = vld [vmem:[%s8 + $0x688] sm:$0xff]
      %v6206 = vld [vmem:[%s8 + $0x690] sm:$0xff]
      %v6207 = vld [vmem:[%s8 + $0x698] sm:$0xff]
      %v6208 = vld [vmem:[%s8 + $0x6a0] sm:$0xff]
      %v6209 = vld [vmem:[%s8 + $0x6a8] sm:$0xff]
      %v6210 = vld [vmem:[%s8 + $0x6b0] sm:$0xff]
      %v6211 = vld [vmem:[%s8 + $0x6b8] sm:$0xff]
      %v6212 = vld [vmem:[%s8 + $0x6c0] sm:$0xff]
      %v6213 = vld [vmem:[%s8 + $0x6c8] sm:$0xff]
      %v6214 = vld [vmem:[%s8 + $0x6d0] sm:$0xff]
      %v6215 = vld [vmem:[%s8 + $0x6d8] sm:$0xff]
      %v6216 = vld [vmem:[%s8 + $0x6e0] sm:$0xff]
      %v6217 = vld [vmem:[%s8 + $0x6e8] sm:$0xff]
      %v6218 = vld [vmem:[%s8 + $0x6f0] sm:$0xff]
      %v6219 = vld [vmem:[%s8 + $0x6f8] sm:$0xff]
      %v6220 = vld [vmem:[%s8 + $0x700] sm:$0xff]
      %v6221 = vld [vmem:[%s8 + $0x708] sm:$0xff]
      %v6222 = vld [vmem:[%s8 + $0x710] sm:$0xff]
      %v6223 = vld [vmem:[%s8 + $0x718] sm:$0xff]
      %v6224 = vld [vmem:[%s8 + $0x720] sm:$0xff]
      %v6225 = vld [vmem:[%s8 + $0x728] sm:$0xff]
      %v6226 = vld [vmem:[%s8 + $0x730] sm:$0xff]
      %v6227 = vld [vmem:[%s8 + $0x738] sm:$0xff]
      %v6228 = vld [vmem:[%s8 + $0x740] sm:$0xff]
      %v6229 = vld [vmem:[%s8 + $0x748] sm:$0xff]
      %v6230 = vld [vmem:[%s8 + $0x750] sm:$0xff]
      %v6231 = vld [vmem:[%s8 + $0x758] sm:$0xff]
      %v6232 = vld [vmem:[%s8 + $0x760] sm:$0xff]
      %v6233 = vld [vmem:[%s8 + $0x768] sm:$0xff]
      %v6234 = vld [vmem:[%s8 + $0x770] sm:$0xff]
      %v6235 = vld [vmem:[%s8 + $0x778] sm:$0xff]
      %v6236 = vld [vmem:[%s8 + $0x780] sm:$0xff]
      %v6237 = vld [vmem:[%s8 + $0x788] sm:$0xff]
      %v6238 = vld [vmem:[%s8 + $0x790] sm:$0xff]
      %v6239 = vld [vmem:[%s8 + $0x798] sm:$0xff]
      %v6240 = vld [vmem:[%s8 + $0x7a0] sm:$0xff]
      %v6241 = vld [vmem:[%s8 + $0x7a8] sm:$0xff]
      %v6242 = vld [vmem:[%s8 + $0x7b0] sm:$0xff]
      %v6243 = vld [vmem:[%s8 + $0x7b8] sm:$0xff]
      %v6244 = vld [vmem:[%s8 + $0x7c0] sm:$0xff]
      %v6245 = vld [vmem:[%s8 + $0x7c8] sm:$0xff]
      %v6246 = vld [vmem:[%s8 + $0x7d0] sm:$0xff]
      %v6247 = vld [vmem:[%s8 + $0x7d8] sm:$0xff]
      %v6248 = vld [vmem:[%s8 + $0x7e0] sm:$0xff]
      %v6249 = vld [vmem:[%s8 + $0x7e8] sm:$0xff]
      %v6250 = vld [vmem:[%s8 + $0x7f0] sm:$0xff]
      %v6251 = vld [vmem:[%s8 + $0x7f8] sm:$0xff]
      %v6252 = vpack.c.bf16 %v5820, %v5804
      %v6253 = vpack.c.bf16 %v5821, %v5805
      %v6254 = vpack.c.bf16 %v5822, %v5806
      %v6255 = vpack.c.bf16 %v5823, %v5807
      %v6256 = vpack.c.bf16 %v5824, %v5808
      %v6257 = vpack.c.bf16 %v5825, %v5809
      %v6258 = vpack.c.bf16 %v5826, %v5810
      %v6259 = vpack.c.bf16 %v5827, %v5811
      %v6260 = vpack.c.bf16 %v5828, %v5812
      %v6261 = vpack.c.bf16 %v5829, %v5813
      %v6262 = vpack.c.bf16 %v5830, %v5814
      %v6263 = vpack.c.bf16 %v5831, %v5815
      %v6264 = vpack.c.bf16 %v5832, %v5816
      %v6265 = vpack.c.bf16 %v5833, %v5817
      %v6266 = vpack.c.bf16 %v5834, %v5818
      %v6267 = vpack.c.bf16 %v5835, %v5819
      %v6268 = vpack.c.bf16 %v5852, %v5836
      %v6269 = vpack.c.bf16 %v5853, %v5837
      %v6270 = vpack.c.bf16 %v5854, %v5838
      %v6271 = vpack.c.bf16 %v5855, %v5839
      %v6272 = vpack.c.bf16 %v5856, %v5840
      %v6273 = vpack.c.bf16 %v5857, %v5841
      %v6274 = vpack.c.bf16 %v5858, %v5842
      %v6275 = vpack.c.bf16 %v5859, %v5843
      %v6276 = vpack.c.bf16 %v5860, %v5844
      %v6277 = vpack.c.bf16 %v5861, %v5845
      %v6278 = vpack.c.bf16 %v5862, %v5846
      %v6279 = vpack.c.bf16 %v5863, %v5847
      %v6280 = vpack.c.bf16 %v5864, %v5848
      %v6281 = vpack.c.bf16 %v5865, %v5849
      %v6282 = vpack.c.bf16 %v5866, %v5850
      %v6283 = vpack.c.bf16 %v5867, %v5851
      %v6284 = vpack.c.bf16 %v5884, %v5868
      %v6285 = vpack.c.bf16 %v5885, %v5869
      %v6286 = vpack.c.bf16 %v5886, %v5870
      %v6287 = vpack.c.bf16 %v5887, %v5871
      %v6288 = vpack.c.bf16 %v5888, %v5872
      %v6289 = vpack.c.bf16 %v5889, %v5873
      %v6290 = vpack.c.bf16 %v5890, %v5874
      %v6291 = vpack.c.bf16 %v5891, %v5875
      %v6292 = vpack.c.bf16 %v5892, %v5876
      %v6293 = vpack.c.bf16 %v5893, %v5877
      %v6294 = vpack.c.bf16 %v5894, %v5878
      %v6295 = vpack.c.bf16 %v5895, %v5879
      %v6296 = vpack.c.bf16 %v5896, %v5880
      %v6297 = vpack.c.bf16 %v5897, %v5881
      %v6298 = vpack.c.bf16 %v5898, %v5882
      %v6299 = vpack.c.bf16 %v5899, %v5883
      %v6300 = vpack.c.bf16 %v5916, %v5900
      %v6301 = vpack.c.bf16 %v5917, %v5901
      %v6302 = vpack.c.bf16 %v5918, %v5902
      %v6303 = vpack.c.bf16 %v5919, %v5903
      %v6304 = vpack.c.bf16 %v5920, %v5904
      %v6305 = vpack.c.bf16 %v5921, %v5905
      %v6306 = vpack.c.bf16 %v5922, %v5906
      %v6307 = vpack.c.bf16 %v5923, %v5907
      %v6308 = vpack.c.bf16 %v5924, %v5908
      %v6309 = vpack.c.bf16 %v5925, %v5909
      %v6310 = vpack.c.bf16 %v5926, %v5910
      %v6311 = vpack.c.bf16 %v5927, %v5911
      %v6312 = vpack.c.bf16 %v5928, %v5912
      %v6313 = vpack.c.bf16 %v5929, %v5913
      %v6314 = vpack.c.bf16 %v5930, %v5914
      %v6315 = vpack.c.bf16 %v5931, %v5915
      %v6316 = vpack.c.bf16 %v5948, %v5932
      %v6317 = vpack.c.bf16 %v5949, %v5933
      %v6318 = vpack.c.bf16 %v5950, %v5934
      %v6319 = vpack.c.bf16 %v5951, %v5935
      %v6320 = vpack.c.bf16 %v5952, %v5936
      %v6321 = vpack.c.bf16 %v5953, %v5937
      %v6322 = vpack.c.bf16 %v5954, %v5938
      %v6323 = vpack.c.bf16 %v5955, %v5939
      %v6324 = vpack.c.bf16 %v5956, %v5940
      %v6325 = vpack.c.bf16 %v5957, %v5941
      %v6326 = vpack.c.bf16 %v5958, %v5942
      %v6327 = vpack.c.bf16 %v5959, %v5943
      %v6328 = vpack.c.bf16 %v5960, %v5944
      %v6329 = vpack.c.bf16 %v5961, %v5945
      %v6330 = vpack.c.bf16 %v5962, %v5946
      %v6331 = vpack.c.bf16 %v5963, %v5947
      %v6332 = vpack.c.bf16 %v5980, %v5964
      %v6333 = vpack.c.bf16 %v5981, %v5965
      %v6334 = vpack.c.bf16 %v5982, %v5966
      %v6335 = vpack.c.bf16 %v5983, %v5967
      %v6336 = vpack.c.bf16 %v5984, %v5968
      %v6337 = vpack.c.bf16 %v5985, %v5969
      %v6338 = vpack.c.bf16 %v5986, %v5970
      %v6339 = vpack.c.bf16 %v5987, %v5971
      %v6340 = vpack.c.bf16 %v5988, %v5972
      %v6341 = vpack.c.bf16 %v5989, %v5973
      %v6342 = vpack.c.bf16 %v5990, %v5974
      %v6343 = vpack.c.bf16 %v5991, %v5975
      %v6344 = vpack.c.bf16 %v5992, %v5976
      %v6345 = vpack.c.bf16 %v5993, %v5977
      %v6346 = vpack.c.bf16 %v5994, %v5978
      %v6347 = vpack.c.bf16 %v5995, %v5979
      %v6348 = vpack.c.bf16 %v5997, %v5996
      %v6349 = vpack.c.bf16 %v5999, %v5998
      %v6350 = vpack.c.bf16 %v6001, %v6000
      %v6351 = vpack.c.bf16 %v6003, %v6002
      %v6352 = vpack.c.bf16 %v6005, %v6004
      %v6353 = vpack.c.bf16 %v6007, %v6006
      %v6354 = vpack.c.bf16 %v6009, %v6008
      %v6355 = vpack.c.bf16 %v6011, %v6010
      %v6356 = vpack.c.bf16 %v6013, %v6012
      %v6357 = vpack.c.bf16 %v6015, %v6014
      %v6358 = vpack.c.bf16 %v6017, %v6016
      %v6359 = vpack.c.bf16 %v6019, %v6018
      %v6360 = vpack.c.bf16 %v6021, %v6020
      %v6361 = vpack.c.bf16 %v6023, %v6022
      %v6362 = vpack.c.bf16 %v6025, %v6024
      %v6363 = vpack.c.bf16 %v6027, %v6026
      %v6364 = vpack.c.bf16 %v6029, %v6028
      %v6365 = vpack.c.bf16 %v6031, %v6030
      %v6366 = vpack.c.bf16 %v6033, %v6032
      %v6367 = vpack.c.bf16 %v6035, %v6034
      %v6368 = vpack.c.bf16 %v6037, %v6036
      %v6369 = vpack.c.bf16 %v6039, %v6038
      %v6370 = vpack.c.bf16 %v6041, %v6040
      %v6371 = vpack.c.bf16 %v6043, %v6042
      %v6372 = vpack.c.bf16 %v6045, %v6044
      %v6373 = vpack.c.bf16 %v6047, %v6046
      %v6374 = vpack.c.bf16 %v6049, %v6048
      %v6375 = vpack.c.bf16 %v6051, %v6050
      %v6376 = vpack.c.bf16 %v6053, %v6052
      %v6377 = vpack.c.bf16 %v6055, %v6054
      %v6378 = vpack.c.bf16 %v6057, %v6056
      %v6379 = vpack.c.bf16 %v6059, %v6058
      %v6380 = vpack.c.bf16 %v6061, %v6060
      %v6381 = vpack.c.bf16 %v6063, %v6062
      %v6382 = vpack.c.bf16 %v6065, %v6064
      %v6383 = vpack.c.bf16 %v6067, %v6066
      %v6384 = vpack.c.bf16 %v6069, %v6068
      %v6385 = vpack.c.bf16 %v6071, %v6070
      %v6386 = vpack.c.bf16 %v6073, %v6072
      %v6387 = vpack.c.bf16 %v6075, %v6074
      %v6388 = vpack.c.bf16 %v6077, %v6076
      %v6389 = vpack.c.bf16 %v6079, %v6078
      %v6390 = vpack.c.bf16 %v6081, %v6080
      %v6391 = vpack.c.bf16 %v6083, %v6082
      %v6392 = vpack.c.bf16 %v6085, %v6084
      %v6393 = vpack.c.bf16 %v6087, %v6086
      %v6394 = vpack.c.bf16 %v6089, %v6088
      %v6395 = vpack.c.bf16 %v6091, %v6090
      %v6396 = vpack.c.bf16 %v6093, %v6092
      %v6397 = vpack.c.bf16 %v6095, %v6094
      %v6398 = vpack.c.bf16 %v6097, %v6096
      %v6399 = vpack.c.bf16 %v6099, %v6098
      %v6400 = vpack.c.bf16 %v6101, %v6100
      %v6401 = vpack.c.bf16 %v6103, %v6102
      %v6402 = vpack.c.bf16 %v6105, %v6104
      %v6403 = vpack.c.bf16 %v6107, %v6106
      %v6404 = vpack.c.bf16 %v6109, %v6108
      %v6405 = vpack.c.bf16 %v6111, %v6110
      %v6406 = vpack.c.bf16 %v6113, %v6112
      %v6407 = vpack.c.bf16 %v6115, %v6114
      %v6408 = vpack.c.bf16 %v6117, %v6116
      %v6409 = vpack.c.bf16 %v6119, %v6118
      %v6410 = vpack.c.bf16 %v6121, %v6120
      %v6411 = vpack.c.bf16 %v6123, %v6122
      %v6412 = vpack.c.bf16 %v6125, %v6124
      %v6413 = vpack.c.bf16 %v6127, %v6126
      %v6414 = vpack.c.bf16 %v6129, %v6128
      %v6415 = vpack.c.bf16 %v6131, %v6130
      %v6416 = vpack.c.bf16 %v6133, %v6132
      %v6417 = vpack.c.bf16 %v6135, %v6134
      %v6418 = vpack.c.bf16 %v6137, %v6136
      %v6419 = vpack.c.bf16 %v6139, %v6138
      %v6420 = vpack.c.bf16 %v6141, %v6140
      %v6421 = vpack.c.bf16 %v6143, %v6142
      %v6422 = vpack.c.bf16 %v6145, %v6144
      %v6423 = vpack.c.bf16 %v6147, %v6146
      %v6424 = vpack.c.bf16 %v6149, %v6148
      %v6425 = vpack.c.bf16 %v6151, %v6150
      %v6426 = vpack.c.bf16 %v6153, %v6152
      %v6427 = vpack.c.bf16 %v6155, %v6154
      %v6428 = vpack.c.bf16 %v6157, %v6156
      %v6429 = vpack.c.bf16 %v6159, %v6158
      %v6430 = vpack.c.bf16 %v6161, %v6160
      %v6431 = vpack.c.bf16 %v6163, %v6162
      %v6432 = vpack.c.bf16 %v6165, %v6164
      %v6433 = vpack.c.bf16 %v6167, %v6166
      %v6434 = vpack.c.bf16 %v6169, %v6168
      %v6435 = vpack.c.bf16 %v6171, %v6170
      %v6436 = vpack.c.bf16 %v6173, %v6172
      %v6437 = vpack.c.bf16 %v6175, %v6174
      %v6438 = vpack.c.bf16 %v6177, %v6176
      %v6439 = vpack.c.bf16 %v6179, %v6178
      %v6440 = vpack.c.bf16 %v6181, %v6180
      %v6441 = vpack.c.bf16 %v6183, %v6182
      %v6442 = vpack.c.bf16 %v6185, %v6184
      %v6443 = vpack.c.bf16 %v6187, %v6186
      %v6444 = vpack.c.bf16 %v6189, %v6188
      %v6445 = vpack.c.bf16 %v6191, %v6190
      %v6446 = vpack.c.bf16 %v6193, %v6192
      %v6447 = vpack.c.bf16 %v6195, %v6194
      %v6448 = vpack.c.bf16 %v6197, %v6196
      %v6449 = vpack.c.bf16 %v6199, %v6198
      %v6450 = vpack.c.bf16 %v6201, %v6200
      %v6451 = vpack.c.bf16 %v6203, %v6202
      %v6452 = vpack.c.bf16 %v6205, %v6204
      %v6453 = vpack.c.bf16 %v6207, %v6206
      %v6454 = vpack.c.bf16 %v6209, %v6208
      %v6455 = vpack.c.bf16 %v6211, %v6210
      %v6456 = vpack.c.bf16 %v6213, %v6212
      %v6457 = vpack.c.bf16 %v6215, %v6214
      %v6458 = vpack.c.bf16 %v6217, %v6216
      %v6459 = vpack.c.bf16 %v6219, %v6218
      %v6460 = vpack.c.bf16 %v6221, %v6220
      %v6461 = vpack.c.bf16 %v6223, %v6222
      %v6462 = vpack.c.bf16 %v6225, %v6224
      %v6463 = vpack.c.bf16 %v6227, %v6226
      %v6464 = vpack.c.bf16 %v6229, %v6228
      %v6465 = vpack.c.bf16 %v6231, %v6230
      %v6466 = vpack.c.bf16 %v6233, %v6232
      %v6467 = vpack.c.bf16 %v6235, %v6234
      %v6468 = vpack.c.bf16 %v6237, %v6236
      %v6469 = vpack.c.bf16 %v6239, %v6238
      %v6470 = vpack.c.bf16 %v6241, %v6240
      %v6471 = vpack.c.bf16 %v6243, %v6242
      %v6472 = vpack.c.bf16 %v6245, %v6244
      %v6473 = vpack.c.bf16 %v6247, %v6246
      %v6474 = vpack.c.bf16 %v6249, %v6248
      %v6475 = vpack.c.bf16 %v6251, %v6250
      %v6476 = vld [vmem:[%s9] sm:$0x1]
      %v6478 = vlaneseq
      %v6479 = vshrl.u32 %v6478, 7
      %v6480 = vsub.s32 0, %v6479
      %v6481 = vrot.slane %v6476, %v6480
      %6483 = vmatprep.subr.bf16.mxu0 0
      %6484 = vmatpush1.bf16.msra.mxu0 %v6348
      %6485 = vmatprep.subr.bf16.mxu0 0
      %6486 = vmatpush1.bf16.msra.mxu0 %v6349
      %6487 = vmatprep.subr.bf16.mxu0 0
      %6488 = vmatpush1.bf16.msra.mxu0 %v6350
      %6489 = vmatprep.subr.bf16.mxu0 0
      %6490 = vmatpush1.bf16.msra.mxu0 %v6351
      %6491 = vmatprep.subr.bf16.mxu0 0
      %6492 = vmatpush1.bf16.msra.mxu0 %v6352
      %6493 = vmatprep.subr.bf16.mxu0 0
      %6494 = vmatpush1.bf16.msra.mxu0 %v6353
      %6495 = vmatprep.subr.bf16.mxu0 0
      %6496 = vmatpush1.bf16.msra.mxu0 %v6354
      %6497 = vmatprep.subr.bf16.mxu0 0
      %6498 = vmatpush1.bf16.msra.mxu0 %v6355
      %6499 = vmatprep.subr.bf16.mxu0 0
      %6500 = vmatpush1.bf16.msra.mxu0 %v6356
      %6501 = vmatprep.subr.bf16.mxu0 0
      %6502 = vmatpush1.bf16.msra.mxu0 %v6357
      %6503 = vmatprep.subr.bf16.mxu0 0
      %6504 = vmatpush1.bf16.msra.mxu0 %v6358
      %6505 = vmatprep.subr.bf16.mxu0 0
      %6506 = vmatpush1.bf16.msra.mxu0 %v6359
      %6507 = vmatprep.subr.bf16.mxu0 0
      %6508 = vmatpush1.bf16.msra.mxu0 %v6360
      %6509 = vmatprep.subr.bf16.mxu0 0
      %6510 = vmatpush1.bf16.msra.mxu0 %v6361
      %6511 = vmatprep.subr.bf16.mxu0 0
      %6512 = vmatpush1.bf16.msra.mxu0 %v6362
      %6513 = vmatprep.subr.bf16.mxu0 0
      %6514 = vmatpush1.bf16.msra.mxu0 %v6363
      %6515 = vmatprep.mubr.bf16.mxu0 %v6253
      %6516 = vmatmul.mubr.bf16.gmra.mrb[0].mxu0 %v6252
      %v6517 = vpop.f32.mrb[0].mxu0
      %v6518 = vadd.f32 %v6481, %v6517
      %v6519 = vpop.f32.mrb[0].mxu0
      %v6520 = vpop.f32.mrb[0].mxu0
      %v6521 = vadd.f32 %v6481, %v6520
      %v6522 = vpop.f32.mrb[0].mxu0
      %6523 = vmatprep.mubr.bf16.mxu0 %v6269
      %6524 = vmatmul.mubr.bf16.gmra.mrb[0].mxu0 %v6268
      %v6525 = vpop.f32.mrb[0].mxu0
      %v6526 = vadd.f32 %v6481, %v6525
      %v6527 = vpop.f32.mrb[0].mxu0
      %v6528 = vpop.f32.mrb[0].mxu0
      %v6529 = vadd.f32 %v6481, %v6528
      %v6530 = vpop.f32.mrb[0].mxu0
      %6531 = vmatprep.mubr.bf16.mxu0 %v6285
      %6532 = vmatmul.mubr.bf16.gmra.mrb[0].mxu0 %v6284
      %v6533 = vpop.f32.mrb[0].mxu0
      %v6534 = vadd.f32 %v6481, %v6533
      %v6535 = vpop.f32.mrb[0].mxu0
      %v6536 = vpop.f32.mrb[0].mxu0
      %v6537 = vadd.f32 %v6481, %v6536
      %v6538 = vpop.f32.mrb[0].mxu0
      %6539 = vmatprep.mubr.bf16.mxu0 %v6301
      %6540 = vmatmul.mubr.bf16.gmra.mrb[0].mxu0 %v6300
      %v6541 = vpop.f32.mrb[0].mxu0
      %v6542 = vadd.f32 %v6481, %v6541
      %v6543 = vpop.f32.mrb[0].mxu0
      %v6544 = vpop.f32.mrb[0].mxu0
      %v6545 = vadd.f32 %v6481, %v6544
      %v6546 = vpop.f32.mrb[0].mxu0
      %6547 = vmatprep.mubr.bf16.mxu0 %v6317
      %6548 = vmatmul.mubr.bf16.gmra.mrb[0].mxu0 %v6316
      %v6549 = vpop.f32.mrb[0].mxu0
      %v6550 = vadd.f32 %v6481, %v6549
      %v6551 = vpop.f32.mrb[0].mxu0
      %v6552 = vpop.f32.mrb[0].mxu0
      %v6553 = vadd.f32 %v6481, %v6552
      %v6554 = vpop.f32.mrb[0].mxu0
      %6555 = vmatprep.mubr.bf16.mxu0 %v6333
      %6556 = vmatmul.mubr.bf16.gmra.mrb[0].mxu0 %v6332
      %v6557 = vpop.f32.mrb[0].mxu0
      %v6558 = vadd.f32 %v6481, %v6557
      %v6559 = vpop.f32.mrb[0].mxu0
      %v6560 = vpop.f32.mrb[0].mxu0
      %v6561 = vadd.f32 %v6481, %v6560
      %v6562 = vpop.f32.mrb[0].mxu0
      %6563 = vdwg.mxu0
      %6564 = vmatprep.subr.bf16.mxu0 0
      %6565 = vmatpush1.bf16.msra.mxu0 %v6364
      %6566 = vmatprep.subr.bf16.mxu0 0
      %6567 = vmatpush1.bf16.msra.mxu0 %v6365
      %6568 = vmatprep.subr.bf16.mxu0 0
      %6569 = vmatpush1.bf16.msra.mxu0 %v6366
      %6570 = vmatprep.subr.bf16.mxu0 0
      %6571 = vmatpush1.bf16.msra.mxu0 %v6367
      %6572 = vmatprep.subr.bf16.mxu0 0
      %6573 = vmatpush1.bf16.msra.mxu0 %v6368
      %6574 = vmatprep.subr.bf16.mxu0 0
      %6575 = vmatpush1.bf16.msra.mxu0 %v6369
      %6576 = vmatprep.subr.bf16.mxu0 0
      %6577 = vmatpush1.bf16.msra.mxu0 %v6370
      %6578 = vmatprep.subr.bf16.mxu0 0
      %6579 = vmatpush1.bf16.msra.mxu0 %v6371
      %6580 = vmatprep.subr.bf16.mxu0 0
      %6581 = vmatpush1.bf16.msra.mxu0 %v6372
      %6582 = vmatprep.subr.bf16.mxu0 0
      %6583 = vmatpush1.bf16.msra.mxu0 %v6373
      %6584 = vmatprep.subr.bf16.mxu0 0
      %6585 = vmatpush1.bf16.msra.mxu0 %v6374
      %6586 = vmatprep.subr.bf16.mxu0 0
      %6587 = vmatpush1.bf16.msra.mxu0 %v6375
      %6588 = vmatprep.subr.bf16.mxu0 0
      %6589 = vmatpush1.bf16.msra.mxu0 %v6376
      %6590 = vmatprep.subr.bf16.mxu0 0
      %6591 = vmatpush1.bf16.msra.mxu0 %v6377
      %6592 = vmatprep.subr.bf16.mxu0 0
      %6593 = vmatpush1.bf16.msra.mxu0 %v6378
      %6594 = vmatprep.subr.bf16.mxu0 0
      %6595 = vmatpush1.bf16.msra.mxu0 %v6379
      %6596 = vmatprep.mubr.bf16.mxu0 %v6255
      %6597 = vmatmul.mubr.bf16.gmra.mrb[0].mxu0 %v6254
      %v6598 = vpop.f32.mrb[0].mxu0
      %v6599 = vadd.f32 %v6518, %v6598
      %v6600 = vpop.f32.mrb[0].mxu0
      %v6601 = vpop.f32.mrb[0].mxu0
      %v6602 = vadd.f32 %v6521, %v6601
      %v6603 = vpop.f32.mrb[0].mxu0
      %6604 = vmatprep.mubr.bf16.mxu0 %v6271
      %6605 = vmatmul.mubr.bf16.gmra.mrb[0].mxu0 %v6270
      %v6606 = vpop.f32.mrb[0].mxu0
      %v6607 = vadd.f32 %v6526, %v6606
      %v6608 = vpop.f32.mrb[0].mxu0
      %v6609 = vpop.f32.mrb[0].mxu0
      %v6610 = vadd.f32 %v6529, %v6609
      %v6611 = vpop.f32.mrb[0].mxu0
      %6612 = vmatprep.mubr.bf16.mxu0 %v6287
      %6613 = vmatmul.mubr.bf16.gmra.mrb[0].mxu0 %v6286
      %v6614 = vpop.f32.mrb[0].mxu0
      %v6615 = vadd.f32 %v6534, %v6614
      %v6616 = vpop.f32.mrb[0].mxu0
      %v6617 = vpop.f32.mrb[0].mxu0
      %v6618 = vadd.f32 %v6537, %v6617
      %v6619 = vpop.f32.mrb[0].mxu0
      %6620 = vmatprep.mubr.bf16.mxu0 %v6303
      %6621 = vmatmul.mubr.bf16.gmra.mrb[0].mxu0 %v6302
      %v6622 = vpop.f32.mrb[0].mxu0
      %v6623 = vadd.f32 %v6542, %v6622
      %v6624 = vpop.f32.mrb[0].mxu0
      %v6625 = vpop.f32.mrb[0].mxu0
      %v6626 = vadd.f32 %v6545, %v6625
      %v6627 = vpop.f32.mrb[0].mxu0
      %6628 = vmatprep.mubr.bf16.mxu0 %v6319
      %6629 = vmatmul.mubr.bf16.gmra.mrb[0].mxu0 %v6318
      %v6630 = vpop.f32.mrb[0].mxu0
      %v6631 = vadd.f32 %v6550, %v6630
      %v6632 = vpop.f32.mrb[0].mxu0
      %v6633 = vpop.f32.mrb[0].mxu0
      %v6634 = vadd.f32 %v6553, %v6633
      %v6635 = vpop.f32.mrb[0].mxu0
      %6636 = vmatprep.mubr.bf16.mxu0 %v6335
      %6637 = vmatmul.mubr.bf16.gmra.mrb[0].mxu0 %v6334
      %v6638 = vpop.f32.mrb[0].mxu0
      %v6639 = vadd.f32 %v6558, %v6638
      %v6640 = vpop.f32.mrb[0].mxu0
      %v6641 = vpop.f32.mrb[0].mxu0
      %v6642 = vadd.f32 %v6561, %v6641
      %v6643 = vpop.f32.mrb[0].mxu0
      %6644 = vdwg.mxu0
      %6645 = vmatprep.subr.bf16.mxu0 0
      %6646 = vmatpush1.bf16.msra.mxu0 %v6380
      %6647 = vmatprep.subr.bf16.mxu0 0
      %6648 = vmatpush1.bf16.msra.mxu0 %v6381
      %6649 = vmatprep.subr.bf16.mxu0 0
      %6650 = vmatpush1.bf16.msra.mxu0 %v6382
      %6651 = vmatprep.subr.bf16.mxu0 0
      %6652 = vmatpush1.bf16.msra.mxu0 %v6383
      %6653 = vmatprep.subr.bf16.mxu0 0
      %6654 = vmatpush1.bf16.msra.mxu0 %v6384
      %6655 = vmatprep.subr.bf16.mxu0 0
      %6656 = vmatpush1.bf16.msra.mxu0 %v6385
      %6657 = vmatprep.subr.bf16.mxu0 0
      %6658 = vmatpush1.bf16.msra.mxu0 %v6386
      %6659 = vmatprep.subr.bf16.mxu0 0
      %6660 = vmatpush1.bf16.msra.mxu0 %v6387
      %6661 = vmatprep.subr.bf16.mxu0 0
      %6662 = vmatpush1.bf16.msra.mxu0 %v6388
      %6663 = vmatprep.subr.bf16.mxu0 0
      %6664 = vmatpush1.bf16.msra.mxu0 %v6389
      %6665 = vmatprep.subr.bf16.mxu0 0
      %6666 = vmatpush1.bf16.msra.mxu0 %v6390
      %6667 = vmatprep.subr.bf16.mxu0 0
      %6668 = vmatpush1.bf16.msra.mxu0 %v6391
      %6669 = vmatprep.subr.bf16.mxu0 0
      %6670 = vmatpush1.bf16.msra.mxu0 %v6392
      %6671 = vmatprep.subr.bf16.mxu0 0
      %6672 = vmatpush1.bf16.msra.mxu0 %v6393
      %6673 = vmatprep.subr.bf16.mxu0 0
      %6674 = vmatpush1.bf16.msra.mxu0 %v6394
      %6675 = vmatprep.subr.bf16.mxu0 0
      %6676 = vmatpush1.bf16.msra.mxu0 %v6395
      %6677 = vmatprep.mubr.bf16.mxu0 %v6257
      %6678 = vmatmul.mubr.bf16.gmra.mrb[0].mxu0 %v6256
      %v6679 = vpop.f32.mrb[0].mxu0
      %v6680 = vadd.f32 %v6599, %v6679
      %v6681 = vpop.f32.mrb[0].mxu0
      %v6682 = vpop.f32.mrb[0].mxu0
      %v6683 = vadd.f32 %v6602, %v6682
      %v6684 = vpop.f32.mrb[0].mxu0
      %6685 = vmatprep.mubr.bf16.mxu0 %v6273
      %6686 = vmatmul.mubr.bf16.gmra.mrb[0].mxu0 %v6272
      %v6687 = vpop.f32.mrb[0].mxu0
      %v6688 = vadd.f32 %v6607, %v6687
      %v6689 = vpop.f32.mrb[0].mxu0
      %v6690 = vpop.f32.mrb[0].mxu0
      %v6691 = vadd.f32 %v6610, %v6690
      %v6692 = vpop.f32.mrb[0].mxu0
      %6693 = vmatprep.mubr.bf16.mxu0 %v6289
      %6694 = vmatmul.mubr.bf16.gmra.mrb[0].mxu0 %v6288
      %v6695 = vpop.f32.mrb[0].mxu0
      %v6696 = vadd.f32 %v6615, %v6695
      %v6697 = vpop.f32.mrb[0].mxu0
      %v6698 = vpop.f32.mrb[0].mxu0
      %v6699 = vadd.f32 %v6618, %v6698
      %v6700 = vpop.f32.mrb[0].mxu0
      %6701 = vmatprep.mubr.bf16.mxu0 %v6305
      %6702 = vmatmul.mubr.bf16.gmra.mrb[0].mxu0 %v6304
      %v6703 = vpop.f32.mrb[0].mxu0
      %v6704 = vadd.f32 %v6623, %v6703
      %v6705 = vpop.f32.mrb[0].mxu0
      %v6706 = vpop.f32.mrb[0].mxu0
      %v6707 = vadd.f32 %v6626, %v6706
      %v6708 = vpop.f32.mrb[0].mxu0
      %6709 = vmatprep.mubr.bf16.mxu0 %v6321
      %6710 = vmatmul.mubr.bf16.gmra.mrb[0].mxu0 %v6320
      %v6711 = vpop.f32.mrb[0].mxu0
      %v6712 = vadd.f32 %v6631, %v6711
      %v6713 = vpop.f32.mrb[0].mxu0
      %v6714 = vpop.f32.mrb[0].mxu0
      %v6715 = vadd.f32 %v6634, %v6714
      %v6716 = vpop.f32.mrb[0].mxu0
      %6717 = vmatprep.mubr.bf16.mxu0 %v6337
      %6718 = vmatmul.mubr.bf16.gmra.mrb[0].mxu0 %v6336
      %v6719 = vpop.f32.mrb[0].mxu0
      %v6720 = vadd.f32 %v6639, %v6719
      %v6721 = vpop.f32.mrb[0].mxu0
      %v6722 = vpop.f32.mrb[0].mxu0
      %v6723 = vadd.f32 %v6642, %v6722
      %v6724 = vpop.f32.mrb[0].mxu0
      %6725 = vdwg.mxu0
      %6726 = vmatprep.subr.bf16.mxu0 0
      %6727 = vmatpush1.bf16.msra.mxu0 %v6396
      %6728 = vmatprep.subr.bf16.mxu0 0
      %6729 = vmatpush1.bf16.msra.mxu0 %v6397
      %6730 = vmatprep.subr.bf16.mxu0 0
      %6731 = vmatpush1.bf16.msra.mxu0 %v6398
      %6732 = vmatprep.subr.bf16.mxu0 0
      %6733 = vmatpush1.bf16.msra.mxu0 %v6399
      %6734 = vmatprep.subr.bf16.mxu0 0
      %6735 = vmatpush1.bf16.msra.mxu0 %v6400
      %6736 = vmatprep.subr.bf16.mxu0 0
      %6737 = vmatpush1.bf16.msra.mxu0 %v6401
      %6738 = vmatprep.subr.bf16.mxu0 0
      %6739 = vmatpush1.bf16.msra.mxu0 %v6402
      %6740 = vmatprep.subr.bf16.mxu0 0
      %6741 = vmatpush1.bf16.msra.mxu0 %v6403
      %6742 = vmatprep.subr.bf16.mxu0 0
      %6743 = vmatpush1.bf16.msra.mxu0 %v6404
      %6744 = vmatprep.subr.bf16.mxu0 0
      %6745 = vmatpush1.bf16.msra.mxu0 %v6405
      %6746 = vmatprep.subr.bf16.mxu0 0
      %6747 = vmatpush1.bf16.msra.mxu0 %v6406
      %6748 = vmatprep.subr.bf16.mxu0 0
      %6749 = vmatpush1.bf16.msra.mxu0 %v6407
      %6750 = vmatprep.subr.bf16.mxu0 0
      %6751 = vmatpush1.bf16.msra.mxu0 %v6408
      %6752 = vmatprep.subr.bf16.mxu0 0
      %6753 = vmatpush1.bf16.msra.mxu0 %v6409
      %6754 = vmatprep.subr.bf16.mxu0 0
      %6755 = vmatpush1.bf16.msra.mxu0 %v6410
      %6756 = vmatprep.subr.bf16.mxu0 0
      %6757 = vmatpush1.bf16.msra.mxu0 %v6411
      %6758 = vmatprep.mubr.bf16.mxu0 %v6259
      %6759 = vmatmul.mubr.bf16.gmra.mrb[0].mxu0 %v6258
      %v6760 = vpop.f32.mrb[0].mxu0
      %v6761 = vadd.f32 %v6680, %v6760
      %v6762 = vpop.f32.mrb[0].mxu0
      %v6763 = vpop.f32.mrb[0].mxu0
      %v6764 = vadd.f32 %v6683, %v6763
      %v6765 = vpop.f32.mrb[0].mxu0
      %6766 = vmatprep.mubr.bf16.mxu0 %v6275
      %6767 = vmatmul.mubr.bf16.gmra.mrb[0].mxu0 %v6274
      %v6768 = vpop.f32.mrb[0].mxu0
      %v6769 = vadd.f32 %v6688, %v6768
      %v6770 = vpop.f32.mrb[0].mxu0
      %v6771 = vpop.f32.mrb[0].mxu0
      %v6772 = vadd.f32 %v6691, %v6771
      %v6773 = vpop.f32.mrb[0].mxu0
      %6774 = vmatprep.mubr.bf16.mxu0 %v6291
      %6775 = vmatmul.mubr.bf16.gmra.mrb[0].mxu0 %v6290
      %v6776 = vpop.f32.mrb[0].mxu0
      %v6777 = vadd.f32 %v6696, %v6776
      %v6778 = vpop.f32.mrb[0].mxu0
      %v6779 = vpop.f32.mrb[0].mxu0
      %v6780 = vadd.f32 %v6699, %v6779
      %v6781 = vpop.f32.mrb[0].mxu0
      %6782 = vmatprep.mubr.bf16.mxu0 %v6307
      %6783 = vmatmul.mubr.bf16.gmra.mrb[0].mxu0 %v6306
      %v6784 = vpop.f32.mrb[0].mxu0
      %v6785 = vadd.f32 %v6704, %v6784
      %v6786 = vpop.f32.mrb[0].mxu0
      %v6787 = vpop.f32.mrb[0].mxu0
      %v6788 = vadd.f32 %v6707, %v6787
      %v6789 = vpop.f32.mrb[0].mxu0
      %6790 = vmatprep.mubr.bf16.mxu0 %v6323
      %6791 = vmatmul.mubr.bf16.gmra.mrb[0].mxu0 %v6322
      %v6792 = vpop.f32.mrb[0].mxu0
      %v6793 = vadd.f32 %v6712, %v6792
      %v6794 = vpop.f32.mrb[0].mxu0
      %v6795 = vpop.f32.mrb[0].mxu0
      %v6796 = vadd.f32 %v6715, %v6795
      %v6797 = vpop.f32.mrb[0].mxu0
      %6798 = vmatprep.mubr.bf16.mxu0 %v6339
      %6799 = vmatmul.mubr.bf16.gmra.mrb[0].mxu0 %v6338
      %v6800 = vpop.f32.mrb[0].mxu0
      %v6801 = vadd.f32 %v6720, %v6800
      %v6802 = vpop.f32.mrb[0].mxu0
      %v6803 = vpop.f32.mrb[0].mxu0
      %v6804 = vadd.f32 %v6723, %v6803
      %v6805 = vpop.f32.mrb[0].mxu0
      %6806 = vdwg.mxu0
      %6807 = vmatprep.subr.bf16.mxu0 0
      %6808 = vmatpush1.bf16.msra.mxu0 %v6412
      %6809 = vmatprep.subr.bf16.mxu0 0
      %6810 = vmatpush1.bf16.msra.mxu0 %v6413
      %6811 = vmatprep.subr.bf16.mxu0 0
      %6812 = vmatpush1.bf16.msra.mxu0 %v6414
      %6813 = vmatprep.subr.bf16.mxu0 0
      %6814 = vmatpush1.bf16.msra.mxu0 %v6415
      %6815 = vmatprep.subr.bf16.mxu0 0
      %6816 = vmatpush1.bf16.msra.mxu0 %v6416
      %6817 = vmatprep.subr.bf16.mxu0 0
      %6818 = vmatpush1.bf16.msra.mxu0 %v6417
      %6819 = vmatprep.subr.bf16.mxu0 0
      %6820 = vmatpush1.bf16.msra.mxu0 %v6418
      %6821 = vmatprep.subr.bf16.mxu0 0
      %6822 = vmatpush1.bf16.msra.mxu0 %v6419
      %6823 = vmatprep.subr.bf16.mxu0 0
      %6824 = vmatpush1.bf16.msra.mxu0 %v6420
      %6825 = vmatprep.subr.bf16.mxu0 0
      %6826 = vmatpush1.bf16.msra.mxu0 %v6421
      %6827 = vmatprep.subr.bf16.mxu0 0
      %6828 = vmatpush1.bf16.msra.mxu0 %v6422
      %6829 = vmatprep.subr.bf16.mxu0 0
      %6830 = vmatpush1.bf16.msra.mxu0 %v6423
      %6831 = vmatprep.subr.bf16.mxu0 0
      %6832 = vmatpush1.bf16.msra.mxu0 %v6424
      %6833 = vmatprep.subr.bf16.mxu0 0
      %6834 = vmatpush1.bf16.msra.mxu0 %v6425
      %6835 = vmatprep.subr.bf16.mxu0 0
      %6836 = vmatpush1.bf16.msra.mxu0 %v6426
      %6837 = vmatprep.subr.bf16.mxu0 0
      %6838 = vmatpush1.bf16.msra.mxu0 %v6427
      %6839 = vmatprep.mubr.bf16.mxu0 %v6261
      %6840 = vmatmul.mubr.bf16.gmra.mrb[0].mxu0 %v6260
      %v6841 = vpop.f32.mrb[0].mxu0
      %v6842 = vadd.f32 %v6761, %v6841
      %v6843 = vpop.f32.mrb[0].mxu0
      %v6844 = vpop.f32.mrb[0].mxu0
      %v6845 = vadd.f32 %v6764, %v6844
      %v6846 = vpop.f32.mrb[0].mxu0
      %6847 = vmatprep.mubr.bf16.mxu0 %v6277
      %6848 = vmatmul.mubr.bf16.gmra.mrb[0].mxu0 %v6276
      %v6849 = vpop.f32.mrb[0].mxu0
      %v6850 = vadd.f32 %v6769, %v6849
      %v6851 = vpop.f32.mrb[0].mxu0
      %v6852 = vpop.f32.mrb[0].mxu0
      %v6853 = vadd.f32 %v6772, %v6852
      %v6854 = vpop.f32.mrb[0].mxu0
      %6855 = vmatprep.mubr.bf16.mxu0 %v6293
      %6856 = vmatmul.mubr.bf16.gmra.mrb[0].mxu0 %v6292
      %v6857 = vpop.f32.mrb[0].mxu0
      %v6858 = vadd.f32 %v6777, %v6857
      %v6859 = vpop.f32.mrb[0].mxu0
      %v6860 = vpop.f32.mrb[0].mxu0
      %v6861 = vadd.f32 %v6780, %v6860
      %v6862 = vpop.f32.mrb[0].mxu0
      %6863 = vmatprep.mubr.bf16.mxu0 %v6309
      %6864 = vmatmul.mubr.bf16.gmra.mrb[0].mxu0 %v6308
      %v6865 = vpop.f32.mrb[0].mxu0
      %v6866 = vadd.f32 %v6785, %v6865
      %v6867 = vpop.f32.mrb[0].mxu0
      %v6868 = vpop.f32.mrb[0].mxu0
      %v6869 = vadd.f32 %v6788, %v6868
      %v6870 = vpop.f32.mrb[0].mxu0
      %6871 = vmatprep.mubr.bf16.mxu0 %v6325
      %6872 = vmatmul.mubr.bf16.gmra.mrb[0].mxu0 %v6324
      %v6873 = vpop.f32.mrb[0].mxu0
      %v6874 = vadd.f32 %v6793, %v6873
      %v6875 = vpop.f32.mrb[0].mxu0
      %v6876 = vpop.f32.mrb[0].mxu0
      %v6877 = vadd.f32 %v6796, %v6876
      %v6878 = vpop.f32.mrb[0].mxu0
      %6879 = vmatprep.mubr.bf16.mxu0 %v6341
      %6880 = vmatmul.mubr.bf16.gmra.mrb[0].mxu0 %v6340
      %v6881 = vpop.f32.mrb[0].mxu0
      %v6882 = vadd.f32 %v6801, %v6881
      %v6883 = vpop.f32.mrb[0].mxu0
      %v6884 = vpop.f32.mrb[0].mxu0
      %v6885 = vadd.f32 %v6804, %v6884
      %v6886 = vpop.f32.mrb[0].mxu0
      %6887 = vdwg.mxu0
      %6888 = vmatprep.subr.bf16.mxu0 0
      %6889 = vmatpush1.bf16.msra.mxu0 %v6428
      %6890 = vmatprep.subr.bf16.mxu0 0
      %6891 = vmatpush1.bf16.msra.mxu0 %v6429
      %6892 = vmatprep.subr.bf16.mxu0 0
      %6893 = vmatpush1.bf16.msra.mxu0 %v6430
      %6894 = vmatprep.subr.bf16.mxu0 0
      %6895 = vmatpush1.bf16.msra.mxu0 %v6431
      %6896 = vmatprep.subr.bf16.mxu0 0
      %6897 = vmatpush1.bf16.msra.mxu0 %v6432
      %6898 = vmatprep.subr.bf16.mxu0 0
      %6899 = vmatpush1.bf16.msra.mxu0 %v6433
      %6900 = vmatprep.subr.bf16.mxu0 0
      %6901 = vmatpush1.bf16.msra.mxu0 %v6434
      %6902 = vmatprep.subr.bf16.mxu0 0
      %6903 = vmatpush1.bf16.msra.mxu0 %v6435
      %6904 = vmatprep.subr.bf16.mxu0 0
      %6905 = vmatpush1.bf16.msra.mxu0 %v6436
      %6906 = vmatprep.subr.bf16.mxu0 0
      %6907 = vmatpush1.bf16.msra.mxu0 %v6437
      %6908 = vmatprep.subr.bf16.mxu0 0
      %6909 = vmatpush1.bf16.msra.mxu0 %v6438
      %6910 = vmatprep.subr.bf16.mxu0 0
      %6911 = vmatpush1.bf16.msra.mxu0 %v6439
      %6912 = vmatprep.subr.bf16.mxu0 0
      %6913 = vmatpush1.bf16.msra.mxu0 %v6440
      %6914 = vmatprep.subr.bf16.mxu0 0
      %6915 = vmatpush1.bf16.msra.mxu0 %v6441
      %6916 = vmatprep.subr.bf16.mxu0 0
      %6917 = vmatpush1.bf16.msra.mxu0 %v6442
      %6918 = vmatprep.subr.bf16.mxu0 0
      %6919 = vmatpush1.bf16.msra.mxu0 %v6443
      %6920 = vmatprep.mubr.bf16.mxu0 %v6263
      %6921 = vmatmul.mubr.bf16.gmra.mrb[0].mxu0 %v6262
      %v6922 = vpop.f32.mrb[0].mxu0
      %v6923 = vadd.f32 %v6842, %v6922
      %v6924 = vpop.f32.mrb[0].mxu0
      %v6925 = vpop.f32.mrb[0].mxu0
      %v6926 = vadd.f32 %v6845, %v6925
      %v6927 = vpop.f32.mrb[0].mxu0
      %6928 = vmatprep.mubr.bf16.mxu0 %v6279
      %6929 = vmatmul.mubr.bf16.gmra.mrb[0].mxu0 %v6278
      %v6930 = vpop.f32.mrb[0].mxu0
      %v6931 = vadd.f32 %v6850, %v6930
      %v6932 = vpop.f32.mrb[0].mxu0
      %v6933 = vpop.f32.mrb[0].mxu0
      %v6934 = vadd.f32 %v6853, %v6933
      %v6935 = vpop.f32.mrb[0].mxu0
      %6936 = vmatprep.mubr.bf16.mxu0 %v6295
      %6937 = vmatmul.mubr.bf16.gmra.mrb[0].mxu0 %v6294
      %v6938 = vpop.f32.mrb[0].mxu0
      %v6939 = vadd.f32 %v6858, %v6938
      %v6940 = vpop.f32.mrb[0].mxu0
      %v6941 = vpop.f32.mrb[0].mxu0
      %v6942 = vadd.f32 %v6861, %v6941
      %v6943 = vpop.f32.mrb[0].mxu0
      %6944 = vmatprep.mubr.bf16.mxu0 %v6311
      %6945 = vmatmul.mubr.bf16.gmra.mrb[0].mxu0 %v6310
      %v6946 = vpop.f32.mrb[0].mxu0
      %v6947 = vadd.f32 %v6866, %v6946
      %v6948 = vpop.f32.mrb[0].mxu0
      %v6949 = vpop.f32.mrb[0].mxu0
      %v6950 = vadd.f32 %v6869, %v6949
      %v6951 = vpop.f32.mrb[0].mxu0
      %6952 = vmatprep.mubr.bf16.mxu0 %v6327
      %6953 = vmatmul.mubr.bf16.gmra.mrb[0].mxu0 %v6326
      %v6954 = vpop.f32.mrb[0].mxu0
      %v6955 = vadd.f32 %v6874, %v6954
      %v6956 = vpop.f32.mrb[0].mxu0
      %v6957 = vpop.f32.mrb[0].mxu0
      %v6958 = vadd.f32 %v6877, %v6957
      %v6959 = vpop.f32.mrb[0].mxu0
      %6960 = vmatprep.mubr.bf16.mxu0 %v6343
      %6961 = vmatmul.mubr.bf16.gmra.mrb[0].mxu0 %v6342
      %v6962 = vpop.f32.mrb[0].mxu0
      %v6963 = vadd.f32 %v6882, %v6962
      %v6964 = vpop.f32.mrb[0].mxu0
      %v6965 = vpop.f32.mrb[0].mxu0
      %v6966 = vadd.f32 %v6885, %v6965
      %v6967 = vpop.f32.mrb[0].mxu0
      %6968 = vdwg.mxu0
      %6969 = vmatprep.subr.bf16.mxu0 0
      %6970 = vmatpush1.bf16.msra.mxu0 %v6444
      %6971 = vmatprep.subr.bf16.mxu0 0
      %6972 = vmatpush1.bf16.msra.mxu0 %v6445
      %6973 = vmatprep.subr.bf16.mxu0 0
      %6974 = vmatpush1.bf16.msra.mxu0 %v6446
      %6975 = vmatprep.subr.bf16.mxu0 0
      %6976 = vmatpush1.bf16.msra.mxu0 %v6447
      %6977 = vmatprep.subr.bf16.mxu0 0
      %6978 = vmatpush1.bf16.msra.mxu0 %v6448
      %6979 = vmatprep.subr.bf16.mxu0 0
      %6980 = vmatpush1.bf16.msra.mxu0 %v6449
      %6981 = vmatprep.subr.bf16.mxu0 0
      %6982 = vmatpush1.bf16.msra.mxu0 %v6450
      %6983 = vmatprep.subr.bf16.mxu0 0
      %6984 = vmatpush1.bf16.msra.mxu0 %v6451
      %6985 = vmatprep.subr.bf16.mxu0 0
      %6986 = vmatpush1.bf16.msra.mxu0 %v6452
      %6987 = vmatprep.subr.bf16.mxu0 0
      %6988 = vmatpush1.bf16.msra.mxu0 %v6453
      %6989 = vmatprep.subr.bf16.mxu0 0
      %6990 = vmatpush1.bf16.msra.mxu0 %v6454
      %6991 = vmatprep.subr.bf16.mxu0 0
      %6992 = vmatpush1.bf16.msra.mxu0 %v6455
      %6993 = vmatprep.subr.bf16.mxu0 0
      %6994 = vmatpush1.bf16.msra.mxu0 %v6456
      %6995 = vmatprep.subr.bf16.mxu0 0
      %6996 = vmatpush1.bf16.msra.mxu0 %v6457
      %6997 = vmatprep.subr.bf16.mxu0 0
      %6998 = vmatpush1.bf16.msra.mxu0 %v6458
      %6999 = vmatprep.subr.bf16.mxu0 0
      %7000 = vmatpush1.bf16.msra.mxu0 %v6459
      %7001 = vmatprep.mubr.bf16.mxu0 %v6265
      %7002 = vmatmul.mubr.bf16.gmra.mrb[0].mxu0 %v6264
      %v7003 = vpop.f32.mrb[0].mxu0
      %v7004 = vadd.f32 %v6923, %v7003
      %v7005 = vpop.f32.mrb[0].mxu0
      %v7006 = vpop.f32.mrb[0].mxu0
      %v7007 = vadd.f32 %v6926, %v7006
      %v7008 = vpop.f32.mrb[0].mxu0
      %7009 = vmatprep.mubr.bf16.mxu0 %v6281
      %7010 = vmatmul.mubr.bf16.gmra.mrb[0].mxu0 %v6280
      %v7011 = vpop.f32.mrb[0].mxu0
      %v7012 = vadd.f32 %v6931, %v7011
      %v7013 = vpop.f32.mrb[0].mxu0
      %v7014 = vpop.f32.mrb[0].mxu0
      %v7015 = vadd.f32 %v6934, %v7014
      %v7016 = vpop.f32.mrb[0].mxu0
      %7017 = vmatprep.mubr.bf16.mxu0 %v6297
      %7018 = vmatmul.mubr.bf16.gmra.mrb[0].mxu0 %v6296
      %v7019 = vpop.f32.mrb[0].mxu0
      %v7020 = vadd.f32 %v6939, %v7019
      %v7021 = vpop.f32.mrb[0].mxu0
      %v7022 = vpop.f32.mrb[0].mxu0
      %v7023 = vadd.f32 %v6942, %v7022
      %v7024 = vpop.f32.mrb[0].mxu0
      %7025 = vmatprep.mubr.bf16.mxu0 %v6313
      %7026 = vmatmul.mubr.bf16.gmra.mrb[0].mxu0 %v6312
      %v7027 = vpop.f32.mrb[0].mxu0
      %v7028 = vadd.f32 %v6947, %v7027
      %v7029 = vpop.f32.mrb[0].mxu0
      %v7030 = vpop.f32.mrb[0].mxu0
      %v7031 = vadd.f32 %v6950, %v7030
      %v7032 = vpop.f32.mrb[0].mxu0
      %7033 = vmatprep.mubr.bf16.mxu0 %v6329
      %7034 = vmatmul.mubr.bf16.gmra.mrb[0].mxu0 %v6328
      %v7035 = vpop.f32.mrb[0].mxu0
      %v7036 = vadd.f32 %v6955, %v7035
      %v7037 = vpop.f32.mrb[0].mxu0
      %v7038 = vpop.f32.mrb[0].mxu0
      %v7039 = vadd.f32 %v6958, %v7038
      %v7040 = vpop.f32.mrb[0].mxu0
      %7041 = vmatprep.mubr.bf16.mxu0 %v6345
      %7042 = vmatmul.mubr.bf16.gmra.mrb[0].mxu0 %v6344
      %v7043 = vpop.f32.mrb[0].mxu0
      %v7044 = vadd.f32 %v6963, %v7043
      %v7045 = vpop.f32.mrb[0].mxu0
      %v7046 = vpop.f32.mrb[0].mxu0
      %v7047 = vadd.f32 %v6966, %v7046
      %v7048 = vpop.f32.mrb[0].mxu0
      %7049 = vdwg.mxu0
      %7050 = vmatprep.subr.bf16.mxu0 0
      %7051 = vmatpush1.bf16.msra.mxu0 %v6460
      %7052 = vmatprep.subr.bf16.mxu0 0
      %7053 = vmatpush1.bf16.msra.mxu0 %v6461
      %7054 = vmatprep.subr.bf16.mxu0 0
      %7055 = vmatpush1.bf16.msra.mxu0 %v6462
      %7056 = vmatprep.subr.bf16.mxu0 0
      %7057 = vmatpush1.bf16.msra.mxu0 %v6463
      %7058 = vmatprep.subr.bf16.mxu0 0
      %7059 = vmatpush1.bf16.msra.mxu0 %v6464
      %7060 = vmatprep.subr.bf16.mxu0 0
      %7061 = vmatpush1.bf16.msra.mxu0 %v6465
      %7062 = vmatprep.subr.bf16.mxu0 0
      %7063 = vmatpush1.bf16.msra.mxu0 %v6466
      %7064 = vmatprep.subr.bf16.mxu0 0
      %7065 = vmatpush1.bf16.msra.mxu0 %v6467
      %7066 = vmatprep.subr.bf16.mxu0 0
      %7067 = vmatpush1.bf16.msra.mxu0 %v6468
      %7068 = vmatprep.subr.bf16.mxu0 0
      %7069 = vmatpush1.bf16.msra.mxu0 %v6469
      %7070 = vmatprep.subr.bf16.mxu0 0
      %7071 = vmatpush1.bf16.msra.mxu0 %v6470
      %7072 = vmatprep.subr.bf16.mxu0 0
      %7073 = vmatpush1.bf16.msra.mxu0 %v6471
      %7074 = vmatprep.subr.bf16.mxu0 0
      %7075 = vmatpush1.bf16.msra.mxu0 %v6472
      %7076 = vmatprep.subr.bf16.mxu0 0
      %7077 = vmatpush1.bf16.msra.mxu0 %v6473
      %7078 = vmatprep.subr.bf16.mxu0 0
      %7079 = vmatpush1.bf16.msra.mxu0 %v6474
      %7080 = vmatprep.subr.bf16.mxu0 0
      %7081 = vmatpush1.bf16.msra.mxu0 %v6475
      %7082 = vmatprep.mubr.bf16.mxu0 %v6267
      %7083 = vmatmul.mubr.bf16.gmra.mrb[0].mxu0 %v6266
      %v7084 = vpop.f32.mrb[0].mxu0
      %v7085 = vadd.f32 %v7004, %v7084
      %v7086 = vpop.f32.mrb[0].mxu0
      %v7087 = vpop.f32.mrb[0].mxu0
      %v7088 = vadd.f32 %v7007, %v7087
      %v7089 = vpop.f32.mrb[0].mxu0
      %7090 = vmatprep.mubr.bf16.mxu0 %v6283
      %7091 = vmatmul.mubr.bf16.gmra.mrb[0].mxu0 %v6282
      %v7092 = vpop.f32.mrb[0].mxu0
      %v7093 = vadd.f32 %v7012, %v7092
      %v7094 = vpop.f32.mrb[0].mxu0
      %v7095 = vpop.f32.mrb[0].mxu0
      %v7096 = vadd.f32 %v7015, %v7095
      %v7097 = vpop.f32.mrb[0].mxu0
      %7098 = vmatprep.mubr.bf16.mxu0 %v6299
      %7099 = vmatmul.mubr.bf16.gmra.mrb[0].mxu0 %v6298
      %v7100 = vpop.f32.mrb[0].mxu0
      %v7101 = vadd.f32 %v7020, %v7100
      %v7102 = vpop.f32.mrb[0].mxu0
      %v7103 = vpop.f32.mrb[0].mxu0
      %v7104 = vadd.f32 %v7023, %v7103
      %v7105 = vpop.f32.mrb[0].mxu0
      %7106 = vmatprep.mubr.bf16.mxu0 %v6315
      %7107 = vmatmul.mubr.bf16.gmra.mrb[0].mxu0 %v6314
      %v7108 = vpop.f32.mrb[0].mxu0
      %v7109 = vadd.f32 %v7028, %v7108
      %v7110 = vpop.f32.mrb[0].mxu0
      %v7111 = vpop.f32.mrb[0].mxu0
      %v7112 = vadd.f32 %v7031, %v7111
      %v7113 = vpop.f32.mrb[0].mxu0
      %7114 = vmatprep.mubr.bf16.mxu0 %v6331
      %7115 = vmatmul.mubr.bf16.gmra.mrb[0].mxu0 %v6330
      %v7116 = vpop.f32.mrb[0].mxu0
      %v7117 = vadd.f32 %v7036, %v7116
      %v7118 = vpop.f32.mrb[0].mxu0
      %v7119 = vpop.f32.mrb[0].mxu0
      %v7120 = vadd.f32 %v7039, %v7119
      %v7121 = vpop.f32.mrb[0].mxu0
      %7122 = vmatprep.mubr.bf16.mxu0 %v6347
      %7123 = vmatmul.mubr.bf16.gmra.mrb[0].mxu0 %v6346
      %v7124 = vpop.f32.mrb[0].mxu0
      %v7125 = vadd.f32 %v7044, %v7124
      %v7126 = vpop.f32.mrb[0].mxu0
      %v7127 = vpop.f32.mrb[0].mxu0
      %v7128 = vadd.f32 %v7047, %v7127
      %v7129 = vpop.f32.mrb[0].mxu0
      %7130 = vdwg.mxu0
      %v7131 = vadd.f32 %v4748, %v7085
      %v7132 = vadd.f32 %v4749, %v7088
      %v7133 = vadd.f32 %v4750, %v7093
      %v7134 = vadd.f32 %v4751, %v7096
      %v7135 = vadd.f32 %v4752, %v7101
      %v7136 = vadd.f32 %v4753, %v7104
      %v7137 = vadd.f32 %v4754, %v7109
      %v7138 = vadd.f32 %v4755, %v7112
      %v7139 = vadd.f32 %v4756, %v7117
      %v7140 = vadd.f32 %v4757, %v7120
      %v7141 = vadd.f32 %v4758, %v7125
      %v7142 = vadd.f32 %v4759, %v7128
      %v7143 = vld [vmem:[%s12] sm:$0x1]
      %v7144 = vld [vmem:[%s13] sm:$0x1]
      %v7145 = vsel %vm535, %v7131, 0.0
      %7146 = vadd.xlane.f32.xlu0 %v7145
      %v7147 = vpop.xlane.xlu0 %7146
      %v7148 = vsel %vm535, %v7132, 0.0
      %7149 = vadd.xlane.f32.xlu0 %v7148
      %v7150 = vpop.xlane.xlu0 %7149
      %v7151 = vsel %vm535, %v7133, 0.0
      %7152 = vadd.xlane.f32.xlu0 %v7151
      %v7153 = vpop.xlane.xlu0 %7152
      %v7154 = vsel %vm535, %v7134, 0.0
      %7155 = vadd.xlane.f32.xlu0 %v7154
      %v7156 = vpop.xlane.xlu0 %7155
      %v7157 = vsel %vm535, %v7135, 0.0
      %7158 = vadd.xlane.f32.xlu0 %v7157
      %v7159 = vpop.xlane.xlu0 %7158
      %v7160 = vsel %vm535, %v7136, 0.0
      %7161 = vadd.xlane.f32.xlu0 %v7160
      %v7162 = vpop.xlane.xlu0 %7161
      %v7163 = vsel %vm535, %v7137, 0.0
      %7164 = vadd.xlane.f32.xlu0 %v7163
      %v7165 = vpop.xlane.xlu0 %7164
      %v7166 = vsel %vm535, %v7138, 0.0
      %7167 = vadd.xlane.f32.xlu0 %v7166
      %v7168 = vpop.xlane.xlu0 %7167
      %v7169 = vsel %vm535, %v7139, 0.0
      %7170 = vadd.xlane.f32.xlu0 %v7169
      %v7171 = vpop.xlane.xlu0 %7170
      %v7172 = vsel %vm535, %v7140, 0.0
      %7173 = vadd.xlane.f32.xlu0 %v7172
      %v7174 = vpop.xlane.xlu0 %7173
      %v7175 = vsel %vm535, %v7141, 0.0
      %7176 = vadd.xlane.f32.xlu0 %v7175
      %v7177 = vpop.xlane.xlu0 %7176
      %v7178 = vsel %vm535, %v7142, 0.0
      %7179 = vadd.xlane.f32.xlu0 %v7178
      %v7180 = vpop.xlane.xlu0 %7179
      %v7181 = vmul.f32 %v7147, %v4603
      %v7182 = vmul.f32 %v7150, %v4603
      %v7183 = vmul.f32 %v7153, %v4603
      %v7184 = vmul.f32 %v7156, %v4603
      %v7185 = vmul.f32 %v7159, %v4603
      %v7186 = vmul.f32 %v7162, %v4603
      %v7187 = vmul.f32 %v7165, %v4603
      %v7188 = vmul.f32 %v7168, %v4603
      %v7189 = vmul.f32 %v7171, %v4603
      %v7190 = vmul.f32 %v7174, %v4603
      %v7191 = vmul.f32 %v7177, %v4603
      %v7192 = vmul.f32 %v7180, %v4603
      %v7193 = vsub.f32 %v7131, %v7181
      %v7194 = vsub.f32 %v7132, %v7182
      %v7195 = vsub.f32 %v7133, %v7183
      %v7196 = vsub.f32 %v7134, %v7184
      %v7197 = vsub.f32 %v7135, %v7185
      %v7198 = vsub.f32 %v7136, %v7186
      %v7199 = vsub.f32 %v7137, %v7187
      %v7200 = vsub.f32 %v7138, %v7188
      %v7201 = vsub.f32 %v7139, %v7189
      %v7202 = vsub.f32 %v7140, %v7190
      %v7203 = vsub.f32 %v7141, %v7191
      %v7204 = vsub.f32 %v7142, %v7192
      %v7205 = vmul.f32 %v7193, %v7193
      %v7206 = vmul.f32 %v7194, %v7194
      %v7207 = vmul.f32 %v7195, %v7195
      %v7208 = vmul.f32 %v7196, %v7196
      %v7209 = vmul.f32 %v7197, %v7197
      %v7210 = vmul.f32 %v7198, %v7198
      %v7211 = vmul.f32 %v7199, %v7199
      %v7212 = vmul.f32 %v7200, %v7200
      %v7213 = vmul.f32 %v7201, %v7201
      %v7214 = vmul.f32 %v7202, %v7202
      %v7215 = vmul.f32 %v7203, %v7203
      %v7216 = vmul.f32 %v7204, %v7204
      %v7217 = vsel %vm535, %v7205, 0.0
      %7218 = vadd.xlane.f32.xlu0 %v7217
      %v7219 = vpop.xlane.xlu0 %7218
      %v7220 = vsel %vm535, %v7206, 0.0
      %7221 = vadd.xlane.f32.xlu0 %v7220
      %v7222 = vpop.xlane.xlu0 %7221
      %v7223 = vsel %vm535, %v7207, 0.0
      %7224 = vadd.xlane.f32.xlu0 %v7223
      %v7225 = vpop.xlane.xlu0 %7224
      %v7226 = vsel %vm535, %v7208, 0.0
      %7227 = vadd.xlane.f32.xlu0 %v7226
      %v7228 = vpop.xlane.xlu0 %7227
      %v7229 = vsel %vm535, %v7209, 0.0
      %7230 = vadd.xlane.f32.xlu0 %v7229
      %v7231 = vpop.xlane.xlu0 %7230
      %v7232 = vsel %vm535, %v7210, 0.0
      %7233 = vadd.xlane.f32.xlu0 %v7232
      %v7234 = vpop.xlane.xlu0 %7233
      %v7235 = vsel %vm535, %v7211, 0.0
      %7236 = vadd.xlane.f32.xlu0 %v7235
      %v7237 = vpop.xlane.xlu0 %7236
      %v7238 = vsel %vm535, %v7212, 0.0
      %7239 = vadd.xlane.f32.xlu0 %v7238
      %v7240 = vpop.xlane.xlu0 %7239
      %v7241 = vsel %vm535, %v7213, 0.0
      %7242 = vadd.xlane.f32.xlu0 %v7241
      %v7243 = vpop.xlane.xlu0 %7242
      %v7244 = vsel %vm535, %v7214, 0.0
      %7245 = vadd.xlane.f32.xlu0 %v7244
      %v7246 = vpop.xlane.xlu0 %7245
      %v7247 = vsel %vm535, %v7215, 0.0
      %7248 = vadd.xlane.f32.xlu0 %v7247
      %v7249 = vpop.xlane.xlu0 %7248
      %v7250 = vsel %vm535, %v7216, 0.0
      %7251 = vadd.xlane.f32.xlu0 %v7250
      %v7252 = vpop.xlane.xlu0 %7251
      %v7253 = vmul.f32 %v7219, %v4603
      %v7254 = vmul.f32 %v7222, %v4603
      %v7255 = vmul.f32 %v7225, %v4603
      %v7256 = vmul.f32 %v7228, %v4603
      %v7257 = vmul.f32 %v7231, %v4603
      %v7258 = vmul.f32 %v7234, %v4603
      %v7259 = vmul.f32 %v7237, %v4603
      %v7260 = vmul.f32 %v7240, %v4603
      %v7261 = vmul.f32 %v7243, %v4603
      %v7262 = vmul.f32 %v7246, %v4603
      %v7263 = vmul.f32 %v7249, %v4603
      %v7264 = vmul.f32 %v7252, %v4603
      %v7265 = vadd.f32 %v7253, 1e-05
      %v7266 = vadd.f32 %v7254, 1e-05
      %v7267 = vadd.f32 %v7255, 1e-05
      %v7268 = vadd.f32 %v7256, 1e-05
      %v7269 = vadd.f32 %v7257, 1e-05
      %v7270 = vadd.f32 %v7258, 1e-05
      %v7271 = vadd.f32 %v7259, 1e-05
      %v7272 = vadd.f32 %v7260, 1e-05
      %v7273 = vadd.f32 %v7261, 1e-05
      %v7274 = vadd.f32 %v7262, 1e-05
      %v7275 = vadd.f32 %v7263, 1e-05
      %v7276 = vadd.f32 %v7264, 1e-05
      %v7277 = vrsqrt.pop %v7265
      %v7278 = vrsqrt.pop %v7266
      %v7279 = vrsqrt.pop %v7267
      %v7280 = vrsqrt.pop %v7268
      %v7281 = vrsqrt.pop %v7269
      %v7282 = vrsqrt.pop %v7270
      %v7283 = vrsqrt.pop %v7271
      %v7284 = vrsqrt.pop %v7272
      %v7285 = vrsqrt.pop %v7273
      %v7286 = vrsqrt.pop %v7274
      %v7287 = vrsqrt.pop %v7275
      %v7288 = vrsqrt.pop %v7276
      %v7289 = vmul.f32 %v7193, %v7277
      %v7290 = vmul.f32 %v7194, %v7278
      %v7291 = vmul.f32 %v7195, %v7279
      %v7292 = vmul.f32 %v7196, %v7280
      %v7293 = vmul.f32 %v7197, %v7281
      %v7294 = vmul.f32 %v7198, %v7282
      %v7295 = vmul.f32 %v7199, %v7283
      %v7296 = vmul.f32 %v7200, %v7284
      %v7297 = vmul.f32 %v7201, %v7285
      %v7298 = vmul.f32 %v7202, %v7286
      %v7299 = vmul.f32 %v7203, %v7287
      %v7300 = vmul.f32 %v7204, %v7288
      %v7302 = vlaneseq
      %v7303 = vshrl.u32 %v7302, 7
      %v7304 = vsub.s32 0, %v7303
      %v7305 = vrot.slane %v7143, %v7304
      %v7307 = vmul.f32 %v7289, %v7305
      %v7308 = vmul.f32 %v7290, %v7305
      %v7309 = vmul.f32 %v7291, %v7305
      %v7310 = vmul.f32 %v7292, %v7305
      %v7311 = vmul.f32 %v7293, %v7305
      %v7312 = vmul.f32 %v7294, %v7305
      %v7313 = vmul.f32 %v7295, %v7305
      %v7314 = vmul.f32 %v7296, %v7305
      %v7315 = vmul.f32 %v7297, %v7305
      %v7316 = vmul.f32 %v7298, %v7305
      %v7317 = vmul.f32 %v7299, %v7305
      %v7318 = vmul.f32 %v7300, %v7305
      %v7320 = vlaneseq
      %v7321 = vshrl.u32 %v7320, 7
      %v7322 = vsub.s32 0, %v7321
      %v7323 = vrot.slane %v7144, %v7322
      %v7325 = vadd.f32 %v7307, %v7323
      %v7326 = vadd.f32 %v7308, %v7323
      %v7327 = vadd.f32 %v7309, %v7323
      %v7328 = vadd.f32 %v7310, %v7323
      %v7329 = vadd.f32 %v7311, %v7323
      %v7330 = vadd.f32 %v7312, %v7323
      %v7331 = vadd.f32 %v7313, %v7323
      %v7332 = vadd.f32 %v7314, %v7323
      %v7333 = vadd.f32 %v7315, %v7323
      %v7334 = vadd.f32 %v7316, %v7323
      %v7335 = vadd.f32 %v7317, %v7323
      %v7336 = vadd.f32 %v7318, %v7323
      %v7349 = vcombine.high %v7325, %v7325
      %v7350 = vcombine.high %v7326, %v7326
      %v7351 = vcombine.high %v7327, %v7327
      %v7352 = vcombine.high %v7328, %v7328
      %v7353 = vcombine.high %v7329, %v7329
      %v7354 = vcombine.high %v7330, %v7330
      %v7355 = vcombine.high %v7331, %v7331
      %v7356 = vcombine.high %v7332, %v7332
      %v7357 = vcombine.high %v7333, %v7333
      %v7358 = vcombine.high %v7334, %v7334
      %v7359 = vcombine.high %v7335, %v7335
      %v7360 = vcombine.high %v7336, %v7336
      %v7365 = vcombine.low %v7325, %v7349
      %v7366 = vcombine.low %v7350, %v7327
      %v7367 = vcombine.low %v7328, %v7352
      %v7368 = vcombine.low %v7353, %v7330
      %v7369 = vcombine.low %v7331, %v7355
      %v7370 = vcombine.low %v7356, %v7333
      %v7371 = vcombine.low %v7334, %v7358
      %v7372 = vcombine.low %v7359, %v7336
      %v7381 = vsel %vm535, %v7365, 0.0
      %vm7382 = vcmask 519168
      %v7383 = vsel %vm7382, %v7326, 0.0
      %v7384 = vadd.f32 %v7381, %v7383
      %v7385 = vrot.slane %v7384, 4
      %v7386 = vadd.f32 %v7384, %v7385
      %v7387 = vrot.slane %v7386, 2
      %v7388 = vadd.f32 %v7386, %v7387
      %v7389 = vrot.slane %v7388, 1
      %v7390 = vadd.f32 %v7388, %v7389
      %v7391 = vsel %vm535, %v7366, 0.0
      %v7392 = vsel %vm7382, %v7351, 0.0
      %v7393 = vadd.f32 %v7391, %v7392
      %v7394 = vrot.slane %v7393, 4
      %v7395 = vadd.f32 %v7393, %v7394
      %v7396 = vrot.slane %v7395, 2
      %v7397 = vadd.f32 %v7395, %v7396
      %v7398 = vrot.slane %v7397, 1
      %v7399 = vadd.f32 %v7397, %v7398
      %v7400 = vsel %vm535, %v7367, 0.0
      %v7401 = vsel %vm7382, %v7329, 0.0
      %v7402 = vadd.f32 %v7400, %v7401
      %v7403 = vrot.slane %v7402, 4
      %v7404 = vadd.f32 %v7402, %v7403
      %v7405 = vrot.slane %v7404, 2
      %v7406 = vadd.f32 %v7404, %v7405
      %v7407 = vrot.slane %v7406, 1
      %v7408 = vadd.f32 %v7406, %v7407
      %v7409 = vsel %vm535, %v7368, 0.0
      %v7410 = vsel %vm7382, %v7354, 0.0
      %v7411 = vadd.f32 %v7409, %v7410
      %v7412 = vrot.slane %v7411, 4
      %v7413 = vadd.f32 %v7411, %v7412
      %v7414 = vrot.slane %v7413, 2
      %v7415 = vadd.f32 %v7413, %v7414
      %v7416 = vrot.slane %v7415, 1
      %v7417 = vadd.f32 %v7415, %v7416
      %v7418 = vsel %vm535, %v7369, 0.0
      %v7419 = vsel %vm7382, %v7332, 0.0
      %v7420 = vadd.f32 %v7418, %v7419
      %v7421 = vrot.slane %v7420, 4
      %v7422 = vadd.f32 %v7420, %v7421
      %v7423 = vrot.slane %v7422, 2
      %v7424 = vadd.f32 %v7422, %v7423
      %v7425 = vrot.slane %v7424, 1
      %v7426 = vadd.f32 %v7424, %v7425
      %v7427 = vsel %vm535, %v7370, 0.0
      %v7428 = vsel %vm7382, %v7357, 0.0
      %v7429 = vadd.f32 %v7427, %v7428
      %v7430 = vrot.slane %v7429, 4
      %v7431 = vadd.f32 %v7429, %v7430
      %v7432 = vrot.slane %v7431, 2
      %v7433 = vadd.f32 %v7431, %v7432
      %v7434 = vrot.slane %v7433, 1
      %v7435 = vadd.f32 %v7433, %v7434
      %v7436 = vsel %vm535, %v7371, 0.0
      %v7437 = vsel %vm7382, %v7335, 0.0
      %v7438 = vadd.f32 %v7436, %v7437
      %v7439 = vrot.slane %v7438, 4
      %v7440 = vadd.f32 %v7438, %v7439
      %v7441 = vrot.slane %v7440, 2
      %v7442 = vadd.f32 %v7440, %v7441
      %v7443 = vrot.slane %v7442, 1
      %v7444 = vadd.f32 %v7442, %v7443
      %v7445 = vsel %vm535, %v7372, 0.0
      %v7446 = vsel %vm7382, %v7360, 0.0
      %v7447 = vadd.f32 %v7445, %v7446
      %v7448 = vrot.slane %v7447, 4
      %v7449 = vadd.f32 %v7447, %v7448
      %v7450 = vrot.slane %v7449, 2
      %v7451 = vadd.f32 %v7449, %v7450
      %v7452 = vrot.slane %v7451, 1
      %v7453 = vadd.f32 %v7451, %v7452
      %v7454 = vrcp.pop 12.0
      %v7455 = vmul.f32 %v7390, %v7454
      %v7456 = vmul.f32 %v7399, %v7454
      %v7457 = vmul.f32 %v7408, %v7454
      %v7458 = vmul.f32 %v7417, %v7454
      %v7459 = vmul.f32 %v7426, %v7454
      %v7460 = vmul.f32 %v7435, %v7454
      %v7461 = vmul.f32 %v7444, %v7454
      %v7462 = vmul.f32 %v7453, %v7454
      %vm7471 = vcmask 1041409
      %v7472 = vsel %vm7471, %v7456, %v7455
      %vm7473 = vcmask 1042434
      %v7474 = vsel %vm7473, %v7457, %v7472
      %vm7475 = vcmask 1043459
      %v7476 = vsel %vm7475, %v7458, %v7474
      %vm7477 = vcmask 1044484
      %v7478 = vsel %vm7477, %v7459, %v7476
      %vm7479 = vcmask 1045509
      %v7480 = vsel %vm7479, %v7460, %v7478
      %vm7481 = vcmask 1046534
      %v7482 = vsel %vm7481, %v7461, %v7480
      %vm7483 = vcmask 1047559
      %v7484 = vsel %vm7483, %v7462, %v7482
      %7486 = vst.msk [vmem:[%s467] sm:$0xff] %vm535, %v7484
      %p7487 = scmp.lt.s32.totalorder %s25, 1
      %s7488 = scalar_select %p7487, %s25, 1
      %s7489 = smul.addr %s7488, 8
      %s7490 = scalar_lea.vmem %s14, %s7489
      // Predicated region
      $region77: #{mrkgcn_forward.4} parent=75 // pred_check
        %p7491 = pneg %p342
      $region78: #{mrkgcn_forward.4} parent=75 // pred_check_branch
        %7493 = sbr.rel (%p7491) target = $region80
      $region79: #{mrkgcn_forward.4} parent=75 // pred_region
        _
      $region80: #{mrkgcn_forward.4} parent=75 // pred_fallthru
        _
    $region76: #{mrkgcn_forward.4} parent=5 // pred_fallthru
      _
    %p7494 = scmp.le.s32.totalorder 2, %s20
    // Predicated region
    $region81: #{mrkgcn_forward.4} parent=5 // pred_check
      %p7495 = pneg %p7494
    $region82: #{mrkgcn_forward.4} parent=5 // pred_check_branch
      %7497 = sbr.rel (%p7495) target = $region84
    $region83: #{mrkgcn_forward.4} parent=5 // pred_region
      %s7498 = ssub.s32 %s20, 2
      // Predicated region
      $region85: #{mrkgcn_forward.4} parent=83 // pred_check
        %p7499 = pneg %p348
      $region86: #{mrkgcn_forward.4} parent=83 // pred_check_branch
        %7501 = sbr.rel (%p7499) target = $region88
      $region87: #{mrkgcn_forward.4} parent=83 // pred_region
        %p7502 = scmp.lt.s32.totalorder %s26, 1
        %s7503 = scalar_select %p7502, %s26, 1
        %s7504 = smul.addr %s7503, 8
        %s7505 = scalar_lea.vmem %s14, %s7504
      $region88: #{mrkgcn_forward.4} parent=83 // pred_fallthru
        _
    $region84: #{mrkgcn_forward.4} parent=5 // pred_fallthru
      _
  $region6: #{mrkgcn_forward.4} parent=0 // loop_footer
    %s24 = sadd.s32 1, %s20
  $region7: #{mrkgcn_forward.4} parent=0 // loop_footer_branch
    %19 = sbr.rel target = $region3
  $region8: #{mrkgcn_forward.4} parent=0 // loop_exit
    _

</llo_original>
